<compile_context>
chip_gen: v6e
topology: v6e:2x2x1
jax: 0.10.0
libtpu: 0.0.40
codegen_flags: <defaults>
</compile_context>

<pallas_src>
import math

import jax
import jax.numpy as jnp
from jax.experimental import pallas as pl
from jax.experimental.pallas import tpu as pltpu


# ---------------------------------------------------------------------------
# In-kernel helpers (traced inside the Pallas kernel body)
# ---------------------------------------------------------------------------

def _dense_relu(x2d_bf16, w_ref, b_ref):
    """(M, Cin) bf16 @ (Cin, Cout) bf16 -> f32, + bias, ReLU."""
    y = jnp.dot(x2d_bf16, w_ref[...], preferred_element_type=jnp.float32)
    return jnp.maximum(y + b_ref[...], 0.0)


def _conv_same_relu(s_hwc_bf16, w_ref, b_ref):
    """KxK stride-1 'same' conv + bias + ReLU via K*K accumulating MXU dots.

    s_hwc_bf16: (H, W, C)      bf16 activation (full spatial extent in VMEM)
    w_ref:      (K*K, C, Cout) bf16 per-tap weights (tap index = di*K + dj)
    b_ref:      (1, Cout)      f32
    returns:    (H*W, Cout)    f32
    """
    h, w, c = s_hwc_bf16.shape
    kk, _, cout = w_ref.shape
    k = int(round(math.sqrt(kk)))
    p = (k - 1) // 2

    # Zero halo built once in VMEM (no HBM-side padded copies, no im2col blow-up).
    zr = jnp.zeros((p, w, c), s_hwc_bf16.dtype)
    sp = jnp.concatenate([zr, s_hwc_bf16, zr], axis=0)          # (H+2p, W,    C)
    zc = jnp.zeros((h + 2 * p, p, c), sp.dtype)
    sp = jnp.concatenate([zc, sp, zc], axis=1)                  # (H+2p, W+2p, C)

    acc = jnp.zeros((h * w, cout), jnp.float32)
    for t in range(kk):                                         # unrolled; kk is 9 or 25
        di, dj = t // k, t % k
        tap = sp[di:di + h, dj:dj + w, :].reshape(h * w, c)
        acc = acc + jnp.dot(tap, w_ref[t], preferred_element_type=jnp.float32)
    return jnp.maximum(acc + b_ref[...], 0.0)


def _maxpool3x3_same(x_hwc):
    """3x3 / stride-1 / pad-1 max pool, separable; replicate-edge == -inf pad."""
    up = jnp.concatenate([x_hwc[:1], x_hwc[:-1]], axis=0)
    dn = jnp.concatenate([x_hwc[1:], x_hwc[-1:]], axis=0)
    v = jnp.maximum(jnp.maximum(up, x_hwc), dn)
    lf = jnp.concatenate([v[:, :1], v[:, :-1]], axis=1)
    rt = jnp.concatenate([v[:, 1:], v[:, -1:]], axis=1)
    return jnp.maximum(jnp.maximum(lf, v), rt)


# ---------------------------------------------------------------------------
# Fused Inception kernel: one batch image per grid step
# ---------------------------------------------------------------------------

def _inception_kernel(x_ref, w1_ref, b1_ref, w21_ref, b21_ref, w22_ref, b22_ref,
                      w31_ref, b31_ref, w32_ref, b32_ref, w4_ref, b4_ref, o_ref):
    x = x_ref[0]                                          # (H, W, Cin) bf16
    h, w, cin = x.shape
    m = h * w
    x2d = x.reshape(m, cin)

    # Branch 1: 1x1 conv + ReLU.
    p1 = _dense_relu(x2d, w1_ref, b1_ref)                 # (M, out1) f32

    # Branch 2: 1x1 conv + ReLU -> 3x3 'same' conv + ReLU.
    s2 = _dense_relu(x2d, w21_ref, b21_ref).astype(jnp.bfloat16).reshape(h, w, -1)
    p2 = _conv_same_relu(s2, w22_ref, b22_ref)            # (M, out2[1]) f32

    # Branch 3: 1x1 conv + ReLU -> 5x5 'same' conv + ReLU.
    s3 = _dense_relu(x2d, w31_ref, b31_ref).astype(jnp.bfloat16).reshape(h, w, -1)
    p3 = _conv_same_relu(s3, w32_ref, b32_ref)            # (M, out3[1]) f32

    # Branch 4: 3x3/stride-1 max pool -> 1x1 conv + ReLU.
    # (max commutes with the monotone bf16 cast, so pooling in bf16 is exact.)
    pool = _maxpool3x3_same(x)
    p4 = _dense_relu(pool.reshape(m, cin), w4_ref, b4_ref)  # (M, out4) f32

    # Channel concat of all four branches, one dense store of the final output.
    # TODO(synk): at real GoogLeNet widths, pad each branch to a 128 (v5e) /
    # 256 (v6e/v7x) lane multiple and use per-branch slice stores to avoid the
    # relayout at unaligned lane boundaries.
    out = jnp.concatenate([p1, p2, p3, p4], axis=-1)
    o_ref[0] = out.reshape(h, w, out.shape[-1])


# ---------------------------------------------------------------------------
# Wrapper
# ---------------------------------------------------------------------------

def inception_forward(x_nchw, params):
    """Pallas implementation of Inception.forward; NCHW in, NCHW out (f32)."""
    # NCHW -> NHWC fused with the bf16 cast: one pass over x, and the kernel
    # DMAs half the bytes.
    x = jnp.transpose(x_nchw, (0, 2, 3, 1)).astype(jnp.bfloat16)
    n, h, w, cin = x.shape

    def w1x1(wkey):                                          # (Cin, Cout) bf16
        return params[wkey][:, :, 0, 0].T.astype(jnp.bfloat16)

    def taps(wkey, k):                                       # (K*K, Cin, Cout) bf16
        wt = jnp.transpose(params[wkey], (2, 3, 1, 0))       # (K, K, Cin, Cout)
        return wt.reshape(k * k, wt.shape[2], wt.shape[3]).astype(jnp.bfloat16)

    def brow(bkey):                                          # (1, Cout) f32
        return params[bkey].reshape(1, -1).astype(jnp.float32)

    w1, b1 = w1x1('p1_1_w'), brow('p1_1_b')
    w21, b21 = w1x1('p2_1_w'), brow('p2_1_b')
    w22, b22 = taps('p2_2_w', 3), brow('p2_2_b')
    w31, b31 = w1x1('p3_1_w'), brow('p3_1_b')
    w32, b32 = taps('p3_2_w', 5), brow('p3_2_b')
    w4, b4 = w1x1('p4_2_w'), brow('p4_2_b')

    out1 = w1.shape[1]
    out2b = w22.shape[2]
    out3b = w32.shape[2]
    out4 = w4.shape[1]
    ctot = out1 + out2b + out3b + out4

    def fixed(shape):
        nd = len(shape)
        return pl.BlockSpec(shape, lambda i, _nd=nd: (0,) * _nd)

    y = pl.pallas_call(
        _inception_kernel,
        grid=(n,),
        in_specs=[
            pl.BlockSpec((1, h, w, cin), lambda i: (i, 0, 0, 0)),
            fixed(w1.shape), fixed(b1.shape),
            fixed(w21.shape), fixed(b21.shape),
            fixed(w22.shape), fixed(b22.shape),
            fixed(w31.shape), fixed(b31.shape),
            fixed(w32.shape), fixed(b32.shape),
            fixed(w4.shape), fixed(b4.shape),
        ],
        out_specs=pl.BlockSpec((1, h, w, ctot), lambda i: (i, 0, 0, 0)),
        out_shape=jax.ShapeDtypeStruct((n, h, w, ctot), jnp.float32),
        # Batch axis is "parallel": v7x's two TensorCores split the batch.
        # TODO(synk): for batch==1 on v7x, add a second 'parallel' row-tile axis
        # (with in-kernel halos) so both TensorCores get work.
        compiler_params=pltpu.CompilerParams(dimension_semantics=("parallel",)),
    )(x, w1, b1, w21, b21, w22, b22, w31, b31, w32, b32, w4, b4)

    return jnp.transpose(y, (0, 3, 1, 2))                    # NHWC -> NCHW


def init_inception_params(key, in_channels, out1, out2, out3, out4):
    """Deterministic Conv2d-style (kaiming-uniform-ish) parameter init."""
    def conv_init(k, cout, cin, kh, kw):
        kw_, kb_ = jax.random.split(k)
        bound = 1.0 / jnp.sqrt(float(cin * kh * kw))
        wgt = jax.random.uniform(kw_, (cout, cin, kh, kw), jnp.float32, -bound, bound)
        bia = jax.random.uniform(kb_, (cout,), jnp.float32, -bound, bound)
        return wgt, bia

    keys = jax.random.split(key, 6)
    p = {}
    p['p1_1_w'], p['p1_1_b'] = conv_init(keys[0], out1, in_channels, 1, 1)
    p['p2_1_w'], p['p2_1_b'] = conv_init(keys[1], out2[0], in_channels, 1, 1)
    p['p2_2_w'], p['p2_2_b'] = conv_init(keys[2], out2[1], out2[0], 3, 3)
    p['p3_1_w'], p['p3_1_b'] = conv_init(keys[3], out3[0], in_channels, 1, 1)
    p['p3_2_w'], p['p3_2_b'] = conv_init(keys[4], out3[1], out3[0], 5, 5)
    p['p4_2_w'], p['p4_2_b'] = conv_init(keys[5], out4, in_channels, 1, 1)
    return p


# ---------------------------------------------------------------------------
# Pure-JAX reference (mirrors the kernel's bf16-operand / f32-accum policy)
# ---------------------------------------------------------------------------

def _ref_conv_relu(x_nhwc, w_oihw, b, pad):
    w_hwio = jnp.transpose(w_oihw, (2, 3, 1, 0)).astype(jnp.bfloat16)
    y = jax.lax.conv_general_dilated(
        x_nhwc.astype(jnp.bfloat16), w_hwio, window_strides=(1, 1),
        padding=[(pad, pad), (pad, pad)],
        dimension_numbers=('NHWC', 'HWIO', 'NHWC'),
        preferred_element_type=jnp.float32)
    return jax.nn.relu(y + b.reshape(1, 1, 1, -1).astype(jnp.float32))


def _ref_forward(x_nchw, params):
    x = jnp.transpose(x_nchw, (0, 2, 3, 1)).astype(jnp.float32)
    p1 = _ref_conv_relu(x, params['p1_1_w'], params['p1_1_b'], 0)
    p2 = _ref_conv_relu(_ref_conv_relu(x, params['p2_1_w'], params['p2_1_b'], 0),
                        params['p2_2_w'], params['p2_2_b'], 1)
    p3 = _ref_conv_relu(_ref_conv_relu(x, params['p3_1_w'], params['p3_1_b'], 0),
                        params['p3_2_w'], params['p3_2_b'], 2)
    pooled = jax.lax.reduce_window(x, -jnp.inf, jax.lax.max,
                                   (1, 3, 3, 1), (1, 1, 1, 1),
                                   [(0, 0), (1, 1), (1, 1), (0, 0)])
    p4 = _ref_conv_relu(pooled, params['p4_2_w'], params['p4_2_b'], 0)
    out = jnp.concatenate([p1, p2, p3, p4], axis=-1)
    return jnp.transpose(out, (0, 3, 1, 2))


if __name__ == "__main__":
    key = jax.random.PRNGKey(0)
    kx, kp = jax.random.split(key)

    # Small shapes consistent with the module: NCHW input.
    N, C, H, W = 2, 4, 16, 16
    out1, out2, out3, out4 = 4, (4, 8), (2, 4), 4

    x = jax.random.normal(kx, (N, C, H, W), jnp.float32)
    params = init_inception_params(kp, C, out1, out2, out3, out4)

    out = jax.jit(inception_forward)(x, params)
    out = jax.block_until_ready(out)

    assert out.shape == (N, out1 + out2[1] + out3[1] + out4, H, W), out.shape

    ref = _ref_forward(x, params)
    max_diff = float(jnp.max(jnp.abs(out - ref)))
    assert jnp.allclose(out, ref, rtol=1e-2, atol=1e-2), \
        f"max abs diff = {max_diff}"

    print("KERNEL_OK")
</pallas_src>

<mosaic_0001>
module attributes {stable_mosaic.version = 11 : i64} {
  func.func @_inception_kernel(%arg0: i32, %arg1: memref<1x16x16x4xbf16, #tpu.memory_space<vmem>>, %arg2: memref<4x4xbf16, #tpu.memory_space<vmem>>, %arg3: memref<1x4xf32, #tpu.memory_space<vmem>>, %arg4: memref<4x4xbf16, #tpu.memory_space<vmem>>, %arg5: memref<1x4xf32, #tpu.memory_space<vmem>>, %arg6: memref<9x4x8xbf16, #tpu.memory_space<vmem>>, %arg7: memref<1x8xf32, #tpu.memory_space<vmem>>, %arg8: memref<4x2xbf16, #tpu.memory_space<vmem>>, %arg9: memref<1x2xf32, #tpu.memory_space<vmem>>, %arg10: memref<25x2x4xbf16, #tpu.memory_space<vmem>>, %arg11: memref<1x4xf32, #tpu.memory_space<vmem>>, %arg12: memref<4x4xbf16, #tpu.memory_space<vmem>>, %arg13: memref<1x4xf32, #tpu.memory_space<vmem>>, %arg14: memref<1x16x16x20xf32, #tpu.memory_space<vmem>>) attributes {dimension_semantics = [#tpu.dimension_semantics<parallel>], iteration_bounds = array<i64: 2>, scalar_prefetch = 0 : i64, scratch_operands = 0 : i64, tpu.core_type = #tpu.core_type<tc>, window_params = [{transform_indices = @transform_0, window_bounds = array<i64: 1, 16, 16, 4>}, {pipeline_mode = #tpu.pipeline_mode<synchronous>, transform_indices = @transform_1, window_bounds = array<i64: 4, 4>}, {pipeline_mode = #tpu.pipeline_mode<synchronous>, transform_indices = @transform_2, window_bounds = array<i64: 1, 4>}, {pipeline_mode = #tpu.pipeline_mode<synchronous>, transform_indices = @transform_3, window_bounds = array<i64: 4, 4>}, {pipeline_mode = #tpu.pipeline_mode<synchronous>, transform_indices = @transform_4, window_bounds = array<i64: 1, 4>}, {pipeline_mode = #tpu.pipeline_mode<synchronous>, transform_indices = @transform_5, window_bounds = array<i64: 9, 4, 8>}, {pipeline_mode = #tpu.pipeline_mode<synchronous>, transform_indices = @transform_6, window_bounds = array<i64: 1, 8>}, {pipeline_mode = #tpu.pipeline_mode<synchronous>, transform_indices = @transform_7, window_bounds = array<i64: 4, 2>}, {pipeline_mode = #tpu.pipeline_mode<synchronous>, transform_indices = @transform_8, window_bounds = array<i64: 1, 2>}, {pipeline_mode = #tpu.pipeline_mode<synchronous>, transform_indices = @transform_9, window_bounds = array<i64: 25, 2, 4>}, {pipeline_mode = #tpu.pipeline_mode<synchronous>, transform_indices = @transform_10, window_bounds = array<i64: 1, 4>}, {pipeline_mode = #tpu.pipeline_mode<synchronous>, transform_indices = @transform_11, window_bounds = array<i64: 4, 4>}, {pipeline_mode = #tpu.pipeline_mode<synchronous>, transform_indices = @transform_12, window_bounds = array<i64: 1, 4>}, {transform_indices = @transform_13, window_bounds = array<i64: 1, 16, 16, 20>}]} {
    %c0 = arith.constant 0 : index
    %c0_0 = arith.constant 0 : index
    %c0_1 = arith.constant 0 : index
    %c0_2 = arith.constant 0 : index
    %0 = vector.load %arg1[%c0, %c0_0, %c0_1, %c0_2] : memref<1x16x16x4xbf16, #tpu.memory_space<vmem>>, vector<1x16x16x4xbf16>
    %1 = vector.shape_cast %0 : vector<1x16x16x4xbf16> to vector<16x16x4xbf16>
    %2 = vector.shape_cast %1 : vector<16x16x4xbf16> to vector<256x4xbf16>
    %c0_3 = arith.constant 0 : index
    %c0_4 = arith.constant 0 : index
    %3 = vector.load %arg2[%c0_3, %c0_4] : memref<4x4xbf16, #tpu.memory_space<vmem>>, vector<4x4xbf16>
    %cst = arith.constant dense<0.000000e+00> : vector<256x4xf32>
    %4 = tpu.matmul %2, %3, %cst {dimension_numbers = #tpu.dot_dimension_numbers<[1], [0], [0], [1], [0, 0, 1, 1], [], []>} : vector<256x4xbf16>, vector<4x4xbf16>, vector<256x4xf32> -> vector<256x4xf32>
    %c0_5 = arith.constant 0 : index
    %c0_6 = arith.constant 0 : index
    %5 = vector.load %arg3[%c0_5, %c0_6] : memref<1x4xf32, #tpu.memory_space<vmem>>, vector<1x4xf32>
    %6 = vector.broadcast %5 : vector<1x4xf32> to vector<256x4xf32>
    %7 = arith.addf %4, %6 : vector<256x4xf32>
    %cst_7 = arith.constant 0.000000e+00 : f32
    %8 = vector.broadcast %cst_7 : f32 to vector<256x4xf32>
    %9 = arith.maximumf %7, %8 : vector<256x4xf32>
    %c0_8 = arith.constant 0 : index
    %c0_9 = arith.constant 0 : index
    %10 = vector.load %arg4[%c0_8, %c0_9] : memref<4x4xbf16, #tpu.memory_space<vmem>>, vector<4x4xbf16>
    %cst_10 = arith.constant dense<0.000000e+00> : vector<256x4xf32>
    %11 = tpu.matmul %2, %10, %cst_10 {dimension_numbers = #tpu.dot_dimension_numbers<[1], [0], [0], [1], [0, 0, 1, 1], [], []>} : vector<256x4xbf16>, vector<4x4xbf16>, vector<256x4xf32> -> vector<256x4xf32>
    %c0_11 = arith.constant 0 : index
    %c0_12 = arith.constant 0 : index
    %12 = vector.load %arg5[%c0_11, %c0_12] : memref<1x4xf32, #tpu.memory_space<vmem>>, vector<1x4xf32>
    %13 = vector.broadcast %12 : vector<1x4xf32> to vector<256x4xf32>
    %14 = arith.addf %11, %13 : vector<256x4xf32>
    %cst_13 = arith.constant 0.000000e+00 : f32
    %15 = vector.broadcast %cst_13 : f32 to vector<256x4xf32>
    %16 = arith.maximumf %14, %15 : vector<256x4xf32>
    %17 = arith.truncf %16 : vector<256x4xf32> to vector<256x4xbf16>
    %18 = vector.shape_cast %17 : vector<256x4xbf16> to vector<16x16x4xbf16>
    %cst_14 = arith.constant 0.000000e+00 : bf16
    %19 = vector.broadcast %cst_14 : bf16 to vector<1x16x4xbf16>
    %20 = tpu.concatenate %19, %18, %19 in 0 : vector<1x16x4xbf16>, vector<16x16x4xbf16>, vector<1x16x4xbf16> -> vector<18x16x4xbf16>
    %cst_15 = arith.constant 0.000000e+00 : bf16
    %21 = vector.broadcast %cst_15 : bf16 to vector<18x1x4xbf16>
    %22 = tpu.concatenate %21, %20, %21 in 1 : vector<18x1x4xbf16>, vector<18x16x4xbf16>, vector<18x1x4xbf16> -> vector<18x18x4xbf16>
    %cst_16 = arith.constant 0.000000e+00 : f32
    %23 = vector.broadcast %cst_16 : f32 to vector<256x8xf32>
    %24 = vector.extract_strided_slice %22 {offsets = [0, 0, 0], sizes = [16, 16, 4], strides = [1, 1, 1]} : vector<18x18x4xbf16> to vector<16x16x4xbf16>
    %25 = vector.shape_cast %24 : vector<16x16x4xbf16> to vector<256x4xbf16>
    %c0_17 = arith.constant 0 : index
    %c0_18 = arith.constant 0 : index
    %c0_19 = arith.constant 0 : index
    %26 = vector.load %arg6[%c0_17, %c0_18, %c0_19] : memref<9x4x8xbf16, #tpu.memory_space<vmem>>, vector<1x4x8xbf16>
    %27 = vector.shape_cast %26 : vector<1x4x8xbf16> to vector<4x8xbf16>
    %cst_20 = arith.constant dense<0.000000e+00> : vector<256x8xf32>
    %28 = tpu.matmul %25, %27, %cst_20 {dimension_numbers = #tpu.dot_dimension_numbers<[1], [0], [0], [1], [0, 0, 1, 1], [], []>} : vector<256x4xbf16>, vector<4x8xbf16>, vector<256x8xf32> -> vector<256x8xf32>
    %29 = arith.addf %23, %28 : vector<256x8xf32>
    %30 = vector.extract_strided_slice %22 {offsets = [0, 1, 0], sizes = [16, 16, 4], strides = [1, 1, 1]} : vector<18x18x4xbf16> to vector<16x16x4xbf16>
    %31 = vector.shape_cast %30 : vector<16x16x4xbf16> to vector<256x4xbf16>
    %c1 = arith.constant 1 : index
    %c0_21 = arith.constant 0 : index
    %c0_22 = arith.constant 0 : index
    %32 = vector.load %arg6[%c1, %c0_21, %c0_22] : memref<9x4x8xbf16, #tpu.memory_space<vmem>>, vector<1x4x8xbf16>
    %33 = vector.shape_cast %32 : vector<1x4x8xbf16> to vector<4x8xbf16>
    %cst_23 = arith.constant dense<0.000000e+00> : vector<256x8xf32>
    %34 = tpu.matmul %31, %33, %cst_23 {dimension_numbers = #tpu.dot_dimension_numbers<[1], [0], [0], [1], [0, 0, 1, 1], [], []>} : vector<256x4xbf16>, vector<4x8xbf16>, vector<256x8xf32> -> vector<256x8xf32>
    %35 = arith.addf %29, %34 : vector<256x8xf32>
    %36 = vector.extract_strided_slice %22 {offsets = [0, 2, 0], sizes = [16, 16, 4], strides = [1, 1, 1]} : vector<18x18x4xbf16> to vector<16x16x4xbf16>
    %37 = vector.shape_cast %36 : vector<16x16x4xbf16> to vector<256x4xbf16>
    %c2 = arith.constant 2 : index
    %c0_24 = arith.constant 0 : index
    %c0_25 = arith.constant 0 : index
    %38 = vector.load %arg6[%c2, %c0_24, %c0_25] : memref<9x4x8xbf16, #tpu.memory_space<vmem>>, vector<1x4x8xbf16>
    %39 = vector.shape_cast %38 : vector<1x4x8xbf16> to vector<4x8xbf16>
    %cst_26 = arith.constant dense<0.000000e+00> : vector<256x8xf32>
    %40 = tpu.matmul %37, %39, %cst_26 {dimension_numbers = #tpu.dot_dimension_numbers<[1], [0], [0], [1], [0, 0, 1, 1], [], []>} : vector<256x4xbf16>, vector<4x8xbf16>, vector<256x8xf32> -> vector<256x8xf32>
    %41 = arith.addf %35, %40 : vector<256x8xf32>
    %42 = vector.extract_strided_slice %22 {offsets = [1, 0, 0], sizes = [16, 16, 4], strides = [1, 1, 1]} : vector<18x18x4xbf16> to vector<16x16x4xbf16>
    %43 = vector.shape_cast %42 : vector<16x16x4xbf16> to vector<256x4xbf16>
    %c3 = arith.constant 3 : index
    %c0_27 = arith.constant 0 : index
    %c0_28 = arith.constant 0 : index
    %44 = vector.load %arg6[%c3, %c0_27, %c0_28] : memref<9x4x8xbf16, #tpu.memory_space<vmem>>, vector<1x4x8xbf16>
    %45 = vector.shape_cast %44 : vector<1x4x8xbf16> to vector<4x8xbf16>
    %cst_29 = arith.constant dense<0.000000e+00> : vector<256x8xf32>
    %46 = tpu.matmul %43, %45, %cst_29 {dimension_numbers = #tpu.dot_dimension_numbers<[1], [0], [0], [1], [0, 0, 1, 1], [], []>} : vector<256x4xbf16>, vector<4x8xbf16>, vector<256x8xf32> -> vector<256x8xf32>
    %47 = arith.addf %41, %46 : vector<256x8xf32>
    %48 = vector.extract_strided_slice %22 {offsets = [1, 1, 0], sizes = [16, 16, 4], strides = [1, 1, 1]} : vector<18x18x4xbf16> to vector<16x16x4xbf16>
    %49 = vector.shape_cast %48 : vector<16x16x4xbf16> to vector<256x4xbf16>
    %c4 = arith.constant 4 : index
    %c0_30 = arith.constant 0 : index
    %c0_31 = arith.constant 0 : index
    %50 = vector.load %arg6[%c4, %c0_30, %c0_31] : memref<9x4x8xbf16, #tpu.memory_space<vmem>>, vector<1x4x8xbf16>
    %51 = vector.shape_cast %50 : vector<1x4x8xbf16> to vector<4x8xbf16>
    %cst_32 = arith.constant dense<0.000000e+00> : vector<256x8xf32>
    %52 = tpu.matmul %49, %51, %cst_32 {dimension_numbers = #tpu.dot_dimension_numbers<[1], [0], [0], [1], [0, 0, 1, 1], [], []>} : vector<256x4xbf16>, vector<4x8xbf16>, vector<256x8xf32> -> vector<256x8xf32>
    %53 = arith.addf %47, %52 : vector<256x8xf32>
    %54 = vector.extract_strided_slice %22 {offsets = [1, 2, 0], sizes = [16, 16, 4], strides = [1, 1, 1]} : vector<18x18x4xbf16> to vector<16x16x4xbf16>
    %55 = vector.shape_cast %54 : vector<16x16x4xbf16> to vector<256x4xbf16>
    %c5 = arith.constant 5 : index
    %c0_33 = arith.constant 0 : index
    %c0_34 = arith.constant 0 : index
    %56 = vector.load %arg6[%c5, %c0_33, %c0_34] : memref<9x4x8xbf16, #tpu.memory_space<vmem>>, vector<1x4x8xbf16>
    %57 = vector.shape_cast %56 : vector<1x4x8xbf16> to vector<4x8xbf16>
    %cst_35 = arith.constant dense<0.000000e+00> : vector<256x8xf32>
    %58 = tpu.matmul %55, %57, %cst_35 {dimension_numbers = #tpu.dot_dimension_numbers<[1], [0], [0], [1], [0, 0, 1, 1], [], []>} : vector<256x4xbf16>, vector<4x8xbf16>, vector<256x8xf32> -> vector<256x8xf32>
    %59 = arith.addf %53, %58 : vector<256x8xf32>
    %60 = vector.extract_strided_slice %22 {offsets = [2, 0, 0], sizes = [16, 16, 4], strides = [1, 1, 1]} : vector<18x18x4xbf16> to vector<16x16x4xbf16>
    %61 = vector.shape_cast %60 : vector<16x16x4xbf16> to vector<256x4xbf16>
    %c6 = arith.constant 6 : index
    %c0_36 = arith.constant 0 : index
    %c0_37 = arith.constant 0 : index
    %62 = vector.load %arg6[%c6, %c0_36, %c0_37] : memref<9x4x8xbf16, #tpu.memory_space<vmem>>, vector<1x4x8xbf16>
    %63 = vector.shape_cast %62 : vector<1x4x8xbf16> to vector<4x8xbf16>
    %cst_38 = arith.constant dense<0.000000e+00> : vector<256x8xf32>
    %64 = tpu.matmul %61, %63, %cst_38 {dimension_numbers = #tpu.dot_dimension_numbers<[1], [0], [0], [1], [0, 0, 1, 1], [], []>} : vector<256x4xbf16>, vector<4x8xbf16>, vector<256x8xf32> -> vector<256x8xf32>
    %65 = arith.addf %59, %64 : vector<256x8xf32>
    %66 = vector.extract_strided_slice %22 {offsets = [2, 1, 0], sizes = [16, 16, 4], strides = [1, 1, 1]} : vector<18x18x4xbf16> to vector<16x16x4xbf16>
    %67 = vector.shape_cast %66 : vector<16x16x4xbf16> to vector<256x4xbf16>
    %c7 = arith.constant 7 : index
    %c0_39 = arith.constant 0 : index
    %c0_40 = arith.constant 0 : index
    %68 = vector.load %arg6[%c7, %c0_39, %c0_40] : memref<9x4x8xbf16, #tpu.memory_space<vmem>>, vector<1x4x8xbf16>
    %69 = vector.shape_cast %68 : vector<1x4x8xbf16> to vector<4x8xbf16>
    %cst_41 = arith.constant dense<0.000000e+00> : vector<256x8xf32>
    %70 = tpu.matmul %67, %69, %cst_41 {dimension_numbers = #tpu.dot_dimension_numbers<[1], [0], [0], [1], [0, 0, 1, 1], [], []>} : vector<256x4xbf16>, vector<4x8xbf16>, vector<256x8xf32> -> vector<256x8xf32>
    %71 = arith.addf %65, %70 : vector<256x8xf32>
    %72 = vector.extract_strided_slice %22 {offsets = [2, 2, 0], sizes = [16, 16, 4], strides = [1, 1, 1]} : vector<18x18x4xbf16> to vector<16x16x4xbf16>
    %73 = vector.shape_cast %72 : vector<16x16x4xbf16> to vector<256x4xbf16>
    %c8 = arith.constant 8 : index
    %c0_42 = arith.constant 0 : index
    %c0_43 = arith.constant 0 : index
    %74 = vector.load %arg6[%c8, %c0_42, %c0_43] : memref<9x4x8xbf16, #tpu.memory_space<vmem>>, vector<1x4x8xbf16>
    %75 = vector.shape_cast %74 : vector<1x4x8xbf16> to vector<4x8xbf16>
    %cst_44 = arith.constant dense<0.000000e+00> : vector<256x8xf32>
    %76 = tpu.matmul %73, %75, %cst_44 {dimension_numbers = #tpu.dot_dimension_numbers<[1], [0], [0], [1], [0, 0, 1, 1], [], []>} : vector<256x4xbf16>, vector<4x8xbf16>, vector<256x8xf32> -> vector<256x8xf32>
    %77 = arith.addf %71, %76 : vector<256x8xf32>
    %c0_45 = arith.constant 0 : index
    %c0_46 = arith.constant 0 : index
    %78 = vector.load %arg7[%c0_45, %c0_46] : memref<1x8xf32, #tpu.memory_space<vmem>>, vector<1x8xf32>
    %79 = vector.broadcast %78 : vector<1x8xf32> to vector<256x8xf32>
    %80 = arith.addf %77, %79 : vector<256x8xf32>
    %cst_47 = arith.constant 0.000000e+00 : f32
    %81 = vector.broadcast %cst_47 : f32 to vector<256x8xf32>
    %82 = arith.maximumf %80, %81 : vector<256x8xf32>
    %c0_48 = arith.constant 0 : index
    %c0_49 = arith.constant 0 : index
    %83 = vector.load %arg8[%c0_48, %c0_49] : memref<4x2xbf16, #tpu.memory_space<vmem>>, vector<4x2xbf16>
    %cst_50 = arith.constant dense<0.000000e+00> : vector<256x2xf32>
    %84 = tpu.matmul %2, %83, %cst_50 {dimension_numbers = #tpu.dot_dimension_numbers<[1], [0], [0], [1], [0, 0, 1, 1], [], []>} : vector<256x4xbf16>, vector<4x2xbf16>, vector<256x2xf32> -> vector<256x2xf32>
    %c0_51 = arith.constant 0 : index
    %c0_52 = arith.constant 0 : index
    %85 = vector.load %arg9[%c0_51, %c0_52] : memref<1x2xf32, #tpu.memory_space<vmem>>, vector<1x2xf32>
    %86 = vector.broadcast %85 : vector<1x2xf32> to vector<256x2xf32>
    %87 = arith.addf %84, %86 : vector<256x2xf32>
    %cst_53 = arith.constant 0.000000e+00 : f32
    %88 = vector.broadcast %cst_53 : f32 to vector<256x2xf32>
    %89 = arith.maximumf %87, %88 : vector<256x2xf32>
    %90 = arith.truncf %89 : vector<256x2xf32> to vector<256x2xbf16>
    %91 = vector.shape_cast %90 : vector<256x2xbf16> to vector<16x16x2xbf16>
    %cst_54 = arith.constant 0.000000e+00 : bf16
    %92 = vector.broadcast %cst_54 : bf16 to vector<2x16x2xbf16>
    %93 = tpu.concatenate %92, %91, %92 in 0 : vector<2x16x2xbf16>, vector<16x16x2xbf16>, vector<2x16x2xbf16> -> vector<20x16x2xbf16>
    %cst_55 = arith.constant 0.000000e+00 : bf16
    %94 = vector.broadcast %cst_55 : bf16 to vector<20x2x2xbf16>
    %95 = tpu.concatenate %94, %93, %94 in 1 : vector<20x2x2xbf16>, vector<20x16x2xbf16>, vector<20x2x2xbf16> -> vector<20x20x2xbf16>
    %cst_56 = arith.constant 0.000000e+00 : f32
    %96 = vector.broadcast %cst_56 : f32 to vector<256x4xf32>
    %97 = vector.extract_strided_slice %95 {offsets = [0, 0, 0], sizes = [16, 16, 2], strides = [1, 1, 1]} : vector<20x20x2xbf16> to vector<16x16x2xbf16>
    %98 = vector.shape_cast %97 : vector<16x16x2xbf16> to vector<256x2xbf16>
    %c0_57 = arith.constant 0 : index
    %c0_58 = arith.constant 0 : index
    %c0_59 = arith.constant 0 : index
    %99 = vector.load %arg10[%c0_57, %c0_58, %c0_59] : memref<25x2x4xbf16, #tpu.memory_space<vmem>>, vector<1x2x4xbf16>
    %100 = vector.shape_cast %99 : vector<1x2x4xbf16> to vector<2x4xbf16>
    %cst_60 = arith.constant dense<0.000000e+00> : vector<256x4xf32>
    %101 = tpu.matmul %98, %100, %cst_60 {dimension_numbers = #tpu.dot_dimension_numbers<[1], [0], [0], [1], [0, 0, 1, 1], [], []>} : vector<256x2xbf16>, vector<2x4xbf16>, vector<256x4xf32> -> vector<256x4xf32>
    %102 = arith.addf %96, %101 : vector<256x4xf32>
    %103 = vector.extract_strided_slice %95 {offsets = [0, 1, 0], sizes = [16, 16, 2], strides = [1, 1, 1]} : vector<20x20x2xbf16> to vector<16x16x2xbf16>
    %104 = vector.shape_cast %103 : vector<16x16x2xbf16> to vector<256x2xbf16>
    %c1_61 = arith.constant 1 : index
    %c0_62 = arith.constant 0 : index
    %c0_63 = arith.constant 0 : index
    %105 = vector.load %arg10[%c1_61, %c0_62, %c0_63] : memref<25x2x4xbf16, #tpu.memory_space<vmem>>, vector<1x2x4xbf16>
    %106 = vector.shape_cast %105 : vector<1x2x4xbf16> to vector<2x4xbf16>
    %cst_64 = arith.constant dense<0.000000e+00> : vector<256x4xf32>
    %107 = tpu.matmul %104, %106, %cst_64 {dimension_numbers = #tpu.dot_dimension_numbers<[1], [0], [0], [1], [0, 0, 1, 1], [], []>} : vector<256x2xbf16>, vector<2x4xbf16>, vector<256x4xf32> -> vector<256x4xf32>
    %108 = arith.addf %102, %107 : vector<256x4xf32>
    %109 = vector.extract_strided_slice %95 {offsets = [0, 2, 0], sizes = [16, 16, 2], strides = [1, 1, 1]} : vector<20x20x2xbf16> to vector<16x16x2xbf16>
    %110 = vector.shape_cast %109 : vector<16x16x2xbf16> to vector<256x2xbf16>
    %c2_65 = arith.constant 2 : index
    %c0_66 = arith.constant 0 : index
    %c0_67 = arith.constant 0 : index
    %111 = vector.load %arg10[%c2_65, %c0_66, %c0_67] : memref<25x2x4xbf16, #tpu.memory_space<vmem>>, vector<1x2x4xbf16>
    %112 = vector.shape_cast %111 : vector<1x2x4xbf16> to vector<2x4xbf16>
    %cst_68 = arith.constant dense<0.000000e+00> : vector<256x4xf32>
    %113 = tpu.matmul %110, %112, %cst_68 {dimension_numbers = #tpu.dot_dimension_numbers<[1], [0], [0], [1], [0, 0, 1, 1], [], []>} : vector<256x2xbf16>, vector<2x4xbf16>, vector<256x4xf32> -> vector<256x4xf32>
    %114 = arith.addf %108, %113 : vector<256x4xf32>
    %115 = vector.extract_strided_slice %95 {offsets = [0, 3, 0], sizes = [16, 16, 2], strides = [1, 1, 1]} : vector<20x20x2xbf16> to vector<16x16x2xbf16>
    %116 = vector.shape_cast %115 : vector<16x16x2xbf16> to vector<256x2xbf16>
    %c3_69 = arith.constant 3 : index
    %c0_70 = arith.constant 0 : index
    %c0_71 = arith.constant 0 : index
    %117 = vector.load %arg10[%c3_69, %c0_70, %c0_71] : memref<25x2x4xbf16, #tpu.memory_space<vmem>>, vector<1x2x4xbf16>
    %118 = vector.shape_cast %117 : vector<1x2x4xbf16> to vector<2x4xbf16>
    %cst_72 = arith.constant dense<0.000000e+00> : vector<256x4xf32>
    %119 = tpu.matmul %116, %118, %cst_72 {dimension_numbers = #tpu.dot_dimension_numbers<[1], [0], [0], [1], [0, 0, 1, 1], [], []>} : vector<256x2xbf16>, vector<2x4xbf16>, vector<256x4xf32> -> vector<256x4xf32>
    %120 = arith.addf %114, %119 : vector<256x4xf32>
    %121 = vector.extract_strided_slice %95 {offsets = [0, 4, 0], sizes = [16, 16, 2], strides = [1, 1, 1]} : vector<20x20x2xbf16> to vector<16x16x2xbf16>
    %122 = vector.shape_cast %121 : vector<16x16x2xbf16> to vector<256x2xbf16>
    %c4_73 = arith.constant 4 : index
    %c0_74 = arith.constant 0 : index
    %c0_75 = arith.constant 0 : index
    %123 = vector.load %arg10[%c4_73, %c0_74, %c0_75] : memref<25x2x4xbf16, #tpu.memory_space<vmem>>, vector<1x2x4xbf16>
    %124 = vector.shape_cast %123 : vector<1x2x4xbf16> to vector<2x4xbf16>
    %cst_76 = arith.constant dense<0.000000e+00> : vector<256x4xf32>
    %125 = tpu.matmul %122, %124, %cst_76 {dimension_numbers = #tpu.dot_dimension_numbers<[1], [0], [0], [1], [0, 0, 1, 1], [], []>} : vector<256x2xbf16>, vector<2x4xbf16>, vector<256x4xf32> -> vector<256x4xf32>
    %126 = arith.addf %120, %125 : vector<256x4xf32>
    %127 = vector.extract_strided_slice %95 {offsets = [1, 0, 0], sizes = [16, 16, 2], strides = [1, 1, 1]} : vector<20x20x2xbf16> to vector<16x16x2xbf16>
    %128 = vector.shape_cast %127 : vector<16x16x2xbf16> to vector<256x2xbf16>
    %c5_77 = arith.constant 5 : index
    %c0_78 = arith.constant 0 : index
    %c0_79 = arith.constant 0 : index
    %129 = vector.load %arg10[%c5_77, %c0_78, %c0_79] : memref<25x2x4xbf16, #tpu.memory_space<vmem>>, vector<1x2x4xbf16>
    %130 = vector.shape_cast %129 : vector<1x2x4xbf16> to vector<2x4xbf16>
    %cst_80 = arith.constant dense<0.000000e+00> : vector<256x4xf32>
    %131 = tpu.matmul %128, %130, %cst_80 {dimension_numbers = #tpu.dot_dimension_numbers<[1], [0], [0], [1], [0, 0, 1, 1], [], []>} : vector<256x2xbf16>, vector<2x4xbf16>, vector<256x4xf32> -> vector<256x4xf32>
    %132 = arith.addf %126, %131 : vector<256x4xf32>
    %133 = vector.extract_strided_slice %95 {offsets = [1, 1, 0], sizes = [16, 16, 2], strides = [1, 1, 1]} : vector<20x20x2xbf16> to vector<16x16x2xbf16>
    %134 = vector.shape_cast %133 : vector<16x16x2xbf16> to vector<256x2xbf16>
    %c6_81 = arith.constant 6 : index
    %c0_82 = arith.constant 0 : index
    %c0_83 = arith.constant 0 : index
    %135 = vector.load %arg10[%c6_81, %c0_82, %c0_83] : memref<25x2x4xbf16, #tpu.memory_space<vmem>>, vector<1x2x4xbf16>
    %136 = vector.shape_cast %135 : vector<1x2x4xbf16> to vector<2x4xbf16>
    %cst_84 = arith.constant dense<0.000000e+00> : vector<256x4xf32>
    %137 = tpu.matmul %134, %136, %cst_84 {dimension_numbers = #tpu.dot_dimension_numbers<[1], [0], [0], [1], [0, 0, 1, 1], [], []>} : vector<256x2xbf16>, vector<2x4xbf16>, vector<256x4xf32> -> vector<256x4xf32>
    %138 = arith.addf %132, %137 : vector<256x4xf32>
    %139 = vector.extract_strided_slice %95 {offsets = [1, 2, 0], sizes = [16, 16, 2], strides = [1, 1, 1]} : vector<20x20x2xbf16> to vector<16x16x2xbf16>
    %140 = vector.shape_cast %139 : vector<16x16x2xbf16> to vector<256x2xbf16>
    %c7_85 = arith.constant 7 : index
    %c0_86 = arith.constant 0 : index
    %c0_87 = arith.constant 0 : index
    %141 = vector.load %arg10[%c7_85, %c0_86, %c0_87] : memref<25x2x4xbf16, #tpu.memory_space<vmem>>, vector<1x2x4xbf16>
    %142 = vector.shape_cast %141 : vector<1x2x4xbf16> to vector<2x4xbf16>
    %cst_88 = arith.constant dense<0.000000e+00> : vector<256x4xf32>
    %143 = tpu.matmul %140, %142, %cst_88 {dimension_numbers = #tpu.dot_dimension_numbers<[1], [0], [0], [1], [0, 0, 1, 1], [], []>} : vector<256x2xbf16>, vector<2x4xbf16>, vector<256x4xf32> -> vector<256x4xf32>
    %144 = arith.addf %138, %143 : vector<256x4xf32>
    %145 = vector.extract_strided_slice %95 {offsets = [1, 3, 0], sizes = [16, 16, 2], strides = [1, 1, 1]} : vector<20x20x2xbf16> to vector<16x16x2xbf16>
    %146 = vector.shape_cast %145 : vector<16x16x2xbf16> to vector<256x2xbf16>
    %c8_89 = arith.constant 8 : index
    %c0_90 = arith.constant 0 : index
    %c0_91 = arith.constant 0 : index
    %147 = vector.load %arg10[%c8_89, %c0_90, %c0_91] : memref<25x2x4xbf16, #tpu.memory_space<vmem>>, vector<1x2x4xbf16>
    %148 = vector.shape_cast %147 : vector<1x2x4xbf16> to vector<2x4xbf16>
    %cst_92 = arith.constant dense<0.000000e+00> : vector<256x4xf32>
    %149 = tpu.matmul %146, %148, %cst_92 {dimension_numbers = #tpu.dot_dimension_numbers<[1], [0], [0], [1], [0, 0, 1, 1], [], []>} : vector<256x2xbf16>, vector<2x4xbf16>, vector<256x4xf32> -> vector<256x4xf32>
    %150 = arith.addf %144, %149 : vector<256x4xf32>
    %151 = vector.extract_strided_slice %95 {offsets = [1, 4, 0], sizes = [16, 16, 2], strides = [1, 1, 1]} : vector<20x20x2xbf16> to vector<16x16x2xbf16>
    %152 = vector.shape_cast %151 : vector<16x16x2xbf16> to vector<256x2xbf16>
    %c9 = arith.constant 9 : index
    %c0_93 = arith.constant 0 : index
    %c0_94 = arith.constant 0 : index
    %153 = vector.load %arg10[%c9, %c0_93, %c0_94] : memref<25x2x4xbf16, #tpu.memory_space<vmem>>, vector<1x2x4xbf16>
    %154 = vector.shape_cast %153 : vector<1x2x4xbf16> to vector<2x4xbf16>
    %cst_95 = arith.constant dense<0.000000e+00> : vector<256x4xf32>
    %155 = tpu.matmul %152, %154, %cst_95 {dimension_numbers = #tpu.dot_dimension_numbers<[1], [0], [0], [1], [0, 0, 1, 1], [], []>} : vector<256x2xbf16>, vector<2x4xbf16>, vector<256x4xf32> -> vector<256x4xf32>
    %156 = arith.addf %150, %155 : vector<256x4xf32>
    %157 = vector.extract_strided_slice %95 {offsets = [2, 0, 0], sizes = [16, 16, 2], strides = [1, 1, 1]} : vector<20x20x2xbf16> to vector<16x16x2xbf16>
    %158 = vector.shape_cast %157 : vector<16x16x2xbf16> to vector<256x2xbf16>
    %c10 = arith.constant 10 : index
    %c0_96 = arith.constant 0 : index
    %c0_97 = arith.constant 0 : index
    %159 = vector.load %arg10[%c10, %c0_96, %c0_97] : memref<25x2x4xbf16, #tpu.memory_space<vmem>>, vector<1x2x4xbf16>
    %160 = vector.shape_cast %159 : vector<1x2x4xbf16> to vector<2x4xbf16>
    %cst_98 = arith.constant dense<0.000000e+00> : vector<256x4xf32>
    %161 = tpu.matmul %158, %160, %cst_98 {dimension_numbers = #tpu.dot_dimension_numbers<[1], [0], [0], [1], [0, 0, 1, 1], [], []>} : vector<256x2xbf16>, vector<2x4xbf16>, vector<256x4xf32> -> vector<256x4xf32>
    %162 = arith.addf %156, %161 : vector<256x4xf32>
    %163 = vector.extract_strided_slice %95 {offsets = [2, 1, 0], sizes = [16, 16, 2], strides = [1, 1, 1]} : vector<20x20x2xbf16> to vector<16x16x2xbf16>
    %164 = vector.shape_cast %163 : vector<16x16x2xbf16> to vector<256x2xbf16>
    %c11 = arith.constant 11 : index
    %c0_99 = arith.constant 0 : index
    %c0_100 = arith.constant 0 : index
    %165 = vector.load %arg10[%c11, %c0_99, %c0_100] : memref<25x2x4xbf16, #tpu.memory_space<vmem>>, vector<1x2x4xbf16>
    %166 = vector.shape_cast %165 : vector<1x2x4xbf16> to vector<2x4xbf16>
    %cst_101 = arith.constant dense<0.000000e+00> : vector<256x4xf32>
    %167 = tpu.matmul %164, %166, %cst_101 {dimension_numbers = #tpu.dot_dimension_numbers<[1], [0], [0], [1], [0, 0, 1, 1], [], []>} : vector<256x2xbf16>, vector<2x4xbf16>, vector<256x4xf32> -> vector<256x4xf32>
    %168 = arith.addf %162, %167 : vector<256x4xf32>
    %169 = vector.extract_strided_slice %95 {offsets = [2, 2, 0], sizes = [16, 16, 2], strides = [1, 1, 1]} : vector<20x20x2xbf16> to vector<16x16x2xbf16>
    %170 = vector.shape_cast %169 : vector<16x16x2xbf16> to vector<256x2xbf16>
    %c12 = arith.constant 12 : index
    %c0_102 = arith.constant 0 : index
    %c0_103 = arith.constant 0 : index
    %171 = vector.load %arg10[%c12, %c0_102, %c0_103] : memref<25x2x4xbf16, #tpu.memory_space<vmem>>, vector<1x2x4xbf16>
    %172 = vector.shape_cast %171 : vector<1x2x4xbf16> to vector<2x4xbf16>
    %cst_104 = arith.constant dense<0.000000e+00> : vector<256x4xf32>
    %173 = tpu.matmul %170, %172, %cst_104 {dimension_numbers = #tpu.dot_dimension_numbers<[1], [0], [0], [1], [0, 0, 1, 1], [], []>} : vector<256x2xbf16>, vector<2x4xbf16>, vector<256x4xf32> -> vector<256x4xf32>
    %174 = arith.addf %168, %173 : vector<256x4xf32>
    %175 = vector.extract_strided_slice %95 {offsets = [2, 3, 0], sizes = [16, 16, 2], strides = [1, 1, 1]} : vector<20x20x2xbf16> to vector<16x16x2xbf16>
    %176 = vector.shape_cast %175 : vector<16x16x2xbf16> to vector<256x2xbf16>
    %c13 = arith.constant 13 : index
    %c0_105 = arith.constant 0 : index
    %c0_106 = arith.constant 0 : index
    %177 = vector.load %arg10[%c13, %c0_105, %c0_106] : memref<25x2x4xbf16, #tpu.memory_space<vmem>>, vector<1x2x4xbf16>
    %178 = vector.shape_cast %177 : vector<1x2x4xbf16> to vector<2x4xbf16>
    %cst_107 = arith.constant dense<0.000000e+00> : vector<256x4xf32>
    %179 = tpu.matmul %176, %178, %cst_107 {dimension_numbers = #tpu.dot_dimension_numbers<[1], [0], [0], [1], [0, 0, 1, 1], [], []>} : vector<256x2xbf16>, vector<2x4xbf16>, vector<256x4xf32> -> vector<256x4xf32>
    %180 = arith.addf %174, %179 : vector<256x4xf32>
    %181 = vector.extract_strided_slice %95 {offsets = [2, 4, 0], sizes = [16, 16, 2], strides = [1, 1, 1]} : vector<20x20x2xbf16> to vector<16x16x2xbf16>
    %182 = vector.shape_cast %181 : vector<16x16x2xbf16> to vector<256x2xbf16>
    %c14 = arith.constant 14 : index
    %c0_108 = arith.constant 0 : index
    %c0_109 = arith.constant 0 : index
    %183 = vector.load %arg10[%c14, %c0_108, %c0_109] : memref<25x2x4xbf16, #tpu.memory_space<vmem>>, vector<1x2x4xbf16>
    %184 = vector.shape_cast %183 : vector<1x2x4xbf16> to vector<2x4xbf16>
    %cst_110 = arith.constant dense<0.000000e+00> : vector<256x4xf32>
    %185 = tpu.matmul %182, %184, %cst_110 {dimension_numbers = #tpu.dot_dimension_numbers<[1], [0], [0], [1], [0, 0, 1, 1], [], []>} : vector<256x2xbf16>, vector<2x4xbf16>, vector<256x4xf32> -> vector<256x4xf32>
    %186 = arith.addf %180, %185 : vector<256x4xf32>
    %187 = vector.extract_strided_slice %95 {offsets = [3, 0, 0], sizes = [16, 16, 2], strides = [1, 1, 1]} : vector<20x20x2xbf16> to vector<16x16x2xbf16>
    %188 = vector.shape_cast %187 : vector<16x16x2xbf16> to vector<256x2xbf16>
    %c15 = arith.constant 15 : index
    %c0_111 = arith.constant 0 : index
    %c0_112 = arith.constant 0 : index
    %189 = vector.load %arg10[%c15, %c0_111, %c0_112] : memref<25x2x4xbf16, #tpu.memory_space<vmem>>, vector<1x2x4xbf16>
    %190 = vector.shape_cast %189 : vector<1x2x4xbf16> to vector<2x4xbf16>
    %cst_113 = arith.constant dense<0.000000e+00> : vector<256x4xf32>
    %191 = tpu.matmul %188, %190, %cst_113 {dimension_numbers = #tpu.dot_dimension_numbers<[1], [0], [0], [1], [0, 0, 1, 1], [], []>} : vector<256x2xbf16>, vector<2x4xbf16>, vector<256x4xf32> -> vector<256x4xf32>
    %192 = arith.addf %186, %191 : vector<256x4xf32>
    %193 = vector.extract_strided_slice %95 {offsets = [3, 1, 0], sizes = [16, 16, 2], strides = [1, 1, 1]} : vector<20x20x2xbf16> to vector<16x16x2xbf16>
    %194 = vector.shape_cast %193 : vector<16x16x2xbf16> to vector<256x2xbf16>
    %c16 = arith.constant 16 : index
    %c0_114 = arith.constant 0 : index
    %c0_115 = arith.constant 0 : index
    %195 = vector.load %arg10[%c16, %c0_114, %c0_115] : memref<25x2x4xbf16, #tpu.memory_space<vmem>>, vector<1x2x4xbf16>
    %196 = vector.shape_cast %195 : vector<1x2x4xbf16> to vector<2x4xbf16>
    %cst_116 = arith.constant dense<0.000000e+00> : vector<256x4xf32>
    %197 = tpu.matmul %194, %196, %cst_116 {dimension_numbers = #tpu.dot_dimension_numbers<[1], [0], [0], [1], [0, 0, 1, 1], [], []>} : vector<256x2xbf16>, vector<2x4xbf16>, vector<256x4xf32> -> vector<256x4xf32>
    %198 = arith.addf %192, %197 : vector<256x4xf32>
    %199 = vector.extract_strided_slice %95 {offsets = [3, 2, 0], sizes = [16, 16, 2], strides = [1, 1, 1]} : vector<20x20x2xbf16> to vector<16x16x2xbf16>
    %200 = vector.shape_cast %199 : vector<16x16x2xbf16> to vector<256x2xbf16>
    %c17 = arith.constant 17 : index
    %c0_117 = arith.constant 0 : index
    %c0_118 = arith.constant 0 : index
    %201 = vector.load %arg10[%c17, %c0_117, %c0_118] : memref<25x2x4xbf16, #tpu.memory_space<vmem>>, vector<1x2x4xbf16>
    %202 = vector.shape_cast %201 : vector<1x2x4xbf16> to vector<2x4xbf16>
    %cst_119 = arith.constant dense<0.000000e+00> : vector<256x4xf32>
    %203 = tpu.matmul %200, %202, %cst_119 {dimension_numbers = #tpu.dot_dimension_numbers<[1], [0], [0], [1], [0, 0, 1, 1], [], []>} : vector<256x2xbf16>, vector<2x4xbf16>, vector<256x4xf32> -> vector<256x4xf32>
    %204 = arith.addf %198, %203 : vector<256x4xf32>
    %205 = vector.extract_strided_slice %95 {offsets = [3, 3, 0], sizes = [16, 16, 2], strides = [1, 1, 1]} : vector<20x20x2xbf16> to vector<16x16x2xbf16>
    %206 = vector.shape_cast %205 : vector<16x16x2xbf16> to vector<256x2xbf16>
    %c18 = arith.constant 18 : index
    %c0_120 = arith.constant 0 : index
    %c0_121 = arith.constant 0 : index
    %207 = vector.load %arg10[%c18, %c0_120, %c0_121] : memref<25x2x4xbf16, #tpu.memory_space<vmem>>, vector<1x2x4xbf16>
    %208 = vector.shape_cast %207 : vector<1x2x4xbf16> to vector<2x4xbf16>
    %cst_122 = arith.constant dense<0.000000e+00> : vector<256x4xf32>
    %209 = tpu.matmul %206, %208, %cst_122 {dimension_numbers = #tpu.dot_dimension_numbers<[1], [0], [0], [1], [0, 0, 1, 1], [], []>} : vector<256x2xbf16>, vector<2x4xbf16>, vector<256x4xf32> -> vector<256x4xf32>
    %210 = arith.addf %204, %209 : vector<256x4xf32>
    %211 = vector.extract_strided_slice %95 {offsets = [3, 4, 0], sizes = [16, 16, 2], strides = [1, 1, 1]} : vector<20x20x2xbf16> to vector<16x16x2xbf16>
    %212 = vector.shape_cast %211 : vector<16x16x2xbf16> to vector<256x2xbf16>
    %c19 = arith.constant 19 : index
    %c0_123 = arith.constant 0 : index
    %c0_124 = arith.constant 0 : index
    %213 = vector.load %arg10[%c19, %c0_123, %c0_124] : memref<25x2x4xbf16, #tpu.memory_space<vmem>>, vector<1x2x4xbf16>
    %214 = vector.shape_cast %213 : vector<1x2x4xbf16> to vector<2x4xbf16>
    %cst_125 = arith.constant dense<0.000000e+00> : vector<256x4xf32>
    %215 = tpu.matmul %212, %214, %cst_125 {dimension_numbers = #tpu.dot_dimension_numbers<[1], [0], [0], [1], [0, 0, 1, 1], [], []>} : vector<256x2xbf16>, vector<2x4xbf16>, vector<256x4xf32> -> vector<256x4xf32>
    %216 = arith.addf %210, %215 : vector<256x4xf32>
    %217 = vector.extract_strided_slice %95 {offsets = [4, 0, 0], sizes = [16, 16, 2], strides = [1, 1, 1]} : vector<20x20x2xbf16> to vector<16x16x2xbf16>
    %218 = vector.shape_cast %217 : vector<16x16x2xbf16> to vector<256x2xbf16>
    %c20 = arith.constant 20 : index
    %c0_126 = arith.constant 0 : index
    %c0_127 = arith.constant 0 : index
    %219 = vector.load %arg10[%c20, %c0_126, %c0_127] : memref<25x2x4xbf16, #tpu.memory_space<vmem>>, vector<1x2x4xbf16>
    %220 = vector.shape_cast %219 : vector<1x2x4xbf16> to vector<2x4xbf16>
    %cst_128 = arith.constant dense<0.000000e+00> : vector<256x4xf32>
    %221 = tpu.matmul %218, %220, %cst_128 {dimension_numbers = #tpu.dot_dimension_numbers<[1], [0], [0], [1], [0, 0, 1, 1], [], []>} : vector<256x2xbf16>, vector<2x4xbf16>, vector<256x4xf32> -> vector<256x4xf32>
    %222 = arith.addf %216, %221 : vector<256x4xf32>
    %223 = vector.extract_strided_slice %95 {offsets = [4, 1, 0], sizes = [16, 16, 2], strides = [1, 1, 1]} : vector<20x20x2xbf16> to vector<16x16x2xbf16>
    %224 = vector.shape_cast %223 : vector<16x16x2xbf16> to vector<256x2xbf16>
    %c21 = arith.constant 21 : index
    %c0_129 = arith.constant 0 : index
    %c0_130 = arith.constant 0 : index
    %225 = vector.load %arg10[%c21, %c0_129, %c0_130] : memref<25x2x4xbf16, #tpu.memory_space<vmem>>, vector<1x2x4xbf16>
    %226 = vector.shape_cast %225 : vector<1x2x4xbf16> to vector<2x4xbf16>
    %cst_131 = arith.constant dense<0.000000e+00> : vector<256x4xf32>
    %227 = tpu.matmul %224, %226, %cst_131 {dimension_numbers = #tpu.dot_dimension_numbers<[1], [0], [0], [1], [0, 0, 1, 1], [], []>} : vector<256x2xbf16>, vector<2x4xbf16>, vector<256x4xf32> -> vector<256x4xf32>
    %228 = arith.addf %222, %227 : vector<256x4xf32>
    %229 = vector.extract_strided_slice %95 {offsets = [4, 2, 0], sizes = [16, 16, 2], strides = [1, 1, 1]} : vector<20x20x2xbf16> to vector<16x16x2xbf16>
    %230 = vector.shape_cast %229 : vector<16x16x2xbf16> to vector<256x2xbf16>
    %c22 = arith.constant 22 : index
    %c0_132 = arith.constant 0 : index
    %c0_133 = arith.constant 0 : index
    %231 = vector.load %arg10[%c22, %c0_132, %c0_133] : memref<25x2x4xbf16, #tpu.memory_space<vmem>>, vector<1x2x4xbf16>
    %232 = vector.shape_cast %231 : vector<1x2x4xbf16> to vector<2x4xbf16>
    %cst_134 = arith.constant dense<0.000000e+00> : vector<256x4xf32>
    %233 = tpu.matmul %230, %232, %cst_134 {dimension_numbers = #tpu.dot_dimension_numbers<[1], [0], [0], [1], [0, 0, 1, 1], [], []>} : vector<256x2xbf16>, vector<2x4xbf16>, vector<256x4xf32> -> vector<256x4xf32>
    %234 = arith.addf %228, %233 : vector<256x4xf32>
    %235 = vector.extract_strided_slice %95 {offsets = [4, 3, 0], sizes = [16, 16, 2], strides = [1, 1, 1]} : vector<20x20x2xbf16> to vector<16x16x2xbf16>
    %236 = vector.shape_cast %235 : vector<16x16x2xbf16> to vector<256x2xbf16>
    %c23 = arith.constant 23 : index
    %c0_135 = arith.constant 0 : index
    %c0_136 = arith.constant 0 : index
    %237 = vector.load %arg10[%c23, %c0_135, %c0_136] : memref<25x2x4xbf16, #tpu.memory_space<vmem>>, vector<1x2x4xbf16>
    %238 = vector.shape_cast %237 : vector<1x2x4xbf16> to vector<2x4xbf16>
    %cst_137 = arith.constant dense<0.000000e+00> : vector<256x4xf32>
    %239 = tpu.matmul %236, %238, %cst_137 {dimension_numbers = #tpu.dot_dimension_numbers<[1], [0], [0], [1], [0, 0, 1, 1], [], []>} : vector<256x2xbf16>, vector<2x4xbf16>, vector<256x4xf32> -> vector<256x4xf32>
    %240 = arith.addf %234, %239 : vector<256x4xf32>
    %241 = vector.extract_strided_slice %95 {offsets = [4, 4, 0], sizes = [16, 16, 2], strides = [1, 1, 1]} : vector<20x20x2xbf16> to vector<16x16x2xbf16>
    %242 = vector.shape_cast %241 : vector<16x16x2xbf16> to vector<256x2xbf16>
    %c24 = arith.constant 24 : index
    %c0_138 = arith.constant 0 : index
    %c0_139 = arith.constant 0 : index
    %243 = vector.load %arg10[%c24, %c0_138, %c0_139] : memref<25x2x4xbf16, #tpu.memory_space<vmem>>, vector<1x2x4xbf16>
    %244 = vector.shape_cast %243 : vector<1x2x4xbf16> to vector<2x4xbf16>
    %cst_140 = arith.constant dense<0.000000e+00> : vector<256x4xf32>
    %245 = tpu.matmul %242, %244, %cst_140 {dimension_numbers = #tpu.dot_dimension_numbers<[1], [0], [0], [1], [0, 0, 1, 1], [], []>} : vector<256x2xbf16>, vector<2x4xbf16>, vector<256x4xf32> -> vector<256x4xf32>
    %246 = arith.addf %240, %245 : vector<256x4xf32>
    %c0_141 = arith.constant 0 : index
    %c0_142 = arith.constant 0 : index
    %247 = vector.load %arg11[%c0_141, %c0_142] : memref<1x4xf32, #tpu.memory_space<vmem>>, vector<1x4xf32>
    %248 = vector.broadcast %247 : vector<1x4xf32> to vector<256x4xf32>
    %249 = arith.addf %246, %248 : vector<256x4xf32>
    %cst_143 = arith.constant 0.000000e+00 : f32
    %250 = vector.broadcast %cst_143 : f32 to vector<256x4xf32>
    %251 = arith.maximumf %249, %250 : vector<256x4xf32>
    %252 = vector.extract_strided_slice %1 {offsets = [0, 0, 0], sizes = [1, 16, 4], strides = [1, 1, 1]} : vector<16x16x4xbf16> to vector<1x16x4xbf16>
    %253 = vector.extract_strided_slice %1 {offsets = [0, 0, 0], sizes = [15, 16, 4], strides = [1, 1, 1]} : vector<16x16x4xbf16> to vector<15x16x4xbf16>
    %254 = tpu.concatenate %252, %253 in 0 : vector<1x16x4xbf16>, vector<15x16x4xbf16> -> vector<16x16x4xbf16>
    %255 = vector.extract_strided_slice %1 {offsets = [1, 0, 0], sizes = [15, 16, 4], strides = [1, 1, 1]} : vector<16x16x4xbf16> to vector<15x16x4xbf16>
    %256 = vector.extract_strided_slice %1 {offsets = [15, 0, 0], sizes = [1, 16, 4], strides = [1, 1, 1]} : vector<16x16x4xbf16> to vector<1x16x4xbf16>
    %257 = tpu.concatenate %255, %256 in 0 : vector<15x16x4xbf16>, vector<1x16x4xbf16> -> vector<16x16x4xbf16>
    %258 = arith.maximumf %254, %1 : vector<16x16x4xbf16>
    %259 = arith.maximumf %258, %257 : vector<16x16x4xbf16>
    %260 = vector.extract_strided_slice %259 {offsets = [0, 0, 0], sizes = [16, 1, 4], strides = [1, 1, 1]} : vector<16x16x4xbf16> to vector<16x1x4xbf16>
    %261 = vector.extract_strided_slice %259 {offsets = [0, 0, 0], sizes = [16, 15, 4], strides = [1, 1, 1]} : vector<16x16x4xbf16> to vector<16x15x4xbf16>
    %262 = tpu.concatenate %260, %261 in 1 : vector<16x1x4xbf16>, vector<16x15x4xbf16> -> vector<16x16x4xbf16>
    %263 = vector.extract_strided_slice %259 {offsets = [0, 1, 0], sizes = [16, 15, 4], strides = [1, 1, 1]} : vector<16x16x4xbf16> to vector<16x15x4xbf16>
    %264 = vector.extract_strided_slice %259 {offsets = [0, 15, 0], sizes = [16, 1, 4], strides = [1, 1, 1]} : vector<16x16x4xbf16> to vector<16x1x4xbf16>
    %265 = tpu.concatenate %263, %264 in 1 : vector<16x15x4xbf16>, vector<16x1x4xbf16> -> vector<16x16x4xbf16>
    %266 = arith.maximumf %262, %259 : vector<16x16x4xbf16>
    %267 = arith.maximumf %266, %265 : vector<16x16x4xbf16>
    %268 = vector.shape_cast %267 : vector<16x16x4xbf16> to vector<256x4xbf16>
    %c0_144 = arith.constant 0 : index
    %c0_145 = arith.constant 0 : index
    %269 = vector.load %arg12[%c0_144, %c0_145] : memref<4x4xbf16, #tpu.memory_space<vmem>>, vector<4x4xbf16>
    %cst_146 = arith.constant dense<0.000000e+00> : vector<256x4xf32>
    %270 = tpu.matmul %268, %269, %cst_146 {dimension_numbers = #tpu.dot_dimension_numbers<[1], [0], [0], [1], [0, 0, 1, 1], [], []>} : vector<256x4xbf16>, vector<4x4xbf16>, vector<256x4xf32> -> vector<256x4xf32>
    %c0_147 = arith.constant 0 : index
    %c0_148 = arith.constant 0 : index
    %271 = vector.load %arg13[%c0_147, %c0_148] : memref<1x4xf32, #tpu.memory_space<vmem>>, vector<1x4xf32>
    %272 = vector.broadcast %271 : vector<1x4xf32> to vector<256x4xf32>
    %273 = arith.addf %270, %272 : vector<256x4xf32>
    %cst_149 = arith.constant 0.000000e+00 : f32
    %274 = vector.broadcast %cst_149 : f32 to vector<256x4xf32>
    %275 = arith.maximumf %273, %274 : vector<256x4xf32>
    %276 = tpu.concatenate %9, %82, %251, %275 in 1 : vector<256x4xf32>, vector<256x8xf32>, vector<256x4xf32>, vector<256x4xf32> -> vector<256x20xf32>
    %277 = vector.shape_cast %276 : vector<256x20xf32> to vector<16x16x20xf32>
    %c0_150 = arith.constant 0 : index
    %c0_151 = arith.constant 0 : index
    %c0_152 = arith.constant 0 : index
    %c0_153 = arith.constant 0 : index
    %278 = vector.load %arg14[%c0_150, %c0_151, %c0_152, %c0_153] : memref<1x16x16x20xf32, #tpu.memory_space<vmem>>, vector<1x16x16x20xf32>
    %279 = vector.shape_cast %278 : vector<1x16x16x20xf32> to vector<16x16x20xf32>
    %280 = vector.shape_cast %277 : vector<16x16x20xf32> to vector<1x16x16x20xf32>
    tpu.vector_store %arg14[%c0_150, %c0_151, %c0_152, %c0_153], %280 {strides = array<i32>} : memref<1x16x16x20xf32, #tpu.memory_space<vmem>>, vector<1x16x16x20xf32>,
    return
  }
  func.func @transform_0(%arg0: i32) -> (i32, i32, i32, i32) {
    %c0_i32 = arith.constant 0 : i32
    %c0_i32_0 = arith.constant 0 : i32
    %c0_i32_1 = arith.constant 0 : i32
    %c0_i32_2 = arith.constant 0 : i32
    return %arg0, %c0_i32, %c0_i32_0, %c0_i32_1 : i32, i32, i32, i32
  }
  func.func @transform_1(%arg0: i32) -> (i32, i32) {
    %c0_i32 = arith.constant 0 : i32
    %c0_i32_0 = arith.constant 0 : i32
    %c0_i32_1 = arith.constant 0 : i32
    return %c0_i32, %c0_i32_0 : i32, i32
  }
  func.func @transform_2(%arg0: i32) -> (i32, i32) {
    %c0_i32 = arith.constant 0 : i32
    %c0_i32_0 = arith.constant 0 : i32
    %c0_i32_1 = arith.constant 0 : i32
    return %c0_i32, %c0_i32_0 : i32, i32
  }
  func.func @transform_3(%arg0: i32) -> (i32, i32) {
    %c0_i32 = arith.constant 0 : i32
    %c0_i32_0 = arith.constant 0 : i32
    %c0_i32_1 = arith.constant 0 : i32
    return %c0_i32, %c0_i32_0 : i32, i32
  }
  func.func @transform_4(%arg0: i32) -> (i32, i32) {
    %c0_i32 = arith.constant 0 : i32
    %c0_i32_0 = arith.constant 0 : i32
    %c0_i32_1 = arith.constant 0 : i32
    return %c0_i32, %c0_i32_0 : i32, i32
  }
  func.func @transform_5(%arg0: i32) -> (i32, i32, i32) {
    %c0_i32 = arith.constant 0 : i32
    %c0_i32_0 = arith.constant 0 : i32
    %c0_i32_1 = arith.constant 0 : i32
    %c0_i32_2 = arith.constant 0 : i32
    return %c0_i32, %c0_i32_0, %c0_i32_1 : i32, i32, i32
  }
  func.func @transform_6(%arg0: i32) -> (i32, i32) {
    %c0_i32 = arith.constant 0 : i32
    %c0_i32_0 = arith.constant 0 : i32
    %c0_i32_1 = arith.constant 0 : i32
    return %c0_i32, %c0_i32_0 : i32, i32
  }
  func.func @transform_7(%arg0: i32) -> (i32, i32) {
    %c0_i32 = arith.constant 0 : i32
    %c0_i32_0 = arith.constant 0 : i32
    %c0_i32_1 = arith.constant 0 : i32
    return %c0_i32, %c0_i32_0 : i32, i32
  }
  func.func @transform_8(%arg0: i32) -> (i32, i32) {
    %c0_i32 = arith.constant 0 : i32
    %c0_i32_0 = arith.constant 0 : i32
    %c0_i32_1 = arith.constant 0 : i32
    return %c0_i32, %c0_i32_0 : i32, i32
  }
  func.func @transform_9(%arg0: i32) -> (i32, i32, i32) {
    %c0_i32 = arith.constant 0 : i32
    %c0_i32_0 = arith.constant 0 : i32
    %c0_i32_1 = arith.constant 0 : i32
    %c0_i32_2 = arith.constant 0 : i32
    return %c0_i32, %c0_i32_0, %c0_i32_1 : i32, i32, i32
  }
  func.func @transform_10(%arg0: i32) -> (i32, i32) {
    %c0_i32 = arith.constant 0 : i32
    %c0_i32_0 = arith.constant 0 : i32
    %c0_i32_1 = arith.constant 0 : i32
    return %c0_i32, %c0_i32_0 : i32, i32
  }
  func.func @transform_11(%arg0: i32) -> (i32, i32) {
    %c0_i32 = arith.constant 0 : i32
    %c0_i32_0 = arith.constant 0 : i32
    %c0_i32_1 = arith.constant 0 : i32
    return %c0_i32, %c0_i32_0 : i32, i32
  }
  func.func @transform_12(%arg0: i32) -> (i32, i32) {
    %c0_i32 = arith.constant 0 : i32
    %c0_i32_0 = arith.constant 0 : i32
    %c0_i32_1 = arith.constant 0 : i32
    return %c0_i32, %c0_i32_0 : i32, i32
  }
  func.func @transform_13(%arg0: i32) -> (i32, i32, i32, i32) {
    %c0_i32 = arith.constant 0 : i32
    %c0_i32_0 = arith.constant 0 : i32
    %c0_i32_1 = arith.constant 0 : i32
    %c0_i32_2 = arith.constant 0 : i32
    return %arg0, %c0_i32, %c0_i32_0, %c0_i32_1 : i32, i32, i32, i32
  }
}

</mosaic_0001>

<llo_original>
// kernel: inception_forward.1
$region0: #{inception_forward.1}
  #allocation0 [shape = 'u32[]', space=smem, size = 0x4, offset = 0x4, fixed_abs, tag = 'smem constant byte address 0x4 - core index']
  #allocation1 [shape = 'u32[144,128]{1,0:T(1,128)}', space=vmem, size = 0x12000, scoped, tag = 'internal scratch']
  %s0 = inlined_call_operand.vmem [shape: bf16[2,16,16,4], index: 0, kind: input, shape index: {}]
  %s1 = inlined_call_operand.vmem [shape: bf16[4,4], index: 1, kind: input, shape index: {}]
  %s2 = inlined_call_operand.vmem [shape: f32[1,4], index: 2, kind: input, shape index: {}]
  %s3 = inlined_call_operand.vmem [shape: bf16[4,4], index: 3, kind: input, shape index: {}]
  %s4 = inlined_call_operand.vmem [shape: f32[1,4], index: 4, kind: input, shape index: {}]
  %s5 = inlined_call_operand.vmem [shape: bf16[9,4,8], index: 5, kind: input, shape index: {}]
  %s6 = inlined_call_operand.vmem [shape: f32[1,8], index: 6, kind: input, shape index: {}]
  %s7 = inlined_call_operand.vmem [shape: bf16[4,2], index: 7, kind: input, shape index: {}]
  %s8 = inlined_call_operand.vmem [shape: f32[1,2], index: 8, kind: input, shape index: {}]
  %s9 = inlined_call_operand.vmem [shape: bf16[25,2,4], index: 9, kind: input, shape index: {}]
  %s10 = inlined_call_operand.vmem [shape: f32[1,4], index: 10, kind: input, shape index: {}]
  %s11 = inlined_call_operand.vmem [shape: bf16[4,4], index: 11, kind: input, shape index: {}]
  %s12 = inlined_call_operand.vmem [shape: f32[1,4], index: 12, kind: input, shape index: {}]
  %s13 = inlined_call_operand.hbm [shape: f32[2,16,16,20], index: 13, kind: output, shape index: {}]
  %s14 = sld [smem:[#allocation0]]
  $region85: #{inception_forward.1} parent=0
    _
  %s16 = ssub.s32 1, %s14
  %s17 = scalar_select 0, %s16, %s14
  $region1: #{inception_forward.1} parent=0
    #allocation2 [shape = 'u8[262144]{0}', space=vmem, size = 0x40000, scoped, tag = 'output window, operand 0']
    #allocation3 [shape = 's32[2]{0}', space=sflag, size = 0x8, scoped, tag = 'scoped memory for inception_forward.1']
    %18 = vsyncpa [#allocation3], 0
    %s19 = scalar_lea.sflag [#allocation3], 1
    %20 = vsyncpa %s19, 0
    loop: start=0, step=1, limit=4
    $region2: #{inception_forward.1} parent=1 // loop_pre_header
      _
    $region3: #{inception_forward.1} parent=1 // loop_header
      %s22 = sphi 0, %s26
      %p23 = scmp.ge.s32.totalorder %s22, 4
      %s32 = sphi 0, %s34
      %s35 = sphi 0, %s32
      %s36 = sphi 0, %s35
      %s52 = sphi 0, %s36
      %s56 = sphi 0, %s56
      %s58 = sphi 0, %s56
      %s59 = sphi 0, %s58
      %s73 = sphi 0, %s59
      %s77 = sphi 0, %s77
      %s79 = sphi 0, %s77
      %s80 = sphi 0, %s79
      %s94 = sphi 0, %s80
      %s98 = sphi 0, %s98
      %s100 = sphi 0, %s98
      %s101 = sphi 0, %s100
      %s115 = sphi 0, %s101
      %s119 = sphi 0, %s119
      %s121 = sphi 0, %s119
      %s122 = sphi 0, %s121
      %s136 = sphi 0, %s122
      %s140 = sphi 0, %s140
      %s142 = sphi 0, %s140
      %s143 = sphi 0, %s142
      %s157 = sphi 0, %s143
      %s161 = sphi 0, %s161
      %s163 = sphi 0, %s161
      %s164 = sphi 0, %s163
      %s178 = sphi 0, %s164
      %s182 = sphi 0, %s182
      %s184 = sphi 0, %s182
      %s185 = sphi 0, %s184
      %s199 = sphi 0, %s185
      %s203 = sphi 0, %s203
      %s205 = sphi 0, %s203
      %s206 = sphi 0, %s205
      %s220 = sphi 0, %s206
      %s224 = sphi 0, %s224
      %s226 = sphi 0, %s224
      %s227 = sphi 0, %s226
      %s241 = sphi 0, %s227
      %s245 = sphi 0, %s245
      %s247 = sphi 0, %s245
      %s248 = sphi 0, %s247
      %s262 = sphi 0, %s248
      %s266 = sphi 0, %s266
      %s268 = sphi 0, %s266
      %s269 = sphi 0, %s268
      %s283 = sphi 0, %s269
      %s287 = sphi 0, %s287
      %s289 = sphi 0, %s287
      %s290 = sphi 0, %s289
      %s304 = sphi 0, %s290
      %s310 = sphi 0, %s312
      %s313 = sphi 0, %s310
      %s314 = sphi 0, %s313
      %s330 = sphi 0, %s314
    $region4: #{inception_forward.1} parent=1 // loop_header_branch
      %25 = sbr.rel (%p23) target = $region8
    $region5: #{inception_forward.1} parent=1 // loop_body
      %s27 = ssub.s32 %s22, 1
      %s28 = ssub.s32 %s22, 2
      %s29 = sadd.s32 %s22, 1
      %s30 = ssub.s32 %s22, %s29
      %p31 = scmp.eq.s32.totalorder %s30, 0
      %s33 = sadd.s32 %s32, 1
      %s34 = scalar_select %p31, %s32, %s33
      %p37 = pneg %p31
      %p38 = scmp.eq.s32.totalorder %s22, 1
      %p39 = por %p37, %p38
      %p40 = scmp.ne.s32.totalorder %s32, %s35
      %p41 = scmp.eq.s32.totalorder %s22, 0
      %p42 = por %p40, %p41
      %p43 = scmp.ne.s32.totalorder %s32, %s35
      %p44 = scmp.eq.s32.totalorder %s27, 1
      %p45 = por %p43, %p44
      %p46 = scmp.ne.s32.totalorder %s35, %s36
      %p47 = scmp.eq.s32.totalorder %s27, 0
      %p48 = por %p46, %p47
      %p49 = scmp.ne.s32.totalorder %s35, %s36
      %p50 = scmp.eq.s32.totalorder %s28, 1
      %p51 = por %p49, %p50
      %p53 = scmp.ne.s32.totalorder %s36, %s52
      %p54 = scmp.eq.s32.totalorder %s28, 0
      %p55 = por %p53, %p54
      %s57 = sadd.s32 %s56, 1
      %p60 = scmp.eq.s32.totalorder %s22, 1
      %p61 = scmp.ne.s32.totalorder %s56, %s58
      %p62 = scmp.eq.s32.totalorder %s22, 0
      %p63 = por %p61, %p62
      %p64 = scmp.ne.s32.totalorder %s56, %s58
      %p65 = scmp.eq.s32.totalorder %s27, 1
      %p66 = por %p64, %p65
      %p67 = scmp.ne.s32.totalorder %s58, %s59
      %p68 = scmp.eq.s32.totalorder %s27, 0
      %p69 = por %p67, %p68
      %p70 = scmp.ne.s32.totalorder %s58, %s59
      %p71 = scmp.eq.s32.totalorder %s28, 1
      %p72 = por %p70, %p71
      %p74 = scmp.ne.s32.totalorder %s59, %s73
      %p75 = scmp.eq.s32.totalorder %s28, 0
      %p76 = por %p74, %p75
      %s78 = sadd.s32 %s77, 1
      %p81 = scmp.eq.s32.totalorder %s22, 1
      %p82 = scmp.ne.s32.totalorder %s77, %s79
      %p83 = scmp.eq.s32.totalorder %s22, 0
      %p84 = por %p82, %p83
      %p85 = scmp.ne.s32.totalorder %s77, %s79
      %p86 = scmp.eq.s32.totalorder %s27, 1
      %p87 = por %p85, %p86
      %p88 = scmp.ne.s32.totalorder %s79, %s80
      %p89 = scmp.eq.s32.totalorder %s27, 0
      %p90 = por %p88, %p89
      %p91 = scmp.ne.s32.totalorder %s79, %s80
      %p92 = scmp.eq.s32.totalorder %s28, 1
      %p93 = por %p91, %p92
      %p95 = scmp.ne.s32.totalorder %s80, %s94
      %p96 = scmp.eq.s32.totalorder %s28, 0
      %p97 = por %p95, %p96
      %s99 = sadd.s32 %s98, 1
      %p102 = scmp.eq.s32.totalorder %s22, 1
      %p103 = scmp.ne.s32.totalorder %s98, %s100
      %p104 = scmp.eq.s32.totalorder %s22, 0
      %p105 = por %p103, %p104
      %p106 = scmp.ne.s32.totalorder %s98, %s100
      %p107 = scmp.eq.s32.totalorder %s27, 1
      %p108 = por %p106, %p107
      %p109 = scmp.ne.s32.totalorder %s100, %s101
      %p110 = scmp.eq.s32.totalorder %s27, 0
      %p111 = por %p109, %p110
      %p112 = scmp.ne.s32.totalorder %s100, %s101
      %p113 = scmp.eq.s32.totalorder %s28, 1
      %p114 = por %p112, %p113
      %p116 = scmp.ne.s32.totalorder %s101, %s115
      %p117 = scmp.eq.s32.totalorder %s28, 0
      %p118 = por %p116, %p117
      %s120 = sadd.s32 %s119, 1
      %p123 = scmp.eq.s32.totalorder %s22, 1
      %p124 = scmp.ne.s32.totalorder %s119, %s121
      %p125 = scmp.eq.s32.totalorder %s22, 0
      %p126 = por %p124, %p125
      %p127 = scmp.ne.s32.totalorder %s119, %s121
      %p128 = scmp.eq.s32.totalorder %s27, 1
      %p129 = por %p127, %p128
      %p130 = scmp.ne.s32.totalorder %s121, %s122
      %p131 = scmp.eq.s32.totalorder %s27, 0
      %p132 = por %p130, %p131
      %p133 = scmp.ne.s32.totalorder %s121, %s122
      %p134 = scmp.eq.s32.totalorder %s28, 1
      %p135 = por %p133, %p134
      %p137 = scmp.ne.s32.totalorder %s122, %s136
      %p138 = scmp.eq.s32.totalorder %s28, 0
      %p139 = por %p137, %p138
      %s141 = sadd.s32 %s140, 1
      %p144 = scmp.eq.s32.totalorder %s22, 1
      %p145 = scmp.ne.s32.totalorder %s140, %s142
      %p146 = scmp.eq.s32.totalorder %s22, 0
      %p147 = por %p145, %p146
      %p148 = scmp.ne.s32.totalorder %s140, %s142
      %p149 = scmp.eq.s32.totalorder %s27, 1
      %p150 = por %p148, %p149
      %p151 = scmp.ne.s32.totalorder %s142, %s143
      %p152 = scmp.eq.s32.totalorder %s27, 0
      %p153 = por %p151, %p152
      %p154 = scmp.ne.s32.totalorder %s142, %s143
      %p155 = scmp.eq.s32.totalorder %s28, 1
      %p156 = por %p154, %p155
      %p158 = scmp.ne.s32.totalorder %s143, %s157
      %p159 = scmp.eq.s32.totalorder %s28, 0
      %p160 = por %p158, %p159
      %s162 = sadd.s32 %s161, 1
      %p165 = scmp.eq.s32.totalorder %s22, 1
      %p166 = scmp.ne.s32.totalorder %s161, %s163
      %p167 = scmp.eq.s32.totalorder %s22, 0
      %p168 = por %p166, %p167
      %p169 = scmp.ne.s32.totalorder %s161, %s163
      %p170 = scmp.eq.s32.totalorder %s27, 1
      %p171 = por %p169, %p170
      %p172 = scmp.ne.s32.totalorder %s163, %s164
      %p173 = scmp.eq.s32.totalorder %s27, 0
      %p174 = por %p172, %p173
      %p175 = scmp.ne.s32.totalorder %s163, %s164
      %p176 = scmp.eq.s32.totalorder %s28, 1
      %p177 = por %p175, %p176
      %p179 = scmp.ne.s32.totalorder %s164, %s178
      %p180 = scmp.eq.s32.totalorder %s28, 0
      %p181 = por %p179, %p180
      %s183 = sadd.s32 %s182, 1
      %p186 = scmp.eq.s32.totalorder %s22, 1
      %p187 = scmp.ne.s32.totalorder %s182, %s184
      %p188 = scmp.eq.s32.totalorder %s22, 0
      %p189 = por %p187, %p188
      %p190 = scmp.ne.s32.totalorder %s182, %s184
      %p191 = scmp.eq.s32.totalorder %s27, 1
      %p192 = por %p190, %p191
      %p193 = scmp.ne.s32.totalorder %s184, %s185
      %p194 = scmp.eq.s32.totalorder %s27, 0
      %p195 = por %p193, %p194
      %p196 = scmp.ne.s32.totalorder %s184, %s185
      %p197 = scmp.eq.s32.totalorder %s28, 1
      %p198 = por %p196, %p197
      %p200 = scmp.ne.s32.totalorder %s185, %s199
      %p201 = scmp.eq.s32.totalorder %s28, 0
      %p202 = por %p200, %p201
      %s204 = sadd.s32 %s203, 1
      %p207 = scmp.eq.s32.totalorder %s22, 1
      %p208 = scmp.ne.s32.totalorder %s203, %s205
      %p209 = scmp.eq.s32.totalorder %s22, 0
      %p210 = por %p208, %p209
      %p211 = scmp.ne.s32.totalorder %s203, %s205
      %p212 = scmp.eq.s32.totalorder %s27, 1
      %p213 = por %p211, %p212
      %p214 = scmp.ne.s32.totalorder %s205, %s206
      %p215 = scmp.eq.s32.totalorder %s27, 0
      %p216 = por %p214, %p215
      %p217 = scmp.ne.s32.totalorder %s205, %s206
      %p218 = scmp.eq.s32.totalorder %s28, 1
      %p219 = por %p217, %p218
      %p221 = scmp.ne.s32.totalorder %s206, %s220
      %p222 = scmp.eq.s32.totalorder %s28, 0
      %p223 = por %p221, %p222
      %s225 = sadd.s32 %s224, 1
      %p228 = scmp.eq.s32.totalorder %s22, 1
      %p229 = scmp.ne.s32.totalorder %s224, %s226
      %p230 = scmp.eq.s32.totalorder %s22, 0
      %p231 = por %p229, %p230
      %p232 = scmp.ne.s32.totalorder %s224, %s226
      %p233 = scmp.eq.s32.totalorder %s27, 1
      %p234 = por %p232, %p233
      %p235 = scmp.ne.s32.totalorder %s226, %s227
      %p236 = scmp.eq.s32.totalorder %s27, 0
      %p237 = por %p235, %p236
      %p238 = scmp.ne.s32.totalorder %s226, %s227
      %p239 = scmp.eq.s32.totalorder %s28, 1
      %p240 = por %p238, %p239
      %p242 = scmp.ne.s32.totalorder %s227, %s241
      %p243 = scmp.eq.s32.totalorder %s28, 0
      %p244 = por %p242, %p243
      %s246 = sadd.s32 %s245, 1
      %p249 = scmp.eq.s32.totalorder %s22, 1
      %p250 = scmp.ne.s32.totalorder %s245, %s247
      %p251 = scmp.eq.s32.totalorder %s22, 0
      %p252 = por %p250, %p251
      %p253 = scmp.ne.s32.totalorder %s245, %s247
      %p254 = scmp.eq.s32.totalorder %s27, 1
      %p255 = por %p253, %p254
      %p256 = scmp.ne.s32.totalorder %s247, %s248
      %p257 = scmp.eq.s32.totalorder %s27, 0
      %p258 = por %p256, %p257
      %p259 = scmp.ne.s32.totalorder %s247, %s248
      %p260 = scmp.eq.s32.totalorder %s28, 1
      %p261 = por %p259, %p260
      %p263 = scmp.ne.s32.totalorder %s248, %s262
      %p264 = scmp.eq.s32.totalorder %s28, 0
      %p265 = por %p263, %p264
      %s267 = sadd.s32 %s266, 1
      %p270 = scmp.eq.s32.totalorder %s22, 1
      %p271 = scmp.ne.s32.totalorder %s266, %s268
      %p272 = scmp.eq.s32.totalorder %s22, 0
      %p273 = por %p271, %p272
      %p274 = scmp.ne.s32.totalorder %s266, %s268
      %p275 = scmp.eq.s32.totalorder %s27, 1
      %p276 = por %p274, %p275
      %p277 = scmp.ne.s32.totalorder %s268, %s269
      %p278 = scmp.eq.s32.totalorder %s27, 0
      %p279 = por %p277, %p278
      %p280 = scmp.ne.s32.totalorder %s268, %s269
      %p281 = scmp.eq.s32.totalorder %s28, 1
      %p282 = por %p280, %p281
      %p284 = scmp.ne.s32.totalorder %s269, %s283
      %p285 = scmp.eq.s32.totalorder %s28, 0
      %p286 = por %p284, %p285
      %s288 = sadd.s32 %s287, 1
      %p291 = scmp.eq.s32.totalorder %s22, 1
      %p292 = scmp.ne.s32.totalorder %s287, %s289
      %p293 = scmp.eq.s32.totalorder %s22, 0
      %p294 = por %p292, %p293
      %p295 = scmp.ne.s32.totalorder %s287, %s289
      %p296 = scmp.eq.s32.totalorder %s27, 1
      %p297 = por %p295, %p296
      %p298 = scmp.ne.s32.totalorder %s289, %s290
      %p299 = scmp.eq.s32.totalorder %s27, 0
      %p300 = por %p298, %p299
      %p301 = scmp.ne.s32.totalorder %s289, %s290
      %p302 = scmp.eq.s32.totalorder %s28, 1
      %p303 = por %p301, %p302
      %p305 = scmp.ne.s32.totalorder %s290, %s304
      %p306 = scmp.eq.s32.totalorder %s28, 0
      %p307 = por %p305, %p306
      %s308 = ssub.s32 %s22, %s29
      %p309 = scmp.eq.s32.totalorder %s308, 0
      %s311 = sadd.s32 %s310, 1
      %s312 = scalar_select %p309, %s310, %s311
      %p315 = pneg %p309
      %p316 = scmp.eq.s32.totalorder %s22, 1
      %p317 = por %p315, %p316
      %p318 = scmp.ne.s32.totalorder %s310, %s313
      %p319 = scmp.eq.s32.totalorder %s22, 0
      %p320 = por %p318, %p319
      %p321 = scmp.ne.s32.totalorder %s310, %s313
      %p322 = scmp.eq.s32.totalorder %s27, 1
      %p323 = por %p321, %p322
      %p324 = scmp.ne.s32.totalorder %s313, %s314
      %p325 = scmp.eq.s32.totalorder %s27, 0
      %p326 = por %p324, %p325
      %p327 = scmp.ne.s32.totalorder %s313, %s314
      %p328 = scmp.eq.s32.totalorder %s28, 1
      %p329 = por %p327, %p328
      %p331 = scmp.ne.s32.totalorder %s314, %s330
      %p332 = scmp.eq.s32.totalorder %s28, 0
      %p333 = por %p331, %p332
      %p334 = scmp.le.s32.totalorder 1, %s22
      %p335 = scmp.lt.s32.totalorder %s22, 3
      %p336 = pnand %p334, %p335
      %p337 = pneg %p336
      // Predicated region
      $region9: #{inception_forward.1} parent=5 // pred_check
        _
      $region10: #{inception_forward.1} parent=5 // pred_check_branch
        %339 = sbr.rel (%p336) target = $region12
      $region11: #{inception_forward.1} parent=5 // pred_region
        %s340 = ssub.s32 %s22, 1
        // Predicated region
        $region13: #{inception_forward.1} parent=11 // pred_check
          %p341 = pneg %p69
        $region14: #{inception_forward.1} parent=11 // pred_check_branch
          %343 = sbr.rel (%p341) target = $region16
        $region15: #{inception_forward.1} parent=11 // pred_region
          _
        $region16: #{inception_forward.1} parent=11 // pred_fallthru
          _
        // Predicated region
        $region17: #{inception_forward.1} parent=11 // pred_check
          %p344 = pneg %p90
        $region18: #{inception_forward.1} parent=11 // pred_check_branch
          %346 = sbr.rel (%p344) target = $region20
        $region19: #{inception_forward.1} parent=11 // pred_region
          _
        $region20: #{inception_forward.1} parent=11 // pred_fallthru
          _
        // Predicated region
        $region21: #{inception_forward.1} parent=11 // pred_check
          %p347 = pneg %p111
        $region22: #{inception_forward.1} parent=11 // pred_check_branch
          %349 = sbr.rel (%p347) target = $region24
        $region23: #{inception_forward.1} parent=11 // pred_region
          _
        $region24: #{inception_forward.1} parent=11 // pred_fallthru
          _
        // Predicated region
        $region25: #{inception_forward.1} parent=11 // pred_check
          %p350 = pneg %p132
        $region26: #{inception_forward.1} parent=11 // pred_check_branch
          %352 = sbr.rel (%p350) target = $region28
        $region27: #{inception_forward.1} parent=11 // pred_region
          _
        $region28: #{inception_forward.1} parent=11 // pred_fallthru
          _
        // Predicated region
        $region29: #{inception_forward.1} parent=11 // pred_check
          %p353 = pneg %p153
        $region30: #{inception_forward.1} parent=11 // pred_check_branch
          %355 = sbr.rel (%p353) target = $region32
        $region31: #{inception_forward.1} parent=11 // pred_region
          _
        $region32: #{inception_forward.1} parent=11 // pred_fallthru
          _
        // Predicated region
        $region33: #{inception_forward.1} parent=11 // pred_check
          %p356 = pneg %p174
        $region34: #{inception_forward.1} parent=11 // pred_check_branch
          %358 = sbr.rel (%p356) target = $region36
        $region35: #{inception_forward.1} parent=11 // pred_region
          _
        $region36: #{inception_forward.1} parent=11 // pred_fallthru
          _
        // Predicated region
        $region37: #{inception_forward.1} parent=11 // pred_check
          %p359 = pneg %p195
        $region38: #{inception_forward.1} parent=11 // pred_check_branch
          %361 = sbr.rel (%p359) target = $region40
        $region39: #{inception_forward.1} parent=11 // pred_region
          _
        $region40: #{inception_forward.1} parent=11 // pred_fallthru
          _
        // Predicated region
        $region41: #{inception_forward.1} parent=11 // pred_check
          %p362 = pneg %p216
        $region42: #{inception_forward.1} parent=11 // pred_check_branch
          %364 = sbr.rel (%p362) target = $region44
        $region43: #{inception_forward.1} parent=11 // pred_region
          _
        $region44: #{inception_forward.1} parent=11 // pred_fallthru
          _
        // Predicated region
        $region45: #{inception_forward.1} parent=11 // pred_check
          %p365 = pneg %p237
        $region46: #{inception_forward.1} parent=11 // pred_check_branch
          %367 = sbr.rel (%p365) target = $region48
        $region47: #{inception_forward.1} parent=11 // pred_region
          _
        $region48: #{inception_forward.1} parent=11 // pred_fallthru
          _
        // Predicated region
        $region49: #{inception_forward.1} parent=11 // pred_check
          %p368 = pneg %p258
        $region50: #{inception_forward.1} parent=11 // pred_check_branch
          %370 = sbr.rel (%p368) target = $region52
        $region51: #{inception_forward.1} parent=11 // pred_region
          _
        $region52: #{inception_forward.1} parent=11 // pred_fallthru
          _
        // Predicated region
        $region53: #{inception_forward.1} parent=11 // pred_check
          %p371 = pneg %p279
        $region54: #{inception_forward.1} parent=11 // pred_check_branch
          %373 = sbr.rel (%p371) target = $region56
        $region55: #{inception_forward.1} parent=11 // pred_region
          _
        $region56: #{inception_forward.1} parent=11 // pred_fallthru
          _
        // Predicated region
        $region57: #{inception_forward.1} parent=11 // pred_check
          %p374 = pneg %p300
        $region58: #{inception_forward.1} parent=11 // pred_check_branch
          %376 = sbr.rel (%p374) target = $region60
        $region59: #{inception_forward.1} parent=11 // pred_region
          _
        $region60: #{inception_forward.1} parent=11 // pred_fallthru
          _
      $region12: #{inception_forward.1} parent=5 // pred_fallthru
        _
      %p377 = scmp.lt.s32.totalorder %s22, 2
      // Predicated region
      $region61: #{inception_forward.1} parent=5 // pred_check
        %p378 = pneg %p377
      $region62: #{inception_forward.1} parent=5 // pred_check_branch
        %380 = sbr.rel (%p378) target = $region64
      $region63: #{inception_forward.1} parent=5 // pred_region
        // Predicated region
        $region65: #{inception_forward.1} parent=63 // pred_check
          %p381 = pneg %p42
        $region66: #{inception_forward.1} parent=63 // pred_check_branch
          %383 = sbr.rel (%p381) target = $region68
        $region67: #{inception_forward.1} parent=63 // pred_region
          %p384 = scmp.lt.s32.totalorder %s22, 1
          %s385 = scalar_select %p384, %s22, 1
          %s386 = smul.addr %s385, 32
          %s387 = smul.addr %s386, 4
          %s388 = scalar_lea.vmem %s0, %s387
        $region68: #{inception_forward.1} parent=63 // pred_fallthru
          _
      $region64: #{inception_forward.1} parent=5 // pred_fallthru
        _
      %p389 = scmp.le.s32.totalorder 1, %s22
      %p390 = scmp.lt.s32.totalorder %s22, 3
      %p391 = pnand %p389, %p390
      %p392 = pneg %p391
      // Predicated region
      $region69: #{inception_forward.1} parent=5 // pred_check
        _
      $region70: #{inception_forward.1} parent=5 // pred_check_branch
        %394 = sbr.rel (%p391) target = $region72
      $region71: #{inception_forward.1} parent=5 // pred_region
        %s395 = ssub.s32 %s22, 1
        %p396 = scmp.lt.s32.totalorder %s27, 1
        %s397 = scalar_select %p396, %s27, 1
        %s398 = smul.addr %s397, 32
        %s399 = smul.addr %s398, 4
        %s400 = scalar_lea.vmem %s0, %s399
        %p401 = pneg %p48
        %p402 = pneg %p45
        %p403 = pneg %p69
        %p404 = pneg %p66
        %p405 = pneg %p90
        %p406 = pneg %p87
        %p407 = pneg %p111
        %p408 = pneg %p108
        %p409 = pneg %p132
        %p410 = pneg %p129
        %p411 = pneg %p153
        %p412 = pneg %p150
        %p413 = pneg %p174
        %p414 = pneg %p171
        %p415 = pneg %p195
        %p416 = pneg %p192
        %p417 = pneg %p216
        %p418 = pneg %p213
        %p419 = pneg %p237
        %p420 = pneg %p234
        %p421 = pneg %p258
        %p422 = pneg %p255
        %p423 = pneg %p279
        %p424 = pneg %p276
        %p425 = pneg %p300
        %p426 = pneg %p297
        %p427 = pneg %p326
        %p428 = pneg %p323
        %s429 = sand.u32 %s313, 1
        %s430 = scalar_lea.sflag [#allocation3], %s429
        %s431 = sand.u32 %s313, 1
        %s432 = smul.addr %s431, 256
        %s433 = scalar_lea.vmem [#allocation2], %s432
        %p434 = scmp.lt.s32.totalorder %s27, 1
        %s435 = scalar_select %p434, %s27, 1
        %s436 = smul.addr %s435, 32
        %s437 = smul.addr %s436, 4
        %s438 = scalar_lea.vmem %s0, %s437
        %v440 = vld [vmem:[%s438] sm:$0xf]
        %v441 = vld [vmem:[%s438 + $0x4] sm:$0xf]
        %v442 = vld [vmem:[%s438 + $0x8] sm:$0xf]
        %v443 = vld [vmem:[%s438 + $0xc] sm:$0xf]
        %v444 = vld [vmem:[%s438 + $0x10] sm:$0xf]
        %v445 = vld [vmem:[%s438 + $0x14] sm:$0xf]
        %v446 = vld [vmem:[%s438 + $0x18] sm:$0xf]
        %v447 = vld [vmem:[%s438 + $0x1c] sm:$0xf]
        %v448 = vld [vmem:[%s438 + $0x20] sm:$0xf]
        %v449 = vld [vmem:[%s438 + $0x24] sm:$0xf]
        %v450 = vld [vmem:[%s438 + $0x28] sm:$0xf]
        %v451 = vld [vmem:[%s438 + $0x2c] sm:$0xf]
        %v452 = vld [vmem:[%s438 + $0x30] sm:$0xf]
        %v453 = vld [vmem:[%s438 + $0x34] sm:$0xf]
        %v454 = vld [vmem:[%s438 + $0x38] sm:$0xf]
        %v455 = vld [vmem:[%s438 + $0x3c] sm:$0xf]
        %v456 = vld [vmem:[%s438 + $0x40] sm:$0xf]
        %v457 = vld [vmem:[%s438 + $0x44] sm:$0xf]
        %v458 = vld [vmem:[%s438 + $0x48] sm:$0xf]
        %v459 = vld [vmem:[%s438 + $0x4c] sm:$0xf]
        %v460 = vld [vmem:[%s438 + $0x50] sm:$0xf]
        %v461 = vld [vmem:[%s438 + $0x54] sm:$0xf]
        %v462 = vld [vmem:[%s438 + $0x58] sm:$0xf]
        %v463 = vld [vmem:[%s438 + $0x5c] sm:$0xf]
        %v464 = vld [vmem:[%s438 + $0x60] sm:$0xf]
        %v465 = vld [vmem:[%s438 + $0x64] sm:$0xf]
        %v466 = vld [vmem:[%s438 + $0x68] sm:$0xf]
        %v467 = vld [vmem:[%s438 + $0x6c] sm:$0xf]
        %v468 = vld [vmem:[%s438 + $0x70] sm:$0xf]
        %v469 = vld [vmem:[%s438 + $0x74] sm:$0xf]
        %v470 = vld [vmem:[%s438 + $0x78] sm:$0xf]
        %v471 = vld [vmem:[%s438 + $0x7c] sm:$0xf]
        %v472 = vld [vmem:[%s1] sm:$0x3]
        %v473 = vld [vmem:[%s2] sm:$0x1]
        %v475 = vlaneseq
        %v476 = vshrl.u32 %v475, 7
        %v477 = vsub.s32 0, %v476
        %v478 = vrot.slane %v473, %v477
        %v512 = vunpack.c.l.b16 %v440
        %v513 = vunpack.c.l.b16 %v441
        %v514 = vunpack.c.l.b16 %v442
        %v515 = vunpack.c.l.b16 %v443
        %v516 = vunpack.c.l.b16 %v444
        %v517 = vunpack.c.l.b16 %v445
        %v518 = vunpack.c.l.b16 %v446
        %v519 = vunpack.c.l.b16 %v447
        %v520 = vunpack.c.l.b16 %v448
        %v521 = vunpack.c.l.b16 %v449
        %v522 = vunpack.c.l.b16 %v450
        %v523 = vunpack.c.l.b16 %v451
        %v524 = vunpack.c.l.b16 %v452
        %v525 = vunpack.c.l.b16 %v453
        %v526 = vunpack.c.l.b16 %v454
        %v527 = vunpack.c.l.b16 %v455
        %v528 = vunpack.c.l.b16 %v456
        %v529 = vunpack.c.l.b16 %v457
        %v530 = vunpack.c.l.b16 %v458
        %v531 = vunpack.c.l.b16 %v459
        %v532 = vunpack.c.l.b16 %v460
        %v533 = vunpack.c.l.b16 %v461
        %v534 = vunpack.c.l.b16 %v462
        %v535 = vunpack.c.l.b16 %v463
        %v536 = vunpack.c.l.b16 %v464
        %v537 = vunpack.c.l.b16 %v465
        %v538 = vunpack.c.l.b16 %v466
        %v539 = vunpack.c.l.b16 %v467
        %v540 = vunpack.c.l.b16 %v468
        %v541 = vunpack.c.l.b16 %v469
        %v542 = vunpack.c.l.b16 %v470
        %v543 = vunpack.c.l.b16 %v471
        %v544 = vpack.c.b16 %v513, %v512
        %v545 = vpack.c.b16 %v515, %v514
        %v546 = vpack.c.b16 %v517, %v516
        %v547 = vpack.c.b16 %v519, %v518
        %v548 = vpack.c.b16 %v521, %v520
        %v549 = vpack.c.b16 %v523, %v522
        %v550 = vpack.c.b16 %v525, %v524
        %v551 = vpack.c.b16 %v527, %v526
        %v552 = vpack.c.b16 %v529, %v528
        %v553 = vpack.c.b16 %v531, %v530
        %v554 = vpack.c.b16 %v533, %v532
        %v555 = vpack.c.b16 %v535, %v534
        %v556 = vpack.c.b16 %v537, %v536
        %v557 = vpack.c.b16 %v539, %v538
        %v558 = vpack.c.b16 %v541, %v540
        %v559 = vpack.c.b16 %v543, %v542
        %vm560 = vcmask 31744
        %v562 = vsel %vm560, %v544, 0
        %v565 = vsel %vm560, %v545, 0
        %v568 = vsel %vm560, %v546, 0
        %v571 = vsel %vm560, %v547, 0
        %v574 = vsel %vm560, %v548, 0
        %v577 = vsel %vm560, %v549, 0
        %v580 = vsel %vm560, %v550, 0
        %v583 = vsel %vm560, %v551, 0
        %v586 = vsel %vm560, %v552, 0
        %v589 = vsel %vm560, %v553, 0
        %v592 = vsel %vm560, %v554, 0
        %v595 = vsel %vm560, %v555, 0
        %v598 = vsel %vm560, %v556, 0
        %v601 = vsel %vm560, %v557, 0
        %v604 = vsel %vm560, %v558, 0
        %v607 = vsel %vm560, %v559, 0
        %vm609 = vcmask 1041408
        %v611 = vsel %vm609, %v472, 0
        %613 = vmatprep.subr.bf16.mxu0 0
        %614 = vmatpush1.bf16.msra.mxu0 0
        %615 = vmatprep.subr.bf16.mxu0 0
        %616 = vmatpush1.bf16.msra.mxu0 0
        %617 = vmatprep.subr.bf16.mxu0 0
        %618 = vmatpush1.bf16.msra.mxu0 0
        %619 = vmatprep.subr.bf16.mxu0 0
        %620 = vmatpush1.bf16.msra.mxu0 0
        %621 = vmatprep.subr.bf16.mxu0 0
        %622 = vmatpush1.bf16.msra.mxu0 0
        %623 = vmatprep.subr.bf16.mxu0 0
        %624 = vmatpush1.bf16.msra.mxu0 0
        %625 = vmatprep.subr.bf16.mxu0 0
        %626 = vmatpush1.bf16.msra.mxu0 0
        %627 = vmatprep.subr.bf16.mxu0 0
        %628 = vmatpush1.bf16.msra.mxu0 %v611
        %629 = vmatprep.subr.bf16.mxu0 0
        %630 = vmatpush2.bf16.msra.mxu0 0
        %631 = vmatprep.subr.bf16.mxu0 0
        %632 = vmatpush2.bf16.msra.mxu0 0
        %633 = vmatprep.subr.bf16.mxu0 0
        %634 = vmatpush2.bf16.msra.mxu0 0
        %635 = vmatprep.subr.bf16.mxu0 0
        %636 = vmatpush2.bf16.msra.mxu0 0
        %637 = vmatprep.subr.bf16.mxu0 0
        %638 = vmatpush2.bf16.msra.mxu0 0
        %639 = vmatprep.subr.bf16.mxu0 0
        %640 = vmatpush2.bf16.msra.mxu0 0
        %641 = vmatprep.subr.bf16.mxu0 0
        %642 = vmatpush2.bf16.msra.mxu0 0
        %643 = vmatprep.subr.bf16.mxu0 0
        %644 = vmatpush2.bf16.msra.mxu0 0
        %645 = vmatprep.mubr.bf16.mxu0 0
        %646 = vmatmul.mubr.bf16.gmra.mxu0 %v562
        %v647 = vpop.f32.mrf.mxu0
        %v648 = vadd.f32 %v478, %v647
        %v649 = vpop.f32.mrf.mxu0
        %v650 = vpop.f32.mrf.mxu0
        %v651 = vadd.f32 %v478, %v650
        %v652 = vpop.f32.mrf.mxu0
        %653 = vmatprep.mubr.bf16.mxu0 0
        %654 = vmatmul.mubr.bf16.gmra.mxu0 %v565
        %v655 = vpop.f32.mrf.mxu0
        %v656 = vadd.f32 %v478, %v655
        %v657 = vpop.f32.mrf.mxu0
        %v658 = vpop.f32.mrf.mxu0
        %v659 = vadd.f32 %v478, %v658
        %v660 = vpop.f32.mrf.mxu0
        %661 = vmatprep.mubr.bf16.mxu0 0
        %662 = vmatmul.mubr.bf16.gmra.mxu0 %v568
        %v663 = vpop.f32.mrf.mxu0
        %v664 = vadd.f32 %v478, %v663
        %v665 = vpop.f32.mrf.mxu0
        %v666 = vpop.f32.mrf.mxu0
        %v667 = vadd.f32 %v478, %v666
        %v668 = vpop.f32.mrf.mxu0
        %669 = vmatprep.mubr.bf16.mxu0 0
        %670 = vmatmul.mubr.bf16.gmra.mxu0 %v571
        %v671 = vpop.f32.mrf.mxu0
        %v672 = vadd.f32 %v478, %v671
        %v673 = vpop.f32.mrf.mxu0
        %v674 = vpop.f32.mrf.mxu0
        %v675 = vadd.f32 %v478, %v674
        %v676 = vpop.f32.mrf.mxu0
        %677 = vmatprep.mubr.bf16.mxu0 0
        %678 = vmatmul.mubr.bf16.gmra.mxu0 %v574
        %v679 = vpop.f32.mrf.mxu0
        %v680 = vadd.f32 %v478, %v679
        %v681 = vpop.f32.mrf.mxu0
        %v682 = vpop.f32.mrf.mxu0
        %v683 = vadd.f32 %v478, %v682
        %v684 = vpop.f32.mrf.mxu0
        %685 = vmatprep.mubr.bf16.mxu0 0
        %686 = vmatmul.mubr.bf16.gmra.mxu0 %v577
        %v687 = vpop.f32.mrf.mxu0
        %v688 = vadd.f32 %v478, %v687
        %v689 = vpop.f32.mrf.mxu0
        %v690 = vpop.f32.mrf.mxu0
        %v691 = vadd.f32 %v478, %v690
        %v692 = vpop.f32.mrf.mxu0
        %693 = vmatprep.mubr.bf16.mxu0 0
        %694 = vmatmul.mubr.bf16.gmra.mxu0 %v580
        %v695 = vpop.f32.mrf.mxu0
        %v696 = vadd.f32 %v478, %v695
        %v697 = vpop.f32.mrf.mxu0
        %v698 = vpop.f32.mrf.mxu0
        %v699 = vadd.f32 %v478, %v698
        %v700 = vpop.f32.mrf.mxu0
        %701 = vmatprep.mubr.bf16.mxu0 0
        %702 = vmatmul.mubr.bf16.gmra.mxu0 %v583
        %v703 = vpop.f32.mrf.mxu0
        %v704 = vadd.f32 %v478, %v703
        %v705 = vpop.f32.mrf.mxu0
        %v706 = vpop.f32.mrf.mxu0
        %v707 = vadd.f32 %v478, %v706
        %v708 = vpop.f32.mrf.mxu0
        %709 = vmatprep.mubr.bf16.mxu0 0
        %710 = vmatmul.mubr.bf16.gmra.mxu0 %v586
        %v711 = vpop.f32.mrf.mxu0
        %v712 = vadd.f32 %v478, %v711
        %v713 = vpop.f32.mrf.mxu0
        %v714 = vpop.f32.mrf.mxu0
        %v715 = vadd.f32 %v478, %v714
        %v716 = vpop.f32.mrf.mxu0
        %717 = vmatprep.mubr.bf16.mxu0 0
        %718 = vmatmul.mubr.bf16.gmra.mxu0 %v589
        %v719 = vpop.f32.mrf.mxu0
        %v720 = vadd.f32 %v478, %v719
        %v721 = vpop.f32.mrf.mxu0
        %v722 = vpop.f32.mrf.mxu0
        %v723 = vadd.f32 %v478, %v722
        %v724 = vpop.f32.mrf.mxu0
        %725 = vmatprep.mubr.bf16.mxu0 0
        %726 = vmatmul.mubr.bf16.gmra.mxu0 %v592
        %v727 = vpop.f32.mrf.mxu0
        %v728 = vadd.f32 %v478, %v727
        %v729 = vpop.f32.mrf.mxu0
        %v730 = vpop.f32.mrf.mxu0
        %v731 = vadd.f32 %v478, %v730
        %v732 = vpop.f32.mrf.mxu0
        %733 = vmatprep.mubr.bf16.mxu0 0
        %734 = vmatmul.mubr.bf16.gmra.mxu0 %v595
        %v735 = vpop.f32.mrf.mxu0
        %v736 = vadd.f32 %v478, %v735
        %v737 = vpop.f32.mrf.mxu0
        %v738 = vpop.f32.mrf.mxu0
        %v739 = vadd.f32 %v478, %v738
        %v740 = vpop.f32.mrf.mxu0
        %741 = vmatprep.mubr.bf16.mxu0 0
        %742 = vmatmul.mubr.bf16.gmra.mxu0 %v598
        %v743 = vpop.f32.mrf.mxu0
        %v744 = vadd.f32 %v478, %v743
        %v745 = vpop.f32.mrf.mxu0
        %v746 = vpop.f32.mrf.mxu0
        %v747 = vadd.f32 %v478, %v746
        %v748 = vpop.f32.mrf.mxu0
        %749 = vmatprep.mubr.bf16.mxu0 0
        %750 = vmatmul.mubr.bf16.gmra.mxu0 %v601
        %v751 = vpop.f32.mrf.mxu0
        %v752 = vadd.f32 %v478, %v751
        %v753 = vpop.f32.mrf.mxu0
        %v754 = vpop.f32.mrf.mxu0
        %v755 = vadd.f32 %v478, %v754
        %v756 = vpop.f32.mrf.mxu0
        %757 = vmatprep.mubr.bf16.mxu0 0
        %758 = vmatmul.mubr.bf16.gmra.mxu0 %v604
        %v759 = vpop.f32.mrf.mxu0
        %v760 = vadd.f32 %v478, %v759
        %v761 = vpop.f32.mrf.mxu0
        %v762 = vpop.f32.mrf.mxu0
        %v763 = vadd.f32 %v478, %v762
        %v764 = vpop.f32.mrf.mxu0
        %765 = vmatprep.mubr.bf16.mxu0 0
        %766 = vmatmul.mubr.bf16.gmra.mxu0 %v607
        %v767 = vpop.f32.mrf.mxu0
        %v768 = vadd.f32 %v478, %v767
        %v769 = vpop.f32.mrf.mxu0
        %v770 = vpop.f32.mrf.mxu0
        %v771 = vadd.f32 %v478, %v770
        %v772 = vpop.f32.mrf.mxu0
        %773 = vdwg.mxu0
        %v774 = vmax.f32 %v648, 0.0
        %v775 = vmax.f32 %v651, 0.0
        %v776 = vmax.f32 %v656, 0.0
        %v777 = vmax.f32 %v659, 0.0
        %v778 = vmax.f32 %v664, 0.0
        %v779 = vmax.f32 %v667, 0.0
        %v780 = vmax.f32 %v672, 0.0
        %v781 = vmax.f32 %v675, 0.0
        %v782 = vmax.f32 %v680, 0.0
        %v783 = vmax.f32 %v683, 0.0
        %v784 = vmax.f32 %v688, 0.0
        %v785 = vmax.f32 %v691, 0.0
        %v786 = vmax.f32 %v696, 0.0
        %v787 = vmax.f32 %v699, 0.0
        %v788 = vmax.f32 %v704, 0.0
        %v789 = vmax.f32 %v707, 0.0
        %v790 = vmax.f32 %v712, 0.0
        %v791 = vmax.f32 %v715, 0.0
        %v792 = vmax.f32 %v720, 0.0
        %v793 = vmax.f32 %v723, 0.0
        %v794 = vmax.f32 %v728, 0.0
        %v795 = vmax.f32 %v731, 0.0
        %v796 = vmax.f32 %v736, 0.0
        %v797 = vmax.f32 %v739, 0.0
        %v798 = vmax.f32 %v744, 0.0
        %v799 = vmax.f32 %v747, 0.0
        %v800 = vmax.f32 %v752, 0.0
        %v801 = vmax.f32 %v755, 0.0
        %v802 = vmax.f32 %v760, 0.0
        %v803 = vmax.f32 %v763, 0.0
        %v804 = vmax.f32 %v768, 0.0
        %v805 = vmax.f32 %v771, 0.0
        %v806 = vld [vmem:[%s3] sm:$0x3]
        %v807 = vld [vmem:[%s4] sm:$0x1]
        %v809 = vlaneseq
        %v810 = vshrl.u32 %v809, 7
        %v811 = vsub.s32 0, %v810
        %v812 = vrot.slane %v807, %v811
        %v815 = vsel %vm609, %v806, 0
        %817 = vmatprep.subr.bf16.mxu0 0
        %818 = vmatpush1.bf16.msra.mxu0 0
        %819 = vmatprep.subr.bf16.mxu0 0
        %820 = vmatpush1.bf16.msra.mxu0 0
        %821 = vmatprep.subr.bf16.mxu0 0
        %822 = vmatpush1.bf16.msra.mxu0 0
        %823 = vmatprep.subr.bf16.mxu0 0
        %824 = vmatpush1.bf16.msra.mxu0 0
        %825 = vmatprep.subr.bf16.mxu0 0
        %826 = vmatpush1.bf16.msra.mxu0 0
        %827 = vmatprep.subr.bf16.mxu0 0
        %828 = vmatpush1.bf16.msra.mxu0 0
        %829 = vmatprep.subr.bf16.mxu0 0
        %830 = vmatpush1.bf16.msra.mxu0 0
        %831 = vmatprep.subr.bf16.mxu0 0
        %832 = vmatpush1.bf16.msra.mxu0 %v815
        %833 = vmatprep.subr.bf16.mxu0 0
        %834 = vmatpush2.bf16.msra.mxu0 0
        %835 = vmatprep.subr.bf16.mxu0 0
        %836 = vmatpush2.bf16.msra.mxu0 0
        %837 = vmatprep.subr.bf16.mxu0 0
        %838 = vmatpush2.bf16.msra.mxu0 0
        %839 = vmatprep.subr.bf16.mxu0 0
        %840 = vmatpush2.bf16.msra.mxu0 0
        %841 = vmatprep.subr.bf16.mxu0 0
        %842 = vmatpush2.bf16.msra.mxu0 0
        %843 = vmatprep.subr.bf16.mxu0 0
        %844 = vmatpush2.bf16.msra.mxu0 0
        %845 = vmatprep.subr.bf16.mxu0 0
        %846 = vmatpush2.bf16.msra.mxu0 0
        %847 = vmatprep.subr.bf16.mxu0 0
        %848 = vmatpush2.bf16.msra.mxu0 0
        %849 = vmatprep.mubr.bf16.mxu0 0
        %850 = vmatmul.mubr.bf16.gmra.mxu0 %v562
        %v851 = vpop.f32.mrf.mxu0
        %v852 = vadd.f32 %v812, %v851
        %v853 = vpop.f32.mrf.mxu0
        %v854 = vpop.f32.mrf.mxu0
        %v855 = vadd.f32 %v812, %v854
        %v856 = vpop.f32.mrf.mxu0
        %857 = vmatprep.mubr.bf16.mxu0 0
        %858 = vmatmul.mubr.bf16.gmra.mxu0 %v565
        %v859 = vpop.f32.mrf.mxu0
        %v860 = vadd.f32 %v812, %v859
        %v861 = vpop.f32.mrf.mxu0
        %v862 = vpop.f32.mrf.mxu0
        %v863 = vadd.f32 %v812, %v862
        %v864 = vpop.f32.mrf.mxu0
        %865 = vmatprep.mubr.bf16.mxu0 0
        %866 = vmatmul.mubr.bf16.gmra.mxu0 %v568
        %v867 = vpop.f32.mrf.mxu0
        %v868 = vadd.f32 %v812, %v867
        %v869 = vpop.f32.mrf.mxu0
        %v870 = vpop.f32.mrf.mxu0
        %v871 = vadd.f32 %v812, %v870
        %v872 = vpop.f32.mrf.mxu0
        %873 = vmatprep.mubr.bf16.mxu0 0
        %874 = vmatmul.mubr.bf16.gmra.mxu0 %v571
        %v875 = vpop.f32.mrf.mxu0
        %v876 = vadd.f32 %v812, %v875
        %v877 = vpop.f32.mrf.mxu0
        %v878 = vpop.f32.mrf.mxu0
        %v879 = vadd.f32 %v812, %v878
        %v880 = vpop.f32.mrf.mxu0
        %881 = vmatprep.mubr.bf16.mxu0 0
        %882 = vmatmul.mubr.bf16.gmra.mxu0 %v574
        %v883 = vpop.f32.mrf.mxu0
        %v884 = vadd.f32 %v812, %v883
        %v885 = vpop.f32.mrf.mxu0
        %v886 = vpop.f32.mrf.mxu0
        %v887 = vadd.f32 %v812, %v886
        %v888 = vpop.f32.mrf.mxu0
        %889 = vmatprep.mubr.bf16.mxu0 0
        %890 = vmatmul.mubr.bf16.gmra.mxu0 %v577
        %v891 = vpop.f32.mrf.mxu0
        %v892 = vadd.f32 %v812, %v891
        %v893 = vpop.f32.mrf.mxu0
        %v894 = vpop.f32.mrf.mxu0
        %v895 = vadd.f32 %v812, %v894
        %v896 = vpop.f32.mrf.mxu0
        %897 = vmatprep.mubr.bf16.mxu0 0
        %898 = vmatmul.mubr.bf16.gmra.mxu0 %v580
        %v899 = vpop.f32.mrf.mxu0
        %v900 = vadd.f32 %v812, %v899
        %v901 = vpop.f32.mrf.mxu0
        %v902 = vpop.f32.mrf.mxu0
        %v903 = vadd.f32 %v812, %v902
        %v904 = vpop.f32.mrf.mxu0
        %905 = vmatprep.mubr.bf16.mxu0 0
        %906 = vmatmul.mubr.bf16.gmra.mxu0 %v583
        %v907 = vpop.f32.mrf.mxu0
        %v908 = vadd.f32 %v812, %v907
        %v909 = vpop.f32.mrf.mxu0
        %v910 = vpop.f32.mrf.mxu0
        %v911 = vadd.f32 %v812, %v910
        %v912 = vpop.f32.mrf.mxu0
        %913 = vmatprep.mubr.bf16.mxu0 0
        %914 = vmatmul.mubr.bf16.gmra.mxu0 %v586
        %v915 = vpop.f32.mrf.mxu0
        %v916 = vadd.f32 %v812, %v915
        %v917 = vpop.f32.mrf.mxu0
        %v918 = vpop.f32.mrf.mxu0
        %v919 = vadd.f32 %v812, %v918
        %v920 = vpop.f32.mrf.mxu0
        %921 = vmatprep.mubr.bf16.mxu0 0
        %922 = vmatmul.mubr.bf16.gmra.mxu0 %v589
        %v923 = vpop.f32.mrf.mxu0
        %v924 = vadd.f32 %v812, %v923
        %v925 = vpop.f32.mrf.mxu0
        %v926 = vpop.f32.mrf.mxu0
        %v927 = vadd.f32 %v812, %v926
        %v928 = vpop.f32.mrf.mxu0
        %929 = vmatprep.mubr.bf16.mxu0 0
        %930 = vmatmul.mubr.bf16.gmra.mxu0 %v592
        %v931 = vpop.f32.mrf.mxu0
        %v932 = vadd.f32 %v812, %v931
        %v933 = vpop.f32.mrf.mxu0
        %v934 = vpop.f32.mrf.mxu0
        %v935 = vadd.f32 %v812, %v934
        %v936 = vpop.f32.mrf.mxu0
        %937 = vmatprep.mubr.bf16.mxu0 0
        %938 = vmatmul.mubr.bf16.gmra.mxu0 %v595
        %v939 = vpop.f32.mrf.mxu0
        %v940 = vadd.f32 %v812, %v939
        %v941 = vpop.f32.mrf.mxu0
        %v942 = vpop.f32.mrf.mxu0
        %v943 = vadd.f32 %v812, %v942
        %v944 = vpop.f32.mrf.mxu0
        %945 = vmatprep.mubr.bf16.mxu0 0
        %946 = vmatmul.mubr.bf16.gmra.mxu0 %v598
        %v947 = vpop.f32.mrf.mxu0
        %v948 = vadd.f32 %v812, %v947
        %v949 = vpop.f32.mrf.mxu0
        %v950 = vpop.f32.mrf.mxu0
        %v951 = vadd.f32 %v812, %v950
        %v952 = vpop.f32.mrf.mxu0
        %953 = vmatprep.mubr.bf16.mxu0 0
        %954 = vmatmul.mubr.bf16.gmra.mxu0 %v601
        %v955 = vpop.f32.mrf.mxu0
        %v956 = vadd.f32 %v812, %v955
        %v957 = vpop.f32.mrf.mxu0
        %v958 = vpop.f32.mrf.mxu0
        %v959 = vadd.f32 %v812, %v958
        %v960 = vpop.f32.mrf.mxu0
        %961 = vmatprep.mubr.bf16.mxu0 0
        %962 = vmatmul.mubr.bf16.gmra.mxu0 %v604
        %v963 = vpop.f32.mrf.mxu0
        %v964 = vadd.f32 %v812, %v963
        %v965 = vpop.f32.mrf.mxu0
        %v966 = vpop.f32.mrf.mxu0
        %v967 = vadd.f32 %v812, %v966
        %v968 = vpop.f32.mrf.mxu0
        %969 = vmatprep.mubr.bf16.mxu0 0
        %970 = vmatmul.mubr.bf16.gmra.mxu0 %v607
        %v971 = vpop.f32.mrf.mxu0
        %v972 = vadd.f32 %v812, %v971
        %v973 = vpop.f32.mrf.mxu0
        %v974 = vpop.f32.mrf.mxu0
        %v975 = vadd.f32 %v812, %v974
        %v976 = vpop.f32.mrf.mxu0
        %977 = vdwg.mxu0
        %v978 = vmax.f32 %v852, 0.0
        %v979 = vmax.f32 %v855, 0.0
        %v980 = vmax.f32 %v860, 0.0
        %v981 = vmax.f32 %v863, 0.0
        %v982 = vmax.f32 %v868, 0.0
        %v983 = vmax.f32 %v871, 0.0
        %v984 = vmax.f32 %v876, 0.0
        %v985 = vmax.f32 %v879, 0.0
        %v986 = vmax.f32 %v884, 0.0
        %v987 = vmax.f32 %v887, 0.0
        %v988 = vmax.f32 %v892, 0.0
        %v989 = vmax.f32 %v895, 0.0
        %v990 = vmax.f32 %v900, 0.0
        %v991 = vmax.f32 %v903, 0.0
        %v992 = vmax.f32 %v908, 0.0
        %v993 = vmax.f32 %v911, 0.0
        %v994 = vmax.f32 %v916, 0.0
        %v995 = vmax.f32 %v919, 0.0
        %v996 = vmax.f32 %v924, 0.0
        %v997 = vmax.f32 %v927, 0.0
        %v998 = vmax.f32 %v932, 0.0
        %v999 = vmax.f32 %v935, 0.0
        %v1000 = vmax.f32 %v940, 0.0
        %v1001 = vmax.f32 %v943, 0.0
        %v1002 = vmax.f32 %v948, 0.0
        %v1003 = vmax.f32 %v951, 0.0
        %v1004 = vmax.f32 %v956, 0.0
        %v1005 = vmax.f32 %v959, 0.0
        %v1006 = vmax.f32 %v964, 0.0
        %v1007 = vmax.f32 %v967, 0.0
        %v1008 = vmax.f32 %v972, 0.0
        %v1009 = vmax.f32 %v975, 0.0
        %v1010 = vpack.c.bf16 %v979, %v978
        %v1011 = vpack.c.bf16 %v981, %v980
        %v1012 = vpack.c.bf16 %v983, %v982
        %v1013 = vpack.c.bf16 %v985, %v984
        %v1014 = vpack.c.bf16 %v987, %v986
        %v1015 = vpack.c.bf16 %v989, %v988
        %v1016 = vpack.c.bf16 %v991, %v990
        %v1017 = vpack.c.bf16 %v993, %v992
        %v1018 = vpack.c.bf16 %v995, %v994
        %v1019 = vpack.c.bf16 %v997, %v996
        %v1020 = vpack.c.bf16 %v999, %v998
        %v1021 = vpack.c.bf16 %v1001, %v1000
        %v1022 = vpack.c.bf16 %v1003, %v1002
        %v1023 = vpack.c.bf16 %v1005, %v1004
        %v1024 = vpack.c.bf16 %v1007, %v1006
        %v1025 = vpack.c.bf16 %v1009, %v1008
        %v1027 = vshrl.u32 0, 16
        %v1029 = vrot.slane %v1027, 7
        %v1030 = vshll.u32 0, 16
        %v1032 = vor.u32 %v1029, %v1030
        %v1034 = vshrl.u32 %v1010, 16
        %v1036 = vrot.slane %v1034, 7
        %v1037 = vshll.u32 %v1010, 16
        %v1039 = vor.u32 %v1036, %v1037
        %v1041 = vshrl.u32 %v1011, 16
        %v1043 = vrot.slane %v1041, 7
        %v1044 = vshll.u32 %v1011, 16
        %v1046 = vor.u32 %v1043, %v1044
        %v1048 = vshrl.u32 %v1012, 16
        %v1050 = vrot.slane %v1048, 7
        %v1051 = vshll.u32 %v1012, 16
        %v1053 = vor.u32 %v1050, %v1051
        %v1055 = vshrl.u32 %v1013, 16
        %v1057 = vrot.slane %v1055, 7
        %v1058 = vshll.u32 %v1013, 16
        %v1060 = vor.u32 %v1057, %v1058
        %v1062 = vshrl.u32 %v1014, 16
        %v1064 = vrot.slane %v1062, 7
        %v1065 = vshll.u32 %v1014, 16
        %v1067 = vor.u32 %v1064, %v1065
        %v1069 = vshrl.u32 %v1015, 16
        %v1071 = vrot.slane %v1069, 7
        %v1072 = vshll.u32 %v1015, 16
        %v1074 = vor.u32 %v1071, %v1072
        %v1076 = vshrl.u32 %v1016, 16
        %v1078 = vrot.slane %v1076, 7
        %v1079 = vshll.u32 %v1016, 16
        %v1081 = vor.u32 %v1078, %v1079
        %v1083 = vshrl.u32 %v1017, 16
        %v1085 = vrot.slane %v1083, 7
        %v1086 = vshll.u32 %v1017, 16
        %v1088 = vor.u32 %v1085, %v1086
        %v1090 = vshrl.u32 %v1018, 16
        %v1092 = vrot.slane %v1090, 7
        %v1093 = vshll.u32 %v1018, 16
        %v1095 = vor.u32 %v1092, %v1093
        %v1097 = vshrl.u32 %v1019, 16
        %v1099 = vrot.slane %v1097, 7
        %v1100 = vshll.u32 %v1019, 16
        %v1102 = vor.u32 %v1099, %v1100
        %v1104 = vshrl.u32 %v1020, 16
        %v1106 = vrot.slane %v1104, 7
        %v1107 = vshll.u32 %v1020, 16
        %v1109 = vor.u32 %v1106, %v1107
        %v1111 = vshrl.u32 %v1021, 16
        %v1113 = vrot.slane %v1111, 7
        %v1114 = vshll.u32 %v1021, 16
        %v1116 = vor.u32 %v1113, %v1114
        %v1118 = vshrl.u32 %v1022, 16
        %v1120 = vrot.slane %v1118, 7
        %v1121 = vshll.u32 %v1022, 16
        %v1123 = vor.u32 %v1120, %v1121
        %v1125 = vshrl.u32 %v1023, 16
        %v1127 = vrot.slane %v1125, 7
        %v1128 = vshll.u32 %v1023, 16
        %v1130 = vor.u32 %v1127, %v1128
        %v1132 = vshrl.u32 %v1024, 16
        %v1134 = vrot.slane %v1132, 7
        %v1135 = vshll.u32 %v1024, 16
        %v1137 = vor.u32 %v1134, %v1135
        %v1139 = vshrl.u32 %v1025, 16
        %v1141 = vrot.slane %v1139, 7
        %v1142 = vshll.u32 %v1025, 16
        %v1144 = vor.u32 %v1141, %v1142
        %vm1179 = vcmask 1040384
        %vm1180 = vsmask.f32 256
        %vm1181 = vmand %vm1179, %vm1180
        %v1182 = vsel %vm1181, 0, %v1032
        %v1183 = vsel %vm1181, 0, %v1039
        %v1184 = vsel %vm1181, 0, %v1046
        %v1185 = vsel %vm1181, 0, %v1053
        %v1186 = vsel %vm1181, 0, %v1060
        %v1187 = vsel %vm1181, 0, %v1067
        %v1188 = vsel %vm1181, 0, %v1074
        %v1189 = vsel %vm1181, 0, %v1081
        %v1190 = vsel %vm1181, 0, %v1088
        %v1191 = vsel %vm1181, 0, %v1095
        %v1192 = vsel %vm1181, 0, %v1102
        %v1193 = vsel %vm1181, 0, %v1109
        %v1194 = vsel %vm1181, 0, %v1116
        %v1195 = vsel %vm1181, 0, %v1123
        %v1196 = vsel %vm1181, 0, %v1130
        %v1197 = vsel %vm1181, 0, %v1137
        %v1198 = vsel %vm1181, 0, %v1144
        %v1199 = vsel %vm1181, %v1029, 0
        %v1200 = vsel %vm1181, %v1036, 0
        %v1201 = vsel %vm1181, %v1043, 0
        %v1202 = vsel %vm1181, %v1050, 0
        %v1203 = vsel %vm1181, %v1057, 0
        %v1204 = vsel %vm1181, %v1064, 0
        %v1205 = vsel %vm1181, %v1071, 0
        %v1206 = vsel %vm1181, %v1078, 0
        %v1207 = vsel %vm1181, %v1085, 0
        %v1208 = vsel %vm1181, %v1092, 0
        %v1209 = vsel %vm1181, %v1099, 0
        %v1210 = vsel %vm1181, %v1106, 0
        %v1211 = vsel %vm1181, %v1113, 0
        %v1212 = vsel %vm1181, %v1120, 0
        %v1213 = vsel %vm1181, %v1127, 0
        %v1214 = vsel %vm1181, %v1134, 0
        %v1215 = vsel %vm1181, %v1141, 0
        %v1216 = vld [vmem:[%s5] sm:$0x3]
        %vm1217 = vsmask.f32 7424
        %v1219 = vshrl.u32 %v1182, 16
        %v1221 = vshll.u32 %v1182, 16
        %v1223 = vrot.slane %v1221, 1
        %v1224 = vor.u32 %v1219, %v1223
        %v1226 = vshll.u32 %v1199, 16
        %v1228 = vrot.slane %v1226, 1
        %v1229 = vsel %vm1217, %v1224, %v1228
        %v1231 = vshrl.u32 %v1183, 16
        %v1233 = vshll.u32 %v1183, 16
        %v1235 = vrot.slane %v1233, 1
        %v1236 = vor.u32 %v1231, %v1235
        %v1238 = vshll.u32 %v1200, 16
        %v1240 = vrot.slane %v1238, 1
        %v1241 = vsel %vm1217, %v1236, %v1240
        %v1243 = vshrl.u32 %v1184, 16
        %v1245 = vshll.u32 %v1184, 16
        %v1247 = vrot.slane %v1245, 1
        %v1248 = vor.u32 %v1243, %v1247
        %v1250 = vshll.u32 %v1201, 16
        %v1252 = vrot.slane %v1250, 1
        %v1253 = vsel %vm1217, %v1248, %v1252
        %v1255 = vshrl.u32 %v1185, 16
        %v1257 = vshll.u32 %v1185, 16
        %v1259 = vrot.slane %v1257, 1
        %v1260 = vor.u32 %v1255, %v1259
        %v1262 = vshll.u32 %v1202, 16
        %v1264 = vrot.slane %v1262, 1
        %v1265 = vsel %vm1217, %v1260, %v1264
        %v1267 = vshrl.u32 %v1186, 16
        %v1269 = vshll.u32 %v1186, 16
        %v1271 = vrot.slane %v1269, 1
        %v1272 = vor.u32 %v1267, %v1271
        %v1274 = vshll.u32 %v1203, 16
        %v1276 = vrot.slane %v1274, 1
        %v1277 = vsel %vm1217, %v1272, %v1276
        %v1279 = vshrl.u32 %v1187, 16
        %v1281 = vshll.u32 %v1187, 16
        %v1283 = vrot.slane %v1281, 1
        %v1284 = vor.u32 %v1279, %v1283
        %v1286 = vshll.u32 %v1204, 16
        %v1288 = vrot.slane %v1286, 1
        %v1289 = vsel %vm1217, %v1284, %v1288
        %v1291 = vshrl.u32 %v1188, 16
        %v1293 = vshll.u32 %v1188, 16
        %v1295 = vrot.slane %v1293, 1
        %v1296 = vor.u32 %v1291, %v1295
        %v1298 = vshll.u32 %v1205, 16
        %v1300 = vrot.slane %v1298, 1
        %v1301 = vsel %vm1217, %v1296, %v1300
        %v1303 = vshrl.u32 %v1189, 16
        %v1305 = vshll.u32 %v1189, 16
        %v1307 = vrot.slane %v1305, 1
        %v1308 = vor.u32 %v1303, %v1307
        %v1310 = vshll.u32 %v1206, 16
        %v1312 = vrot.slane %v1310, 1
        %v1313 = vsel %vm1217, %v1308, %v1312
        %v1315 = vshrl.u32 %v1190, 16
        %v1317 = vshll.u32 %v1190, 16
        %v1319 = vrot.slane %v1317, 1
        %v1320 = vor.u32 %v1315, %v1319
        %v1322 = vshll.u32 %v1207, 16
        %v1324 = vrot.slane %v1322, 1
        %v1325 = vsel %vm1217, %v1320, %v1324
        %v1327 = vshrl.u32 %v1191, 16
        %v1329 = vshll.u32 %v1191, 16
        %v1331 = vrot.slane %v1329, 1
        %v1332 = vor.u32 %v1327, %v1331
        %v1334 = vshll.u32 %v1208, 16
        %v1336 = vrot.slane %v1334, 1
        %v1337 = vsel %vm1217, %v1332, %v1336
        %v1339 = vshrl.u32 %v1192, 16
        %v1341 = vshll.u32 %v1192, 16
        %v1343 = vrot.slane %v1341, 1
        %v1344 = vor.u32 %v1339, %v1343
        %v1346 = vshll.u32 %v1209, 16
        %v1348 = vrot.slane %v1346, 1
        %v1349 = vsel %vm1217, %v1344, %v1348
        %v1351 = vshrl.u32 %v1193, 16
        %v1353 = vshll.u32 %v1193, 16
        %v1355 = vrot.slane %v1353, 1
        %v1356 = vor.u32 %v1351, %v1355
        %v1358 = vshll.u32 %v1210, 16
        %v1360 = vrot.slane %v1358, 1
        %v1361 = vsel %vm1217, %v1356, %v1360
        %v1363 = vshrl.u32 %v1194, 16
        %v1365 = vshll.u32 %v1194, 16
        %v1367 = vrot.slane %v1365, 1
        %v1368 = vor.u32 %v1363, %v1367
        %v1370 = vshll.u32 %v1211, 16
        %v1372 = vrot.slane %v1370, 1
        %v1373 = vsel %vm1217, %v1368, %v1372
        %v1375 = vshrl.u32 %v1195, 16
        %v1377 = vshll.u32 %v1195, 16
        %v1379 = vrot.slane %v1377, 1
        %v1380 = vor.u32 %v1375, %v1379
        %v1382 = vshll.u32 %v1212, 16
        %v1384 = vrot.slane %v1382, 1
        %v1385 = vsel %vm1217, %v1380, %v1384
        %v1387 = vshrl.u32 %v1196, 16
        %v1389 = vshll.u32 %v1196, 16
        %v1391 = vrot.slane %v1389, 1
        %v1392 = vor.u32 %v1387, %v1391
        %v1394 = vshll.u32 %v1213, 16
        %v1396 = vrot.slane %v1394, 1
        %v1397 = vsel %vm1217, %v1392, %v1396
        %v1399 = vshrl.u32 %v1197, 16
        %v1401 = vshll.u32 %v1197, 16
        %v1403 = vrot.slane %v1401, 1
        %v1404 = vor.u32 %v1399, %v1403
        %v1406 = vshll.u32 %v1214, 16
        %v1408 = vrot.slane %v1406, 1
        %v1409 = vsel %vm1217, %v1404, %v1408
        %s1410 = scalar_lea.vmem %s5, 2
        %v1411 = vld [vmem:[%s1410] sm:$0x3]
        %v1413 = vsel %vm560, %v1229, 0
        %v1416 = vsel %vm560, %v1241, 0
        %v1419 = vsel %vm560, %v1253, 0
        %v1422 = vsel %vm560, %v1265, 0
        %v1425 = vsel %vm560, %v1277, 0
        %v1428 = vsel %vm560, %v1289, 0
        %v1431 = vsel %vm560, %v1301, 0
        %v1434 = vsel %vm560, %v1313, 0
        %v1437 = vsel %vm560, %v1325, 0
        %v1440 = vsel %vm560, %v1337, 0
        %v1443 = vsel %vm560, %v1349, 0
        %v1446 = vsel %vm560, %v1361, 0
        %v1449 = vsel %vm560, %v1373, 0
        %v1452 = vsel %vm560, %v1385, 0
        %v1455 = vsel %vm560, %v1397, 0
        %v1458 = vsel %vm560, %v1409, 0
        %v1461 = vsel %vm609, %v1411, 0
        %1463 = vmatprep.subr.bf16.mxu0 0
        %1464 = vmatpush1.bf16.msra.mxu0 0
        %1465 = vmatprep.subr.bf16.mxu0 0
        %1466 = vmatpush1.bf16.msra.mxu0 0
        %1467 = vmatprep.subr.bf16.mxu0 0
        %1468 = vmatpush1.bf16.msra.mxu0 0
        %1469 = vmatprep.subr.bf16.mxu0 0
        %1470 = vmatpush1.bf16.msra.mxu0 0
        %1471 = vmatprep.subr.bf16.mxu0 0
        %1472 = vmatpush1.bf16.msra.mxu0 0
        %1473 = vmatprep.subr.bf16.mxu0 0
        %1474 = vmatpush1.bf16.msra.mxu0 0
        %1475 = vmatprep.subr.bf16.mxu0 0
        %1476 = vmatpush1.bf16.msra.mxu0 0
        %1477 = vmatprep.subr.bf16.mxu0 0
        %1478 = vmatpush1.bf16.msra.mxu0 %v1461
        %1479 = vmatprep.subr.bf16.mxu0 0
        %1480 = vmatpush2.bf16.msra.mxu0 0
        %1481 = vmatprep.subr.bf16.mxu0 0
        %1482 = vmatpush2.bf16.msra.mxu0 0
        %1483 = vmatprep.subr.bf16.mxu0 0
        %1484 = vmatpush2.bf16.msra.mxu0 0
        %1485 = vmatprep.subr.bf16.mxu0 0
        %1486 = vmatpush2.bf16.msra.mxu0 0
        %1487 = vmatprep.subr.bf16.mxu0 0
        %1488 = vmatpush2.bf16.msra.mxu0 0
        %1489 = vmatprep.subr.bf16.mxu0 0
        %1490 = vmatpush2.bf16.msra.mxu0 0
        %1491 = vmatprep.subr.bf16.mxu0 0
        %1492 = vmatpush2.bf16.msra.mxu0 0
        %1493 = vmatprep.subr.bf16.mxu0 0
        %1494 = vmatpush2.bf16.msra.mxu0 0
        %1495 = vmatprep.mubr.bf16.mxu0 0
        %1496 = vmatmul.mubr.bf16.gmra.mxu0 %v1413
        %v1497 = vpop.f32.mrf.mxu0
        %v1498 = vadd.f32 0.0, %v1497
        %v1499 = vpop.f32.mrf.mxu0
        %v1500 = vpop.f32.mrf.mxu0
        %v1501 = vadd.f32 0.0, %v1500
        %v1502 = vpop.f32.mrf.mxu0
        %1503 = vmatprep.mubr.bf16.mxu0 0
        %1504 = vmatmul.mubr.bf16.gmra.mxu0 %v1416
        %v1505 = vpop.f32.mrf.mxu0
        %v1506 = vadd.f32 0.0, %v1505
        %v1507 = vpop.f32.mrf.mxu0
        %v1508 = vpop.f32.mrf.mxu0
        %v1509 = vadd.f32 0.0, %v1508
        %v1510 = vpop.f32.mrf.mxu0
        %1511 = vmatprep.mubr.bf16.mxu0 0
        %1512 = vmatmul.mubr.bf16.gmra.mxu0 %v1419
        %v1513 = vpop.f32.mrf.mxu0
        %v1514 = vadd.f32 0.0, %v1513
        %v1515 = vpop.f32.mrf.mxu0
        %v1516 = vpop.f32.mrf.mxu0
        %v1517 = vadd.f32 0.0, %v1516
        %v1518 = vpop.f32.mrf.mxu0
        %1519 = vmatprep.mubr.bf16.mxu0 0
        %1520 = vmatmul.mubr.bf16.gmra.mxu0 %v1422
        %v1521 = vpop.f32.mrf.mxu0
        %v1522 = vadd.f32 0.0, %v1521
        %v1523 = vpop.f32.mrf.mxu0
        %v1524 = vpop.f32.mrf.mxu0
        %v1525 = vadd.f32 0.0, %v1524
        %v1526 = vpop.f32.mrf.mxu0
        %1527 = vmatprep.mubr.bf16.mxu0 0
        %1528 = vmatmul.mubr.bf16.gmra.mxu0 %v1425
        %v1529 = vpop.f32.mrf.mxu0
        %v1530 = vadd.f32 0.0, %v1529
        %v1531 = vpop.f32.mrf.mxu0
        %v1532 = vpop.f32.mrf.mxu0
        %v1533 = vadd.f32 0.0, %v1532
        %v1534 = vpop.f32.mrf.mxu0
        %1535 = vmatprep.mubr.bf16.mxu0 0
        %1536 = vmatmul.mubr.bf16.gmra.mxu0 %v1428
        %v1537 = vpop.f32.mrf.mxu0
        %v1538 = vadd.f32 0.0, %v1537
        %v1539 = vpop.f32.mrf.mxu0
        %v1540 = vpop.f32.mrf.mxu0
        %v1541 = vadd.f32 0.0, %v1540
        %v1542 = vpop.f32.mrf.mxu0
        %1543 = vmatprep.mubr.bf16.mxu0 0
        %1544 = vmatmul.mubr.bf16.gmra.mxu0 %v1431
        %v1545 = vpop.f32.mrf.mxu0
        %v1546 = vadd.f32 0.0, %v1545
        %v1547 = vpop.f32.mrf.mxu0
        %v1548 = vpop.f32.mrf.mxu0
        %v1549 = vadd.f32 0.0, %v1548
        %v1550 = vpop.f32.mrf.mxu0
        %1551 = vmatprep.mubr.bf16.mxu0 0
        %1552 = vmatmul.mubr.bf16.gmra.mxu0 %v1434
        %v1553 = vpop.f32.mrf.mxu0
        %v1554 = vadd.f32 0.0, %v1553
        %v1555 = vpop.f32.mrf.mxu0
        %v1556 = vpop.f32.mrf.mxu0
        %v1557 = vadd.f32 0.0, %v1556
        %v1558 = vpop.f32.mrf.mxu0
        %1559 = vmatprep.mubr.bf16.mxu0 0
        %1560 = vmatmul.mubr.bf16.gmra.mxu0 %v1437
        %v1561 = vpop.f32.mrf.mxu0
        %v1562 = vadd.f32 0.0, %v1561
        %v1563 = vpop.f32.mrf.mxu0
        %v1564 = vpop.f32.mrf.mxu0
        %v1565 = vadd.f32 0.0, %v1564
        %v1566 = vpop.f32.mrf.mxu0
        %1567 = vmatprep.mubr.bf16.mxu0 0
        %1568 = vmatmul.mubr.bf16.gmra.mxu0 %v1440
        %v1569 = vpop.f32.mrf.mxu0
        %v1570 = vadd.f32 0.0, %v1569
        %v1571 = vpop.f32.mrf.mxu0
        %v1572 = vpop.f32.mrf.mxu0
        %v1573 = vadd.f32 0.0, %v1572
        %v1574 = vpop.f32.mrf.mxu0
        %1575 = vmatprep.mubr.bf16.mxu0 0
        %1576 = vmatmul.mubr.bf16.gmra.mxu0 %v1443
        %v1577 = vpop.f32.mrf.mxu0
        %v1578 = vadd.f32 0.0, %v1577
        %v1579 = vpop.f32.mrf.mxu0
        %v1580 = vpop.f32.mrf.mxu0
        %v1581 = vadd.f32 0.0, %v1580
        %v1582 = vpop.f32.mrf.mxu0
        %1583 = vmatprep.mubr.bf16.mxu0 0
        %1584 = vmatmul.mubr.bf16.gmra.mxu0 %v1446
        %v1585 = vpop.f32.mrf.mxu0
        %v1586 = vadd.f32 0.0, %v1585
        %v1587 = vpop.f32.mrf.mxu0
        %v1588 = vpop.f32.mrf.mxu0
        %v1589 = vadd.f32 0.0, %v1588
        %v1590 = vpop.f32.mrf.mxu0
        %1591 = vmatprep.mubr.bf16.mxu0 0
        %1592 = vmatmul.mubr.bf16.gmra.mxu0 %v1449
        %v1593 = vpop.f32.mrf.mxu0
        %v1594 = vadd.f32 0.0, %v1593
        %v1595 = vpop.f32.mrf.mxu0
        %v1596 = vpop.f32.mrf.mxu0
        %v1597 = vadd.f32 0.0, %v1596
        %v1598 = vpop.f32.mrf.mxu0
        %1599 = vmatprep.mubr.bf16.mxu0 0
        %1600 = vmatmul.mubr.bf16.gmra.mxu0 %v1452
        %v1601 = vpop.f32.mrf.mxu0
        %v1602 = vadd.f32 0.0, %v1601
        %v1603 = vpop.f32.mrf.mxu0
        %v1604 = vpop.f32.mrf.mxu0
        %v1605 = vadd.f32 0.0, %v1604
        %v1606 = vpop.f32.mrf.mxu0
        %1607 = vmatprep.mubr.bf16.mxu0 0
        %1608 = vmatmul.mubr.bf16.gmra.mxu0 %v1455
        %v1609 = vpop.f32.mrf.mxu0
        %v1610 = vadd.f32 0.0, %v1609
        %v1611 = vpop.f32.mrf.mxu0
        %v1612 = vpop.f32.mrf.mxu0
        %v1613 = vadd.f32 0.0, %v1612
        %v1614 = vpop.f32.mrf.mxu0
        %1615 = vmatprep.mubr.bf16.mxu0 0
        %1616 = vmatmul.mubr.bf16.gmra.mxu0 %v1458
        %v1617 = vpop.f32.mrf.mxu0
        %v1618 = vadd.f32 0.0, %v1617
        %v1619 = vpop.f32.mrf.mxu0
        %v1620 = vpop.f32.mrf.mxu0
        %v1621 = vadd.f32 0.0, %v1620
        %v1622 = vpop.f32.mrf.mxu0
        %1623 = vdwg.mxu0
        %v1624 = vsel %vm560, %v1182, 0
        %v1626 = vsel %vm560, %v1183, 0
        %v1628 = vsel %vm560, %v1184, 0
        %v1630 = vsel %vm560, %v1185, 0
        %v1632 = vsel %vm560, %v1186, 0
        %v1634 = vsel %vm560, %v1187, 0
        %v1636 = vsel %vm560, %v1188, 0
        %v1638 = vsel %vm560, %v1189, 0
        %v1640 = vsel %vm560, %v1190, 0
        %v1642 = vsel %vm560, %v1191, 0
        %v1644 = vsel %vm560, %v1192, 0
        %v1646 = vsel %vm560, %v1193, 0
        %v1648 = vsel %vm560, %v1194, 0
        %v1650 = vsel %vm560, %v1195, 0
        %v1652 = vsel %vm560, %v1196, 0
        %v1654 = vsel %vm560, %v1197, 0
        %v1657 = vsel %vm609, %v1216, 0
        %1659 = vmatprep.subr.bf16.mxu0 0
        %1660 = vmatpush1.bf16.msra.mxu0 0
        %1661 = vmatprep.subr.bf16.mxu0 0
        %1662 = vmatpush1.bf16.msra.mxu0 0
        %1663 = vmatprep.subr.bf16.mxu0 0
        %1664 = vmatpush1.bf16.msra.mxu0 0
        %1665 = vmatprep.subr.bf16.mxu0 0
        %1666 = vmatpush1.bf16.msra.mxu0 0
        %1667 = vmatprep.subr.bf16.mxu0 0
        %1668 = vmatpush1.bf16.msra.mxu0 0
        %1669 = vmatprep.subr.bf16.mxu0 0
        %1670 = vmatpush1.bf16.msra.mxu0 0
        %1671 = vmatprep.subr.bf16.mxu0 0
        %1672 = vmatpush1.bf16.msra.mxu0 0
        %1673 = vmatprep.subr.bf16.mxu0 0
        %1674 = vmatpush1.bf16.msra.mxu0 %v1657
        %1675 = vmatprep.subr.bf16.mxu0 0
        %1676 = vmatpush2.bf16.msra.mxu0 0
        %1677 = vmatprep.subr.bf16.mxu0 0
        %1678 = vmatpush2.bf16.msra.mxu0 0
        %1679 = vmatprep.subr.bf16.mxu0 0
        %1680 = vmatpush2.bf16.msra.mxu0 0
        %1681 = vmatprep.subr.bf16.mxu0 0
        %1682 = vmatpush2.bf16.msra.mxu0 0
        %1683 = vmatprep.subr.bf16.mxu0 0
        %1684 = vmatpush2.bf16.msra.mxu0 0
        %1685 = vmatprep.subr.bf16.mxu0 0
        %1686 = vmatpush2.bf16.msra.mxu0 0
        %1687 = vmatprep.subr.bf16.mxu0 0
        %1688 = vmatpush2.bf16.msra.mxu0 0
        %1689 = vmatprep.subr.bf16.mxu0 0
        %1690 = vmatpush2.bf16.msra.mxu0 0
        %1691 = vmatprep.mubr.bf16.mxu0 0
        %1692 = vmatmul.mubr.bf16.gmra.mxu0 %v1624
        %v1693 = vpop.f32.mrf.mxu0
        %v1694 = vadd.f32 %v1498, %v1693
        %v1695 = vpop.f32.mrf.mxu0
        %v1696 = vpop.f32.mrf.mxu0
        %v1697 = vadd.f32 %v1501, %v1696
        %v1698 = vpop.f32.mrf.mxu0
        %1699 = vmatprep.mubr.bf16.mxu0 0
        %1700 = vmatmul.mubr.bf16.gmra.mxu0 %v1626
        %v1701 = vpop.f32.mrf.mxu0
        %v1702 = vadd.f32 %v1506, %v1701
        %v1703 = vpop.f32.mrf.mxu0
        %v1704 = vpop.f32.mrf.mxu0
        %v1705 = vadd.f32 %v1509, %v1704
        %v1706 = vpop.f32.mrf.mxu0
        %1707 = vmatprep.mubr.bf16.mxu0 0
        %1708 = vmatmul.mubr.bf16.gmra.mxu0 %v1628
        %v1709 = vpop.f32.mrf.mxu0
        %v1710 = vadd.f32 %v1514, %v1709
        %v1711 = vpop.f32.mrf.mxu0
        %v1712 = vpop.f32.mrf.mxu0
        %v1713 = vadd.f32 %v1517, %v1712
        %v1714 = vpop.f32.mrf.mxu0
        %1715 = vmatprep.mubr.bf16.mxu0 0
        %1716 = vmatmul.mubr.bf16.gmra.mxu0 %v1630
        %v1717 = vpop.f32.mrf.mxu0
        %v1718 = vadd.f32 %v1522, %v1717
        %v1719 = vpop.f32.mrf.mxu0
        %v1720 = vpop.f32.mrf.mxu0
        %v1721 = vadd.f32 %v1525, %v1720
        %v1722 = vpop.f32.mrf.mxu0
        %1723 = vmatprep.mubr.bf16.mxu0 0
        %1724 = vmatmul.mubr.bf16.gmra.mxu0 %v1632
        %v1725 = vpop.f32.mrf.mxu0
        %v1726 = vadd.f32 %v1530, %v1725
        %v1727 = vpop.f32.mrf.mxu0
        %v1728 = vpop.f32.mrf.mxu0
        %v1729 = vadd.f32 %v1533, %v1728
        %v1730 = vpop.f32.mrf.mxu0
        %1731 = vmatprep.mubr.bf16.mxu0 0
        %1732 = vmatmul.mubr.bf16.gmra.mxu0 %v1634
        %v1733 = vpop.f32.mrf.mxu0
        %v1734 = vadd.f32 %v1538, %v1733
        %v1735 = vpop.f32.mrf.mxu0
        %v1736 = vpop.f32.mrf.mxu0
        %v1737 = vadd.f32 %v1541, %v1736
        %v1738 = vpop.f32.mrf.mxu0
        %1739 = vmatprep.mubr.bf16.mxu0 0
        %1740 = vmatmul.mubr.bf16.gmra.mxu0 %v1636
        %v1741 = vpop.f32.mrf.mxu0
        %v1742 = vadd.f32 %v1546, %v1741
        %v1743 = vpop.f32.mrf.mxu0
        %v1744 = vpop.f32.mrf.mxu0
        %v1745 = vadd.f32 %v1549, %v1744
        %v1746 = vpop.f32.mrf.mxu0
        %1747 = vmatprep.mubr.bf16.mxu0 0
        %1748 = vmatmul.mubr.bf16.gmra.mxu0 %v1638
        %v1749 = vpop.f32.mrf.mxu0
        %v1750 = vadd.f32 %v1554, %v1749
        %v1751 = vpop.f32.mrf.mxu0
        %v1752 = vpop.f32.mrf.mxu0
        %v1753 = vadd.f32 %v1557, %v1752
        %v1754 = vpop.f32.mrf.mxu0
        %1755 = vmatprep.mubr.bf16.mxu0 0
        %1756 = vmatmul.mubr.bf16.gmra.mxu0 %v1640
        %v1757 = vpop.f32.mrf.mxu0
        %v1758 = vadd.f32 %v1562, %v1757
        %v1759 = vpop.f32.mrf.mxu0
        %v1760 = vpop.f32.mrf.mxu0
        %v1761 = vadd.f32 %v1565, %v1760
        %v1762 = vpop.f32.mrf.mxu0
        %1763 = vmatprep.mubr.bf16.mxu0 0
        %1764 = vmatmul.mubr.bf16.gmra.mxu0 %v1642
        %v1765 = vpop.f32.mrf.mxu0
        %v1766 = vadd.f32 %v1570, %v1765
        %v1767 = vpop.f32.mrf.mxu0
        %v1768 = vpop.f32.mrf.mxu0
        %v1769 = vadd.f32 %v1573, %v1768
        %v1770 = vpop.f32.mrf.mxu0
        %1771 = vmatprep.mubr.bf16.mxu0 0
        %1772 = vmatmul.mubr.bf16.gmra.mxu0 %v1644
        %v1773 = vpop.f32.mrf.mxu0
        %v1774 = vadd.f32 %v1578, %v1773
        %v1775 = vpop.f32.mrf.mxu0
        %v1776 = vpop.f32.mrf.mxu0
        %v1777 = vadd.f32 %v1581, %v1776
        %v1778 = vpop.f32.mrf.mxu0
        %1779 = vmatprep.mubr.bf16.mxu0 0
        %1780 = vmatmul.mubr.bf16.gmra.mxu0 %v1646
        %v1781 = vpop.f32.mrf.mxu0
        %v1782 = vadd.f32 %v1586, %v1781
        %v1783 = vpop.f32.mrf.mxu0
        %v1784 = vpop.f32.mrf.mxu0
        %v1785 = vadd.f32 %v1589, %v1784
        %v1786 = vpop.f32.mrf.mxu0
        %1787 = vmatprep.mubr.bf16.mxu0 0
        %1788 = vmatmul.mubr.bf16.gmra.mxu0 %v1648
        %v1789 = vpop.f32.mrf.mxu0
        %v1790 = vadd.f32 %v1594, %v1789
        %v1791 = vpop.f32.mrf.mxu0
        %v1792 = vpop.f32.mrf.mxu0
        %v1793 = vadd.f32 %v1597, %v1792
        %v1794 = vpop.f32.mrf.mxu0
        %1795 = vmatprep.mubr.bf16.mxu0 0
        %1796 = vmatmul.mubr.bf16.gmra.mxu0 %v1650
        %v1797 = vpop.f32.mrf.mxu0
        %v1798 = vadd.f32 %v1602, %v1797
        %v1799 = vpop.f32.mrf.mxu0
        %v1800 = vpop.f32.mrf.mxu0
        %v1801 = vadd.f32 %v1605, %v1800
        %v1802 = vpop.f32.mrf.mxu0
        %1803 = vmatprep.mubr.bf16.mxu0 0
        %1804 = vmatmul.mubr.bf16.gmra.mxu0 %v1652
        %v1805 = vpop.f32.mrf.mxu0
        %v1806 = vadd.f32 %v1610, %v1805
        %v1807 = vpop.f32.mrf.mxu0
        %v1808 = vpop.f32.mrf.mxu0
        %v1809 = vadd.f32 %v1613, %v1808
        %v1810 = vpop.f32.mrf.mxu0
        %1811 = vmatprep.mubr.bf16.mxu0 0
        %1812 = vmatmul.mubr.bf16.gmra.mxu0 %v1654
        %v1813 = vpop.f32.mrf.mxu0
        %v1814 = vadd.f32 %v1618, %v1813
        %v1815 = vpop.f32.mrf.mxu0
        %v1816 = vpop.f32.mrf.mxu0
        %v1817 = vadd.f32 %v1621, %v1816
        %v1818 = vpop.f32.mrf.mxu0
        %1819 = vdwg.mxu0
        %vm1852 = vcmask 1046528
        %v1853 = vrot.slane %v1182, 1
        %v1854 = vrot.slane %v1199, 1
        %v1855 = vsel %vm1852, %v1853, %v1854
        %v1856 = vrot.slane %v1183, 1
        %v1857 = vrot.slane %v1200, 1
        %v1858 = vsel %vm1852, %v1856, %v1857
        %v1859 = vrot.slane %v1184, 1
        %v1860 = vrot.slane %v1201, 1
        %v1861 = vsel %vm1852, %v1859, %v1860
        %v1862 = vrot.slane %v1185, 1
        %v1863 = vrot.slane %v1202, 1
        %v1864 = vsel %vm1852, %v1862, %v1863
        %v1865 = vrot.slane %v1186, 1
        %v1866 = vrot.slane %v1203, 1
        %v1867 = vsel %vm1852, %v1865, %v1866
        %v1868 = vrot.slane %v1187, 1
        %v1869 = vrot.slane %v1204, 1
        %v1870 = vsel %vm1852, %v1868, %v1869
        %v1871 = vrot.slane %v1188, 1
        %v1872 = vrot.slane %v1205, 1
        %v1873 = vsel %vm1852, %v1871, %v1872
        %v1874 = vrot.slane %v1189, 1
        %v1875 = vrot.slane %v1206, 1
        %v1876 = vsel %vm1852, %v1874, %v1875
        %v1877 = vrot.slane %v1190, 1
        %v1878 = vrot.slane %v1207, 1
        %v1879 = vsel %vm1852, %v1877, %v1878
        %v1880 = vrot.slane %v1191, 1
        %v1881 = vrot.slane %v1208, 1
        %v1882 = vsel %vm1852, %v1880, %v1881
        %v1883 = vrot.slane %v1192, 1
        %v1884 = vrot.slane %v1209, 1
        %v1885 = vsel %vm1852, %v1883, %v1884
        %v1886 = vrot.slane %v1193, 1
        %v1887 = vrot.slane %v1210, 1
        %v1888 = vsel %vm1852, %v1886, %v1887
        %v1889 = vrot.slane %v1194, 1
        %v1890 = vrot.slane %v1211, 1
        %v1891 = vsel %vm1852, %v1889, %v1890
        %v1892 = vrot.slane %v1195, 1
        %v1893 = vrot.slane %v1212, 1
        %v1894 = vsel %vm1852, %v1892, %v1893
        %v1895 = vrot.slane %v1196, 1
        %v1896 = vrot.slane %v1213, 1
        %v1897 = vsel %vm1852, %v1895, %v1896
        %v1898 = vrot.slane %v1197, 1
        %v1899 = vrot.slane %v1214, 1
        %v1900 = vsel %vm1852, %v1898, %v1899
        %s1901 = scalar_lea.vmem %s5, 4
        %v1902 = vld [vmem:[%s1901] sm:$0x3]
        %v1904 = vsel %vm560, %v1855, 0
        %v1907 = vsel %vm560, %v1858, 0
        %v1910 = vsel %vm560, %v1861, 0
        %v1913 = vsel %vm560, %v1864, 0
        %v1916 = vsel %vm560, %v1867, 0
        %v1919 = vsel %vm560, %v1870, 0
        %v1922 = vsel %vm560, %v1873, 0
        %v1925 = vsel %vm560, %v1876, 0
        %v1928 = vsel %vm560, %v1879, 0
        %v1931 = vsel %vm560, %v1882, 0
        %v1934 = vsel %vm560, %v1885, 0
        %v1937 = vsel %vm560, %v1888, 0
        %v1940 = vsel %vm560, %v1891, 0
        %v1943 = vsel %vm560, %v1894, 0
        %v1946 = vsel %vm560, %v1897, 0
        %v1949 = vsel %vm560, %v1900, 0
        %v1952 = vsel %vm609, %v1902, 0
        %1954 = vmatprep.subr.bf16.mxu0 0
        %1955 = vmatpush1.bf16.msra.mxu0 0
        %1956 = vmatprep.subr.bf16.mxu0 0
        %1957 = vmatpush1.bf16.msra.mxu0 0
        %1958 = vmatprep.subr.bf16.mxu0 0
        %1959 = vmatpush1.bf16.msra.mxu0 0
        %1960 = vmatprep.subr.bf16.mxu0 0
        %1961 = vmatpush1.bf16.msra.mxu0 0
        %1962 = vmatprep.subr.bf16.mxu0 0
        %1963 = vmatpush1.bf16.msra.mxu0 0
        %1964 = vmatprep.subr.bf16.mxu0 0
        %1965 = vmatpush1.bf16.msra.mxu0 0
        %1966 = vmatprep.subr.bf16.mxu0 0
        %1967 = vmatpush1.bf16.msra.mxu0 0
        %1968 = vmatprep.subr.bf16.mxu0 0
        %1969 = vmatpush1.bf16.msra.mxu0 %v1952
        %1970 = vmatprep.subr.bf16.mxu0 0
        %1971 = vmatpush2.bf16.msra.mxu0 0
        %1972 = vmatprep.subr.bf16.mxu0 0
        %1973 = vmatpush2.bf16.msra.mxu0 0
        %1974 = vmatprep.subr.bf16.mxu0 0
        %1975 = vmatpush2.bf16.msra.mxu0 0
        %1976 = vmatprep.subr.bf16.mxu0 0
        %1977 = vmatpush2.bf16.msra.mxu0 0
        %1978 = vmatprep.subr.bf16.mxu0 0
        %1979 = vmatpush2.bf16.msra.mxu0 0
        %1980 = vmatprep.subr.bf16.mxu0 0
        %1981 = vmatpush2.bf16.msra.mxu0 0
        %1982 = vmatprep.subr.bf16.mxu0 0
        %1983 = vmatpush2.bf16.msra.mxu0 0
        %1984 = vmatprep.subr.bf16.mxu0 0
        %1985 = vmatpush2.bf16.msra.mxu0 0
        %1986 = vmatprep.mubr.bf16.mxu0 0
        %1987 = vmatmul.mubr.bf16.gmra.mxu0 %v1904
        %v1988 = vpop.f32.mrf.mxu0
        %v1989 = vadd.f32 0.0, %v1988
        %v1990 = vpop.f32.mrf.mxu0
        %v1991 = vpop.f32.mrf.mxu0
        %v1992 = vadd.f32 0.0, %v1991
        %v1993 = vpop.f32.mrf.mxu0
        %1994 = vmatprep.mubr.bf16.mxu0 0
        %1995 = vmatmul.mubr.bf16.gmra.mxu0 %v1907
        %v1996 = vpop.f32.mrf.mxu0
        %v1997 = vadd.f32 0.0, %v1996
        %v1998 = vpop.f32.mrf.mxu0
        %v1999 = vpop.f32.mrf.mxu0
        %v2000 = vadd.f32 0.0, %v1999
        %v2001 = vpop.f32.mrf.mxu0
        %2002 = vmatprep.mubr.bf16.mxu0 0
        %2003 = vmatmul.mubr.bf16.gmra.mxu0 %v1910
        %v2004 = vpop.f32.mrf.mxu0
        %v2005 = vadd.f32 0.0, %v2004
        %v2006 = vpop.f32.mrf.mxu0
        %v2007 = vpop.f32.mrf.mxu0
        %v2008 = vadd.f32 0.0, %v2007
        %v2009 = vpop.f32.mrf.mxu0
        %2010 = vmatprep.mubr.bf16.mxu0 0
        %2011 = vmatmul.mubr.bf16.gmra.mxu0 %v1913
        %v2012 = vpop.f32.mrf.mxu0
        %v2013 = vadd.f32 0.0, %v2012
        %v2014 = vpop.f32.mrf.mxu0
        %v2015 = vpop.f32.mrf.mxu0
        %v2016 = vadd.f32 0.0, %v2015
        %v2017 = vpop.f32.mrf.mxu0
        %2018 = vmatprep.mubr.bf16.mxu0 0
        %2019 = vmatmul.mubr.bf16.gmra.mxu0 %v1916
        %v2020 = vpop.f32.mrf.mxu0
        %v2021 = vadd.f32 0.0, %v2020
        %v2022 = vpop.f32.mrf.mxu0
        %v2023 = vpop.f32.mrf.mxu0
        %v2024 = vadd.f32 0.0, %v2023
        %v2025 = vpop.f32.mrf.mxu0
        %2026 = vmatprep.mubr.bf16.mxu0 0
        %2027 = vmatmul.mubr.bf16.gmra.mxu0 %v1919
        %v2028 = vpop.f32.mrf.mxu0
        %v2029 = vadd.f32 0.0, %v2028
        %v2030 = vpop.f32.mrf.mxu0
        %v2031 = vpop.f32.mrf.mxu0
        %v2032 = vadd.f32 0.0, %v2031
        %v2033 = vpop.f32.mrf.mxu0
        %2034 = vmatprep.mubr.bf16.mxu0 0
        %2035 = vmatmul.mubr.bf16.gmra.mxu0 %v1922
        %v2036 = vpop.f32.mrf.mxu0
        %v2037 = vadd.f32 0.0, %v2036
        %v2038 = vpop.f32.mrf.mxu0
        %v2039 = vpop.f32.mrf.mxu0
        %v2040 = vadd.f32 0.0, %v2039
        %v2041 = vpop.f32.mrf.mxu0
        %2042 = vmatprep.mubr.bf16.mxu0 0
        %2043 = vmatmul.mubr.bf16.gmra.mxu0 %v1925
        %v2044 = vpop.f32.mrf.mxu0
        %v2045 = vadd.f32 0.0, %v2044
        %v2046 = vpop.f32.mrf.mxu0
        %v2047 = vpop.f32.mrf.mxu0
        %v2048 = vadd.f32 0.0, %v2047
        %v2049 = vpop.f32.mrf.mxu0
        %2050 = vmatprep.mubr.bf16.mxu0 0
        %2051 = vmatmul.mubr.bf16.gmra.mxu0 %v1928
        %v2052 = vpop.f32.mrf.mxu0
        %v2053 = vadd.f32 0.0, %v2052
        %v2054 = vpop.f32.mrf.mxu0
        %v2055 = vpop.f32.mrf.mxu0
        %v2056 = vadd.f32 0.0, %v2055
        %v2057 = vpop.f32.mrf.mxu0
        %2058 = vmatprep.mubr.bf16.mxu0 0
        %2059 = vmatmul.mubr.bf16.gmra.mxu0 %v1931
        %v2060 = vpop.f32.mrf.mxu0
        %v2061 = vadd.f32 0.0, %v2060
        %v2062 = vpop.f32.mrf.mxu0
        %v2063 = vpop.f32.mrf.mxu0
        %v2064 = vadd.f32 0.0, %v2063
        %v2065 = vpop.f32.mrf.mxu0
        %2066 = vmatprep.mubr.bf16.mxu0 0
        %2067 = vmatmul.mubr.bf16.gmra.mxu0 %v1934
        %v2068 = vpop.f32.mrf.mxu0
        %v2069 = vadd.f32 0.0, %v2068
        %v2070 = vpop.f32.mrf.mxu0
        %v2071 = vpop.f32.mrf.mxu0
        %v2072 = vadd.f32 0.0, %v2071
        %v2073 = vpop.f32.mrf.mxu0
        %2074 = vmatprep.mubr.bf16.mxu0 0
        %2075 = vmatmul.mubr.bf16.gmra.mxu0 %v1937
        %v2076 = vpop.f32.mrf.mxu0
        %v2077 = vadd.f32 0.0, %v2076
        %v2078 = vpop.f32.mrf.mxu0
        %v2079 = vpop.f32.mrf.mxu0
        %v2080 = vadd.f32 0.0, %v2079
        %v2081 = vpop.f32.mrf.mxu0
        %2082 = vmatprep.mubr.bf16.mxu0 0
        %2083 = vmatmul.mubr.bf16.gmra.mxu0 %v1940
        %v2084 = vpop.f32.mrf.mxu0
        %v2085 = vadd.f32 0.0, %v2084
        %v2086 = vpop.f32.mrf.mxu0
        %v2087 = vpop.f32.mrf.mxu0
        %v2088 = vadd.f32 0.0, %v2087
        %v2089 = vpop.f32.mrf.mxu0
        %2090 = vmatprep.mubr.bf16.mxu0 0
        %2091 = vmatmul.mubr.bf16.gmra.mxu0 %v1943
        %v2092 = vpop.f32.mrf.mxu0
        %v2093 = vadd.f32 0.0, %v2092
        %v2094 = vpop.f32.mrf.mxu0
        %v2095 = vpop.f32.mrf.mxu0
        %v2096 = vadd.f32 0.0, %v2095
        %v2097 = vpop.f32.mrf.mxu0
        %2098 = vmatprep.mubr.bf16.mxu0 0
        %2099 = vmatmul.mubr.bf16.gmra.mxu0 %v1946
        %v2100 = vpop.f32.mrf.mxu0
        %v2101 = vadd.f32 0.0, %v2100
        %v2102 = vpop.f32.mrf.mxu0
        %v2103 = vpop.f32.mrf.mxu0
        %v2104 = vadd.f32 0.0, %v2103
        %v2105 = vpop.f32.mrf.mxu0
        %2106 = vmatprep.mubr.bf16.mxu0 0
        %2107 = vmatmul.mubr.bf16.gmra.mxu0 %v1949
        %v2108 = vpop.f32.mrf.mxu0
        %v2109 = vadd.f32 0.0, %v2108
        %v2110 = vpop.f32.mrf.mxu0
        %v2111 = vpop.f32.mrf.mxu0
        %v2112 = vadd.f32 0.0, %v2111
        %v2113 = vpop.f32.mrf.mxu0
        %2114 = vdwg.mxu0
        %v2115 = vadd.f32 %v1694, %v1989
        %v2116 = vadd.f32 %v1697, %v1992
        %v2117 = vadd.f32 %v1702, %v1997
        %v2118 = vadd.f32 %v1705, %v2000
        %v2119 = vadd.f32 %v1710, %v2005
        %v2120 = vadd.f32 %v1713, %v2008
        %v2121 = vadd.f32 %v1718, %v2013
        %v2122 = vadd.f32 %v1721, %v2016
        %v2123 = vadd.f32 %v1726, %v2021
        %v2124 = vadd.f32 %v1729, %v2024
        %v2125 = vadd.f32 %v1734, %v2029
        %v2126 = vadd.f32 %v1737, %v2032
        %v2127 = vadd.f32 %v1742, %v2037
        %v2128 = vadd.f32 %v1745, %v2040
        %v2129 = vadd.f32 %v1750, %v2045
        %v2130 = vadd.f32 %v1753, %v2048
        %v2131 = vadd.f32 %v1758, %v2053
        %v2132 = vadd.f32 %v1761, %v2056
        %v2133 = vadd.f32 %v1766, %v2061
        %v2134 = vadd.f32 %v1769, %v2064
        %v2135 = vadd.f32 %v1774, %v2069
        %v2136 = vadd.f32 %v1777, %v2072
        %v2137 = vadd.f32 %v1782, %v2077
        %v2138 = vadd.f32 %v1785, %v2080
        %v2139 = vadd.f32 %v1790, %v2085
        %v2140 = vadd.f32 %v1793, %v2088
        %v2141 = vadd.f32 %v1798, %v2093
        %v2142 = vadd.f32 %v1801, %v2096
        %v2143 = vadd.f32 %v1806, %v2101
        %v2144 = vadd.f32 %v1809, %v2104
        %v2145 = vadd.f32 %v1814, %v2109
        %v2146 = vadd.f32 %v1817, %v2112
        %s2147 = scalar_lea.vmem %s5, 6
        %v2148 = vld [vmem:[%s2147] sm:$0x3]
        %v2150 = vsel %vm560, %v1198, 0
        %v2153 = vsel %vm609, %v2148, 0
        %2155 = vmatprep.subr.bf16.mxu0 0
        %2156 = vmatpush1.bf16.msra.mxu0 0
        %2157 = vmatprep.subr.bf16.mxu0 0
        %2158 = vmatpush1.bf16.msra.mxu0 0
        %2159 = vmatprep.subr.bf16.mxu0 0
        %2160 = vmatpush1.bf16.msra.mxu0 0
        %2161 = vmatprep.subr.bf16.mxu0 0
        %2162 = vmatpush1.bf16.msra.mxu0 0
        %2163 = vmatprep.subr.bf16.mxu0 0
        %2164 = vmatpush1.bf16.msra.mxu0 0
        %2165 = vmatprep.subr.bf16.mxu0 0
        %2166 = vmatpush1.bf16.msra.mxu0 0
        %2167 = vmatprep.subr.bf16.mxu0 0
        %2168 = vmatpush1.bf16.msra.mxu0 0
        %2169 = vmatprep.subr.bf16.mxu0 0
        %2170 = vmatpush1.bf16.msra.mxu0 %v2153
        %2171 = vmatprep.subr.bf16.mxu0 0
        %2172 = vmatpush2.bf16.msra.mxu0 0
        %2173 = vmatprep.subr.bf16.mxu0 0
        %2174 = vmatpush2.bf16.msra.mxu0 0
        %2175 = vmatprep.subr.bf16.mxu0 0
        %2176 = vmatpush2.bf16.msra.mxu0 0
        %2177 = vmatprep.subr.bf16.mxu0 0
        %2178 = vmatpush2.bf16.msra.mxu0 0
        %2179 = vmatprep.subr.bf16.mxu0 0
        %2180 = vmatpush2.bf16.msra.mxu0 0
        %2181 = vmatprep.subr.bf16.mxu0 0
        %2182 = vmatpush2.bf16.msra.mxu0 0
        %2183 = vmatprep.subr.bf16.mxu0 0
        %2184 = vmatpush2.bf16.msra.mxu0 0
        %2185 = vmatprep.subr.bf16.mxu0 0
        %2186 = vmatpush2.bf16.msra.mxu0 0
        %2187 = vmatprep.mubr.bf16.mxu0 0
        %2188 = vmatmul.mubr.bf16.gmra.mxu0 %v1626
        %v2189 = vpop.f32.mrf.mxu0
        %v2190 = vadd.f32 0.0, %v2189
        %v2191 = vpop.f32.mrf.mxu0
        %v2192 = vpop.f32.mrf.mxu0
        %v2193 = vadd.f32 0.0, %v2192
        %v2194 = vpop.f32.mrf.mxu0
        %2195 = vmatprep.mubr.bf16.mxu0 0
        %2196 = vmatmul.mubr.bf16.gmra.mxu0 %v1628
        %v2197 = vpop.f32.mrf.mxu0
        %v2198 = vadd.f32 0.0, %v2197
        %v2199 = vpop.f32.mrf.mxu0
        %v2200 = vpop.f32.mrf.mxu0
        %v2201 = vadd.f32 0.0, %v2200
        %v2202 = vpop.f32.mrf.mxu0
        %2203 = vmatprep.mubr.bf16.mxu0 0
        %2204 = vmatmul.mubr.bf16.gmra.mxu0 %v1630
        %v2205 = vpop.f32.mrf.mxu0
        %v2206 = vadd.f32 0.0, %v2205
        %v2207 = vpop.f32.mrf.mxu0
        %v2208 = vpop.f32.mrf.mxu0
        %v2209 = vadd.f32 0.0, %v2208
        %v2210 = vpop.f32.mrf.mxu0
        %2211 = vmatprep.mubr.bf16.mxu0 0
        %2212 = vmatmul.mubr.bf16.gmra.mxu0 %v1632
        %v2213 = vpop.f32.mrf.mxu0
        %v2214 = vadd.f32 0.0, %v2213
        %v2215 = vpop.f32.mrf.mxu0
        %v2216 = vpop.f32.mrf.mxu0
        %v2217 = vadd.f32 0.0, %v2216
        %v2218 = vpop.f32.mrf.mxu0
        %2219 = vmatprep.mubr.bf16.mxu0 0
        %2220 = vmatmul.mubr.bf16.gmra.mxu0 %v1634
        %v2221 = vpop.f32.mrf.mxu0
        %v2222 = vadd.f32 0.0, %v2221
        %v2223 = vpop.f32.mrf.mxu0
        %v2224 = vpop.f32.mrf.mxu0
        %v2225 = vadd.f32 0.0, %v2224
        %v2226 = vpop.f32.mrf.mxu0
        %2227 = vmatprep.mubr.bf16.mxu0 0
        %2228 = vmatmul.mubr.bf16.gmra.mxu0 %v1636
        %v2229 = vpop.f32.mrf.mxu0
        %v2230 = vadd.f32 0.0, %v2229
        %v2231 = vpop.f32.mrf.mxu0
        %v2232 = vpop.f32.mrf.mxu0
        %v2233 = vadd.f32 0.0, %v2232
        %v2234 = vpop.f32.mrf.mxu0
        %2235 = vmatprep.mubr.bf16.mxu0 0
        %2236 = vmatmul.mubr.bf16.gmra.mxu0 %v1638
        %v2237 = vpop.f32.mrf.mxu0
        %v2238 = vadd.f32 0.0, %v2237
        %v2239 = vpop.f32.mrf.mxu0
        %v2240 = vpop.f32.mrf.mxu0
        %v2241 = vadd.f32 0.0, %v2240
        %v2242 = vpop.f32.mrf.mxu0
        %2243 = vmatprep.mubr.bf16.mxu0 0
        %2244 = vmatmul.mubr.bf16.gmra.mxu0 %v1640
        %v2245 = vpop.f32.mrf.mxu0
        %v2246 = vadd.f32 0.0, %v2245
        %v2247 = vpop.f32.mrf.mxu0
        %v2248 = vpop.f32.mrf.mxu0
        %v2249 = vadd.f32 0.0, %v2248
        %v2250 = vpop.f32.mrf.mxu0
        %2251 = vmatprep.mubr.bf16.mxu0 0
        %2252 = vmatmul.mubr.bf16.gmra.mxu0 %v1642
        %v2253 = vpop.f32.mrf.mxu0
        %v2254 = vadd.f32 0.0, %v2253
        %v2255 = vpop.f32.mrf.mxu0
        %v2256 = vpop.f32.mrf.mxu0
        %v2257 = vadd.f32 0.0, %v2256
        %v2258 = vpop.f32.mrf.mxu0
        %2259 = vmatprep.mubr.bf16.mxu0 0
        %2260 = vmatmul.mubr.bf16.gmra.mxu0 %v1644
        %v2261 = vpop.f32.mrf.mxu0
        %v2262 = vadd.f32 0.0, %v2261
        %v2263 = vpop.f32.mrf.mxu0
        %v2264 = vpop.f32.mrf.mxu0
        %v2265 = vadd.f32 0.0, %v2264
        %v2266 = vpop.f32.mrf.mxu0
        %2267 = vmatprep.mubr.bf16.mxu0 0
        %2268 = vmatmul.mubr.bf16.gmra.mxu0 %v1646
        %v2269 = vpop.f32.mrf.mxu0
        %v2270 = vadd.f32 0.0, %v2269
        %v2271 = vpop.f32.mrf.mxu0
        %v2272 = vpop.f32.mrf.mxu0
        %v2273 = vadd.f32 0.0, %v2272
        %v2274 = vpop.f32.mrf.mxu0
        %2275 = vmatprep.mubr.bf16.mxu0 0
        %2276 = vmatmul.mubr.bf16.gmra.mxu0 %v1648
        %v2277 = vpop.f32.mrf.mxu0
        %v2278 = vadd.f32 0.0, %v2277
        %v2279 = vpop.f32.mrf.mxu0
        %v2280 = vpop.f32.mrf.mxu0
        %v2281 = vadd.f32 0.0, %v2280
        %v2282 = vpop.f32.mrf.mxu0
        %2283 = vmatprep.mubr.bf16.mxu0 0
        %2284 = vmatmul.mubr.bf16.gmra.mxu0 %v1650
        %v2285 = vpop.f32.mrf.mxu0
        %v2286 = vadd.f32 0.0, %v2285
        %v2287 = vpop.f32.mrf.mxu0
        %v2288 = vpop.f32.mrf.mxu0
        %v2289 = vadd.f32 0.0, %v2288
        %v2290 = vpop.f32.mrf.mxu0
        %2291 = vmatprep.mubr.bf16.mxu0 0
        %2292 = vmatmul.mubr.bf16.gmra.mxu0 %v1652
        %v2293 = vpop.f32.mrf.mxu0
        %v2294 = vadd.f32 0.0, %v2293
        %v2295 = vpop.f32.mrf.mxu0
        %v2296 = vpop.f32.mrf.mxu0
        %v2297 = vadd.f32 0.0, %v2296
        %v2298 = vpop.f32.mrf.mxu0
        %2299 = vmatprep.mubr.bf16.mxu0 0
        %2300 = vmatmul.mubr.bf16.gmra.mxu0 %v1654
        %v2301 = vpop.f32.mrf.mxu0
        %v2302 = vadd.f32 0.0, %v2301
        %v2303 = vpop.f32.mrf.mxu0
        %v2304 = vpop.f32.mrf.mxu0
        %v2305 = vadd.f32 0.0, %v2304
        %v2306 = vpop.f32.mrf.mxu0
        %2307 = vmatprep.mubr.bf16.mxu0 0
        %2308 = vmatmul.mubr.bf16.gmra.mxu0 %v2150
        %v2309 = vpop.f32.mrf.mxu0
        %v2310 = vadd.f32 0.0, %v2309
        %v2311 = vpop.f32.mrf.mxu0
        %v2312 = vpop.f32.mrf.mxu0
        %v2313 = vadd.f32 0.0, %v2312
        %v2314 = vpop.f32.mrf.mxu0
        %2315 = vdwg.mxu0
        %v2316 = vadd.f32 %v2115, %v2190
        %v2317 = vadd.f32 %v2116, %v2193
        %v2318 = vadd.f32 %v2117, %v2198
        %v2319 = vadd.f32 %v2118, %v2201
        %v2320 = vadd.f32 %v2119, %v2206
        %v2321 = vadd.f32 %v2120, %v2209
        %v2322 = vadd.f32 %v2121, %v2214
        %v2323 = vadd.f32 %v2122, %v2217
        %v2324 = vadd.f32 %v2123, %v2222
        %v2325 = vadd.f32 %v2124, %v2225
        %v2326 = vadd.f32 %v2125, %v2230
        %v2327 = vadd.f32 %v2126, %v2233
        %v2328 = vadd.f32 %v2127, %v2238
        %v2329 = vadd.f32 %v2128, %v2241
        %v2330 = vadd.f32 %v2129, %v2246
        %v2331 = vadd.f32 %v2130, %v2249
        %v2332 = vadd.f32 %v2131, %v2254
        %v2333 = vadd.f32 %v2132, %v2257
        %v2334 = vadd.f32 %v2133, %v2262
        %v2335 = vadd.f32 %v2134, %v2265
        %v2336 = vadd.f32 %v2135, %v2270
        %v2337 = vadd.f32 %v2136, %v2273
        %v2338 = vadd.f32 %v2137, %v2278
        %v2339 = vadd.f32 %v2138, %v2281
        %v2340 = vadd.f32 %v2139, %v2286
        %v2341 = vadd.f32 %v2140, %v2289
        %v2342 = vadd.f32 %v2141, %v2294
        %v2343 = vadd.f32 %v2142, %v2297
        %v2344 = vadd.f32 %v2143, %v2302
        %v2345 = vadd.f32 %v2144, %v2305
        %v2346 = vadd.f32 %v2145, %v2310
        %v2347 = vadd.f32 %v2146, %v2313
        %v2348 = vshrl.u32 %v1198, 16
        %v2350 = vshll.u32 %v1198, 16
        %v2352 = vrot.slane %v2350, 1
        %v2353 = vor.u32 %v2348, %v2352
        %v2355 = vshll.u32 %v1215, 16
        %v2357 = vrot.slane %v2355, 1
        %v2358 = vsel %vm1217, %v2353, %v2357
        %s2359 = scalar_lea.vmem %s5, 8
        %v2360 = vld [vmem:[%s2359] sm:$0x3]
        %v2362 = vsel %vm560, %v2358, 0
        %v2365 = vsel %vm609, %v2360, 0
        %2367 = vmatprep.subr.bf16.mxu0 0
        %2368 = vmatpush1.bf16.msra.mxu0 0
        %2369 = vmatprep.subr.bf16.mxu0 0
        %2370 = vmatpush1.bf16.msra.mxu0 0
        %2371 = vmatprep.subr.bf16.mxu0 0
        %2372 = vmatpush1.bf16.msra.mxu0 0
        %2373 = vmatprep.subr.bf16.mxu0 0
        %2374 = vmatpush1.bf16.msra.mxu0 0
        %2375 = vmatprep.subr.bf16.mxu0 0
        %2376 = vmatpush1.bf16.msra.mxu0 0
        %2377 = vmatprep.subr.bf16.mxu0 0
        %2378 = vmatpush1.bf16.msra.mxu0 0
        %2379 = vmatprep.subr.bf16.mxu0 0
        %2380 = vmatpush1.bf16.msra.mxu0 0
        %2381 = vmatprep.subr.bf16.mxu0 0
        %2382 = vmatpush1.bf16.msra.mxu0 %v2365
        %2383 = vmatprep.subr.bf16.mxu0 0
        %2384 = vmatpush2.bf16.msra.mxu0 0
        %2385 = vmatprep.subr.bf16.mxu0 0
        %2386 = vmatpush2.bf16.msra.mxu0 0
        %2387 = vmatprep.subr.bf16.mxu0 0
        %2388 = vmatpush2.bf16.msra.mxu0 0
        %2389 = vmatprep.subr.bf16.mxu0 0
        %2390 = vmatpush2.bf16.msra.mxu0 0
        %2391 = vmatprep.subr.bf16.mxu0 0
        %2392 = vmatpush2.bf16.msra.mxu0 0
        %2393 = vmatprep.subr.bf16.mxu0 0
        %2394 = vmatpush2.bf16.msra.mxu0 0
        %2395 = vmatprep.subr.bf16.mxu0 0
        %2396 = vmatpush2.bf16.msra.mxu0 0
        %2397 = vmatprep.subr.bf16.mxu0 0
        %2398 = vmatpush2.bf16.msra.mxu0 0
        %2399 = vmatprep.mubr.bf16.mxu0 0
        %2400 = vmatmul.mubr.bf16.gmra.mxu0 %v1416
        %v2401 = vpop.f32.mrf.mxu0
        %v2402 = vadd.f32 0.0, %v2401
        %v2403 = vpop.f32.mrf.mxu0
        %v2404 = vpop.f32.mrf.mxu0
        %v2405 = vadd.f32 0.0, %v2404
        %v2406 = vpop.f32.mrf.mxu0
        %2407 = vmatprep.mubr.bf16.mxu0 0
        %2408 = vmatmul.mubr.bf16.gmra.mxu0 %v1419
        %v2409 = vpop.f32.mrf.mxu0
        %v2410 = vadd.f32 0.0, %v2409
        %v2411 = vpop.f32.mrf.mxu0
        %v2412 = vpop.f32.mrf.mxu0
        %v2413 = vadd.f32 0.0, %v2412
        %v2414 = vpop.f32.mrf.mxu0
        %2415 = vmatprep.mubr.bf16.mxu0 0
        %2416 = vmatmul.mubr.bf16.gmra.mxu0 %v1422
        %v2417 = vpop.f32.mrf.mxu0
        %v2418 = vadd.f32 0.0, %v2417
        %v2419 = vpop.f32.mrf.mxu0
        %v2420 = vpop.f32.mrf.mxu0
        %v2421 = vadd.f32 0.0, %v2420
        %v2422 = vpop.f32.mrf.mxu0
        %2423 = vmatprep.mubr.bf16.mxu0 0
        %2424 = vmatmul.mubr.bf16.gmra.mxu0 %v1425
        %v2425 = vpop.f32.mrf.mxu0
        %v2426 = vadd.f32 0.0, %v2425
        %v2427 = vpop.f32.mrf.mxu0
        %v2428 = vpop.f32.mrf.mxu0
        %v2429 = vadd.f32 0.0, %v2428
        %v2430 = vpop.f32.mrf.mxu0
        %2431 = vmatprep.mubr.bf16.mxu0 0
        %2432 = vmatmul.mubr.bf16.gmra.mxu0 %v1428
        %v2433 = vpop.f32.mrf.mxu0
        %v2434 = vadd.f32 0.0, %v2433
        %v2435 = vpop.f32.mrf.mxu0
        %v2436 = vpop.f32.mrf.mxu0
        %v2437 = vadd.f32 0.0, %v2436
        %v2438 = vpop.f32.mrf.mxu0
        %2439 = vmatprep.mubr.bf16.mxu0 0
        %2440 = vmatmul.mubr.bf16.gmra.mxu0 %v1431
        %v2441 = vpop.f32.mrf.mxu0
        %v2442 = vadd.f32 0.0, %v2441
        %v2443 = vpop.f32.mrf.mxu0
        %v2444 = vpop.f32.mrf.mxu0
        %v2445 = vadd.f32 0.0, %v2444
        %v2446 = vpop.f32.mrf.mxu0
        %2447 = vmatprep.mubr.bf16.mxu0 0
        %2448 = vmatmul.mubr.bf16.gmra.mxu0 %v1434
        %v2449 = vpop.f32.mrf.mxu0
        %v2450 = vadd.f32 0.0, %v2449
        %v2451 = vpop.f32.mrf.mxu0
        %v2452 = vpop.f32.mrf.mxu0
        %v2453 = vadd.f32 0.0, %v2452
        %v2454 = vpop.f32.mrf.mxu0
        %2455 = vmatprep.mubr.bf16.mxu0 0
        %2456 = vmatmul.mubr.bf16.gmra.mxu0 %v1437
        %v2457 = vpop.f32.mrf.mxu0
        %v2458 = vadd.f32 0.0, %v2457
        %v2459 = vpop.f32.mrf.mxu0
        %v2460 = vpop.f32.mrf.mxu0
        %v2461 = vadd.f32 0.0, %v2460
        %v2462 = vpop.f32.mrf.mxu0
        %2463 = vmatprep.mubr.bf16.mxu0 0
        %2464 = vmatmul.mubr.bf16.gmra.mxu0 %v1440
        %v2465 = vpop.f32.mrf.mxu0
        %v2466 = vadd.f32 0.0, %v2465
        %v2467 = vpop.f32.mrf.mxu0
        %v2468 = vpop.f32.mrf.mxu0
        %v2469 = vadd.f32 0.0, %v2468
        %v2470 = vpop.f32.mrf.mxu0
        %2471 = vmatprep.mubr.bf16.mxu0 0
        %2472 = vmatmul.mubr.bf16.gmra.mxu0 %v1443
        %v2473 = vpop.f32.mrf.mxu0
        %v2474 = vadd.f32 0.0, %v2473
        %v2475 = vpop.f32.mrf.mxu0
        %v2476 = vpop.f32.mrf.mxu0
        %v2477 = vadd.f32 0.0, %v2476
        %v2478 = vpop.f32.mrf.mxu0
        %2479 = vmatprep.mubr.bf16.mxu0 0
        %2480 = vmatmul.mubr.bf16.gmra.mxu0 %v1446
        %v2481 = vpop.f32.mrf.mxu0
        %v2482 = vadd.f32 0.0, %v2481
        %v2483 = vpop.f32.mrf.mxu0
        %v2484 = vpop.f32.mrf.mxu0
        %v2485 = vadd.f32 0.0, %v2484
        %v2486 = vpop.f32.mrf.mxu0
        %2487 = vmatprep.mubr.bf16.mxu0 0
        %2488 = vmatmul.mubr.bf16.gmra.mxu0 %v1449
        %v2489 = vpop.f32.mrf.mxu0
        %v2490 = vadd.f32 0.0, %v2489
        %v2491 = vpop.f32.mrf.mxu0
        %v2492 = vpop.f32.mrf.mxu0
        %v2493 = vadd.f32 0.0, %v2492
        %v2494 = vpop.f32.mrf.mxu0
        %2495 = vmatprep.mubr.bf16.mxu0 0
        %2496 = vmatmul.mubr.bf16.gmra.mxu0 %v1452
        %v2497 = vpop.f32.mrf.mxu0
        %v2498 = vadd.f32 0.0, %v2497
        %v2499 = vpop.f32.mrf.mxu0
        %v2500 = vpop.f32.mrf.mxu0
        %v2501 = vadd.f32 0.0, %v2500
        %v2502 = vpop.f32.mrf.mxu0
        %2503 = vmatprep.mubr.bf16.mxu0 0
        %2504 = vmatmul.mubr.bf16.gmra.mxu0 %v1455
        %v2505 = vpop.f32.mrf.mxu0
        %v2506 = vadd.f32 0.0, %v2505
        %v2507 = vpop.f32.mrf.mxu0
        %v2508 = vpop.f32.mrf.mxu0
        %v2509 = vadd.f32 0.0, %v2508
        %v2510 = vpop.f32.mrf.mxu0
        %2511 = vmatprep.mubr.bf16.mxu0 0
        %2512 = vmatmul.mubr.bf16.gmra.mxu0 %v1458
        %v2513 = vpop.f32.mrf.mxu0
        %v2514 = vadd.f32 0.0, %v2513
        %v2515 = vpop.f32.mrf.mxu0
        %v2516 = vpop.f32.mrf.mxu0
        %v2517 = vadd.f32 0.0, %v2516
        %v2518 = vpop.f32.mrf.mxu0
        %2519 = vmatprep.mubr.bf16.mxu0 0
        %2520 = vmatmul.mubr.bf16.gmra.mxu0 %v2362
        %v2521 = vpop.f32.mrf.mxu0
        %v2522 = vadd.f32 0.0, %v2521
        %v2523 = vpop.f32.mrf.mxu0
        %v2524 = vpop.f32.mrf.mxu0
        %v2525 = vadd.f32 0.0, %v2524
        %v2526 = vpop.f32.mrf.mxu0
        %2527 = vdwg.mxu0
        %v2528 = vadd.f32 %v2316, %v2402
        %v2529 = vadd.f32 %v2317, %v2405
        %v2530 = vadd.f32 %v2318, %v2410
        %v2531 = vadd.f32 %v2319, %v2413
        %v2532 = vadd.f32 %v2320, %v2418
        %v2533 = vadd.f32 %v2321, %v2421
        %v2534 = vadd.f32 %v2322, %v2426
        %v2535 = vadd.f32 %v2323, %v2429
        %v2536 = vadd.f32 %v2324, %v2434
        %v2537 = vadd.f32 %v2325, %v2437
        %v2538 = vadd.f32 %v2326, %v2442
        %v2539 = vadd.f32 %v2327, %v2445
        %v2540 = vadd.f32 %v2328, %v2450
        %v2541 = vadd.f32 %v2329, %v2453
        %v2542 = vadd.f32 %v2330, %v2458
        %v2543 = vadd.f32 %v2331, %v2461
        %v2544 = vadd.f32 %v2332, %v2466
        %v2545 = vadd.f32 %v2333, %v2469
        %v2546 = vadd.f32 %v2334, %v2474
        %v2547 = vadd.f32 %v2335, %v2477
        %v2548 = vadd.f32 %v2336, %v2482
        %v2549 = vadd.f32 %v2337, %v2485
        %v2550 = vadd.f32 %v2338, %v2490
        %v2551 = vadd.f32 %v2339, %v2493
        %v2552 = vadd.f32 %v2340, %v2498
        %v2553 = vadd.f32 %v2341, %v2501
        %v2554 = vadd.f32 %v2342, %v2506
        %v2555 = vadd.f32 %v2343, %v2509
        %v2556 = vadd.f32 %v2344, %v2514
        %v2557 = vadd.f32 %v2345, %v2517
        %v2558 = vadd.f32 %v2346, %v2522
        %v2559 = vadd.f32 %v2347, %v2525
        %v2562 = vrot.slane %v1198, 1
        %v2563 = vrot.slane %v1215, 1
        %v2564 = vsel %vm1852, %v2562, %v2563
        %s2565 = scalar_lea.vmem %s5, 10
        %v2566 = vld [vmem:[%s2565] sm:$0x3]
        %v2568 = vsel %vm560, %v2564, 0
        %v2571 = vsel %vm609, %v2566, 0
        %2573 = vmatprep.subr.bf16.mxu0 0
        %2574 = vmatpush1.bf16.msra.mxu0 0
        %2575 = vmatprep.subr.bf16.mxu0 0
        %2576 = vmatpush1.bf16.msra.mxu0 0
        %2577 = vmatprep.subr.bf16.mxu0 0
        %2578 = vmatpush1.bf16.msra.mxu0 0
        %2579 = vmatprep.subr.bf16.mxu0 0
        %2580 = vmatpush1.bf16.msra.mxu0 0
        %2581 = vmatprep.subr.bf16.mxu0 0
        %2582 = vmatpush1.bf16.msra.mxu0 0
        %2583 = vmatprep.subr.bf16.mxu0 0
        %2584 = vmatpush1.bf16.msra.mxu0 0
        %2585 = vmatprep.subr.bf16.mxu0 0
        %2586 = vmatpush1.bf16.msra.mxu0 0
        %2587 = vmatprep.subr.bf16.mxu0 0
        %2588 = vmatpush1.bf16.msra.mxu0 %v2571
        %2589 = vmatprep.subr.bf16.mxu0 0
        %2590 = vmatpush2.bf16.msra.mxu0 0
        %2591 = vmatprep.subr.bf16.mxu0 0
        %2592 = vmatpush2.bf16.msra.mxu0 0
        %2593 = vmatprep.subr.bf16.mxu0 0
        %2594 = vmatpush2.bf16.msra.mxu0 0
        %2595 = vmatprep.subr.bf16.mxu0 0
        %2596 = vmatpush2.bf16.msra.mxu0 0
        %2597 = vmatprep.subr.bf16.mxu0 0
        %2598 = vmatpush2.bf16.msra.mxu0 0
        %2599 = vmatprep.subr.bf16.mxu0 0
        %2600 = vmatpush2.bf16.msra.mxu0 0
        %2601 = vmatprep.subr.bf16.mxu0 0
        %2602 = vmatpush2.bf16.msra.mxu0 0
        %2603 = vmatprep.subr.bf16.mxu0 0
        %2604 = vmatpush2.bf16.msra.mxu0 0
        %2605 = vmatprep.mubr.bf16.mxu0 0
        %2606 = vmatmul.mubr.bf16.gmra.mxu0 %v1907
        %v2607 = vpop.f32.mrf.mxu0
        %v2608 = vadd.f32 0.0, %v2607
        %v2609 = vpop.f32.mrf.mxu0
        %v2610 = vpop.f32.mrf.mxu0
        %v2611 = vadd.f32 0.0, %v2610
        %v2612 = vpop.f32.mrf.mxu0
        %2613 = vmatprep.mubr.bf16.mxu0 0
        %2614 = vmatmul.mubr.bf16.gmra.mxu0 %v1910
        %v2615 = vpop.f32.mrf.mxu0
        %v2616 = vadd.f32 0.0, %v2615
        %v2617 = vpop.f32.mrf.mxu0
        %v2618 = vpop.f32.mrf.mxu0
        %v2619 = vadd.f32 0.0, %v2618
        %v2620 = vpop.f32.mrf.mxu0
        %2621 = vmatprep.mubr.bf16.mxu0 0
        %2622 = vmatmul.mubr.bf16.gmra.mxu0 %v1913
        %v2623 = vpop.f32.mrf.mxu0
        %v2624 = vadd.f32 0.0, %v2623
        %v2625 = vpop.f32.mrf.mxu0
        %v2626 = vpop.f32.mrf.mxu0
        %v2627 = vadd.f32 0.0, %v2626
        %v2628 = vpop.f32.mrf.mxu0
        %2629 = vmatprep.mubr.bf16.mxu0 0
        %2630 = vmatmul.mubr.bf16.gmra.mxu0 %v1916
        %v2631 = vpop.f32.mrf.mxu0
        %v2632 = vadd.f32 0.0, %v2631
        %v2633 = vpop.f32.mrf.mxu0
        %v2634 = vpop.f32.mrf.mxu0
        %v2635 = vadd.f32 0.0, %v2634
        %v2636 = vpop.f32.mrf.mxu0
        %2637 = vmatprep.mubr.bf16.mxu0 0
        %2638 = vmatmul.mubr.bf16.gmra.mxu0 %v1919
        %v2639 = vpop.f32.mrf.mxu0
        %v2640 = vadd.f32 0.0, %v2639
        %v2641 = vpop.f32.mrf.mxu0
        %v2642 = vpop.f32.mrf.mxu0
        %v2643 = vadd.f32 0.0, %v2642
        %v2644 = vpop.f32.mrf.mxu0
        %2645 = vmatprep.mubr.bf16.mxu0 0
        %2646 = vmatmul.mubr.bf16.gmra.mxu0 %v1922
        %v2647 = vpop.f32.mrf.mxu0
        %v2648 = vadd.f32 0.0, %v2647
        %v2649 = vpop.f32.mrf.mxu0
        %v2650 = vpop.f32.mrf.mxu0
        %v2651 = vadd.f32 0.0, %v2650
        %v2652 = vpop.f32.mrf.mxu0
        %2653 = vmatprep.mubr.bf16.mxu0 0
        %2654 = vmatmul.mubr.bf16.gmra.mxu0 %v1925
        %v2655 = vpop.f32.mrf.mxu0
        %v2656 = vadd.f32 0.0, %v2655
        %v2657 = vpop.f32.mrf.mxu0
        %v2658 = vpop.f32.mrf.mxu0
        %v2659 = vadd.f32 0.0, %v2658
        %v2660 = vpop.f32.mrf.mxu0
        %2661 = vmatprep.mubr.bf16.mxu0 0
        %2662 = vmatmul.mubr.bf16.gmra.mxu0 %v1928
        %v2663 = vpop.f32.mrf.mxu0
        %v2664 = vadd.f32 0.0, %v2663
        %v2665 = vpop.f32.mrf.mxu0
        %v2666 = vpop.f32.mrf.mxu0
        %v2667 = vadd.f32 0.0, %v2666
        %v2668 = vpop.f32.mrf.mxu0
        %2669 = vmatprep.mubr.bf16.mxu0 0
        %2670 = vmatmul.mubr.bf16.gmra.mxu0 %v1931
        %v2671 = vpop.f32.mrf.mxu0
        %v2672 = vadd.f32 0.0, %v2671
        %v2673 = vpop.f32.mrf.mxu0
        %v2674 = vpop.f32.mrf.mxu0
        %v2675 = vadd.f32 0.0, %v2674
        %v2676 = vpop.f32.mrf.mxu0
        %2677 = vmatprep.mubr.bf16.mxu0 0
        %2678 = vmatmul.mubr.bf16.gmra.mxu0 %v1934
        %v2679 = vpop.f32.mrf.mxu0
        %v2680 = vadd.f32 0.0, %v2679
        %v2681 = vpop.f32.mrf.mxu0
        %v2682 = vpop.f32.mrf.mxu0
        %v2683 = vadd.f32 0.0, %v2682
        %v2684 = vpop.f32.mrf.mxu0
        %2685 = vmatprep.mubr.bf16.mxu0 0
        %2686 = vmatmul.mubr.bf16.gmra.mxu0 %v1937
        %v2687 = vpop.f32.mrf.mxu0
        %v2688 = vadd.f32 0.0, %v2687
        %v2689 = vpop.f32.mrf.mxu0
        %v2690 = vpop.f32.mrf.mxu0
        %v2691 = vadd.f32 0.0, %v2690
        %v2692 = vpop.f32.mrf.mxu0
        %2693 = vmatprep.mubr.bf16.mxu0 0
        %2694 = vmatmul.mubr.bf16.gmra.mxu0 %v1940
        %v2695 = vpop.f32.mrf.mxu0
        %v2696 = vadd.f32 0.0, %v2695
        %v2697 = vpop.f32.mrf.mxu0
        %v2698 = vpop.f32.mrf.mxu0
        %v2699 = vadd.f32 0.0, %v2698
        %v2700 = vpop.f32.mrf.mxu0
        %2701 = vmatprep.mubr.bf16.mxu0 0
        %2702 = vmatmul.mubr.bf16.gmra.mxu0 %v1943
        %v2703 = vpop.f32.mrf.mxu0
        %v2704 = vadd.f32 0.0, %v2703
        %v2705 = vpop.f32.mrf.mxu0
        %v2706 = vpop.f32.mrf.mxu0
        %v2707 = vadd.f32 0.0, %v2706
        %v2708 = vpop.f32.mrf.mxu0
        %2709 = vmatprep.mubr.bf16.mxu0 0
        %2710 = vmatmul.mubr.bf16.gmra.mxu0 %v1946
        %v2711 = vpop.f32.mrf.mxu0
        %v2712 = vadd.f32 0.0, %v2711
        %v2713 = vpop.f32.mrf.mxu0
        %v2714 = vpop.f32.mrf.mxu0
        %v2715 = vadd.f32 0.0, %v2714
        %v2716 = vpop.f32.mrf.mxu0
        %2717 = vmatprep.mubr.bf16.mxu0 0
        %2718 = vmatmul.mubr.bf16.gmra.mxu0 %v1949
        %v2719 = vpop.f32.mrf.mxu0
        %v2720 = vadd.f32 0.0, %v2719
        %v2721 = vpop.f32.mrf.mxu0
        %v2722 = vpop.f32.mrf.mxu0
        %v2723 = vadd.f32 0.0, %v2722
        %v2724 = vpop.f32.mrf.mxu0
        %2725 = vmatprep.mubr.bf16.mxu0 0
        %2726 = vmatmul.mubr.bf16.gmra.mxu0 %v2568
        %v2727 = vpop.f32.mrf.mxu0
        %v2728 = vadd.f32 0.0, %v2727
        %v2729 = vpop.f32.mrf.mxu0
        %v2730 = vpop.f32.mrf.mxu0
        %v2731 = vadd.f32 0.0, %v2730
        %v2732 = vpop.f32.mrf.mxu0
        %2733 = vdwg.mxu0
        %v2734 = vadd.f32 %v2528, %v2608
        %v2735 = vadd.f32 %v2529, %v2611
        %v2736 = vadd.f32 %v2530, %v2616
        %v2737 = vadd.f32 %v2531, %v2619
        %v2738 = vadd.f32 %v2532, %v2624
        %v2739 = vadd.f32 %v2533, %v2627
        %v2740 = vadd.f32 %v2534, %v2632
        %v2741 = vadd.f32 %v2535, %v2635
        %v2742 = vadd.f32 %v2536, %v2640
        %v2743 = vadd.f32 %v2537, %v2643
        %v2744 = vadd.f32 %v2538, %v2648
        %v2745 = vadd.f32 %v2539, %v2651
        %v2746 = vadd.f32 %v2540, %v2656
        %v2747 = vadd.f32 %v2541, %v2659
        %v2748 = vadd.f32 %v2542, %v2664
        %v2749 = vadd.f32 %v2543, %v2667
        %v2750 = vadd.f32 %v2544, %v2672
        %v2751 = vadd.f32 %v2545, %v2675
        %v2752 = vadd.f32 %v2546, %v2680
        %v2753 = vadd.f32 %v2547, %v2683
        %v2754 = vadd.f32 %v2548, %v2688
        %v2755 = vadd.f32 %v2549, %v2691
        %v2756 = vadd.f32 %v2550, %v2696
        %v2757 = vadd.f32 %v2551, %v2699
        %v2758 = vadd.f32 %v2552, %v2704
        %v2759 = vadd.f32 %v2553, %v2707
        %v2760 = vadd.f32 %v2554, %v2712
        %v2761 = vadd.f32 %v2555, %v2715
        %v2762 = vadd.f32 %v2556, %v2720
        %v2763 = vadd.f32 %v2557, %v2723
        %v2764 = vadd.f32 %v2558, %v2728
        %v2765 = vadd.f32 %v2559, %v2731
        %s2766 = scalar_lea.vmem %s5, 12
        %v2767 = vld [vmem:[%s2766] sm:$0x3]
        %v2769 = vsel %vm609, %v2767, 0
        %2771 = vmatprep.subr.bf16.mxu0 0
        %2772 = vmatpush1.bf16.msra.mxu0 0
        %2773 = vmatprep.subr.bf16.mxu0 0
        %2774 = vmatpush1.bf16.msra.mxu0 0
        %2775 = vmatprep.subr.bf16.mxu0 0
        %2776 = vmatpush1.bf16.msra.mxu0 0
        %2777 = vmatprep.subr.bf16.mxu0 0
        %2778 = vmatpush1.bf16.msra.mxu0 0
        %2779 = vmatprep.subr.bf16.mxu0 0
        %2780 = vmatpush1.bf16.msra.mxu0 0
        %2781 = vmatprep.subr.bf16.mxu0 0
        %2782 = vmatpush1.bf16.msra.mxu0 0
        %2783 = vmatprep.subr.bf16.mxu0 0
        %2784 = vmatpush1.bf16.msra.mxu0 0
        %2785 = vmatprep.subr.bf16.mxu0 0
        %2786 = vmatpush1.bf16.msra.mxu0 %v2769
        %2787 = vmatprep.subr.bf16.mxu0 0
        %2788 = vmatpush2.bf16.msra.mxu0 0
        %2789 = vmatprep.subr.bf16.mxu0 0
        %2790 = vmatpush2.bf16.msra.mxu0 0
        %2791 = vmatprep.subr.bf16.mxu0 0
        %2792 = vmatpush2.bf16.msra.mxu0 0
        %2793 = vmatprep.subr.bf16.mxu0 0
        %2794 = vmatpush2.bf16.msra.mxu0 0
        %2795 = vmatprep.subr.bf16.mxu0 0
        %2796 = vmatpush2.bf16.msra.mxu0 0
        %2797 = vmatprep.subr.bf16.mxu0 0
        %2798 = vmatpush2.bf16.msra.mxu0 0
        %2799 = vmatprep.subr.bf16.mxu0 0
        %2800 = vmatpush2.bf16.msra.mxu0 0
        %2801 = vmatprep.subr.bf16.mxu0 0
        %2802 = vmatpush2.bf16.msra.mxu0 0
        %2803 = vmatprep.mubr.bf16.mxu0 0
        %2804 = vmatmul.mubr.bf16.gmra.mxu0 %v1628
        %v2805 = vpop.f32.mrf.mxu0
        %v2806 = vadd.f32 0.0, %v2805
        %v2807 = vpop.f32.mrf.mxu0
        %v2808 = vpop.f32.mrf.mxu0
        %v2809 = vadd.f32 0.0, %v2808
        %v2810 = vpop.f32.mrf.mxu0
        %2811 = vmatprep.mubr.bf16.mxu0 0
        %2812 = vmatmul.mubr.bf16.gmra.mxu0 %v1630
        %v2813 = vpop.f32.mrf.mxu0
        %v2814 = vadd.f32 0.0, %v2813
        %v2815 = vpop.f32.mrf.mxu0
        %v2816 = vpop.f32.mrf.mxu0
        %v2817 = vadd.f32 0.0, %v2816
        %v2818 = vpop.f32.mrf.mxu0
        %2819 = vmatprep.mubr.bf16.mxu0 0
        %2820 = vmatmul.mubr.bf16.gmra.mxu0 %v1632
        %v2821 = vpop.f32.mrf.mxu0
        %v2822 = vadd.f32 0.0, %v2821
        %v2823 = vpop.f32.mrf.mxu0
        %v2824 = vpop.f32.mrf.mxu0
        %v2825 = vadd.f32 0.0, %v2824
        %v2826 = vpop.f32.mrf.mxu0
        %2827 = vmatprep.mubr.bf16.mxu0 0
        %2828 = vmatmul.mubr.bf16.gmra.mxu0 %v1634
        %v2829 = vpop.f32.mrf.mxu0
        %v2830 = vadd.f32 0.0, %v2829
        %v2831 = vpop.f32.mrf.mxu0
        %v2832 = vpop.f32.mrf.mxu0
        %v2833 = vadd.f32 0.0, %v2832
        %v2834 = vpop.f32.mrf.mxu0
        %2835 = vmatprep.mubr.bf16.mxu0 0
        %2836 = vmatmul.mubr.bf16.gmra.mxu0 %v1636
        %v2837 = vpop.f32.mrf.mxu0
        %v2838 = vadd.f32 0.0, %v2837
        %v2839 = vpop.f32.mrf.mxu0
        %v2840 = vpop.f32.mrf.mxu0
        %v2841 = vadd.f32 0.0, %v2840
        %v2842 = vpop.f32.mrf.mxu0
        %2843 = vmatprep.mubr.bf16.mxu0 0
        %2844 = vmatmul.mubr.bf16.gmra.mxu0 %v1638
        %v2845 = vpop.f32.mrf.mxu0
        %v2846 = vadd.f32 0.0, %v2845
        %v2847 = vpop.f32.mrf.mxu0
        %v2848 = vpop.f32.mrf.mxu0
        %v2849 = vadd.f32 0.0, %v2848
        %v2850 = vpop.f32.mrf.mxu0
        %2851 = vmatprep.mubr.bf16.mxu0 0
        %2852 = vmatmul.mubr.bf16.gmra.mxu0 %v1640
        %v2853 = vpop.f32.mrf.mxu0
        %v2854 = vadd.f32 0.0, %v2853
        %v2855 = vpop.f32.mrf.mxu0
        %v2856 = vpop.f32.mrf.mxu0
        %v2857 = vadd.f32 0.0, %v2856
        %v2858 = vpop.f32.mrf.mxu0
        %2859 = vmatprep.mubr.bf16.mxu0 0
        %2860 = vmatmul.mubr.bf16.gmra.mxu0 %v1642
        %v2861 = vpop.f32.mrf.mxu0
        %v2862 = vadd.f32 0.0, %v2861
        %v2863 = vpop.f32.mrf.mxu0
        %v2864 = vpop.f32.mrf.mxu0
        %v2865 = vadd.f32 0.0, %v2864
        %v2866 = vpop.f32.mrf.mxu0
        %2867 = vmatprep.mubr.bf16.mxu0 0
        %2868 = vmatmul.mubr.bf16.gmra.mxu0 %v1644
        %v2869 = vpop.f32.mrf.mxu0
        %v2870 = vadd.f32 0.0, %v2869
        %v2871 = vpop.f32.mrf.mxu0
        %v2872 = vpop.f32.mrf.mxu0
        %v2873 = vadd.f32 0.0, %v2872
        %v2874 = vpop.f32.mrf.mxu0
        %2875 = vmatprep.mubr.bf16.mxu0 0
        %2876 = vmatmul.mubr.bf16.gmra.mxu0 %v1646
        %v2877 = vpop.f32.mrf.mxu0
        %v2878 = vadd.f32 0.0, %v2877
        %v2879 = vpop.f32.mrf.mxu0
        %v2880 = vpop.f32.mrf.mxu0
        %v2881 = vadd.f32 0.0, %v2880
        %v2882 = vpop.f32.mrf.mxu0
        %2883 = vmatprep.mubr.bf16.mxu0 0
        %2884 = vmatmul.mubr.bf16.gmra.mxu0 %v1648
        %v2885 = vpop.f32.mrf.mxu0
        %v2886 = vadd.f32 0.0, %v2885
        %v2887 = vpop.f32.mrf.mxu0
        %v2888 = vpop.f32.mrf.mxu0
        %v2889 = vadd.f32 0.0, %v2888
        %v2890 = vpop.f32.mrf.mxu0
        %2891 = vmatprep.mubr.bf16.mxu0 0
        %2892 = vmatmul.mubr.bf16.gmra.mxu0 %v1650
        %v2893 = vpop.f32.mrf.mxu0
        %v2894 = vadd.f32 0.0, %v2893
        %v2895 = vpop.f32.mrf.mxu0
        %v2896 = vpop.f32.mrf.mxu0
        %v2897 = vadd.f32 0.0, %v2896
        %v2898 = vpop.f32.mrf.mxu0
        %2899 = vmatprep.mubr.bf16.mxu0 0
        %2900 = vmatmul.mubr.bf16.gmra.mxu0 %v1652
        %v2901 = vpop.f32.mrf.mxu0
        %v2902 = vadd.f32 0.0, %v2901
        %v2903 = vpop.f32.mrf.mxu0
        %v2904 = vpop.f32.mrf.mxu0
        %v2905 = vadd.f32 0.0, %v2904
        %v2906 = vpop.f32.mrf.mxu0
        %2907 = vmatprep.mubr.bf16.mxu0 0
        %2908 = vmatmul.mubr.bf16.gmra.mxu0 %v1654
        %v2909 = vpop.f32.mrf.mxu0
        %v2910 = vadd.f32 0.0, %v2909
        %v2911 = vpop.f32.mrf.mxu0
        %v2912 = vpop.f32.mrf.mxu0
        %v2913 = vadd.f32 0.0, %v2912
        %v2914 = vpop.f32.mrf.mxu0
        %2915 = vmatprep.mubr.bf16.mxu0 0
        %2916 = vmatmul.mubr.bf16.gmra.mxu0 %v2150
        %v2917 = vpop.f32.mrf.mxu0
        %v2918 = vadd.f32 0.0, %v2917
        %v2919 = vpop.f32.mrf.mxu0
        %v2920 = vpop.f32.mrf.mxu0
        %v2921 = vadd.f32 0.0, %v2920
        %v2922 = vpop.f32.mrf.mxu0
        %2923 = vmatprep.mubr.bf16.mxu0 0
        %2924 = vmatmul.mubr.bf16.gmra.mxu0 %v1624
        %v2925 = vpop.f32.mrf.mxu0
        %v2926 = vadd.f32 0.0, %v2925
        %v2927 = vpop.f32.mrf.mxu0
        %v2928 = vpop.f32.mrf.mxu0
        %v2929 = vadd.f32 0.0, %v2928
        %v2930 = vpop.f32.mrf.mxu0
        %2931 = vdwg.mxu0
        %v2932 = vadd.f32 %v2734, %v2806
        %v2933 = vadd.f32 %v2735, %v2809
        %v2934 = vadd.f32 %v2736, %v2814
        %v2935 = vadd.f32 %v2737, %v2817
        %v2936 = vadd.f32 %v2738, %v2822
        %v2937 = vadd.f32 %v2739, %v2825
        %v2938 = vadd.f32 %v2740, %v2830
        %v2939 = vadd.f32 %v2741, %v2833
        %v2940 = vadd.f32 %v2742, %v2838
        %v2941 = vadd.f32 %v2743, %v2841
        %v2942 = vadd.f32 %v2744, %v2846
        %v2943 = vadd.f32 %v2745, %v2849
        %v2944 = vadd.f32 %v2746, %v2854
        %v2945 = vadd.f32 %v2747, %v2857
        %v2946 = vadd.f32 %v2748, %v2862
        %v2947 = vadd.f32 %v2749, %v2865
        %v2948 = vadd.f32 %v2750, %v2870
        %v2949 = vadd.f32 %v2751, %v2873
        %v2950 = vadd.f32 %v2752, %v2878
        %v2951 = vadd.f32 %v2753, %v2881
        %v2952 = vadd.f32 %v2754, %v2886
        %v2953 = vadd.f32 %v2755, %v2889
        %v2954 = vadd.f32 %v2756, %v2894
        %v2955 = vadd.f32 %v2757, %v2897
        %v2956 = vadd.f32 %v2758, %v2902
        %v2957 = vadd.f32 %v2759, %v2905
        %v2958 = vadd.f32 %v2760, %v2910
        %v2959 = vadd.f32 %v2761, %v2913
        %v2960 = vadd.f32 %v2762, %v2918
        %v2961 = vadd.f32 %v2763, %v2921
        %v2962 = vadd.f32 %v2764, %v2926
        %v2963 = vadd.f32 %v2765, %v2929
        %s2964 = scalar_lea.vmem %s5, 14
        %v2965 = vld [vmem:[%s2964] sm:$0x3]
        %v2967 = vsel %vm609, %v2965, 0
        %2969 = vmatprep.subr.bf16.mxu0 0
        %2970 = vmatpush1.bf16.msra.mxu0 0
        %2971 = vmatprep.subr.bf16.mxu0 0
        %2972 = vmatpush1.bf16.msra.mxu0 0
        %2973 = vmatprep.subr.bf16.mxu0 0
        %2974 = vmatpush1.bf16.msra.mxu0 0
        %2975 = vmatprep.subr.bf16.mxu0 0
        %2976 = vmatpush1.bf16.msra.mxu0 0
        %2977 = vmatprep.subr.bf16.mxu0 0
        %2978 = vmatpush1.bf16.msra.mxu0 0
        %2979 = vmatprep.subr.bf16.mxu0 0
        %2980 = vmatpush1.bf16.msra.mxu0 0
        %2981 = vmatprep.subr.bf16.mxu0 0
        %2982 = vmatpush1.bf16.msra.mxu0 0
        %2983 = vmatprep.subr.bf16.mxu0 0
        %2984 = vmatpush1.bf16.msra.mxu0 %v2967
        %2985 = vmatprep.subr.bf16.mxu0 0
        %2986 = vmatpush2.bf16.msra.mxu0 0
        %2987 = vmatprep.subr.bf16.mxu0 0
        %2988 = vmatpush2.bf16.msra.mxu0 0
        %2989 = vmatprep.subr.bf16.mxu0 0
        %2990 = vmatpush2.bf16.msra.mxu0 0
        %2991 = vmatprep.subr.bf16.mxu0 0
        %2992 = vmatpush2.bf16.msra.mxu0 0
        %2993 = vmatprep.subr.bf16.mxu0 0
        %2994 = vmatpush2.bf16.msra.mxu0 0
        %2995 = vmatprep.subr.bf16.mxu0 0
        %2996 = vmatpush2.bf16.msra.mxu0 0
        %2997 = vmatprep.subr.bf16.mxu0 0
        %2998 = vmatpush2.bf16.msra.mxu0 0
        %2999 = vmatprep.subr.bf16.mxu0 0
        %3000 = vmatpush2.bf16.msra.mxu0 0
        %3001 = vmatprep.mubr.bf16.mxu0 0
        %3002 = vmatmul.mubr.bf16.gmra.mxu0 %v1419
        %v3003 = vpop.f32.mrf.mxu0
        %v3004 = vadd.f32 0.0, %v3003
        %v3005 = vpop.f32.mrf.mxu0
        %v3006 = vpop.f32.mrf.mxu0
        %v3007 = vadd.f32 0.0, %v3006
        %v3008 = vpop.f32.mrf.mxu0
        %3009 = vmatprep.mubr.bf16.mxu0 0
        %3010 = vmatmul.mubr.bf16.gmra.mxu0 %v1422
        %v3011 = vpop.f32.mrf.mxu0
        %v3012 = vadd.f32 0.0, %v3011
        %v3013 = vpop.f32.mrf.mxu0
        %v3014 = vpop.f32.mrf.mxu0
        %v3015 = vadd.f32 0.0, %v3014
        %v3016 = vpop.f32.mrf.mxu0
        %3017 = vmatprep.mubr.bf16.mxu0 0
        %3018 = vmatmul.mubr.bf16.gmra.mxu0 %v1425
        %v3019 = vpop.f32.mrf.mxu0
        %v3020 = vadd.f32 0.0, %v3019
        %v3021 = vpop.f32.mrf.mxu0
        %v3022 = vpop.f32.mrf.mxu0
        %v3023 = vadd.f32 0.0, %v3022
        %v3024 = vpop.f32.mrf.mxu0
        %3025 = vmatprep.mubr.bf16.mxu0 0
        %3026 = vmatmul.mubr.bf16.gmra.mxu0 %v1428
        %v3027 = vpop.f32.mrf.mxu0
        %v3028 = vadd.f32 0.0, %v3027
        %v3029 = vpop.f32.mrf.mxu0
        %v3030 = vpop.f32.mrf.mxu0
        %v3031 = vadd.f32 0.0, %v3030
        %v3032 = vpop.f32.mrf.mxu0
        %3033 = vmatprep.mubr.bf16.mxu0 0
        %3034 = vmatmul.mubr.bf16.gmra.mxu0 %v1431
        %v3035 = vpop.f32.mrf.mxu0
        %v3036 = vadd.f32 0.0, %v3035
        %v3037 = vpop.f32.mrf.mxu0
        %v3038 = vpop.f32.mrf.mxu0
        %v3039 = vadd.f32 0.0, %v3038
        %v3040 = vpop.f32.mrf.mxu0
        %3041 = vmatprep.mubr.bf16.mxu0 0
        %3042 = vmatmul.mubr.bf16.gmra.mxu0 %v1434
        %v3043 = vpop.f32.mrf.mxu0
        %v3044 = vadd.f32 0.0, %v3043
        %v3045 = vpop.f32.mrf.mxu0
        %v3046 = vpop.f32.mrf.mxu0
        %v3047 = vadd.f32 0.0, %v3046
        %v3048 = vpop.f32.mrf.mxu0
        %3049 = vmatprep.mubr.bf16.mxu0 0
        %3050 = vmatmul.mubr.bf16.gmra.mxu0 %v1437
        %v3051 = vpop.f32.mrf.mxu0
        %v3052 = vadd.f32 0.0, %v3051
        %v3053 = vpop.f32.mrf.mxu0
        %v3054 = vpop.f32.mrf.mxu0
        %v3055 = vadd.f32 0.0, %v3054
        %v3056 = vpop.f32.mrf.mxu0
        %3057 = vmatprep.mubr.bf16.mxu0 0
        %3058 = vmatmul.mubr.bf16.gmra.mxu0 %v1440
        %v3059 = vpop.f32.mrf.mxu0
        %v3060 = vadd.f32 0.0, %v3059
        %v3061 = vpop.f32.mrf.mxu0
        %v3062 = vpop.f32.mrf.mxu0
        %v3063 = vadd.f32 0.0, %v3062
        %v3064 = vpop.f32.mrf.mxu0
        %3065 = vmatprep.mubr.bf16.mxu0 0
        %3066 = vmatmul.mubr.bf16.gmra.mxu0 %v1443
        %v3067 = vpop.f32.mrf.mxu0
        %v3068 = vadd.f32 0.0, %v3067
        %v3069 = vpop.f32.mrf.mxu0
        %v3070 = vpop.f32.mrf.mxu0
        %v3071 = vadd.f32 0.0, %v3070
        %v3072 = vpop.f32.mrf.mxu0
        %3073 = vmatprep.mubr.bf16.mxu0 0
        %3074 = vmatmul.mubr.bf16.gmra.mxu0 %v1446
        %v3075 = vpop.f32.mrf.mxu0
        %v3076 = vadd.f32 0.0, %v3075
        %v3077 = vpop.f32.mrf.mxu0
        %v3078 = vpop.f32.mrf.mxu0
        %v3079 = vadd.f32 0.0, %v3078
        %v3080 = vpop.f32.mrf.mxu0
        %3081 = vmatprep.mubr.bf16.mxu0 0
        %3082 = vmatmul.mubr.bf16.gmra.mxu0 %v1449
        %v3083 = vpop.f32.mrf.mxu0
        %v3084 = vadd.f32 0.0, %v3083
        %v3085 = vpop.f32.mrf.mxu0
        %v3086 = vpop.f32.mrf.mxu0
        %v3087 = vadd.f32 0.0, %v3086
        %v3088 = vpop.f32.mrf.mxu0
        %3089 = vmatprep.mubr.bf16.mxu0 0
        %3090 = vmatmul.mubr.bf16.gmra.mxu0 %v1452
        %v3091 = vpop.f32.mrf.mxu0
        %v3092 = vadd.f32 0.0, %v3091
        %v3093 = vpop.f32.mrf.mxu0
        %v3094 = vpop.f32.mrf.mxu0
        %v3095 = vadd.f32 0.0, %v3094
        %v3096 = vpop.f32.mrf.mxu0
        %3097 = vmatprep.mubr.bf16.mxu0 0
        %3098 = vmatmul.mubr.bf16.gmra.mxu0 %v1455
        %v3099 = vpop.f32.mrf.mxu0
        %v3100 = vadd.f32 0.0, %v3099
        %v3101 = vpop.f32.mrf.mxu0
        %v3102 = vpop.f32.mrf.mxu0
        %v3103 = vadd.f32 0.0, %v3102
        %v3104 = vpop.f32.mrf.mxu0
        %3105 = vmatprep.mubr.bf16.mxu0 0
        %3106 = vmatmul.mubr.bf16.gmra.mxu0 %v1458
        %v3107 = vpop.f32.mrf.mxu0
        %v3108 = vadd.f32 0.0, %v3107
        %v3109 = vpop.f32.mrf.mxu0
        %v3110 = vpop.f32.mrf.mxu0
        %v3111 = vadd.f32 0.0, %v3110
        %v3112 = vpop.f32.mrf.mxu0
        %3113 = vmatprep.mubr.bf16.mxu0 0
        %3114 = vmatmul.mubr.bf16.gmra.mxu0 %v2362
        %v3115 = vpop.f32.mrf.mxu0
        %v3116 = vadd.f32 0.0, %v3115
        %v3117 = vpop.f32.mrf.mxu0
        %v3118 = vpop.f32.mrf.mxu0
        %v3119 = vadd.f32 0.0, %v3118
        %v3120 = vpop.f32.mrf.mxu0
        %3121 = vmatprep.mubr.bf16.mxu0 0
        %3122 = vmatmul.mubr.bf16.gmra.mxu0 %v1413
        %v3123 = vpop.f32.mrf.mxu0
        %v3124 = vadd.f32 0.0, %v3123
        %v3125 = vpop.f32.mrf.mxu0
        %v3126 = vpop.f32.mrf.mxu0
        %v3127 = vadd.f32 0.0, %v3126
        %v3128 = vpop.f32.mrf.mxu0
        %3129 = vdwg.mxu0
        %v3130 = vadd.f32 %v2932, %v3004
        %v3131 = vadd.f32 %v2933, %v3007
        %v3132 = vadd.f32 %v2934, %v3012
        %v3133 = vadd.f32 %v2935, %v3015
        %v3134 = vadd.f32 %v2936, %v3020
        %v3135 = vadd.f32 %v2937, %v3023
        %v3136 = vadd.f32 %v2938, %v3028
        %v3137 = vadd.f32 %v2939, %v3031
        %v3138 = vadd.f32 %v2940, %v3036
        %v3139 = vadd.f32 %v2941, %v3039
        %v3140 = vadd.f32 %v2942, %v3044
        %v3141 = vadd.f32 %v2943, %v3047
        %v3142 = vadd.f32 %v2944, %v3052
        %v3143 = vadd.f32 %v2945, %v3055
        %v3144 = vadd.f32 %v2946, %v3060
        %v3145 = vadd.f32 %v2947, %v3063
        %v3146 = vadd.f32 %v2948, %v3068
        %v3147 = vadd.f32 %v2949, %v3071
        %v3148 = vadd.f32 %v2950, %v3076
        %v3149 = vadd.f32 %v2951, %v3079
        %v3150 = vadd.f32 %v2952, %v3084
        %v3151 = vadd.f32 %v2953, %v3087
        %v3152 = vadd.f32 %v2954, %v3092
        %v3153 = vadd.f32 %v2955, %v3095
        %v3154 = vadd.f32 %v2956, %v3100
        %v3155 = vadd.f32 %v2957, %v3103
        %v3156 = vadd.f32 %v2958, %v3108
        %v3157 = vadd.f32 %v2959, %v3111
        %v3158 = vadd.f32 %v2960, %v3116
        %v3159 = vadd.f32 %v2961, %v3119
        %v3160 = vadd.f32 %v2962, %v3124
        %v3161 = vadd.f32 %v2963, %v3127
        %s3162 = scalar_lea.vmem %s5, 16
        %v3163 = vld [vmem:[%s3162] sm:$0x3]
        %v3165 = vsel %vm609, %v3163, 0
        %3167 = vmatprep.subr.bf16.mxu0 0
        %3168 = vmatpush1.bf16.msra.mxu0 0
        %3169 = vmatprep.subr.bf16.mxu0 0
        %3170 = vmatpush1.bf16.msra.mxu0 0
        %3171 = vmatprep.subr.bf16.mxu0 0
        %3172 = vmatpush1.bf16.msra.mxu0 0
        %3173 = vmatprep.subr.bf16.mxu0 0
        %3174 = vmatpush1.bf16.msra.mxu0 0
        %3175 = vmatprep.subr.bf16.mxu0 0
        %3176 = vmatpush1.bf16.msra.mxu0 0
        %3177 = vmatprep.subr.bf16.mxu0 0
        %3178 = vmatpush1.bf16.msra.mxu0 0
        %3179 = vmatprep.subr.bf16.mxu0 0
        %3180 = vmatpush1.bf16.msra.mxu0 0
        %3181 = vmatprep.subr.bf16.mxu0 0
        %3182 = vmatpush1.bf16.msra.mxu0 %v3165
        %3183 = vmatprep.subr.bf16.mxu0 0
        %3184 = vmatpush2.bf16.msra.mxu0 0
        %3185 = vmatprep.subr.bf16.mxu0 0
        %3186 = vmatpush2.bf16.msra.mxu0 0
        %3187 = vmatprep.subr.bf16.mxu0 0
        %3188 = vmatpush2.bf16.msra.mxu0 0
        %3189 = vmatprep.subr.bf16.mxu0 0
        %3190 = vmatpush2.bf16.msra.mxu0 0
        %3191 = vmatprep.subr.bf16.mxu0 0
        %3192 = vmatpush2.bf16.msra.mxu0 0
        %3193 = vmatprep.subr.bf16.mxu0 0
        %3194 = vmatpush2.bf16.msra.mxu0 0
        %3195 = vmatprep.subr.bf16.mxu0 0
        %3196 = vmatpush2.bf16.msra.mxu0 0
        %3197 = vmatprep.subr.bf16.mxu0 0
        %3198 = vmatpush2.bf16.msra.mxu0 0
        %3199 = vmatprep.mubr.bf16.mxu0 0
        %3200 = vmatmul.mubr.bf16.gmra.mxu0 %v1910
        %v3201 = vpop.f32.mrf.mxu0
        %v3202 = vadd.f32 0.0, %v3201
        %v3203 = vpop.f32.mrf.mxu0
        %v3204 = vpop.f32.mrf.mxu0
        %v3205 = vadd.f32 0.0, %v3204
        %v3206 = vpop.f32.mrf.mxu0
        %3207 = vmatprep.mubr.bf16.mxu0 0
        %3208 = vmatmul.mubr.bf16.gmra.mxu0 %v1913
        %v3209 = vpop.f32.mrf.mxu0
        %v3210 = vadd.f32 0.0, %v3209
        %v3211 = vpop.f32.mrf.mxu0
        %v3212 = vpop.f32.mrf.mxu0
        %v3213 = vadd.f32 0.0, %v3212
        %v3214 = vpop.f32.mrf.mxu0
        %3215 = vmatprep.mubr.bf16.mxu0 0
        %3216 = vmatmul.mubr.bf16.gmra.mxu0 %v1916
        %v3217 = vpop.f32.mrf.mxu0
        %v3218 = vadd.f32 0.0, %v3217
        %v3219 = vpop.f32.mrf.mxu0
        %v3220 = vpop.f32.mrf.mxu0
        %v3221 = vadd.f32 0.0, %v3220
        %v3222 = vpop.f32.mrf.mxu0
        %3223 = vmatprep.mubr.bf16.mxu0 0
        %3224 = vmatmul.mubr.bf16.gmra.mxu0 %v1919
        %v3225 = vpop.f32.mrf.mxu0
        %v3226 = vadd.f32 0.0, %v3225
        %v3227 = vpop.f32.mrf.mxu0
        %v3228 = vpop.f32.mrf.mxu0
        %v3229 = vadd.f32 0.0, %v3228
        %v3230 = vpop.f32.mrf.mxu0
        %3231 = vmatprep.mubr.bf16.mxu0 0
        %3232 = vmatmul.mubr.bf16.gmra.mxu0 %v1922
        %v3233 = vpop.f32.mrf.mxu0
        %v3234 = vadd.f32 0.0, %v3233
        %v3235 = vpop.f32.mrf.mxu0
        %v3236 = vpop.f32.mrf.mxu0
        %v3237 = vadd.f32 0.0, %v3236
        %v3238 = vpop.f32.mrf.mxu0
        %3239 = vmatprep.mubr.bf16.mxu0 0
        %3240 = vmatmul.mubr.bf16.gmra.mxu0 %v1925
        %v3241 = vpop.f32.mrf.mxu0
        %v3242 = vadd.f32 0.0, %v3241
        %v3243 = vpop.f32.mrf.mxu0
        %v3244 = vpop.f32.mrf.mxu0
        %v3245 = vadd.f32 0.0, %v3244
        %v3246 = vpop.f32.mrf.mxu0
        %3247 = vmatprep.mubr.bf16.mxu0 0
        %3248 = vmatmul.mubr.bf16.gmra.mxu0 %v1928
        %v3249 = vpop.f32.mrf.mxu0
        %v3250 = vadd.f32 0.0, %v3249
        %v3251 = vpop.f32.mrf.mxu0
        %v3252 = vpop.f32.mrf.mxu0
        %v3253 = vadd.f32 0.0, %v3252
        %v3254 = vpop.f32.mrf.mxu0
        %3255 = vmatprep.mubr.bf16.mxu0 0
        %3256 = vmatmul.mubr.bf16.gmra.mxu0 %v1931
        %v3257 = vpop.f32.mrf.mxu0
        %v3258 = vadd.f32 0.0, %v3257
        %v3259 = vpop.f32.mrf.mxu0
        %v3260 = vpop.f32.mrf.mxu0
        %v3261 = vadd.f32 0.0, %v3260
        %v3262 = vpop.f32.mrf.mxu0
        %3263 = vmatprep.mubr.bf16.mxu0 0
        %3264 = vmatmul.mubr.bf16.gmra.mxu0 %v1934
        %v3265 = vpop.f32.mrf.mxu0
        %v3266 = vadd.f32 0.0, %v3265
        %v3267 = vpop.f32.mrf.mxu0
        %v3268 = vpop.f32.mrf.mxu0
        %v3269 = vadd.f32 0.0, %v3268
        %v3270 = vpop.f32.mrf.mxu0
        %3271 = vmatprep.mubr.bf16.mxu0 0
        %3272 = vmatmul.mubr.bf16.gmra.mxu0 %v1937
        %v3273 = vpop.f32.mrf.mxu0
        %v3274 = vadd.f32 0.0, %v3273
        %v3275 = vpop.f32.mrf.mxu0
        %v3276 = vpop.f32.mrf.mxu0
        %v3277 = vadd.f32 0.0, %v3276
        %v3278 = vpop.f32.mrf.mxu0
        %3279 = vmatprep.mubr.bf16.mxu0 0
        %3280 = vmatmul.mubr.bf16.gmra.mxu0 %v1940
        %v3281 = vpop.f32.mrf.mxu0
        %v3282 = vadd.f32 0.0, %v3281
        %v3283 = vpop.f32.mrf.mxu0
        %v3284 = vpop.f32.mrf.mxu0
        %v3285 = vadd.f32 0.0, %v3284
        %v3286 = vpop.f32.mrf.mxu0
        %3287 = vmatprep.mubr.bf16.mxu0 0
        %3288 = vmatmul.mubr.bf16.gmra.mxu0 %v1943
        %v3289 = vpop.f32.mrf.mxu0
        %v3290 = vadd.f32 0.0, %v3289
        %v3291 = vpop.f32.mrf.mxu0
        %v3292 = vpop.f32.mrf.mxu0
        %v3293 = vadd.f32 0.0, %v3292
        %v3294 = vpop.f32.mrf.mxu0
        %3295 = vmatprep.mubr.bf16.mxu0 0
        %3296 = vmatmul.mubr.bf16.gmra.mxu0 %v1946
        %v3297 = vpop.f32.mrf.mxu0
        %v3298 = vadd.f32 0.0, %v3297
        %v3299 = vpop.f32.mrf.mxu0
        %v3300 = vpop.f32.mrf.mxu0
        %v3301 = vadd.f32 0.0, %v3300
        %v3302 = vpop.f32.mrf.mxu0
        %3303 = vmatprep.mubr.bf16.mxu0 0
        %3304 = vmatmul.mubr.bf16.gmra.mxu0 %v1949
        %v3305 = vpop.f32.mrf.mxu0
        %v3306 = vadd.f32 0.0, %v3305
        %v3307 = vpop.f32.mrf.mxu0
        %v3308 = vpop.f32.mrf.mxu0
        %v3309 = vadd.f32 0.0, %v3308
        %v3310 = vpop.f32.mrf.mxu0
        %3311 = vmatprep.mubr.bf16.mxu0 0
        %3312 = vmatmul.mubr.bf16.gmra.mxu0 %v2568
        %v3313 = vpop.f32.mrf.mxu0
        %v3314 = vadd.f32 0.0, %v3313
        %v3315 = vpop.f32.mrf.mxu0
        %v3316 = vpop.f32.mrf.mxu0
        %v3317 = vadd.f32 0.0, %v3316
        %v3318 = vpop.f32.mrf.mxu0
        %3319 = vmatprep.mubr.bf16.mxu0 0
        %3320 = vmatmul.mubr.bf16.gmra.mxu0 %v1904
        %v3321 = vpop.f32.mrf.mxu0
        %v3322 = vadd.f32 0.0, %v3321
        %v3323 = vpop.f32.mrf.mxu0
        %v3324 = vpop.f32.mrf.mxu0
        %v3325 = vadd.f32 0.0, %v3324
        %v3326 = vpop.f32.mrf.mxu0
        %3327 = vdwg.mxu0
        %v3328 = vadd.f32 %v3130, %v3202
        %v3329 = vadd.f32 %v3131, %v3205
        %v3330 = vadd.f32 %v3132, %v3210
        %v3331 = vadd.f32 %v3133, %v3213
        %v3332 = vadd.f32 %v3134, %v3218
        %v3333 = vadd.f32 %v3135, %v3221
        %v3334 = vadd.f32 %v3136, %v3226
        %v3335 = vadd.f32 %v3137, %v3229
        %v3336 = vadd.f32 %v3138, %v3234
        %v3337 = vadd.f32 %v3139, %v3237
        %v3338 = vadd.f32 %v3140, %v3242
        %v3339 = vadd.f32 %v3141, %v3245
        %v3340 = vadd.f32 %v3142, %v3250
        %v3341 = vadd.f32 %v3143, %v3253
        %v3342 = vadd.f32 %v3144, %v3258
        %v3343 = vadd.f32 %v3145, %v3261
        %v3344 = vadd.f32 %v3146, %v3266
        %v3345 = vadd.f32 %v3147, %v3269
        %v3346 = vadd.f32 %v3148, %v3274
        %v3347 = vadd.f32 %v3149, %v3277
        %v3348 = vadd.f32 %v3150, %v3282
        %v3349 = vadd.f32 %v3151, %v3285
        %v3350 = vadd.f32 %v3152, %v3290
        %v3351 = vadd.f32 %v3153, %v3293
        %v3352 = vadd.f32 %v3154, %v3298
        %v3353 = vadd.f32 %v3155, %v3301
        %v3354 = vadd.f32 %v3156, %v3306
        %v3355 = vadd.f32 %v3157, %v3309
        %v3356 = vadd.f32 %v3158, %v3314
        %v3357 = vadd.f32 %v3159, %v3317
        %v3358 = vadd.f32 %v3160, %v3322
        %v3359 = vadd.f32 %v3161, %v3325
        %v3360 = vld [vmem:[%s6] sm:$0x1]
        %v3362 = vlaneseq
        %v3363 = vshrl.u32 %v3362, 7
        %v3364 = vsub.s32 0, %v3363
        %v3365 = vrot.slane %v3360, %v3364
        %v3367 = vadd.f32 %v3328, %v3365
        %v3368 = vadd.f32 %v3329, %v3365
        %v3369 = vadd.f32 %v3330, %v3365
        %v3370 = vadd.f32 %v3331, %v3365
        %v3371 = vadd.f32 %v3332, %v3365
        %v3372 = vadd.f32 %v3333, %v3365
        %v3373 = vadd.f32 %v3334, %v3365
        %v3374 = vadd.f32 %v3335, %v3365
        %v3375 = vadd.f32 %v3336, %v3365
        %v3376 = vadd.f32 %v3337, %v3365
        %v3377 = vadd.f32 %v3338, %v3365
        %v3378 = vadd.f32 %v3339, %v3365
        %v3379 = vadd.f32 %v3340, %v3365
        %v3380 = vadd.f32 %v3341, %v3365
        %v3381 = vadd.f32 %v3342, %v3365
        %v3382 = vadd.f32 %v3343, %v3365
        %v3383 = vadd.f32 %v3344, %v3365
        %v3384 = vadd.f32 %v3345, %v3365
        %v3385 = vadd.f32 %v3346, %v3365
        %v3386 = vadd.f32 %v3347, %v3365
        %v3387 = vadd.f32 %v3348, %v3365
        %v3388 = vadd.f32 %v3349, %v3365
        %v3389 = vadd.f32 %v3350, %v3365
        %v3390 = vadd.f32 %v3351, %v3365
        %v3391 = vadd.f32 %v3352, %v3365
        %v3392 = vadd.f32 %v3353, %v3365
        %v3393 = vadd.f32 %v3354, %v3365
        %v3394 = vadd.f32 %v3355, %v3365
        %v3395 = vadd.f32 %v3356, %v3365
        %v3396 = vadd.f32 %v3357, %v3365
        %v3397 = vadd.f32 %v3358, %v3365
        %v3398 = vadd.f32 %v3359, %v3365
        %v3399 = vmax.f32 %v3367, 0.0
        %v3400 = vmax.f32 %v3368, 0.0
        %v3401 = vmax.f32 %v3369, 0.0
        %v3402 = vmax.f32 %v3370, 0.0
        %v3403 = vmax.f32 %v3371, 0.0
        %v3404 = vmax.f32 %v3372, 0.0
        %v3405 = vmax.f32 %v3373, 0.0
        %v3406 = vmax.f32 %v3374, 0.0
        %v3407 = vmax.f32 %v3375, 0.0
        %v3408 = vmax.f32 %v3376, 0.0
        %v3409 = vmax.f32 %v3377, 0.0
        %v3410 = vmax.f32 %v3378, 0.0
        %v3411 = vmax.f32 %v3379, 0.0
        %v3412 = vmax.f32 %v3380, 0.0
        %v3413 = vmax.f32 %v3381, 0.0
        %v3414 = vmax.f32 %v3382, 0.0
        %v3415 = vmax.f32 %v3383, 0.0
        %v3416 = vmax.f32 %v3384, 0.0
        %v3417 = vmax.f32 %v3385, 0.0
        %v3418 = vmax.f32 %v3386, 0.0
        %v3419 = vmax.f32 %v3387, 0.0
        %v3420 = vmax.f32 %v3388, 0.0
        %v3421 = vmax.f32 %v3389, 0.0
        %v3422 = vmax.f32 %v3390, 0.0
        %v3423 = vmax.f32 %v3391, 0.0
        %v3424 = vmax.f32 %v3392, 0.0
        %v3425 = vmax.f32 %v3393, 0.0
        %v3426 = vmax.f32 %v3394, 0.0
        %v3427 = vmax.f32 %v3395, 0.0
        %v3428 = vmax.f32 %v3396, 0.0
        %v3429 = vmax.f32 %v3397, 0.0
        %v3430 = vmax.f32 %v3398, 0.0
        %v3431 = vld [vmem:[%s7] sm:$0x3]
        %v3432 = vld [vmem:[%s8] sm:$0x1]
        %v3434 = vlaneseq
        %v3435 = vshrl.u32 %v3434, 7
        %v3436 = vsub.s32 0, %v3435
        %v3437 = vrot.slane %v3432, %v3436
        %v3440 = vsel %vm609, %v3431, 0
        %3442 = vmatprep.subr.bf16.mxu0 0
        %3443 = vmatpush1.bf16.msra.mxu0 0
        %3444 = vmatprep.subr.bf16.mxu0 0
        %3445 = vmatpush1.bf16.msra.mxu0 0
        %3446 = vmatprep.subr.bf16.mxu0 0
        %3447 = vmatpush1.bf16.msra.mxu0 0
        %3448 = vmatprep.subr.bf16.mxu0 0
        %3449 = vmatpush1.bf16.msra.mxu0 0
        %3450 = vmatprep.subr.bf16.mxu0 0
        %3451 = vmatpush1.bf16.msra.mxu0 0
        %3452 = vmatprep.subr.bf16.mxu0 0
        %3453 = vmatpush1.bf16.msra.mxu0 0
        %3454 = vmatprep.subr.bf16.mxu0 0
        %3455 = vmatpush1.bf16.msra.mxu0 0
        %3456 = vmatprep.subr.bf16.mxu0 0
        %3457 = vmatpush1.bf16.msra.mxu0 %v3440
        %3458 = vmatprep.subr.bf16.mxu0 0
        %3459 = vmatpush2.bf16.msra.mxu0 0
        %3460 = vmatprep.subr.bf16.mxu0 0
        %3461 = vmatpush2.bf16.msra.mxu0 0
        %3462 = vmatprep.subr.bf16.mxu0 0
        %3463 = vmatpush2.bf16.msra.mxu0 0
        %3464 = vmatprep.subr.bf16.mxu0 0
        %3465 = vmatpush2.bf16.msra.mxu0 0
        %3466 = vmatprep.subr.bf16.mxu0 0
        %3467 = vmatpush2.bf16.msra.mxu0 0
        %3468 = vmatprep.subr.bf16.mxu0 0
        %3469 = vmatpush2.bf16.msra.mxu0 0
        %3470 = vmatprep.subr.bf16.mxu0 0
        %3471 = vmatpush2.bf16.msra.mxu0 0
        %3472 = vmatprep.subr.bf16.mxu0 0
        %3473 = vmatpush2.bf16.msra.mxu0 0
        %3474 = vmatprep.mubr.bf16.mxu0 0
        %3475 = vmatmul.mubr.bf16.gmra.mxu0 %v562
        %v3476 = vpop.f32.mrf.mxu0
        %v3477 = vadd.f32 %v3437, %v3476
        %v3478 = vpop.f32.mrf.mxu0
        %v3479 = vpop.f32.mrf.mxu0
        %v3480 = vadd.f32 %v3437, %v3479
        %v3481 = vpop.f32.mrf.mxu0
        %3482 = vmatprep.mubr.bf16.mxu0 0
        %3483 = vmatmul.mubr.bf16.gmra.mxu0 %v565
        %v3484 = vpop.f32.mrf.mxu0
        %v3485 = vadd.f32 %v3437, %v3484
        %v3486 = vpop.f32.mrf.mxu0
        %v3487 = vpop.f32.mrf.mxu0
        %v3488 = vadd.f32 %v3437, %v3487
        %v3489 = vpop.f32.mrf.mxu0
        %3490 = vmatprep.mubr.bf16.mxu0 0
        %3491 = vmatmul.mubr.bf16.gmra.mxu0 %v568
        %v3492 = vpop.f32.mrf.mxu0
        %v3493 = vadd.f32 %v3437, %v3492
        %v3494 = vpop.f32.mrf.mxu0
        %v3495 = vpop.f32.mrf.mxu0
        %v3496 = vadd.f32 %v3437, %v3495
        %v3497 = vpop.f32.mrf.mxu0
        %3498 = vmatprep.mubr.bf16.mxu0 0
        %3499 = vmatmul.mubr.bf16.gmra.mxu0 %v571
        %v3500 = vpop.f32.mrf.mxu0
        %v3501 = vadd.f32 %v3437, %v3500
        %v3502 = vpop.f32.mrf.mxu0
        %v3503 = vpop.f32.mrf.mxu0
        %v3504 = vadd.f32 %v3437, %v3503
        %v3505 = vpop.f32.mrf.mxu0
        %3506 = vmatprep.mubr.bf16.mxu0 0
        %3507 = vmatmul.mubr.bf16.gmra.mxu0 %v574
        %v3508 = vpop.f32.mrf.mxu0
        %v3509 = vadd.f32 %v3437, %v3508
        %v3510 = vpop.f32.mrf.mxu0
        %v3511 = vpop.f32.mrf.mxu0
        %v3512 = vadd.f32 %v3437, %v3511
        %v3513 = vpop.f32.mrf.mxu0
        %3514 = vmatprep.mubr.bf16.mxu0 0
        %3515 = vmatmul.mubr.bf16.gmra.mxu0 %v577
        %v3516 = vpop.f32.mrf.mxu0
        %v3517 = vadd.f32 %v3437, %v3516
        %v3518 = vpop.f32.mrf.mxu0
        %v3519 = vpop.f32.mrf.mxu0
        %v3520 = vadd.f32 %v3437, %v3519
        %v3521 = vpop.f32.mrf.mxu0
        %3522 = vmatprep.mubr.bf16.mxu0 0
        %3523 = vmatmul.mubr.bf16.gmra.mxu0 %v580
        %v3524 = vpop.f32.mrf.mxu0
        %v3525 = vadd.f32 %v3437, %v3524
        %v3526 = vpop.f32.mrf.mxu0
        %v3527 = vpop.f32.mrf.mxu0
        %v3528 = vadd.f32 %v3437, %v3527
        %v3529 = vpop.f32.mrf.mxu0
        %3530 = vmatprep.mubr.bf16.mxu0 0
        %3531 = vmatmul.mubr.bf16.gmra.mxu0 %v583
        %v3532 = vpop.f32.mrf.mxu0
        %v3533 = vadd.f32 %v3437, %v3532
        %v3534 = vpop.f32.mrf.mxu0
        %v3535 = vpop.f32.mrf.mxu0
        %v3536 = vadd.f32 %v3437, %v3535
        %v3537 = vpop.f32.mrf.mxu0
        %3538 = vmatprep.mubr.bf16.mxu0 0
        %3539 = vmatmul.mubr.bf16.gmra.mxu0 %v586
        %v3540 = vpop.f32.mrf.mxu0
        %v3541 = vadd.f32 %v3437, %v3540
        %v3542 = vpop.f32.mrf.mxu0
        %v3543 = vpop.f32.mrf.mxu0
        %v3544 = vadd.f32 %v3437, %v3543
        %v3545 = vpop.f32.mrf.mxu0
        %3546 = vmatprep.mubr.bf16.mxu0 0
        %3547 = vmatmul.mubr.bf16.gmra.mxu0 %v589
        %v3548 = vpop.f32.mrf.mxu0
        %v3549 = vadd.f32 %v3437, %v3548
        %v3550 = vpop.f32.mrf.mxu0
        %v3551 = vpop.f32.mrf.mxu0
        %v3552 = vadd.f32 %v3437, %v3551
        %v3553 = vpop.f32.mrf.mxu0
        %3554 = vmatprep.mubr.bf16.mxu0 0
        %3555 = vmatmul.mubr.bf16.gmra.mxu0 %v592
        %v3556 = vpop.f32.mrf.mxu0
        %v3557 = vadd.f32 %v3437, %v3556
        %v3558 = vpop.f32.mrf.mxu0
        %v3559 = vpop.f32.mrf.mxu0
        %v3560 = vadd.f32 %v3437, %v3559
        %v3561 = vpop.f32.mrf.mxu0
        %3562 = vmatprep.mubr.bf16.mxu0 0
        %3563 = vmatmul.mubr.bf16.gmra.mxu0 %v595
        %v3564 = vpop.f32.mrf.mxu0
        %v3565 = vadd.f32 %v3437, %v3564
        %v3566 = vpop.f32.mrf.mxu0
        %v3567 = vpop.f32.mrf.mxu0
        %v3568 = vadd.f32 %v3437, %v3567
        %v3569 = vpop.f32.mrf.mxu0
        %3570 = vmatprep.mubr.bf16.mxu0 0
        %3571 = vmatmul.mubr.bf16.gmra.mxu0 %v598
        %v3572 = vpop.f32.mrf.mxu0
        %v3573 = vadd.f32 %v3437, %v3572
        %v3574 = vpop.f32.mrf.mxu0
        %v3575 = vpop.f32.mrf.mxu0
        %v3576 = vadd.f32 %v3437, %v3575
        %v3577 = vpop.f32.mrf.mxu0
        %3578 = vmatprep.mubr.bf16.mxu0 0
        %3579 = vmatmul.mubr.bf16.gmra.mxu0 %v601
        %v3580 = vpop.f32.mrf.mxu0
        %v3581 = vadd.f32 %v3437, %v3580
        %v3582 = vpop.f32.mrf.mxu0
        %v3583 = vpop.f32.mrf.mxu0
        %v3584 = vadd.f32 %v3437, %v3583
        %v3585 = vpop.f32.mrf.mxu0
        %3586 = vmatprep.mubr.bf16.mxu0 0
        %3587 = vmatmul.mubr.bf16.gmra.mxu0 %v604
        %v3588 = vpop.f32.mrf.mxu0
        %v3589 = vadd.f32 %v3437, %v3588
        %v3590 = vpop.f32.mrf.mxu0
        %v3591 = vpop.f32.mrf.mxu0
        %v3592 = vadd.f32 %v3437, %v3591
        %v3593 = vpop.f32.mrf.mxu0
        %3594 = vmatprep.mubr.bf16.mxu0 0
        %3595 = vmatmul.mubr.bf16.gmra.mxu0 %v607
        %v3596 = vpop.f32.mrf.mxu0
        %v3597 = vadd.f32 %v3437, %v3596
        %v3598 = vpop.f32.mrf.mxu0
        %v3599 = vpop.f32.mrf.mxu0
        %v3600 = vadd.f32 %v3437, %v3599
        %v3601 = vpop.f32.mrf.mxu0
        %3602 = vdwg.mxu0
        %v3603 = vmax.f32 %v3477, 0.0
        %v3604 = vmax.f32 %v3480, 0.0
        %v3605 = vmax.f32 %v3485, 0.0
        %v3606 = vmax.f32 %v3488, 0.0
        %v3607 = vmax.f32 %v3493, 0.0
        %v3608 = vmax.f32 %v3496, 0.0
        %v3609 = vmax.f32 %v3501, 0.0
        %v3610 = vmax.f32 %v3504, 0.0
        %v3611 = vmax.f32 %v3509, 0.0
        %v3612 = vmax.f32 %v3512, 0.0
        %v3613 = vmax.f32 %v3517, 0.0
        %v3614 = vmax.f32 %v3520, 0.0
        %v3615 = vmax.f32 %v3525, 0.0
        %v3616 = vmax.f32 %v3528, 0.0
        %v3617 = vmax.f32 %v3533, 0.0
        %v3618 = vmax.f32 %v3536, 0.0
        %v3619 = vmax.f32 %v3541, 0.0
        %v3620 = vmax.f32 %v3544, 0.0
        %v3621 = vmax.f32 %v3549, 0.0
        %v3622 = vmax.f32 %v3552, 0.0
        %v3623 = vmax.f32 %v3557, 0.0
        %v3624 = vmax.f32 %v3560, 0.0
        %v3625 = vmax.f32 %v3565, 0.0
        %v3626 = vmax.f32 %v3568, 0.0
        %v3627 = vmax.f32 %v3573, 0.0
        %v3628 = vmax.f32 %v3576, 0.0
        %v3629 = vmax.f32 %v3581, 0.0
        %v3630 = vmax.f32 %v3584, 0.0
        %v3631 = vmax.f32 %v3589, 0.0
        %v3632 = vmax.f32 %v3592, 0.0
        %v3633 = vmax.f32 %v3597, 0.0
        %v3634 = vmax.f32 %v3600, 0.0
        %v3635 = vpack.c.bf16 %v3604, %v3603
        %v3636 = vpack.c.bf16 %v3606, %v3605
        %v3637 = vpack.c.bf16 %v3608, %v3607
        %v3638 = vpack.c.bf16 %v3610, %v3609
        %v3639 = vpack.c.bf16 %v3612, %v3611
        %v3640 = vpack.c.bf16 %v3614, %v3613
        %v3641 = vpack.c.bf16 %v3616, %v3615
        %v3642 = vpack.c.bf16 %v3618, %v3617
        %v3643 = vpack.c.bf16 %v3620, %v3619
        %v3644 = vpack.c.bf16 %v3622, %v3621
        %v3645 = vpack.c.bf16 %v3624, %v3623
        %v3646 = vpack.c.bf16 %v3626, %v3625
        %v3647 = vpack.c.bf16 %v3628, %v3627
        %v3648 = vpack.c.bf16 %v3630, %v3629
        %v3649 = vpack.c.bf16 %v3632, %v3631
        %v3650 = vpack.c.bf16 %v3634, %v3633
        %v3668 = vrot.slane 0, 7
        %v3669 = vrot.slane %v3635, 7
        %v3670 = vrot.slane %v3636, 7
        %v3671 = vrot.slane %v3637, 7
        %v3672 = vrot.slane %v3638, 7
        %v3673 = vrot.slane %v3639, 7
        %v3674 = vrot.slane %v3640, 7
        %v3675 = vrot.slane %v3641, 7
        %v3676 = vrot.slane %v3642, 7
        %v3677 = vrot.slane %v3643, 7
        %v3678 = vrot.slane %v3644, 7
        %v3679 = vrot.slane %v3645, 7
        %v3680 = vrot.slane %v3646, 7
        %v3681 = vrot.slane %v3647, 7
        %v3682 = vrot.slane %v3648, 7
        %v3683 = vrot.slane %v3649, 7
        %v3684 = vrot.slane %v3650, 7
        %vm3685 = vcmask 1040384
        %v3687 = vsel %vm3685, 0, %v3668
        %v3689 = vsel %vm3685, 0, %v3669
        %v3691 = vsel %vm3685, 0, %v3670
        %v3693 = vsel %vm3685, 0, %v3671
        %v3695 = vsel %vm3685, 0, %v3672
        %v3697 = vsel %vm3685, 0, %v3673
        %v3699 = vsel %vm3685, 0, %v3674
        %v3701 = vsel %vm3685, 0, %v3675
        %v3703 = vsel %vm3685, 0, %v3676
        %v3705 = vsel %vm3685, 0, %v3677
        %v3707 = vsel %vm3685, 0, %v3678
        %v3709 = vsel %vm3685, 0, %v3679
        %v3711 = vsel %vm3685, 0, %v3680
        %v3713 = vsel %vm3685, 0, %v3681
        %v3715 = vsel %vm3685, 0, %v3682
        %v3717 = vsel %vm3685, 0, %v3683
        %v3719 = vsel %vm3685, 0, %v3684
        %v3720 = vsel %vm3685, %v3668, 0
        %v3721 = vsel %vm3685, %v3669, 0
        %v3722 = vsel %vm3685, %v3670, 0
        %v3723 = vsel %vm3685, %v3671, 0
        %v3724 = vsel %vm3685, %v3672, 0
        %v3725 = vsel %vm3685, %v3673, 0
        %v3726 = vsel %vm3685, %v3674, 0
        %v3727 = vsel %vm3685, %v3675, 0
        %v3728 = vsel %vm3685, %v3676, 0
        %v3729 = vsel %vm3685, %v3677, 0
        %v3730 = vsel %vm3685, %v3678, 0
        %v3731 = vsel %vm3685, %v3679, 0
        %v3732 = vsel %vm3685, %v3680, 0
        %v3733 = vsel %vm3685, %v3681, 0
        %v3734 = vsel %vm3685, %v3682, 0
        %v3735 = vsel %vm3685, %v3683, 0
        %v3736 = vsel %vm3685, %v3684, 0
        %v3737 = vld [vmem:[%s9] sm:$0x1]
        %v3738 = vshrl.u32 %v3687, 16
        %v3740 = vshll.u32 %v3687, 16
        %v3742 = vrot.slane %v3740, 1
        %v3743 = vor.u32 %v3738, %v3742
        %v3744 = vshll.u32 %v3720, 16
        %v3746 = vrot.slane %v3744, 1
        %v3747 = vsel %vm1217, %v3743, %v3746
        %v3748 = vshrl.u32 %v3689, 16
        %v3750 = vshll.u32 %v3689, 16
        %v3752 = vrot.slane %v3750, 1
        %v3753 = vor.u32 %v3748, %v3752
        %v3754 = vshll.u32 %v3721, 16
        %v3756 = vrot.slane %v3754, 1
        %v3757 = vsel %vm1217, %v3753, %v3756
        %v3758 = vshrl.u32 %v3691, 16
        %v3760 = vshll.u32 %v3691, 16
        %v3762 = vrot.slane %v3760, 1
        %v3763 = vor.u32 %v3758, %v3762
        %v3764 = vshll.u32 %v3722, 16
        %v3766 = vrot.slane %v3764, 1
        %v3767 = vsel %vm1217, %v3763, %v3766
        %v3768 = vshrl.u32 %v3693, 16
        %v3770 = vshll.u32 %v3693, 16
        %v3772 = vrot.slane %v3770, 1
        %v3773 = vor.u32 %v3768, %v3772
        %v3774 = vshll.u32 %v3723, 16
        %v3776 = vrot.slane %v3774, 1
        %v3777 = vsel %vm1217, %v3773, %v3776
        %v3778 = vshrl.u32 %v3695, 16
        %v3780 = vshll.u32 %v3695, 16
        %v3782 = vrot.slane %v3780, 1
        %v3783 = vor.u32 %v3778, %v3782
        %v3784 = vshll.u32 %v3724, 16
        %v3786 = vrot.slane %v3784, 1
        %v3787 = vsel %vm1217, %v3783, %v3786
        %v3788 = vshrl.u32 %v3697, 16
        %v3790 = vshll.u32 %v3697, 16
        %v3792 = vrot.slane %v3790, 1
        %v3793 = vor.u32 %v3788, %v3792
        %v3794 = vshll.u32 %v3725, 16
        %v3796 = vrot.slane %v3794, 1
        %v3797 = vsel %vm1217, %v3793, %v3796
        %v3798 = vshrl.u32 %v3699, 16
        %v3800 = vshll.u32 %v3699, 16
        %v3802 = vrot.slane %v3800, 1
        %v3803 = vor.u32 %v3798, %v3802
        %v3804 = vshll.u32 %v3726, 16
        %v3806 = vrot.slane %v3804, 1
        %v3807 = vsel %vm1217, %v3803, %v3806
        %v3808 = vshrl.u32 %v3701, 16
        %v3810 = vshll.u32 %v3701, 16
        %v3812 = vrot.slane %v3810, 1
        %v3813 = vor.u32 %v3808, %v3812
        %v3814 = vshll.u32 %v3727, 16
        %v3816 = vrot.slane %v3814, 1
        %v3817 = vsel %vm1217, %v3813, %v3816
        %v3818 = vshrl.u32 %v3703, 16
        %v3820 = vshll.u32 %v3703, 16
        %v3822 = vrot.slane %v3820, 1
        %v3823 = vor.u32 %v3818, %v3822
        %v3824 = vshll.u32 %v3728, 16
        %v3826 = vrot.slane %v3824, 1
        %v3827 = vsel %vm1217, %v3823, %v3826
        %v3828 = vshrl.u32 %v3705, 16
        %v3830 = vshll.u32 %v3705, 16
        %v3832 = vrot.slane %v3830, 1
        %v3833 = vor.u32 %v3828, %v3832
        %v3834 = vshll.u32 %v3729, 16
        %v3836 = vrot.slane %v3834, 1
        %v3837 = vsel %vm1217, %v3833, %v3836
        %v3838 = vshrl.u32 %v3707, 16
        %v3840 = vshll.u32 %v3707, 16
        %v3842 = vrot.slane %v3840, 1
        %v3843 = vor.u32 %v3838, %v3842
        %v3844 = vshll.u32 %v3730, 16
        %v3846 = vrot.slane %v3844, 1
        %v3847 = vsel %vm1217, %v3843, %v3846
        %v3848 = vshrl.u32 %v3709, 16
        %v3850 = vshll.u32 %v3709, 16
        %v3852 = vrot.slane %v3850, 1
        %v3853 = vor.u32 %v3848, %v3852
        %v3854 = vshll.u32 %v3731, 16
        %v3856 = vrot.slane %v3854, 1
        %v3857 = vsel %vm1217, %v3853, %v3856
        %v3858 = vshrl.u32 %v3711, 16
        %v3860 = vshll.u32 %v3711, 16
        %v3862 = vrot.slane %v3860, 1
        %v3863 = vor.u32 %v3858, %v3862
        %v3864 = vshll.u32 %v3732, 16
        %v3866 = vrot.slane %v3864, 1
        %v3867 = vsel %vm1217, %v3863, %v3866
        %v3868 = vshrl.u32 %v3713, 16
        %v3870 = vshll.u32 %v3713, 16
        %v3872 = vrot.slane %v3870, 1
        %v3873 = vor.u32 %v3868, %v3872
        %v3874 = vshll.u32 %v3733, 16
        %v3876 = vrot.slane %v3874, 1
        %v3877 = vsel %vm1217, %v3873, %v3876
        %v3878 = vshrl.u32 %v3715, 16
        %v3880 = vshll.u32 %v3715, 16
        %v3882 = vrot.slane %v3880, 1
        %v3883 = vor.u32 %v3878, %v3882
        %v3884 = vshll.u32 %v3734, 16
        %v3886 = vrot.slane %v3884, 1
        %v3887 = vsel %vm1217, %v3883, %v3886
        %s3888 = scalar_lea.vmem %s9, 1
        %v3889 = vld [vmem:[%s3888] sm:$0x1]
        %vm3890 = vcmask 15360
        %v3892 = vsel %vm3890, %v3747, 0
        %v3895 = vsel %vm3890, %v3757, 0
        %v3898 = vsel %vm3890, %v3767, 0
        %v3901 = vsel %vm3890, %v3777, 0
        %v3904 = vsel %vm3890, %v3787, 0
        %v3907 = vsel %vm3890, %v3797, 0
        %v3910 = vsel %vm3890, %v3807, 0
        %v3913 = vsel %vm3890, %v3817, 0
        %v3916 = vsel %vm3890, %v3827, 0
        %v3919 = vsel %vm3890, %v3837, 0
        %v3922 = vsel %vm3890, %v3847, 0
        %v3925 = vsel %vm3890, %v3857, 0
        %v3928 = vsel %vm3890, %v3867, 0
        %v3931 = vsel %vm3890, %v3877, 0
        %v3934 = vsel %vm3890, %v3887, 0
        %v3937 = vsel %vm3685, %v3889, 0
        %3939 = vmatprep.subr.bf16.mxu0 0
        %3940 = vmatpush1.bf16.msra.mxu0 0
        %3941 = vmatprep.subr.bf16.mxu0 0
        %3942 = vmatpush1.bf16.msra.mxu0 0
        %3943 = vmatprep.subr.bf16.mxu0 0
        %3944 = vmatpush1.bf16.msra.mxu0 0
        %3945 = vmatprep.subr.bf16.mxu0 0
        %3946 = vmatpush1.bf16.msra.mxu0 0
        %3947 = vmatprep.subr.bf16.mxu0 0
        %3948 = vmatpush1.bf16.msra.mxu0 0
        %3949 = vmatprep.subr.bf16.mxu0 0
        %3950 = vmatpush1.bf16.msra.mxu0 0
        %3951 = vmatprep.subr.bf16.mxu0 0
        %3952 = vmatpush1.bf16.msra.mxu0 0
        %3953 = vmatprep.subr.bf16.mxu0 0
        %3954 = vmatpush1.bf16.msra.mxu0 %v3937
        %3955 = vmatprep.subr.bf16.mxu0 0
        %3956 = vmatpush2.bf16.msra.mxu0 0
        %3957 = vmatprep.subr.bf16.mxu0 0
        %3958 = vmatpush2.bf16.msra.mxu0 0
        %3959 = vmatprep.subr.bf16.mxu0 0
        %3960 = vmatpush2.bf16.msra.mxu0 0
        %3961 = vmatprep.subr.bf16.mxu0 0
        %3962 = vmatpush2.bf16.msra.mxu0 0
        %3963 = vmatprep.subr.bf16.mxu0 0
        %3964 = vmatpush2.bf16.msra.mxu0 0
        %3965 = vmatprep.subr.bf16.mxu0 0
        %3966 = vmatpush2.bf16.msra.mxu0 0
        %3967 = vmatprep.subr.bf16.mxu0 0
        %3968 = vmatpush2.bf16.msra.mxu0 0
        %3969 = vmatprep.subr.bf16.mxu0 0
        %3970 = vmatpush2.bf16.msra.mxu0 0
        %3971 = vmatprep.mubr.bf16.mxu0 0
        %3972 = vmatmul.mubr.bf16.gmra.mxu0 %v3892
        %v3973 = vpop.f32.mrf.mxu0
        %v3974 = vadd.f32 0.0, %v3973
        %v3975 = vpop.f32.mrf.mxu0
        %v3976 = vpop.f32.mrf.mxu0
        %v3977 = vadd.f32 0.0, %v3976
        %v3978 = vpop.f32.mrf.mxu0
        %3979 = vmatprep.mubr.bf16.mxu0 0
        %3980 = vmatmul.mubr.bf16.gmra.mxu0 %v3892
        %v3981 = vpop.f32.mrf.mxu0
        %v3982 = vadd.f32 0.0, %v3981
        %v3983 = vpop.f32.mrf.mxu0
        %v3984 = vpop.f32.mrf.mxu0
        %v3985 = vadd.f32 0.0, %v3984
        %v3986 = vpop.f32.mrf.mxu0
        %3987 = vmatprep.mubr.bf16.mxu0 0
        %3988 = vmatmul.mubr.bf16.gmra.mxu0 %v3895
        %v3989 = vpop.f32.mrf.mxu0
        %v3990 = vadd.f32 0.0, %v3989
        %v3991 = vpop.f32.mrf.mxu0
        %v3992 = vpop.f32.mrf.mxu0
        %v3993 = vadd.f32 0.0, %v3992
        %v3994 = vpop.f32.mrf.mxu0
        %3995 = vmatprep.mubr.bf16.mxu0 0
        %3996 = vmatmul.mubr.bf16.gmra.mxu0 %v3898
        %v3997 = vpop.f32.mrf.mxu0
        %v3998 = vadd.f32 0.0, %v3997
        %v3999 = vpop.f32.mrf.mxu0
        %v4000 = vpop.f32.mrf.mxu0
        %v4001 = vadd.f32 0.0, %v4000
        %v4002 = vpop.f32.mrf.mxu0
        %4003 = vmatprep.mubr.bf16.mxu0 0
        %4004 = vmatmul.mubr.bf16.gmra.mxu0 %v3901
        %v4005 = vpop.f32.mrf.mxu0
        %v4006 = vadd.f32 0.0, %v4005
        %v4007 = vpop.f32.mrf.mxu0
        %v4008 = vpop.f32.mrf.mxu0
        %v4009 = vadd.f32 0.0, %v4008
        %v4010 = vpop.f32.mrf.mxu0
        %4011 = vmatprep.mubr.bf16.mxu0 0
        %4012 = vmatmul.mubr.bf16.gmra.mxu0 %v3904
        %v4013 = vpop.f32.mrf.mxu0
        %v4014 = vadd.f32 0.0, %v4013
        %v4015 = vpop.f32.mrf.mxu0
        %v4016 = vpop.f32.mrf.mxu0
        %v4017 = vadd.f32 0.0, %v4016
        %v4018 = vpop.f32.mrf.mxu0
        %4019 = vmatprep.mubr.bf16.mxu0 0
        %4020 = vmatmul.mubr.bf16.gmra.mxu0 %v3907
        %v4021 = vpop.f32.mrf.mxu0
        %v4022 = vadd.f32 0.0, %v4021
        %v4023 = vpop.f32.mrf.mxu0
        %v4024 = vpop.f32.mrf.mxu0
        %v4025 = vadd.f32 0.0, %v4024
        %v4026 = vpop.f32.mrf.mxu0
        %4027 = vmatprep.mubr.bf16.mxu0 0
        %4028 = vmatmul.mubr.bf16.gmra.mxu0 %v3910
        %v4029 = vpop.f32.mrf.mxu0
        %v4030 = vadd.f32 0.0, %v4029
        %v4031 = vpop.f32.mrf.mxu0
        %v4032 = vpop.f32.mrf.mxu0
        %v4033 = vadd.f32 0.0, %v4032
        %v4034 = vpop.f32.mrf.mxu0
        %4035 = vmatprep.mubr.bf16.mxu0 0
        %4036 = vmatmul.mubr.bf16.gmra.mxu0 %v3913
        %v4037 = vpop.f32.mrf.mxu0
        %v4038 = vadd.f32 0.0, %v4037
        %v4039 = vpop.f32.mrf.mxu0
        %v4040 = vpop.f32.mrf.mxu0
        %v4041 = vadd.f32 0.0, %v4040
        %v4042 = vpop.f32.mrf.mxu0
        %4043 = vmatprep.mubr.bf16.mxu0 0
        %4044 = vmatmul.mubr.bf16.gmra.mxu0 %v3916
        %v4045 = vpop.f32.mrf.mxu0
        %v4046 = vadd.f32 0.0, %v4045
        %v4047 = vpop.f32.mrf.mxu0
        %v4048 = vpop.f32.mrf.mxu0
        %v4049 = vadd.f32 0.0, %v4048
        %v4050 = vpop.f32.mrf.mxu0
        %4051 = vmatprep.mubr.bf16.mxu0 0
        %4052 = vmatmul.mubr.bf16.gmra.mxu0 %v3919
        %v4053 = vpop.f32.mrf.mxu0
        %v4054 = vadd.f32 0.0, %v4053
        %v4055 = vpop.f32.mrf.mxu0
        %v4056 = vpop.f32.mrf.mxu0
        %v4057 = vadd.f32 0.0, %v4056
        %v4058 = vpop.f32.mrf.mxu0
        %4059 = vmatprep.mubr.bf16.mxu0 0
        %4060 = vmatmul.mubr.bf16.gmra.mxu0 %v3922
        %v4061 = vpop.f32.mrf.mxu0
        %v4062 = vadd.f32 0.0, %v4061
        %v4063 = vpop.f32.mrf.mxu0
        %v4064 = vpop.f32.mrf.mxu0
        %v4065 = vadd.f32 0.0, %v4064
        %v4066 = vpop.f32.mrf.mxu0
        %4067 = vmatprep.mubr.bf16.mxu0 0
        %4068 = vmatmul.mubr.bf16.gmra.mxu0 %v3925
        %v4069 = vpop.f32.mrf.mxu0
        %v4070 = vadd.f32 0.0, %v4069
        %v4071 = vpop.f32.mrf.mxu0
        %v4072 = vpop.f32.mrf.mxu0
        %v4073 = vadd.f32 0.0, %v4072
        %v4074 = vpop.f32.mrf.mxu0
        %4075 = vmatprep.mubr.bf16.mxu0 0
        %4076 = vmatmul.mubr.bf16.gmra.mxu0 %v3928
        %v4077 = vpop.f32.mrf.mxu0
        %v4078 = vadd.f32 0.0, %v4077
        %v4079 = vpop.f32.mrf.mxu0
        %v4080 = vpop.f32.mrf.mxu0
        %v4081 = vadd.f32 0.0, %v4080
        %v4082 = vpop.f32.mrf.mxu0
        %4083 = vmatprep.mubr.bf16.mxu0 0
        %4084 = vmatmul.mubr.bf16.gmra.mxu0 %v3931
        %v4085 = vpop.f32.mrf.mxu0
        %v4086 = vadd.f32 0.0, %v4085
        %v4087 = vpop.f32.mrf.mxu0
        %v4088 = vpop.f32.mrf.mxu0
        %v4089 = vadd.f32 0.0, %v4088
        %v4090 = vpop.f32.mrf.mxu0
        %4091 = vmatprep.mubr.bf16.mxu0 0
        %4092 = vmatmul.mubr.bf16.gmra.mxu0 %v3934
        %v4093 = vpop.f32.mrf.mxu0
        %v4094 = vadd.f32 0.0, %v4093
        %v4095 = vpop.f32.mrf.mxu0
        %v4096 = vpop.f32.mrf.mxu0
        %v4097 = vadd.f32 0.0, %v4096
        %v4098 = vpop.f32.mrf.mxu0
        %4099 = vdwg.mxu0
        %v4100 = vsel %vm3890, %v3687, 0
        %v4102 = vsel %vm3890, %v3689, 0
        %v4104 = vsel %vm3890, %v3691, 0
        %v4106 = vsel %vm3890, %v3693, 0
        %v4108 = vsel %vm3890, %v3695, 0
        %v4110 = vsel %vm3890, %v3697, 0
        %v4112 = vsel %vm3890, %v3699, 0
        %v4114 = vsel %vm3890, %v3701, 0
        %v4116 = vsel %vm3890, %v3703, 0
        %v4118 = vsel %vm3890, %v3705, 0
        %v4120 = vsel %vm3890, %v3707, 0
        %v4122 = vsel %vm3890, %v3709, 0
        %v4124 = vsel %vm3890, %v3711, 0
        %v4126 = vsel %vm3890, %v3713, 0
        %v4128 = vsel %vm3890, %v3715, 0
        %v4131 = vsel %vm3685, %v3737, 0
        %4133 = vmatprep.subr.bf16.mxu0 0
        %4134 = vmatpush1.bf16.msra.mxu0 0
        %4135 = vmatprep.subr.bf16.mxu0 0
        %4136 = vmatpush1.bf16.msra.mxu0 0
        %4137 = vmatprep.subr.bf16.mxu0 0
        %4138 = vmatpush1.bf16.msra.mxu0 0
        %4139 = vmatprep.subr.bf16.mxu0 0
        %4140 = vmatpush1.bf16.msra.mxu0 0
        %4141 = vmatprep.subr.bf16.mxu0 0
        %4142 = vmatpush1.bf16.msra.mxu0 0
        %4143 = vmatprep.subr.bf16.mxu0 0
        %4144 = vmatpush1.bf16.msra.mxu0 0
        %4145 = vmatprep.subr.bf16.mxu0 0
        %4146 = vmatpush1.bf16.msra.mxu0 0
        %4147 = vmatprep.subr.bf16.mxu0 0
        %4148 = vmatpush1.bf16.msra.mxu0 %v4131
        %4149 = vmatprep.subr.bf16.mxu0 0
        %4150 = vmatpush2.bf16.msra.mxu0 0
        %4151 = vmatprep.subr.bf16.mxu0 0
        %4152 = vmatpush2.bf16.msra.mxu0 0
        %4153 = vmatprep.subr.bf16.mxu0 0
        %4154 = vmatpush2.bf16.msra.mxu0 0
        %4155 = vmatprep.subr.bf16.mxu0 0
        %4156 = vmatpush2.bf16.msra.mxu0 0
        %4157 = vmatprep.subr.bf16.mxu0 0
        %4158 = vmatpush2.bf16.msra.mxu0 0
        %4159 = vmatprep.subr.bf16.mxu0 0
        %4160 = vmatpush2.bf16.msra.mxu0 0
        %4161 = vmatprep.subr.bf16.mxu0 0
        %4162 = vmatpush2.bf16.msra.mxu0 0
        %4163 = vmatprep.subr.bf16.mxu0 0
        %4164 = vmatpush2.bf16.msra.mxu0 0
        %4165 = vmatprep.mubr.bf16.mxu0 0
        %4166 = vmatmul.mubr.bf16.gmra.mxu0 %v4100
        %v4167 = vpop.f32.mrf.mxu0
        %v4168 = vadd.f32 %v3974, %v4167
        %v4169 = vpop.f32.mrf.mxu0
        %v4170 = vpop.f32.mrf.mxu0
        %v4171 = vadd.f32 %v3977, %v4170
        %v4172 = vpop.f32.mrf.mxu0
        %4173 = vmatprep.mubr.bf16.mxu0 0
        %4174 = vmatmul.mubr.bf16.gmra.mxu0 %v4100
        %v4175 = vpop.f32.mrf.mxu0
        %v4176 = vadd.f32 %v3982, %v4175
        %v4177 = vpop.f32.mrf.mxu0
        %v4178 = vpop.f32.mrf.mxu0
        %v4179 = vadd.f32 %v3985, %v4178
        %v4180 = vpop.f32.mrf.mxu0
        %4181 = vmatprep.mubr.bf16.mxu0 0
        %4182 = vmatmul.mubr.bf16.gmra.mxu0 %v4102
        %v4183 = vpop.f32.mrf.mxu0
        %v4184 = vadd.f32 %v3990, %v4183
        %v4185 = vpop.f32.mrf.mxu0
        %v4186 = vpop.f32.mrf.mxu0
        %v4187 = vadd.f32 %v3993, %v4186
        %v4188 = vpop.f32.mrf.mxu0
        %4189 = vmatprep.mubr.bf16.mxu0 0
        %4190 = vmatmul.mubr.bf16.gmra.mxu0 %v4104
        %v4191 = vpop.f32.mrf.mxu0
        %v4192 = vadd.f32 %v3998, %v4191
        %v4193 = vpop.f32.mrf.mxu0
        %v4194 = vpop.f32.mrf.mxu0
        %v4195 = vadd.f32 %v4001, %v4194
        %v4196 = vpop.f32.mrf.mxu0
        %4197 = vmatprep.mubr.bf16.mxu0 0
        %4198 = vmatmul.mubr.bf16.gmra.mxu0 %v4106
        %v4199 = vpop.f32.mrf.mxu0
        %v4200 = vadd.f32 %v4006, %v4199
        %v4201 = vpop.f32.mrf.mxu0
        %v4202 = vpop.f32.mrf.mxu0
        %v4203 = vadd.f32 %v4009, %v4202
        %v4204 = vpop.f32.mrf.mxu0
        %4205 = vmatprep.mubr.bf16.mxu0 0
        %4206 = vmatmul.mubr.bf16.gmra.mxu0 %v4108
        %v4207 = vpop.f32.mrf.mxu0
        %v4208 = vadd.f32 %v4014, %v4207
        %v4209 = vpop.f32.mrf.mxu0
        %v4210 = vpop.f32.mrf.mxu0
        %v4211 = vadd.f32 %v4017, %v4210
        %v4212 = vpop.f32.mrf.mxu0
        %4213 = vmatprep.mubr.bf16.mxu0 0
        %4214 = vmatmul.mubr.bf16.gmra.mxu0 %v4110
        %v4215 = vpop.f32.mrf.mxu0
        %v4216 = vadd.f32 %v4022, %v4215
        %v4217 = vpop.f32.mrf.mxu0
        %v4218 = vpop.f32.mrf.mxu0
        %v4219 = vadd.f32 %v4025, %v4218
        %v4220 = vpop.f32.mrf.mxu0
        %4221 = vmatprep.mubr.bf16.mxu0 0
        %4222 = vmatmul.mubr.bf16.gmra.mxu0 %v4112
        %v4223 = vpop.f32.mrf.mxu0
        %v4224 = vadd.f32 %v4030, %v4223
        %v4225 = vpop.f32.mrf.mxu0
        %v4226 = vpop.f32.mrf.mxu0
        %v4227 = vadd.f32 %v4033, %v4226
        %v4228 = vpop.f32.mrf.mxu0
        %4229 = vmatprep.mubr.bf16.mxu0 0
        %4230 = vmatmul.mubr.bf16.gmra.mxu0 %v4114
        %v4231 = vpop.f32.mrf.mxu0
        %v4232 = vadd.f32 %v4038, %v4231
        %v4233 = vpop.f32.mrf.mxu0
        %v4234 = vpop.f32.mrf.mxu0
        %v4235 = vadd.f32 %v4041, %v4234
        %v4236 = vpop.f32.mrf.mxu0
        %4237 = vmatprep.mubr.bf16.mxu0 0
        %4238 = vmatmul.mubr.bf16.gmra.mxu0 %v4116
        %v4239 = vpop.f32.mrf.mxu0
        %v4240 = vadd.f32 %v4046, %v4239
        %v4241 = vpop.f32.mrf.mxu0
        %v4242 = vpop.f32.mrf.mxu0
        %v4243 = vadd.f32 %v4049, %v4242
        %v4244 = vpop.f32.mrf.mxu0
        %4245 = vmatprep.mubr.bf16.mxu0 0
        %4246 = vmatmul.mubr.bf16.gmra.mxu0 %v4118
        %v4247 = vpop.f32.mrf.mxu0
        %v4248 = vadd.f32 %v4054, %v4247
        %v4249 = vpop.f32.mrf.mxu0
        %v4250 = vpop.f32.mrf.mxu0
        %v4251 = vadd.f32 %v4057, %v4250
        %v4252 = vpop.f32.mrf.mxu0
        %4253 = vmatprep.mubr.bf16.mxu0 0
        %4254 = vmatmul.mubr.bf16.gmra.mxu0 %v4120
        %v4255 = vpop.f32.mrf.mxu0
        %v4256 = vadd.f32 %v4062, %v4255
        %v4257 = vpop.f32.mrf.mxu0
        %v4258 = vpop.f32.mrf.mxu0
        %v4259 = vadd.f32 %v4065, %v4258
        %v4260 = vpop.f32.mrf.mxu0
        %4261 = vmatprep.mubr.bf16.mxu0 0
        %4262 = vmatmul.mubr.bf16.gmra.mxu0 %v4122
        %v4263 = vpop.f32.mrf.mxu0
        %v4264 = vadd.f32 %v4070, %v4263
        %v4265 = vpop.f32.mrf.mxu0
        %v4266 = vpop.f32.mrf.mxu0
        %v4267 = vadd.f32 %v4073, %v4266
        %v4268 = vpop.f32.mrf.mxu0
        %4269 = vmatprep.mubr.bf16.mxu0 0
        %4270 = vmatmul.mubr.bf16.gmra.mxu0 %v4124
        %v4271 = vpop.f32.mrf.mxu0
        %v4272 = vadd.f32 %v4078, %v4271
        %v4273 = vpop.f32.mrf.mxu0
        %v4274 = vpop.f32.mrf.mxu0
        %v4275 = vadd.f32 %v4081, %v4274
        %v4276 = vpop.f32.mrf.mxu0
        %4277 = vmatprep.mubr.bf16.mxu0 0
        %4278 = vmatmul.mubr.bf16.gmra.mxu0 %v4126
        %v4279 = vpop.f32.mrf.mxu0
        %v4280 = vadd.f32 %v4086, %v4279
        %v4281 = vpop.f32.mrf.mxu0
        %v4282 = vpop.f32.mrf.mxu0
        %v4283 = vadd.f32 %v4089, %v4282
        %v4284 = vpop.f32.mrf.mxu0
        %4285 = vmatprep.mubr.bf16.mxu0 0
        %4286 = vmatmul.mubr.bf16.gmra.mxu0 %v4128
        %v4287 = vpop.f32.mrf.mxu0
        %v4288 = vadd.f32 %v4094, %v4287
        %v4289 = vpop.f32.mrf.mxu0
        %v4290 = vpop.f32.mrf.mxu0
        %v4291 = vadd.f32 %v4097, %v4290
        %v4292 = vpop.f32.mrf.mxu0
        %4293 = vdwg.mxu0
        %v4324 = vrot.slane %v3687, 1
        %v4325 = vrot.slane %v3720, 1
        %v4326 = vsel %vm1852, %v4324, %v4325
        %v4327 = vrot.slane %v3689, 1
        %v4328 = vrot.slane %v3721, 1
        %v4329 = vsel %vm1852, %v4327, %v4328
        %v4330 = vrot.slane %v3691, 1
        %v4331 = vrot.slane %v3722, 1
        %v4332 = vsel %vm1852, %v4330, %v4331
        %v4333 = vrot.slane %v3693, 1
        %v4334 = vrot.slane %v3723, 1
        %v4335 = vsel %vm1852, %v4333, %v4334
        %v4336 = vrot.slane %v3695, 1
        %v4337 = vrot.slane %v3724, 1
        %v4338 = vsel %vm1852, %v4336, %v4337
        %v4339 = vrot.slane %v3697, 1
        %v4340 = vrot.slane %v3725, 1
        %v4341 = vsel %vm1852, %v4339, %v4340
        %v4342 = vrot.slane %v3699, 1
        %v4343 = vrot.slane %v3726, 1
        %v4344 = vsel %vm1852, %v4342, %v4343
        %v4345 = vrot.slane %v3701, 1
        %v4346 = vrot.slane %v3727, 1
        %v4347 = vsel %vm1852, %v4345, %v4346
        %v4348 = vrot.slane %v3703, 1
        %v4349 = vrot.slane %v3728, 1
        %v4350 = vsel %vm1852, %v4348, %v4349
        %v4351 = vrot.slane %v3705, 1
        %v4352 = vrot.slane %v3729, 1
        %v4353 = vsel %vm1852, %v4351, %v4352
        %v4354 = vrot.slane %v3707, 1
        %v4355 = vrot.slane %v3730, 1
        %v4356 = vsel %vm1852, %v4354, %v4355
        %v4357 = vrot.slane %v3709, 1
        %v4358 = vrot.slane %v3731, 1
        %v4359 = vsel %vm1852, %v4357, %v4358
        %v4360 = vrot.slane %v3711, 1
        %v4361 = vrot.slane %v3732, 1
        %v4362 = vsel %vm1852, %v4360, %v4361
        %v4363 = vrot.slane %v3713, 1
        %v4364 = vrot.slane %v3733, 1
        %v4365 = vsel %vm1852, %v4363, %v4364
        %v4366 = vrot.slane %v3715, 1
        %v4367 = vrot.slane %v3734, 1
        %v4368 = vsel %vm1852, %v4366, %v4367
        %s4369 = scalar_lea.vmem %s9, 2
        %v4370 = vld [vmem:[%s4369] sm:$0x1]
        %v4372 = vsel %vm3890, %v4326, 0
        %v4375 = vsel %vm3890, %v4329, 0
        %v4378 = vsel %vm3890, %v4332, 0
        %v4381 = vsel %vm3890, %v4335, 0
        %v4384 = vsel %vm3890, %v4338, 0
        %v4387 = vsel %vm3890, %v4341, 0
        %v4390 = vsel %vm3890, %v4344, 0
        %v4393 = vsel %vm3890, %v4347, 0
        %v4396 = vsel %vm3890, %v4350, 0
        %v4399 = vsel %vm3890, %v4353, 0
        %v4402 = vsel %vm3890, %v4356, 0
        %v4405 = vsel %vm3890, %v4359, 0
        %v4408 = vsel %vm3890, %v4362, 0
        %v4411 = vsel %vm3890, %v4365, 0
        %v4414 = vsel %vm3890, %v4368, 0
        %v4417 = vsel %vm3685, %v4370, 0
        %4419 = vmatprep.subr.bf16.mxu0 0
        %4420 = vmatpush1.bf16.msra.mxu0 0
        %4421 = vmatprep.subr.bf16.mxu0 0
        %4422 = vmatpush1.bf16.msra.mxu0 0
        %4423 = vmatprep.subr.bf16.mxu0 0
        %4424 = vmatpush1.bf16.msra.mxu0 0
        %4425 = vmatprep.subr.bf16.mxu0 0
        %4426 = vmatpush1.bf16.msra.mxu0 0
        %4427 = vmatprep.subr.bf16.mxu0 0
        %4428 = vmatpush1.bf16.msra.mxu0 0
        %4429 = vmatprep.subr.bf16.mxu0 0
        %4430 = vmatpush1.bf16.msra.mxu0 0
        %4431 = vmatprep.subr.bf16.mxu0 0
        %4432 = vmatpush1.bf16.msra.mxu0 0
        %4433 = vmatprep.subr.bf16.mxu0 0
        %4434 = vmatpush1.bf16.msra.mxu0 %v4417
        %4435 = vmatprep.subr.bf16.mxu0 0
        %4436 = vmatpush2.bf16.msra.mxu0 0
        %4437 = vmatprep.subr.bf16.mxu0 0
        %4438 = vmatpush2.bf16.msra.mxu0 0
        %4439 = vmatprep.subr.bf16.mxu0 0
        %4440 = vmatpush2.bf16.msra.mxu0 0
        %4441 = vmatprep.subr.bf16.mxu0 0
        %4442 = vmatpush2.bf16.msra.mxu0 0
        %4443 = vmatprep.subr.bf16.mxu0 0
        %4444 = vmatpush2.bf16.msra.mxu0 0
        %4445 = vmatprep.subr.bf16.mxu0 0
        %4446 = vmatpush2.bf16.msra.mxu0 0
        %4447 = vmatprep.subr.bf16.mxu0 0
        %4448 = vmatpush2.bf16.msra.mxu0 0
        %4449 = vmatprep.subr.bf16.mxu0 0
        %4450 = vmatpush2.bf16.msra.mxu0 0
        %4451 = vmatprep.mubr.bf16.mxu0 0
        %4452 = vmatmul.mubr.bf16.gmra.mxu0 %v4372
        %v4453 = vpop.f32.mrf.mxu0
        %v4454 = vadd.f32 0.0, %v4453
        %v4455 = vpop.f32.mrf.mxu0
        %v4456 = vpop.f32.mrf.mxu0
        %v4457 = vadd.f32 0.0, %v4456
        %v4458 = vpop.f32.mrf.mxu0
        %4459 = vmatprep.mubr.bf16.mxu0 0
        %4460 = vmatmul.mubr.bf16.gmra.mxu0 %v4372
        %v4461 = vpop.f32.mrf.mxu0
        %v4462 = vadd.f32 0.0, %v4461
        %v4463 = vpop.f32.mrf.mxu0
        %v4464 = vpop.f32.mrf.mxu0
        %v4465 = vadd.f32 0.0, %v4464
        %v4466 = vpop.f32.mrf.mxu0
        %4467 = vmatprep.mubr.bf16.mxu0 0
        %4468 = vmatmul.mubr.bf16.gmra.mxu0 %v4375
        %v4469 = vpop.f32.mrf.mxu0
        %v4470 = vadd.f32 0.0, %v4469
        %v4471 = vpop.f32.mrf.mxu0
        %v4472 = vpop.f32.mrf.mxu0
        %v4473 = vadd.f32 0.0, %v4472
        %v4474 = vpop.f32.mrf.mxu0
        %4475 = vmatprep.mubr.bf16.mxu0 0
        %4476 = vmatmul.mubr.bf16.gmra.mxu0 %v4378
        %v4477 = vpop.f32.mrf.mxu0
        %v4478 = vadd.f32 0.0, %v4477
        %v4479 = vpop.f32.mrf.mxu0
        %v4480 = vpop.f32.mrf.mxu0
        %v4481 = vadd.f32 0.0, %v4480
        %v4482 = vpop.f32.mrf.mxu0
        %4483 = vmatprep.mubr.bf16.mxu0 0
        %4484 = vmatmul.mubr.bf16.gmra.mxu0 %v4381
        %v4485 = vpop.f32.mrf.mxu0
        %v4486 = vadd.f32 0.0, %v4485
        %v4487 = vpop.f32.mrf.mxu0
        %v4488 = vpop.f32.mrf.mxu0
        %v4489 = vadd.f32 0.0, %v4488
        %v4490 = vpop.f32.mrf.mxu0
        %4491 = vmatprep.mubr.bf16.mxu0 0
        %4492 = vmatmul.mubr.bf16.gmra.mxu0 %v4384
        %v4493 = vpop.f32.mrf.mxu0
        %v4494 = vadd.f32 0.0, %v4493
        %v4495 = vpop.f32.mrf.mxu0
        %v4496 = vpop.f32.mrf.mxu0
        %v4497 = vadd.f32 0.0, %v4496
        %v4498 = vpop.f32.mrf.mxu0
        %4499 = vmatprep.mubr.bf16.mxu0 0
        %4500 = vmatmul.mubr.bf16.gmra.mxu0 %v4387
        %v4501 = vpop.f32.mrf.mxu0
        %v4502 = vadd.f32 0.0, %v4501
        %v4503 = vpop.f32.mrf.mxu0
        %v4504 = vpop.f32.mrf.mxu0
        %v4505 = vadd.f32 0.0, %v4504
        %v4506 = vpop.f32.mrf.mxu0
        %4507 = vmatprep.mubr.bf16.mxu0 0
        %4508 = vmatmul.mubr.bf16.gmra.mxu0 %v4390
        %v4509 = vpop.f32.mrf.mxu0
        %v4510 = vadd.f32 0.0, %v4509
        %v4511 = vpop.f32.mrf.mxu0
        %v4512 = vpop.f32.mrf.mxu0
        %v4513 = vadd.f32 0.0, %v4512
        %v4514 = vpop.f32.mrf.mxu0
        %4515 = vmatprep.mubr.bf16.mxu0 0
        %4516 = vmatmul.mubr.bf16.gmra.mxu0 %v4393
        %v4517 = vpop.f32.mrf.mxu0
        %v4518 = vadd.f32 0.0, %v4517
        %v4519 = vpop.f32.mrf.mxu0
        %v4520 = vpop.f32.mrf.mxu0
        %v4521 = vadd.f32 0.0, %v4520
        %v4522 = vpop.f32.mrf.mxu0
        %4523 = vmatprep.mubr.bf16.mxu0 0
        %4524 = vmatmul.mubr.bf16.gmra.mxu0 %v4396
        %v4525 = vpop.f32.mrf.mxu0
        %v4526 = vadd.f32 0.0, %v4525
        %v4527 = vpop.f32.mrf.mxu0
        %v4528 = vpop.f32.mrf.mxu0
        %v4529 = vadd.f32 0.0, %v4528
        %v4530 = vpop.f32.mrf.mxu0
        %4531 = vmatprep.mubr.bf16.mxu0 0
        %4532 = vmatmul.mubr.bf16.gmra.mxu0 %v4399
        %v4533 = vpop.f32.mrf.mxu0
        %v4534 = vadd.f32 0.0, %v4533
        %v4535 = vpop.f32.mrf.mxu0
        %v4536 = vpop.f32.mrf.mxu0
        %v4537 = vadd.f32 0.0, %v4536
        %v4538 = vpop.f32.mrf.mxu0
        %4539 = vmatprep.mubr.bf16.mxu0 0
        %4540 = vmatmul.mubr.bf16.gmra.mxu0 %v4402
        %v4541 = vpop.f32.mrf.mxu0
        %v4542 = vadd.f32 0.0, %v4541
        %v4543 = vpop.f32.mrf.mxu0
        %v4544 = vpop.f32.mrf.mxu0
        %v4545 = vadd.f32 0.0, %v4544
        %v4546 = vpop.f32.mrf.mxu0
        %4547 = vmatprep.mubr.bf16.mxu0 0
        %4548 = vmatmul.mubr.bf16.gmra.mxu0 %v4405
        %v4549 = vpop.f32.mrf.mxu0
        %v4550 = vadd.f32 0.0, %v4549
        %v4551 = vpop.f32.mrf.mxu0
        %v4552 = vpop.f32.mrf.mxu0
        %v4553 = vadd.f32 0.0, %v4552
        %v4554 = vpop.f32.mrf.mxu0
        %4555 = vmatprep.mubr.bf16.mxu0 0
        %4556 = vmatmul.mubr.bf16.gmra.mxu0 %v4408
        %v4557 = vpop.f32.mrf.mxu0
        %v4558 = vadd.f32 0.0, %v4557
        %v4559 = vpop.f32.mrf.mxu0
        %v4560 = vpop.f32.mrf.mxu0
        %v4561 = vadd.f32 0.0, %v4560
        %v4562 = vpop.f32.mrf.mxu0
        %4563 = vmatprep.mubr.bf16.mxu0 0
        %4564 = vmatmul.mubr.bf16.gmra.mxu0 %v4411
        %v4565 = vpop.f32.mrf.mxu0
        %v4566 = vadd.f32 0.0, %v4565
        %v4567 = vpop.f32.mrf.mxu0
        %v4568 = vpop.f32.mrf.mxu0
        %v4569 = vadd.f32 0.0, %v4568
        %v4570 = vpop.f32.mrf.mxu0
        %4571 = vmatprep.mubr.bf16.mxu0 0
        %4572 = vmatmul.mubr.bf16.gmra.mxu0 %v4414
        %v4573 = vpop.f32.mrf.mxu0
        %v4574 = vadd.f32 0.0, %v4573
        %v4575 = vpop.f32.mrf.mxu0
        %v4576 = vpop.f32.mrf.mxu0
        %v4577 = vadd.f32 0.0, %v4576
        %v4578 = vpop.f32.mrf.mxu0
        %4579 = vdwg.mxu0
        %v4580 = vadd.f32 %v4168, %v4454
        %v4581 = vadd.f32 %v4171, %v4457
        %v4582 = vadd.f32 %v4176, %v4462
        %v4583 = vadd.f32 %v4179, %v4465
        %v4584 = vadd.f32 %v4184, %v4470
        %v4585 = vadd.f32 %v4187, %v4473
        %v4586 = vadd.f32 %v4192, %v4478
        %v4587 = vadd.f32 %v4195, %v4481
        %v4588 = vadd.f32 %v4200, %v4486
        %v4589 = vadd.f32 %v4203, %v4489
        %v4590 = vadd.f32 %v4208, %v4494
        %v4591 = vadd.f32 %v4211, %v4497
        %v4592 = vadd.f32 %v4216, %v4502
        %v4593 = vadd.f32 %v4219, %v4505
        %v4594 = vadd.f32 %v4224, %v4510
        %v4595 = vadd.f32 %v4227, %v4513
        %v4596 = vadd.f32 %v4232, %v4518
        %v4597 = vadd.f32 %v4235, %v4521
        %v4598 = vadd.f32 %v4240, %v4526
        %v4599 = vadd.f32 %v4243, %v4529
        %v4600 = vadd.f32 %v4248, %v4534
        %v4601 = vadd.f32 %v4251, %v4537
        %v4602 = vadd.f32 %v4256, %v4542
        %v4603 = vadd.f32 %v4259, %v4545
        %v4604 = vadd.f32 %v4264, %v4550
        %v4605 = vadd.f32 %v4267, %v4553
        %v4606 = vadd.f32 %v4272, %v4558
        %v4607 = vadd.f32 %v4275, %v4561
        %v4608 = vadd.f32 %v4280, %v4566
        %v4609 = vadd.f32 %v4283, %v4569
        %v4610 = vadd.f32 %v4288, %v4574
        %v4611 = vadd.f32 %v4291, %v4577
        %vm4612 = vsmask.f32 6400
        %v4613 = vrot.slane %v3738, 1
        %v4614 = vrot.slane %v3740, 2
        %v4615 = vor.u32 %v4613, %v4614
        %v4616 = vshrl.u32 %v3720, 16
        %v4618 = vrot.slane %v4616, 1
        %v4619 = vrot.slane %v3744, 2
        %v4620 = vor.u32 %v4618, %v4619
        %v4621 = vsel %vm4612, %v4615, %v4620
        %v4622 = vrot.slane %v3748, 1
        %v4623 = vrot.slane %v3750, 2
        %v4624 = vor.u32 %v4622, %v4623
        %v4625 = vshrl.u32 %v3721, 16
        %v4627 = vrot.slane %v4625, 1
        %v4628 = vrot.slane %v3754, 2
        %v4629 = vor.u32 %v4627, %v4628
        %v4630 = vsel %vm4612, %v4624, %v4629
        %v4631 = vrot.slane %v3758, 1
        %v4632 = vrot.slane %v3760, 2
        %v4633 = vor.u32 %v4631, %v4632
        %v4634 = vshrl.u32 %v3722, 16
        %v4636 = vrot.slane %v4634, 1
        %v4637 = vrot.slane %v3764, 2
        %v4638 = vor.u32 %v4636, %v4637
        %v4639 = vsel %vm4612, %v4633, %v4638
        %v4640 = vrot.slane %v3768, 1
        %v4641 = vrot.slane %v3770, 2
        %v4642 = vor.u32 %v4640, %v4641
        %v4643 = vshrl.u32 %v3723, 16
        %v4645 = vrot.slane %v4643, 1
        %v4646 = vrot.slane %v3774, 2
        %v4647 = vor.u32 %v4645, %v4646
        %v4648 = vsel %vm4612, %v4642, %v4647
        %v4649 = vrot.slane %v3778, 1
        %v4650 = vrot.slane %v3780, 2
        %v4651 = vor.u32 %v4649, %v4650
        %v4652 = vshrl.u32 %v3724, 16
        %v4654 = vrot.slane %v4652, 1
        %v4655 = vrot.slane %v3784, 2
        %v4656 = vor.u32 %v4654, %v4655
        %v4657 = vsel %vm4612, %v4651, %v4656
        %v4658 = vrot.slane %v3788, 1
        %v4659 = vrot.slane %v3790, 2
        %v4660 = vor.u32 %v4658, %v4659
        %v4661 = vshrl.u32 %v3725, 16
        %v4663 = vrot.slane %v4661, 1
        %v4664 = vrot.slane %v3794, 2
        %v4665 = vor.u32 %v4663, %v4664
        %v4666 = vsel %vm4612, %v4660, %v4665
        %v4667 = vrot.slane %v3798, 1
        %v4668 = vrot.slane %v3800, 2
        %v4669 = vor.u32 %v4667, %v4668
        %v4670 = vshrl.u32 %v3726, 16
        %v4672 = vrot.slane %v4670, 1
        %v4673 = vrot.slane %v3804, 2
        %v4674 = vor.u32 %v4672, %v4673
        %v4675 = vsel %vm4612, %v4669, %v4674
        %v4676 = vrot.slane %v3808, 1
        %v4677 = vrot.slane %v3810, 2
        %v4678 = vor.u32 %v4676, %v4677
        %v4679 = vshrl.u32 %v3727, 16
        %v4681 = vrot.slane %v4679, 1
        %v4682 = vrot.slane %v3814, 2
        %v4683 = vor.u32 %v4681, %v4682
        %v4684 = vsel %vm4612, %v4678, %v4683
        %v4685 = vrot.slane %v3818, 1
        %v4686 = vrot.slane %v3820, 2
        %v4687 = vor.u32 %v4685, %v4686
        %v4688 = vshrl.u32 %v3728, 16
        %v4690 = vrot.slane %v4688, 1
        %v4691 = vrot.slane %v3824, 2
        %v4692 = vor.u32 %v4690, %v4691
        %v4693 = vsel %vm4612, %v4687, %v4692
        %v4694 = vrot.slane %v3828, 1
        %v4695 = vrot.slane %v3830, 2
        %v4696 = vor.u32 %v4694, %v4695
        %v4697 = vshrl.u32 %v3729, 16
        %v4699 = vrot.slane %v4697, 1
        %v4700 = vrot.slane %v3834, 2
        %v4701 = vor.u32 %v4699, %v4700
        %v4702 = vsel %vm4612, %v4696, %v4701
        %v4703 = vrot.slane %v3838, 1
        %v4704 = vrot.slane %v3840, 2
        %v4705 = vor.u32 %v4703, %v4704
        %v4706 = vshrl.u32 %v3730, 16
        %v4708 = vrot.slane %v4706, 1
        %v4709 = vrot.slane %v3844, 2
        %v4710 = vor.u32 %v4708, %v4709
        %v4711 = vsel %vm4612, %v4705, %v4710
        %v4712 = vrot.slane %v3848, 1
        %v4713 = vrot.slane %v3850, 2
        %v4714 = vor.u32 %v4712, %v4713
        %v4715 = vshrl.u32 %v3731, 16
        %v4717 = vrot.slane %v4715, 1
        %v4718 = vrot.slane %v3854, 2
        %v4719 = vor.u32 %v4717, %v4718
        %v4720 = vsel %vm4612, %v4714, %v4719
        %v4721 = vrot.slane %v3858, 1
        %v4722 = vrot.slane %v3860, 2
        %v4723 = vor.u32 %v4721, %v4722
        %v4724 = vshrl.u32 %v3732, 16
        %v4726 = vrot.slane %v4724, 1
        %v4727 = vrot.slane %v3864, 2
        %v4728 = vor.u32 %v4726, %v4727
        %v4729 = vsel %vm4612, %v4723, %v4728
        %v4730 = vrot.slane %v3868, 1
        %v4731 = vrot.slane %v3870, 2
        %v4732 = vor.u32 %v4730, %v4731
        %v4733 = vshrl.u32 %v3733, 16
        %v4735 = vrot.slane %v4733, 1
        %v4736 = vrot.slane %v3874, 2
        %v4737 = vor.u32 %v4735, %v4736
        %v4738 = vsel %vm4612, %v4732, %v4737
        %v4739 = vrot.slane %v3878, 1
        %v4740 = vrot.slane %v3880, 2
        %v4741 = vor.u32 %v4739, %v4740
        %v4742 = vshrl.u32 %v3734, 16
        %v4744 = vrot.slane %v4742, 1
        %v4745 = vrot.slane %v3884, 2
        %v4746 = vor.u32 %v4744, %v4745
        %v4747 = vsel %vm4612, %v4741, %v4746
        %s4748 = scalar_lea.vmem %s9, 3
        %v4749 = vld [vmem:[%s4748] sm:$0x1]
        %v4751 = vsel %vm3890, %v4621, 0
        %v4754 = vsel %vm3890, %v4630, 0
        %v4757 = vsel %vm3890, %v4639, 0
        %v4760 = vsel %vm3890, %v4648, 0
        %v4763 = vsel %vm3890, %v4657, 0
        %v4766 = vsel %vm3890, %v4666, 0
        %v4769 = vsel %vm3890, %v4675, 0
        %v4772 = vsel %vm3890, %v4684, 0
        %v4775 = vsel %vm3890, %v4693, 0
        %v4778 = vsel %vm3890, %v4702, 0
        %v4781 = vsel %vm3890, %v4711, 0
        %v4784 = vsel %vm3890, %v4720, 0
        %v4787 = vsel %vm3890, %v4729, 0
        %v4790 = vsel %vm3890, %v4738, 0
        %v4793 = vsel %vm3890, %v4747, 0
        %v4796 = vsel %vm3685, %v4749, 0
        %4798 = vmatprep.subr.bf16.mxu0 0
        %4799 = vmatpush1.bf16.msra.mxu0 0
        %4800 = vmatprep.subr.bf16.mxu0 0
        %4801 = vmatpush1.bf16.msra.mxu0 0
        %4802 = vmatprep.subr.bf16.mxu0 0
        %4803 = vmatpush1.bf16.msra.mxu0 0
        %4804 = vmatprep.subr.bf16.mxu0 0
        %4805 = vmatpush1.bf16.msra.mxu0 0
        %4806 = vmatprep.subr.bf16.mxu0 0
        %4807 = vmatpush1.bf16.msra.mxu0 0
        %4808 = vmatprep.subr.bf16.mxu0 0
        %4809 = vmatpush1.bf16.msra.mxu0 0
        %4810 = vmatprep.subr.bf16.mxu0 0
        %4811 = vmatpush1.bf16.msra.mxu0 0
        %4812 = vmatprep.subr.bf16.mxu0 0
        %4813 = vmatpush1.bf16.msra.mxu0 %v4796
        %4814 = vmatprep.subr.bf16.mxu0 0
        %4815 = vmatpush2.bf16.msra.mxu0 0
        %4816 = vmatprep.subr.bf16.mxu0 0
        %4817 = vmatpush2.bf16.msra.mxu0 0
        %4818 = vmatprep.subr.bf16.mxu0 0
        %4819 = vmatpush2.bf16.msra.mxu0 0
        %4820 = vmatprep.subr.bf16.mxu0 0
        %4821 = vmatpush2.bf16.msra.mxu0 0
        %4822 = vmatprep.subr.bf16.mxu0 0
        %4823 = vmatpush2.bf16.msra.mxu0 0
        %4824 = vmatprep.subr.bf16.mxu0 0
        %4825 = vmatpush2.bf16.msra.mxu0 0
        %4826 = vmatprep.subr.bf16.mxu0 0
        %4827 = vmatpush2.bf16.msra.mxu0 0
        %4828 = vmatprep.subr.bf16.mxu0 0
        %4829 = vmatpush2.bf16.msra.mxu0 0
        %4830 = vmatprep.mubr.bf16.mxu0 0
        %4831 = vmatmul.mubr.bf16.gmra.mxu0 %v4751
        %v4832 = vpop.f32.mrf.mxu0
        %v4833 = vadd.f32 0.0, %v4832
        %v4834 = vpop.f32.mrf.mxu0
        %v4835 = vpop.f32.mrf.mxu0
        %v4836 = vadd.f32 0.0, %v4835
        %v4837 = vpop.f32.mrf.mxu0
        %4838 = vmatprep.mubr.bf16.mxu0 0
        %4839 = vmatmul.mubr.bf16.gmra.mxu0 %v4751
        %v4840 = vpop.f32.mrf.mxu0
        %v4841 = vadd.f32 0.0, %v4840
        %v4842 = vpop.f32.mrf.mxu0
        %v4843 = vpop.f32.mrf.mxu0
        %v4844 = vadd.f32 0.0, %v4843
        %v4845 = vpop.f32.mrf.mxu0
        %4846 = vmatprep.mubr.bf16.mxu0 0
        %4847 = vmatmul.mubr.bf16.gmra.mxu0 %v4754
        %v4848 = vpop.f32.mrf.mxu0
        %v4849 = vadd.f32 0.0, %v4848
        %v4850 = vpop.f32.mrf.mxu0
        %v4851 = vpop.f32.mrf.mxu0
        %v4852 = vadd.f32 0.0, %v4851
        %v4853 = vpop.f32.mrf.mxu0
        %4854 = vmatprep.mubr.bf16.mxu0 0
        %4855 = vmatmul.mubr.bf16.gmra.mxu0 %v4757
        %v4856 = vpop.f32.mrf.mxu0
        %v4857 = vadd.f32 0.0, %v4856
        %v4858 = vpop.f32.mrf.mxu0
        %v4859 = vpop.f32.mrf.mxu0
        %v4860 = vadd.f32 0.0, %v4859
        %v4861 = vpop.f32.mrf.mxu0
        %4862 = vmatprep.mubr.bf16.mxu0 0
        %4863 = vmatmul.mubr.bf16.gmra.mxu0 %v4760
        %v4864 = vpop.f32.mrf.mxu0
        %v4865 = vadd.f32 0.0, %v4864
        %v4866 = vpop.f32.mrf.mxu0
        %v4867 = vpop.f32.mrf.mxu0
        %v4868 = vadd.f32 0.0, %v4867
        %v4869 = vpop.f32.mrf.mxu0
        %4870 = vmatprep.mubr.bf16.mxu0 0
        %4871 = vmatmul.mubr.bf16.gmra.mxu0 %v4763
        %v4872 = vpop.f32.mrf.mxu0
        %v4873 = vadd.f32 0.0, %v4872
        %v4874 = vpop.f32.mrf.mxu0
        %v4875 = vpop.f32.mrf.mxu0
        %v4876 = vadd.f32 0.0, %v4875
        %v4877 = vpop.f32.mrf.mxu0
        %4878 = vmatprep.mubr.bf16.mxu0 0
        %4879 = vmatmul.mubr.bf16.gmra.mxu0 %v4766
        %v4880 = vpop.f32.mrf.mxu0
        %v4881 = vadd.f32 0.0, %v4880
        %v4882 = vpop.f32.mrf.mxu0
        %v4883 = vpop.f32.mrf.mxu0
        %v4884 = vadd.f32 0.0, %v4883
        %v4885 = vpop.f32.mrf.mxu0
        %4886 = vmatprep.mubr.bf16.mxu0 0
        %4887 = vmatmul.mubr.bf16.gmra.mxu0 %v4769
        %v4888 = vpop.f32.mrf.mxu0
        %v4889 = vadd.f32 0.0, %v4888
        %v4890 = vpop.f32.mrf.mxu0
        %v4891 = vpop.f32.mrf.mxu0
        %v4892 = vadd.f32 0.0, %v4891
        %v4893 = vpop.f32.mrf.mxu0
        %4894 = vmatprep.mubr.bf16.mxu0 0
        %4895 = vmatmul.mubr.bf16.gmra.mxu0 %v4772
        %v4896 = vpop.f32.mrf.mxu0
        %v4897 = vadd.f32 0.0, %v4896
        %v4898 = vpop.f32.mrf.mxu0
        %v4899 = vpop.f32.mrf.mxu0
        %v4900 = vadd.f32 0.0, %v4899
        %v4901 = vpop.f32.mrf.mxu0
        %4902 = vmatprep.mubr.bf16.mxu0 0
        %4903 = vmatmul.mubr.bf16.gmra.mxu0 %v4775
        %v4904 = vpop.f32.mrf.mxu0
        %v4905 = vadd.f32 0.0, %v4904
        %v4906 = vpop.f32.mrf.mxu0
        %v4907 = vpop.f32.mrf.mxu0
        %v4908 = vadd.f32 0.0, %v4907
        %v4909 = vpop.f32.mrf.mxu0
        %4910 = vmatprep.mubr.bf16.mxu0 0
        %4911 = vmatmul.mubr.bf16.gmra.mxu0 %v4778
        %v4912 = vpop.f32.mrf.mxu0
        %v4913 = vadd.f32 0.0, %v4912
        %v4914 = vpop.f32.mrf.mxu0
        %v4915 = vpop.f32.mrf.mxu0
        %v4916 = vadd.f32 0.0, %v4915
        %v4917 = vpop.f32.mrf.mxu0
        %4918 = vmatprep.mubr.bf16.mxu0 0
        %4919 = vmatmul.mubr.bf16.gmra.mxu0 %v4781
        %v4920 = vpop.f32.mrf.mxu0
        %v4921 = vadd.f32 0.0, %v4920
        %v4922 = vpop.f32.mrf.mxu0
        %v4923 = vpop.f32.mrf.mxu0
        %v4924 = vadd.f32 0.0, %v4923
        %v4925 = vpop.f32.mrf.mxu0
        %4926 = vmatprep.mubr.bf16.mxu0 0
        %4927 = vmatmul.mubr.bf16.gmra.mxu0 %v4784
        %v4928 = vpop.f32.mrf.mxu0
        %v4929 = vadd.f32 0.0, %v4928
        %v4930 = vpop.f32.mrf.mxu0
        %v4931 = vpop.f32.mrf.mxu0
        %v4932 = vadd.f32 0.0, %v4931
        %v4933 = vpop.f32.mrf.mxu0
        %4934 = vmatprep.mubr.bf16.mxu0 0
        %4935 = vmatmul.mubr.bf16.gmra.mxu0 %v4787
        %v4936 = vpop.f32.mrf.mxu0
        %v4937 = vadd.f32 0.0, %v4936
        %v4938 = vpop.f32.mrf.mxu0
        %v4939 = vpop.f32.mrf.mxu0
        %v4940 = vadd.f32 0.0, %v4939
        %v4941 = vpop.f32.mrf.mxu0
        %4942 = vmatprep.mubr.bf16.mxu0 0
        %4943 = vmatmul.mubr.bf16.gmra.mxu0 %v4790
        %v4944 = vpop.f32.mrf.mxu0
        %v4945 = vadd.f32 0.0, %v4944
        %v4946 = vpop.f32.mrf.mxu0
        %v4947 = vpop.f32.mrf.mxu0
        %v4948 = vadd.f32 0.0, %v4947
        %v4949 = vpop.f32.mrf.mxu0
        %4950 = vmatprep.mubr.bf16.mxu0 0
        %4951 = vmatmul.mubr.bf16.gmra.mxu0 %v4793
        %v4952 = vpop.f32.mrf.mxu0
        %v4953 = vadd.f32 0.0, %v4952
        %v4954 = vpop.f32.mrf.mxu0
        %v4955 = vpop.f32.mrf.mxu0
        %v4956 = vadd.f32 0.0, %v4955
        %v4957 = vpop.f32.mrf.mxu0
        %4958 = vdwg.mxu0
        %v4959 = vadd.f32 %v4580, %v4833
        %v4960 = vadd.f32 %v4581, %v4836
        %v4961 = vadd.f32 %v4582, %v4841
        %v4962 = vadd.f32 %v4583, %v4844
        %v4963 = vadd.f32 %v4584, %v4849
        %v4964 = vadd.f32 %v4585, %v4852
        %v4965 = vadd.f32 %v4586, %v4857
        %v4966 = vadd.f32 %v4587, %v4860
        %v4967 = vadd.f32 %v4588, %v4865
        %v4968 = vadd.f32 %v4589, %v4868
        %v4969 = vadd.f32 %v4590, %v4873
        %v4970 = vadd.f32 %v4591, %v4876
        %v4971 = vadd.f32 %v4592, %v4881
        %v4972 = vadd.f32 %v4593, %v4884
        %v4973 = vadd.f32 %v4594, %v4889
        %v4974 = vadd.f32 %v4595, %v4892
        %v4975 = vadd.f32 %v4596, %v4897
        %v4976 = vadd.f32 %v4597, %v4900
        %v4977 = vadd.f32 %v4598, %v4905
        %v4978 = vadd.f32 %v4599, %v4908
        %v4979 = vadd.f32 %v4600, %v4913
        %v4980 = vadd.f32 %v4601, %v4916
        %v4981 = vadd.f32 %v4602, %v4921
        %v4982 = vadd.f32 %v4603, %v4924
        %v4983 = vadd.f32 %v4604, %v4929
        %v4984 = vadd.f32 %v4605, %v4932
        %v4985 = vadd.f32 %v4606, %v4937
        %v4986 = vadd.f32 %v4607, %v4940
        %v4987 = vadd.f32 %v4608, %v4945
        %v4988 = vadd.f32 %v4609, %v4948
        %v4989 = vadd.f32 %v4610, %v4953
        %v4990 = vadd.f32 %v4611, %v4956
        %vm4991 = vcmask 1045504
        %v4992 = vrot.slane %v3687, 2
        %v4993 = vrot.slane %v3720, 2
        %v4994 = vsel %vm4991, %v4992, %v4993
        %v4995 = vrot.slane %v3689, 2
        %v4996 = vrot.slane %v3721, 2
        %v4997 = vsel %vm4991, %v4995, %v4996
        %v4998 = vrot.slane %v3691, 2
        %v4999 = vrot.slane %v3722, 2
        %v5000 = vsel %vm4991, %v4998, %v4999
        %v5001 = vrot.slane %v3693, 2
        %v5002 = vrot.slane %v3723, 2
        %v5003 = vsel %vm4991, %v5001, %v5002
        %v5004 = vrot.slane %v3695, 2
        %v5005 = vrot.slane %v3724, 2
        %v5006 = vsel %vm4991, %v5004, %v5005
        %v5007 = vrot.slane %v3697, 2
        %v5008 = vrot.slane %v3725, 2
        %v5009 = vsel %vm4991, %v5007, %v5008
        %v5010 = vrot.slane %v3699, 2
        %v5011 = vrot.slane %v3726, 2
        %v5012 = vsel %vm4991, %v5010, %v5011
        %v5013 = vrot.slane %v3701, 2
        %v5014 = vrot.slane %v3727, 2
        %v5015 = vsel %vm4991, %v5013, %v5014
        %v5016 = vrot.slane %v3703, 2
        %v5017 = vrot.slane %v3728, 2
        %v5018 = vsel %vm4991, %v5016, %v5017
        %v5019 = vrot.slane %v3705, 2
        %v5020 = vrot.slane %v3729, 2
        %v5021 = vsel %vm4991, %v5019, %v5020
        %v5022 = vrot.slane %v3707, 2
        %v5023 = vrot.slane %v3730, 2
        %v5024 = vsel %vm4991, %v5022, %v5023
        %v5025 = vrot.slane %v3709, 2
        %v5026 = vrot.slane %v3731, 2
        %v5027 = vsel %vm4991, %v5025, %v5026
        %v5028 = vrot.slane %v3711, 2
        %v5029 = vrot.slane %v3732, 2
        %v5030 = vsel %vm4991, %v5028, %v5029
        %v5031 = vrot.slane %v3713, 2
        %v5032 = vrot.slane %v3733, 2
        %v5033 = vsel %vm4991, %v5031, %v5032
        %v5034 = vrot.slane %v3715, 2
        %v5035 = vrot.slane %v3734, 2
        %v5036 = vsel %vm4991, %v5034, %v5035
        %s5037 = scalar_lea.vmem %s9, 4
        %v5038 = vld [vmem:[%s5037] sm:$0x1]
        %v5040 = vsel %vm3890, %v4994, 0
        %v5043 = vsel %vm3890, %v4997, 0
        %v5046 = vsel %vm3890, %v5000, 0
        %v5049 = vsel %vm3890, %v5003, 0
        %v5052 = vsel %vm3890, %v5006, 0
        %v5055 = vsel %vm3890, %v5009, 0
        %v5058 = vsel %vm3890, %v5012, 0
        %v5061 = vsel %vm3890, %v5015, 0
        %v5064 = vsel %vm3890, %v5018, 0
        %v5067 = vsel %vm3890, %v5021, 0
        %v5070 = vsel %vm3890, %v5024, 0
        %v5073 = vsel %vm3890, %v5027, 0
        %v5076 = vsel %vm3890, %v5030, 0
        %v5079 = vsel %vm3890, %v5033, 0
        %v5082 = vsel %vm3890, %v5036, 0
        %v5085 = vsel %vm3685, %v5038, 0
        %5087 = vmatprep.subr.bf16.mxu0 0
        %5088 = vmatpush1.bf16.msra.mxu0 0
        %5089 = vmatprep.subr.bf16.mxu0 0
        %5090 = vmatpush1.bf16.msra.mxu0 0
        %5091 = vmatprep.subr.bf16.mxu0 0
        %5092 = vmatpush1.bf16.msra.mxu0 0
        %5093 = vmatprep.subr.bf16.mxu0 0
        %5094 = vmatpush1.bf16.msra.mxu0 0
        %5095 = vmatprep.subr.bf16.mxu0 0
        %5096 = vmatpush1.bf16.msra.mxu0 0
        %5097 = vmatprep.subr.bf16.mxu0 0
        %5098 = vmatpush1.bf16.msra.mxu0 0
        %5099 = vmatprep.subr.bf16.mxu0 0
        %5100 = vmatpush1.bf16.msra.mxu0 0
        %5101 = vmatprep.subr.bf16.mxu0 0
        %5102 = vmatpush1.bf16.msra.mxu0 %v5085
        %5103 = vmatprep.subr.bf16.mxu0 0
        %5104 = vmatpush2.bf16.msra.mxu0 0
        %5105 = vmatprep.subr.bf16.mxu0 0
        %5106 = vmatpush2.bf16.msra.mxu0 0
        %5107 = vmatprep.subr.bf16.mxu0 0
        %5108 = vmatpush2.bf16.msra.mxu0 0
        %5109 = vmatprep.subr.bf16.mxu0 0
        %5110 = vmatpush2.bf16.msra.mxu0 0
        %5111 = vmatprep.subr.bf16.mxu0 0
        %5112 = vmatpush2.bf16.msra.mxu0 0
        %5113 = vmatprep.subr.bf16.mxu0 0
        %5114 = vmatpush2.bf16.msra.mxu0 0
        %5115 = vmatprep.subr.bf16.mxu0 0
        %5116 = vmatpush2.bf16.msra.mxu0 0
        %5117 = vmatprep.subr.bf16.mxu0 0
        %5118 = vmatpush2.bf16.msra.mxu0 0
        %5119 = vmatprep.mubr.bf16.mxu0 0
        %5120 = vmatmul.mubr.bf16.gmra.mxu0 %v5040
        %v5121 = vpop.f32.mrf.mxu0
        %v5122 = vadd.f32 0.0, %v5121
        %v5123 = vpop.f32.mrf.mxu0
        %v5124 = vpop.f32.mrf.mxu0
        %v5125 = vadd.f32 0.0, %v5124
        %v5126 = vpop.f32.mrf.mxu0
        %5127 = vmatprep.mubr.bf16.mxu0 0
        %5128 = vmatmul.mubr.bf16.gmra.mxu0 %v5040
        %v5129 = vpop.f32.mrf.mxu0
        %v5130 = vadd.f32 0.0, %v5129
        %v5131 = vpop.f32.mrf.mxu0
        %v5132 = vpop.f32.mrf.mxu0
        %v5133 = vadd.f32 0.0, %v5132
        %v5134 = vpop.f32.mrf.mxu0
        %5135 = vmatprep.mubr.bf16.mxu0 0
        %5136 = vmatmul.mubr.bf16.gmra.mxu0 %v5043
        %v5137 = vpop.f32.mrf.mxu0
        %v5138 = vadd.f32 0.0, %v5137
        %v5139 = vpop.f32.mrf.mxu0
        %v5140 = vpop.f32.mrf.mxu0
        %v5141 = vadd.f32 0.0, %v5140
        %v5142 = vpop.f32.mrf.mxu0
        %5143 = vmatprep.mubr.bf16.mxu0 0
        %5144 = vmatmul.mubr.bf16.gmra.mxu0 %v5046
        %v5145 = vpop.f32.mrf.mxu0
        %v5146 = vadd.f32 0.0, %v5145
        %v5147 = vpop.f32.mrf.mxu0
        %v5148 = vpop.f32.mrf.mxu0
        %v5149 = vadd.f32 0.0, %v5148
        %v5150 = vpop.f32.mrf.mxu0
        %5151 = vmatprep.mubr.bf16.mxu0 0
        %5152 = vmatmul.mubr.bf16.gmra.mxu0 %v5049
        %v5153 = vpop.f32.mrf.mxu0
        %v5154 = vadd.f32 0.0, %v5153
        %v5155 = vpop.f32.mrf.mxu0
        %v5156 = vpop.f32.mrf.mxu0
        %v5157 = vadd.f32 0.0, %v5156
        %v5158 = vpop.f32.mrf.mxu0
        %5159 = vmatprep.mubr.bf16.mxu0 0
        %5160 = vmatmul.mubr.bf16.gmra.mxu0 %v5052
        %v5161 = vpop.f32.mrf.mxu0
        %v5162 = vadd.f32 0.0, %v5161
        %v5163 = vpop.f32.mrf.mxu0
        %v5164 = vpop.f32.mrf.mxu0
        %v5165 = vadd.f32 0.0, %v5164
        %v5166 = vpop.f32.mrf.mxu0
        %5167 = vmatprep.mubr.bf16.mxu0 0
        %5168 = vmatmul.mubr.bf16.gmra.mxu0 %v5055
        %v5169 = vpop.f32.mrf.mxu0
        %v5170 = vadd.f32 0.0, %v5169
        %v5171 = vpop.f32.mrf.mxu0
        %v5172 = vpop.f32.mrf.mxu0
        %v5173 = vadd.f32 0.0, %v5172
        %v5174 = vpop.f32.mrf.mxu0
        %5175 = vmatprep.mubr.bf16.mxu0 0
        %5176 = vmatmul.mubr.bf16.gmra.mxu0 %v5058
        %v5177 = vpop.f32.mrf.mxu0
        %v5178 = vadd.f32 0.0, %v5177
        %v5179 = vpop.f32.mrf.mxu0
        %v5180 = vpop.f32.mrf.mxu0
        %v5181 = vadd.f32 0.0, %v5180
        %v5182 = vpop.f32.mrf.mxu0
        %5183 = vmatprep.mubr.bf16.mxu0 0
        %5184 = vmatmul.mubr.bf16.gmra.mxu0 %v5061
        %v5185 = vpop.f32.mrf.mxu0
        %v5186 = vadd.f32 0.0, %v5185
        %v5187 = vpop.f32.mrf.mxu0
        %v5188 = vpop.f32.mrf.mxu0
        %v5189 = vadd.f32 0.0, %v5188
        %v5190 = vpop.f32.mrf.mxu0
        %5191 = vmatprep.mubr.bf16.mxu0 0
        %5192 = vmatmul.mubr.bf16.gmra.mxu0 %v5064
        %v5193 = vpop.f32.mrf.mxu0
        %v5194 = vadd.f32 0.0, %v5193
        %v5195 = vpop.f32.mrf.mxu0
        %v5196 = vpop.f32.mrf.mxu0
        %v5197 = vadd.f32 0.0, %v5196
        %v5198 = vpop.f32.mrf.mxu0
        %5199 = vmatprep.mubr.bf16.mxu0 0
        %5200 = vmatmul.mubr.bf16.gmra.mxu0 %v5067
        %v5201 = vpop.f32.mrf.mxu0
        %v5202 = vadd.f32 0.0, %v5201
        %v5203 = vpop.f32.mrf.mxu0
        %v5204 = vpop.f32.mrf.mxu0
        %v5205 = vadd.f32 0.0, %v5204
        %v5206 = vpop.f32.mrf.mxu0
        %5207 = vmatprep.mubr.bf16.mxu0 0
        %5208 = vmatmul.mubr.bf16.gmra.mxu0 %v5070
        %v5209 = vpop.f32.mrf.mxu0
        %v5210 = vadd.f32 0.0, %v5209
        %v5211 = vpop.f32.mrf.mxu0
        %v5212 = vpop.f32.mrf.mxu0
        %v5213 = vadd.f32 0.0, %v5212
        %v5214 = vpop.f32.mrf.mxu0
        %5215 = vmatprep.mubr.bf16.mxu0 0
        %5216 = vmatmul.mubr.bf16.gmra.mxu0 %v5073
        %v5217 = vpop.f32.mrf.mxu0
        %v5218 = vadd.f32 0.0, %v5217
        %v5219 = vpop.f32.mrf.mxu0
        %v5220 = vpop.f32.mrf.mxu0
        %v5221 = vadd.f32 0.0, %v5220
        %v5222 = vpop.f32.mrf.mxu0
        %5223 = vmatprep.mubr.bf16.mxu0 0
        %5224 = vmatmul.mubr.bf16.gmra.mxu0 %v5076
        %v5225 = vpop.f32.mrf.mxu0
        %v5226 = vadd.f32 0.0, %v5225
        %v5227 = vpop.f32.mrf.mxu0
        %v5228 = vpop.f32.mrf.mxu0
        %v5229 = vadd.f32 0.0, %v5228
        %v5230 = vpop.f32.mrf.mxu0
        %5231 = vmatprep.mubr.bf16.mxu0 0
        %5232 = vmatmul.mubr.bf16.gmra.mxu0 %v5079
        %v5233 = vpop.f32.mrf.mxu0
        %v5234 = vadd.f32 0.0, %v5233
        %v5235 = vpop.f32.mrf.mxu0
        %v5236 = vpop.f32.mrf.mxu0
        %v5237 = vadd.f32 0.0, %v5236
        %v5238 = vpop.f32.mrf.mxu0
        %5239 = vmatprep.mubr.bf16.mxu0 0
        %5240 = vmatmul.mubr.bf16.gmra.mxu0 %v5082
        %v5241 = vpop.f32.mrf.mxu0
        %v5242 = vadd.f32 0.0, %v5241
        %v5243 = vpop.f32.mrf.mxu0
        %v5244 = vpop.f32.mrf.mxu0
        %v5245 = vadd.f32 0.0, %v5244
        %v5246 = vpop.f32.mrf.mxu0
        %5247 = vdwg.mxu0
        %v5248 = vadd.f32 %v4959, %v5122
        %v5249 = vadd.f32 %v4960, %v5125
        %v5250 = vadd.f32 %v4961, %v5130
        %v5251 = vadd.f32 %v4962, %v5133
        %v5252 = vadd.f32 %v4963, %v5138
        %v5253 = vadd.f32 %v4964, %v5141
        %v5254 = vadd.f32 %v4965, %v5146
        %v5255 = vadd.f32 %v4966, %v5149
        %v5256 = vadd.f32 %v4967, %v5154
        %v5257 = vadd.f32 %v4968, %v5157
        %v5258 = vadd.f32 %v4969, %v5162
        %v5259 = vadd.f32 %v4970, %v5165
        %v5260 = vadd.f32 %v4971, %v5170
        %v5261 = vadd.f32 %v4972, %v5173
        %v5262 = vadd.f32 %v4973, %v5178
        %v5263 = vadd.f32 %v4974, %v5181
        %v5264 = vadd.f32 %v4975, %v5186
        %v5265 = vadd.f32 %v4976, %v5189
        %v5266 = vadd.f32 %v4977, %v5194
        %v5267 = vadd.f32 %v4978, %v5197
        %v5268 = vadd.f32 %v4979, %v5202
        %v5269 = vadd.f32 %v4980, %v5205
        %v5270 = vadd.f32 %v4981, %v5210
        %v5271 = vadd.f32 %v4982, %v5213
        %v5272 = vadd.f32 %v4983, %v5218
        %v5273 = vadd.f32 %v4984, %v5221
        %v5274 = vadd.f32 %v4985, %v5226
        %v5275 = vadd.f32 %v4986, %v5229
        %v5276 = vadd.f32 %v4987, %v5234
        %v5277 = vadd.f32 %v4988, %v5237
        %v5278 = vadd.f32 %v4989, %v5242
        %v5279 = vadd.f32 %v4990, %v5245
        %s5280 = scalar_lea.vmem %s9, 5
        %v5281 = vld [vmem:[%s5280] sm:$0x1]
        %v5282 = vsel %vm3890, %v3717, 0
        %v5285 = vsel %vm3685, %v5281, 0
        %5287 = vmatprep.subr.bf16.mxu0 0
        %5288 = vmatpush1.bf16.msra.mxu0 0
        %5289 = vmatprep.subr.bf16.mxu0 0
        %5290 = vmatpush1.bf16.msra.mxu0 0
        %5291 = vmatprep.subr.bf16.mxu0 0
        %5292 = vmatpush1.bf16.msra.mxu0 0
        %5293 = vmatprep.subr.bf16.mxu0 0
        %5294 = vmatpush1.bf16.msra.mxu0 0
        %5295 = vmatprep.subr.bf16.mxu0 0
        %5296 = vmatpush1.bf16.msra.mxu0 0
        %5297 = vmatprep.subr.bf16.mxu0 0
        %5298 = vmatpush1.bf16.msra.mxu0 0
        %5299 = vmatprep.subr.bf16.mxu0 0
        %5300 = vmatpush1.bf16.msra.mxu0 0
        %5301 = vmatprep.subr.bf16.mxu0 0
        %5302 = vmatpush1.bf16.msra.mxu0 %v5285
        %5303 = vmatprep.subr.bf16.mxu0 0
        %5304 = vmatpush2.bf16.msra.mxu0 0
        %5305 = vmatprep.subr.bf16.mxu0 0
        %5306 = vmatpush2.bf16.msra.mxu0 0
        %5307 = vmatprep.subr.bf16.mxu0 0
        %5308 = vmatpush2.bf16.msra.mxu0 0
        %5309 = vmatprep.subr.bf16.mxu0 0
        %5310 = vmatpush2.bf16.msra.mxu0 0
        %5311 = vmatprep.subr.bf16.mxu0 0
        %5312 = vmatpush2.bf16.msra.mxu0 0
        %5313 = vmatprep.subr.bf16.mxu0 0
        %5314 = vmatpush2.bf16.msra.mxu0 0
        %5315 = vmatprep.subr.bf16.mxu0 0
        %5316 = vmatpush2.bf16.msra.mxu0 0
        %5317 = vmatprep.subr.bf16.mxu0 0
        %5318 = vmatpush2.bf16.msra.mxu0 0
        %5319 = vmatprep.mubr.bf16.mxu0 0
        %5320 = vmatmul.mubr.bf16.gmra.mxu0 %v4100
        %v5321 = vpop.f32.mrf.mxu0
        %v5322 = vadd.f32 0.0, %v5321
        %v5323 = vpop.f32.mrf.mxu0
        %v5324 = vpop.f32.mrf.mxu0
        %v5325 = vadd.f32 0.0, %v5324
        %v5326 = vpop.f32.mrf.mxu0
        %5327 = vmatprep.mubr.bf16.mxu0 0
        %5328 = vmatmul.mubr.bf16.gmra.mxu0 %v4102
        %v5329 = vpop.f32.mrf.mxu0
        %v5330 = vadd.f32 0.0, %v5329
        %v5331 = vpop.f32.mrf.mxu0
        %v5332 = vpop.f32.mrf.mxu0
        %v5333 = vadd.f32 0.0, %v5332
        %v5334 = vpop.f32.mrf.mxu0
        %5335 = vmatprep.mubr.bf16.mxu0 0
        %5336 = vmatmul.mubr.bf16.gmra.mxu0 %v4104
        %v5337 = vpop.f32.mrf.mxu0
        %v5338 = vadd.f32 0.0, %v5337
        %v5339 = vpop.f32.mrf.mxu0
        %v5340 = vpop.f32.mrf.mxu0
        %v5341 = vadd.f32 0.0, %v5340
        %v5342 = vpop.f32.mrf.mxu0
        %5343 = vmatprep.mubr.bf16.mxu0 0
        %5344 = vmatmul.mubr.bf16.gmra.mxu0 %v4106
        %v5345 = vpop.f32.mrf.mxu0
        %v5346 = vadd.f32 0.0, %v5345
        %v5347 = vpop.f32.mrf.mxu0
        %v5348 = vpop.f32.mrf.mxu0
        %v5349 = vadd.f32 0.0, %v5348
        %v5350 = vpop.f32.mrf.mxu0
        %5351 = vmatprep.mubr.bf16.mxu0 0
        %5352 = vmatmul.mubr.bf16.gmra.mxu0 %v4108
        %v5353 = vpop.f32.mrf.mxu0
        %v5354 = vadd.f32 0.0, %v5353
        %v5355 = vpop.f32.mrf.mxu0
        %v5356 = vpop.f32.mrf.mxu0
        %v5357 = vadd.f32 0.0, %v5356
        %v5358 = vpop.f32.mrf.mxu0
        %5359 = vmatprep.mubr.bf16.mxu0 0
        %5360 = vmatmul.mubr.bf16.gmra.mxu0 %v4110
        %v5361 = vpop.f32.mrf.mxu0
        %v5362 = vadd.f32 0.0, %v5361
        %v5363 = vpop.f32.mrf.mxu0
        %v5364 = vpop.f32.mrf.mxu0
        %v5365 = vadd.f32 0.0, %v5364
        %v5366 = vpop.f32.mrf.mxu0
        %5367 = vmatprep.mubr.bf16.mxu0 0
        %5368 = vmatmul.mubr.bf16.gmra.mxu0 %v4112
        %v5369 = vpop.f32.mrf.mxu0
        %v5370 = vadd.f32 0.0, %v5369
        %v5371 = vpop.f32.mrf.mxu0
        %v5372 = vpop.f32.mrf.mxu0
        %v5373 = vadd.f32 0.0, %v5372
        %v5374 = vpop.f32.mrf.mxu0
        %5375 = vmatprep.mubr.bf16.mxu0 0
        %5376 = vmatmul.mubr.bf16.gmra.mxu0 %v4114
        %v5377 = vpop.f32.mrf.mxu0
        %v5378 = vadd.f32 0.0, %v5377
        %v5379 = vpop.f32.mrf.mxu0
        %v5380 = vpop.f32.mrf.mxu0
        %v5381 = vadd.f32 0.0, %v5380
        %v5382 = vpop.f32.mrf.mxu0
        %5383 = vmatprep.mubr.bf16.mxu0 0
        %5384 = vmatmul.mubr.bf16.gmra.mxu0 %v4116
        %v5385 = vpop.f32.mrf.mxu0
        %v5386 = vadd.f32 0.0, %v5385
        %v5387 = vpop.f32.mrf.mxu0
        %v5388 = vpop.f32.mrf.mxu0
        %v5389 = vadd.f32 0.0, %v5388
        %v5390 = vpop.f32.mrf.mxu0
        %5391 = vmatprep.mubr.bf16.mxu0 0
        %5392 = vmatmul.mubr.bf16.gmra.mxu0 %v4118
        %v5393 = vpop.f32.mrf.mxu0
        %v5394 = vadd.f32 0.0, %v5393
        %v5395 = vpop.f32.mrf.mxu0
        %v5396 = vpop.f32.mrf.mxu0
        %v5397 = vadd.f32 0.0, %v5396
        %v5398 = vpop.f32.mrf.mxu0
        %5399 = vmatprep.mubr.bf16.mxu0 0
        %5400 = vmatmul.mubr.bf16.gmra.mxu0 %v4120
        %v5401 = vpop.f32.mrf.mxu0
        %v5402 = vadd.f32 0.0, %v5401
        %v5403 = vpop.f32.mrf.mxu0
        %v5404 = vpop.f32.mrf.mxu0
        %v5405 = vadd.f32 0.0, %v5404
        %v5406 = vpop.f32.mrf.mxu0
        %5407 = vmatprep.mubr.bf16.mxu0 0
        %5408 = vmatmul.mubr.bf16.gmra.mxu0 %v4122
        %v5409 = vpop.f32.mrf.mxu0
        %v5410 = vadd.f32 0.0, %v5409
        %v5411 = vpop.f32.mrf.mxu0
        %v5412 = vpop.f32.mrf.mxu0
        %v5413 = vadd.f32 0.0, %v5412
        %v5414 = vpop.f32.mrf.mxu0
        %5415 = vmatprep.mubr.bf16.mxu0 0
        %5416 = vmatmul.mubr.bf16.gmra.mxu0 %v4124
        %v5417 = vpop.f32.mrf.mxu0
        %v5418 = vadd.f32 0.0, %v5417
        %v5419 = vpop.f32.mrf.mxu0
        %v5420 = vpop.f32.mrf.mxu0
        %v5421 = vadd.f32 0.0, %v5420
        %v5422 = vpop.f32.mrf.mxu0
        %5423 = vmatprep.mubr.bf16.mxu0 0
        %5424 = vmatmul.mubr.bf16.gmra.mxu0 %v4126
        %v5425 = vpop.f32.mrf.mxu0
        %v5426 = vadd.f32 0.0, %v5425
        %v5427 = vpop.f32.mrf.mxu0
        %v5428 = vpop.f32.mrf.mxu0
        %v5429 = vadd.f32 0.0, %v5428
        %v5430 = vpop.f32.mrf.mxu0
        %5431 = vmatprep.mubr.bf16.mxu0 0
        %5432 = vmatmul.mubr.bf16.gmra.mxu0 %v4128
        %v5433 = vpop.f32.mrf.mxu0
        %v5434 = vadd.f32 0.0, %v5433
        %v5435 = vpop.f32.mrf.mxu0
        %v5436 = vpop.f32.mrf.mxu0
        %v5437 = vadd.f32 0.0, %v5436
        %v5438 = vpop.f32.mrf.mxu0
        %5439 = vmatprep.mubr.bf16.mxu0 0
        %5440 = vmatmul.mubr.bf16.gmra.mxu0 %v5282
        %v5441 = vpop.f32.mrf.mxu0
        %v5442 = vadd.f32 0.0, %v5441
        %v5443 = vpop.f32.mrf.mxu0
        %v5444 = vpop.f32.mrf.mxu0
        %v5445 = vadd.f32 0.0, %v5444
        %v5446 = vpop.f32.mrf.mxu0
        %5447 = vdwg.mxu0
        %v5448 = vadd.f32 %v5248, %v5322
        %v5449 = vadd.f32 %v5249, %v5325
        %v5450 = vadd.f32 %v5250, %v5330
        %v5451 = vadd.f32 %v5251, %v5333
        %v5452 = vadd.f32 %v5252, %v5338
        %v5453 = vadd.f32 %v5253, %v5341
        %v5454 = vadd.f32 %v5254, %v5346
        %v5455 = vadd.f32 %v5255, %v5349
        %v5456 = vadd.f32 %v5256, %v5354
        %v5457 = vadd.f32 %v5257, %v5357
        %v5458 = vadd.f32 %v5258, %v5362
        %v5459 = vadd.f32 %v5259, %v5365
        %v5460 = vadd.f32 %v5260, %v5370
        %v5461 = vadd.f32 %v5261, %v5373
        %v5462 = vadd.f32 %v5262, %v5378
        %v5463 = vadd.f32 %v5263, %v5381
        %v5464 = vadd.f32 %v5264, %v5386
        %v5465 = vadd.f32 %v5265, %v5389
        %v5466 = vadd.f32 %v5266, %v5394
        %v5467 = vadd.f32 %v5267, %v5397
        %v5468 = vadd.f32 %v5268, %v5402
        %v5469 = vadd.f32 %v5269, %v5405
        %v5470 = vadd.f32 %v5270, %v5410
        %v5471 = vadd.f32 %v5271, %v5413
        %v5472 = vadd.f32 %v5272, %v5418
        %v5473 = vadd.f32 %v5273, %v5421
        %v5474 = vadd.f32 %v5274, %v5426
        %v5475 = vadd.f32 %v5275, %v5429
        %v5476 = vadd.f32 %v5276, %v5434
        %v5477 = vadd.f32 %v5277, %v5437
        %v5478 = vadd.f32 %v5278, %v5442
        %v5479 = vadd.f32 %v5279, %v5445
        %v5480 = vshrl.u32 %v3717, 16
        %v5482 = vshll.u32 %v3717, 16
        %v5484 = vrot.slane %v5482, 1
        %v5485 = vor.u32 %v5480, %v5484
        %v5486 = vshll.u32 %v3735, 16
        %v5488 = vrot.slane %v5486, 1
        %v5489 = vsel %vm1217, %v5485, %v5488
        %s5490 = scalar_lea.vmem %s9, 6
        %v5491 = vld [vmem:[%s5490] sm:$0x1]
        %v5493 = vsel %vm3890, %v5489, 0
        %v5496 = vsel %vm3685, %v5491, 0
        %5498 = vmatprep.subr.bf16.mxu0 0
        %5499 = vmatpush1.bf16.msra.mxu0 0
        %5500 = vmatprep.subr.bf16.mxu0 0
        %5501 = vmatpush1.bf16.msra.mxu0 0
        %5502 = vmatprep.subr.bf16.mxu0 0
        %5503 = vmatpush1.bf16.msra.mxu0 0
        %5504 = vmatprep.subr.bf16.mxu0 0
        %5505 = vmatpush1.bf16.msra.mxu0 0
        %5506 = vmatprep.subr.bf16.mxu0 0
        %5507 = vmatpush1.bf16.msra.mxu0 0
        %5508 = vmatprep.subr.bf16.mxu0 0
        %5509 = vmatpush1.bf16.msra.mxu0 0
        %5510 = vmatprep.subr.bf16.mxu0 0
        %5511 = vmatpush1.bf16.msra.mxu0 0
        %5512 = vmatprep.subr.bf16.mxu0 0
        %5513 = vmatpush1.bf16.msra.mxu0 %v5496
        %5514 = vmatprep.subr.bf16.mxu0 0
        %5515 = vmatpush2.bf16.msra.mxu0 0
        %5516 = vmatprep.subr.bf16.mxu0 0
        %5517 = vmatpush2.bf16.msra.mxu0 0
        %5518 = vmatprep.subr.bf16.mxu0 0
        %5519 = vmatpush2.bf16.msra.mxu0 0
        %5520 = vmatprep.subr.bf16.mxu0 0
        %5521 = vmatpush2.bf16.msra.mxu0 0
        %5522 = vmatprep.subr.bf16.mxu0 0
        %5523 = vmatpush2.bf16.msra.mxu0 0
        %5524 = vmatprep.subr.bf16.mxu0 0
        %5525 = vmatpush2.bf16.msra.mxu0 0
        %5526 = vmatprep.subr.bf16.mxu0 0
        %5527 = vmatpush2.bf16.msra.mxu0 0
        %5528 = vmatprep.subr.bf16.mxu0 0
        %5529 = vmatpush2.bf16.msra.mxu0 0
        %5530 = vmatprep.mubr.bf16.mxu0 0
        %5531 = vmatmul.mubr.bf16.gmra.mxu0 %v3892
        %v5532 = vpop.f32.mrf.mxu0
        %v5533 = vadd.f32 0.0, %v5532
        %v5534 = vpop.f32.mrf.mxu0
        %v5535 = vpop.f32.mrf.mxu0
        %v5536 = vadd.f32 0.0, %v5535
        %v5537 = vpop.f32.mrf.mxu0
        %5538 = vmatprep.mubr.bf16.mxu0 0
        %5539 = vmatmul.mubr.bf16.gmra.mxu0 %v3895
        %v5540 = vpop.f32.mrf.mxu0
        %v5541 = vadd.f32 0.0, %v5540
        %v5542 = vpop.f32.mrf.mxu0
        %v5543 = vpop.f32.mrf.mxu0
        %v5544 = vadd.f32 0.0, %v5543
        %v5545 = vpop.f32.mrf.mxu0
        %5546 = vmatprep.mubr.bf16.mxu0 0
        %5547 = vmatmul.mubr.bf16.gmra.mxu0 %v3898
        %v5548 = vpop.f32.mrf.mxu0
        %v5549 = vadd.f32 0.0, %v5548
        %v5550 = vpop.f32.mrf.mxu0
        %v5551 = vpop.f32.mrf.mxu0
        %v5552 = vadd.f32 0.0, %v5551
        %v5553 = vpop.f32.mrf.mxu0
        %5554 = vmatprep.mubr.bf16.mxu0 0
        %5555 = vmatmul.mubr.bf16.gmra.mxu0 %v3901
        %v5556 = vpop.f32.mrf.mxu0
        %v5557 = vadd.f32 0.0, %v5556
        %v5558 = vpop.f32.mrf.mxu0
        %v5559 = vpop.f32.mrf.mxu0
        %v5560 = vadd.f32 0.0, %v5559
        %v5561 = vpop.f32.mrf.mxu0
        %5562 = vmatprep.mubr.bf16.mxu0 0
        %5563 = vmatmul.mubr.bf16.gmra.mxu0 %v3904
        %v5564 = vpop.f32.mrf.mxu0
        %v5565 = vadd.f32 0.0, %v5564
        %v5566 = vpop.f32.mrf.mxu0
        %v5567 = vpop.f32.mrf.mxu0
        %v5568 = vadd.f32 0.0, %v5567
        %v5569 = vpop.f32.mrf.mxu0
        %5570 = vmatprep.mubr.bf16.mxu0 0
        %5571 = vmatmul.mubr.bf16.gmra.mxu0 %v3907
        %v5572 = vpop.f32.mrf.mxu0
        %v5573 = vadd.f32 0.0, %v5572
        %v5574 = vpop.f32.mrf.mxu0
        %v5575 = vpop.f32.mrf.mxu0
        %v5576 = vadd.f32 0.0, %v5575
        %v5577 = vpop.f32.mrf.mxu0
        %5578 = vmatprep.mubr.bf16.mxu0 0
        %5579 = vmatmul.mubr.bf16.gmra.mxu0 %v3910
        %v5580 = vpop.f32.mrf.mxu0
        %v5581 = vadd.f32 0.0, %v5580
        %v5582 = vpop.f32.mrf.mxu0
        %v5583 = vpop.f32.mrf.mxu0
        %v5584 = vadd.f32 0.0, %v5583
        %v5585 = vpop.f32.mrf.mxu0
        %5586 = vmatprep.mubr.bf16.mxu0 0
        %5587 = vmatmul.mubr.bf16.gmra.mxu0 %v3913
        %v5588 = vpop.f32.mrf.mxu0
        %v5589 = vadd.f32 0.0, %v5588
        %v5590 = vpop.f32.mrf.mxu0
        %v5591 = vpop.f32.mrf.mxu0
        %v5592 = vadd.f32 0.0, %v5591
        %v5593 = vpop.f32.mrf.mxu0
        %5594 = vmatprep.mubr.bf16.mxu0 0
        %5595 = vmatmul.mubr.bf16.gmra.mxu0 %v3916
        %v5596 = vpop.f32.mrf.mxu0
        %v5597 = vadd.f32 0.0, %v5596
        %v5598 = vpop.f32.mrf.mxu0
        %v5599 = vpop.f32.mrf.mxu0
        %v5600 = vadd.f32 0.0, %v5599
        %v5601 = vpop.f32.mrf.mxu0
        %5602 = vmatprep.mubr.bf16.mxu0 0
        %5603 = vmatmul.mubr.bf16.gmra.mxu0 %v3919
        %v5604 = vpop.f32.mrf.mxu0
        %v5605 = vadd.f32 0.0, %v5604
        %v5606 = vpop.f32.mrf.mxu0
        %v5607 = vpop.f32.mrf.mxu0
        %v5608 = vadd.f32 0.0, %v5607
        %v5609 = vpop.f32.mrf.mxu0
        %5610 = vmatprep.mubr.bf16.mxu0 0
        %5611 = vmatmul.mubr.bf16.gmra.mxu0 %v3922
        %v5612 = vpop.f32.mrf.mxu0
        %v5613 = vadd.f32 0.0, %v5612
        %v5614 = vpop.f32.mrf.mxu0
        %v5615 = vpop.f32.mrf.mxu0
        %v5616 = vadd.f32 0.0, %v5615
        %v5617 = vpop.f32.mrf.mxu0
        %5618 = vmatprep.mubr.bf16.mxu0 0
        %5619 = vmatmul.mubr.bf16.gmra.mxu0 %v3925
        %v5620 = vpop.f32.mrf.mxu0
        %v5621 = vadd.f32 0.0, %v5620
        %v5622 = vpop.f32.mrf.mxu0
        %v5623 = vpop.f32.mrf.mxu0
        %v5624 = vadd.f32 0.0, %v5623
        %v5625 = vpop.f32.mrf.mxu0
        %5626 = vmatprep.mubr.bf16.mxu0 0
        %5627 = vmatmul.mubr.bf16.gmra.mxu0 %v3928
        %v5628 = vpop.f32.mrf.mxu0
        %v5629 = vadd.f32 0.0, %v5628
        %v5630 = vpop.f32.mrf.mxu0
        %v5631 = vpop.f32.mrf.mxu0
        %v5632 = vadd.f32 0.0, %v5631
        %v5633 = vpop.f32.mrf.mxu0
        %5634 = vmatprep.mubr.bf16.mxu0 0
        %5635 = vmatmul.mubr.bf16.gmra.mxu0 %v3931
        %v5636 = vpop.f32.mrf.mxu0
        %v5637 = vadd.f32 0.0, %v5636
        %v5638 = vpop.f32.mrf.mxu0
        %v5639 = vpop.f32.mrf.mxu0
        %v5640 = vadd.f32 0.0, %v5639
        %v5641 = vpop.f32.mrf.mxu0
        %5642 = vmatprep.mubr.bf16.mxu0 0
        %5643 = vmatmul.mubr.bf16.gmra.mxu0 %v3934
        %v5644 = vpop.f32.mrf.mxu0
        %v5645 = vadd.f32 0.0, %v5644
        %v5646 = vpop.f32.mrf.mxu0
        %v5647 = vpop.f32.mrf.mxu0
        %v5648 = vadd.f32 0.0, %v5647
        %v5649 = vpop.f32.mrf.mxu0
        %5650 = vmatprep.mubr.bf16.mxu0 0
        %5651 = vmatmul.mubr.bf16.gmra.mxu0 %v5493
        %v5652 = vpop.f32.mrf.mxu0
        %v5653 = vadd.f32 0.0, %v5652
        %v5654 = vpop.f32.mrf.mxu0
        %v5655 = vpop.f32.mrf.mxu0
        %v5656 = vadd.f32 0.0, %v5655
        %v5657 = vpop.f32.mrf.mxu0
        %5658 = vdwg.mxu0
        %v5659 = vadd.f32 %v5448, %v5533
        %v5660 = vadd.f32 %v5449, %v5536
        %v5661 = vadd.f32 %v5450, %v5541
        %v5662 = vadd.f32 %v5451, %v5544
        %v5663 = vadd.f32 %v5452, %v5549
        %v5664 = vadd.f32 %v5453, %v5552
        %v5665 = vadd.f32 %v5454, %v5557
        %v5666 = vadd.f32 %v5455, %v5560
        %v5667 = vadd.f32 %v5456, %v5565
        %v5668 = vadd.f32 %v5457, %v5568
        %v5669 = vadd.f32 %v5458, %v5573
        %v5670 = vadd.f32 %v5459, %v5576
        %v5671 = vadd.f32 %v5460, %v5581
        %v5672 = vadd.f32 %v5461, %v5584
        %v5673 = vadd.f32 %v5462, %v5589
        %v5674 = vadd.f32 %v5463, %v5592
        %v5675 = vadd.f32 %v5464, %v5597
        %v5676 = vadd.f32 %v5465, %v5600
        %v5677 = vadd.f32 %v5466, %v5605
        %v5678 = vadd.f32 %v5467, %v5608
        %v5679 = vadd.f32 %v5468, %v5613
        %v5680 = vadd.f32 %v5469, %v5616
        %v5681 = vadd.f32 %v5470, %v5621
        %v5682 = vadd.f32 %v5471, %v5624
        %v5683 = vadd.f32 %v5472, %v5629
        %v5684 = vadd.f32 %v5473, %v5632
        %v5685 = vadd.f32 %v5474, %v5637
        %v5686 = vadd.f32 %v5475, %v5640
        %v5687 = vadd.f32 %v5476, %v5645
        %v5688 = vadd.f32 %v5477, %v5648
        %v5689 = vadd.f32 %v5478, %v5653
        %v5690 = vadd.f32 %v5479, %v5656
        %v5693 = vrot.slane %v3717, 1
        %v5694 = vrot.slane %v3735, 1
        %v5695 = vsel %vm1852, %v5693, %v5694
        %s5696 = scalar_lea.vmem %s9, 7
        %v5697 = vld [vmem:[%s5696] sm:$0x1]
        %v5699 = vsel %vm3890, %v5695, 0
        %v5702 = vsel %vm3685, %v5697, 0
        %5704 = vmatprep.subr.bf16.mxu0 0
        %5705 = vmatpush1.bf16.msra.mxu0 0
        %5706 = vmatprep.subr.bf16.mxu0 0
        %5707 = vmatpush1.bf16.msra.mxu0 0
        %5708 = vmatprep.subr.bf16.mxu0 0
        %5709 = vmatpush1.bf16.msra.mxu0 0
        %5710 = vmatprep.subr.bf16.mxu0 0
        %5711 = vmatpush1.bf16.msra.mxu0 0
        %5712 = vmatprep.subr.bf16.mxu0 0
        %5713 = vmatpush1.bf16.msra.mxu0 0
        %5714 = vmatprep.subr.bf16.mxu0 0
        %5715 = vmatpush1.bf16.msra.mxu0 0
        %5716 = vmatprep.subr.bf16.mxu0 0
        %5717 = vmatpush1.bf16.msra.mxu0 0
        %5718 = vmatprep.subr.bf16.mxu0 0
        %5719 = vmatpush1.bf16.msra.mxu0 %v5702
        %5720 = vmatprep.subr.bf16.mxu0 0
        %5721 = vmatpush2.bf16.msra.mxu0 0
        %5722 = vmatprep.subr.bf16.mxu0 0
        %5723 = vmatpush2.bf16.msra.mxu0 0
        %5724 = vmatprep.subr.bf16.mxu0 0
        %5725 = vmatpush2.bf16.msra.mxu0 0
        %5726 = vmatprep.subr.bf16.mxu0 0
        %5727 = vmatpush2.bf16.msra.mxu0 0
        %5728 = vmatprep.subr.bf16.mxu0 0
        %5729 = vmatpush2.bf16.msra.mxu0 0
        %5730 = vmatprep.subr.bf16.mxu0 0
        %5731 = vmatpush2.bf16.msra.mxu0 0
        %5732 = vmatprep.subr.bf16.mxu0 0
        %5733 = vmatpush2.bf16.msra.mxu0 0
        %5734 = vmatprep.subr.bf16.mxu0 0
        %5735 = vmatpush2.bf16.msra.mxu0 0
        %5736 = vmatprep.mubr.bf16.mxu0 0
        %5737 = vmatmul.mubr.bf16.gmra.mxu0 %v4372
        %v5738 = vpop.f32.mrf.mxu0
        %v5739 = vadd.f32 0.0, %v5738
        %v5740 = vpop.f32.mrf.mxu0
        %v5741 = vpop.f32.mrf.mxu0
        %v5742 = vadd.f32 0.0, %v5741
        %v5743 = vpop.f32.mrf.mxu0
        %5744 = vmatprep.mubr.bf16.mxu0 0
        %5745 = vmatmul.mubr.bf16.gmra.mxu0 %v4375
        %v5746 = vpop.f32.mrf.mxu0
        %v5747 = vadd.f32 0.0, %v5746
        %v5748 = vpop.f32.mrf.mxu0
        %v5749 = vpop.f32.mrf.mxu0
        %v5750 = vadd.f32 0.0, %v5749
        %v5751 = vpop.f32.mrf.mxu0
        %5752 = vmatprep.mubr.bf16.mxu0 0
        %5753 = vmatmul.mubr.bf16.gmra.mxu0 %v4378
        %v5754 = vpop.f32.mrf.mxu0
        %v5755 = vadd.f32 0.0, %v5754
        %v5756 = vpop.f32.mrf.mxu0
        %v5757 = vpop.f32.mrf.mxu0
        %v5758 = vadd.f32 0.0, %v5757
        %v5759 = vpop.f32.mrf.mxu0
        %5760 = vmatprep.mubr.bf16.mxu0 0
        %5761 = vmatmul.mubr.bf16.gmra.mxu0 %v4381
        %v5762 = vpop.f32.mrf.mxu0
        %v5763 = vadd.f32 0.0, %v5762
        %v5764 = vpop.f32.mrf.mxu0
        %v5765 = vpop.f32.mrf.mxu0
        %v5766 = vadd.f32 0.0, %v5765
        %v5767 = vpop.f32.mrf.mxu0
        %5768 = vmatprep.mubr.bf16.mxu0 0
        %5769 = vmatmul.mubr.bf16.gmra.mxu0 %v4384
        %v5770 = vpop.f32.mrf.mxu0
        %v5771 = vadd.f32 0.0, %v5770
        %v5772 = vpop.f32.mrf.mxu0
        %v5773 = vpop.f32.mrf.mxu0
        %v5774 = vadd.f32 0.0, %v5773
        %v5775 = vpop.f32.mrf.mxu0
        %5776 = vmatprep.mubr.bf16.mxu0 0
        %5777 = vmatmul.mubr.bf16.gmra.mxu0 %v4387
        %v5778 = vpop.f32.mrf.mxu0
        %v5779 = vadd.f32 0.0, %v5778
        %v5780 = vpop.f32.mrf.mxu0
        %v5781 = vpop.f32.mrf.mxu0
        %v5782 = vadd.f32 0.0, %v5781
        %v5783 = vpop.f32.mrf.mxu0
        %5784 = vmatprep.mubr.bf16.mxu0 0
        %5785 = vmatmul.mubr.bf16.gmra.mxu0 %v4390
        %v5786 = vpop.f32.mrf.mxu0
        %v5787 = vadd.f32 0.0, %v5786
        %v5788 = vpop.f32.mrf.mxu0
        %v5789 = vpop.f32.mrf.mxu0
        %v5790 = vadd.f32 0.0, %v5789
        %v5791 = vpop.f32.mrf.mxu0
        %5792 = vmatprep.mubr.bf16.mxu0 0
        %5793 = vmatmul.mubr.bf16.gmra.mxu0 %v4393
        %v5794 = vpop.f32.mrf.mxu0
        %v5795 = vadd.f32 0.0, %v5794
        %v5796 = vpop.f32.mrf.mxu0
        %v5797 = vpop.f32.mrf.mxu0
        %v5798 = vadd.f32 0.0, %v5797
        %v5799 = vpop.f32.mrf.mxu0
        %5800 = vmatprep.mubr.bf16.mxu0 0
        %5801 = vmatmul.mubr.bf16.gmra.mxu0 %v4396
        %v5802 = vpop.f32.mrf.mxu0
        %v5803 = vadd.f32 0.0, %v5802
        %v5804 = vpop.f32.mrf.mxu0
        %v5805 = vpop.f32.mrf.mxu0
        %v5806 = vadd.f32 0.0, %v5805
        %v5807 = vpop.f32.mrf.mxu0
        %5808 = vmatprep.mubr.bf16.mxu0 0
        %5809 = vmatmul.mubr.bf16.gmra.mxu0 %v4399
        %v5810 = vpop.f32.mrf.mxu0
        %v5811 = vadd.f32 0.0, %v5810
        %v5812 = vpop.f32.mrf.mxu0
        %v5813 = vpop.f32.mrf.mxu0
        %v5814 = vadd.f32 0.0, %v5813
        %v5815 = vpop.f32.mrf.mxu0
        %5816 = vmatprep.mubr.bf16.mxu0 0
        %5817 = vmatmul.mubr.bf16.gmra.mxu0 %v4402
        %v5818 = vpop.f32.mrf.mxu0
        %v5819 = vadd.f32 0.0, %v5818
        %v5820 = vpop.f32.mrf.mxu0
        %v5821 = vpop.f32.mrf.mxu0
        %v5822 = vadd.f32 0.0, %v5821
        %v5823 = vpop.f32.mrf.mxu0
        %5824 = vmatprep.mubr.bf16.mxu0 0
        %5825 = vmatmul.mubr.bf16.gmra.mxu0 %v4405
        %v5826 = vpop.f32.mrf.mxu0
        %v5827 = vadd.f32 0.0, %v5826
        %v5828 = vpop.f32.mrf.mxu0
        %v5829 = vpop.f32.mrf.mxu0
        %v5830 = vadd.f32 0.0, %v5829
        %v5831 = vpop.f32.mrf.mxu0
        %5832 = vmatprep.mubr.bf16.mxu0 0
        %5833 = vmatmul.mubr.bf16.gmra.mxu0 %v4408
        %v5834 = vpop.f32.mrf.mxu0
        %v5835 = vadd.f32 0.0, %v5834
        %v5836 = vpop.f32.mrf.mxu0
        %v5837 = vpop.f32.mrf.mxu0
        %v5838 = vadd.f32 0.0, %v5837
        %v5839 = vpop.f32.mrf.mxu0
        %5840 = vmatprep.mubr.bf16.mxu0 0
        %5841 = vmatmul.mubr.bf16.gmra.mxu0 %v4411
        %v5842 = vpop.f32.mrf.mxu0
        %v5843 = vadd.f32 0.0, %v5842
        %v5844 = vpop.f32.mrf.mxu0
        %v5845 = vpop.f32.mrf.mxu0
        %v5846 = vadd.f32 0.0, %v5845
        %v5847 = vpop.f32.mrf.mxu0
        %5848 = vmatprep.mubr.bf16.mxu0 0
        %5849 = vmatmul.mubr.bf16.gmra.mxu0 %v4414
        %v5850 = vpop.f32.mrf.mxu0
        %v5851 = vadd.f32 0.0, %v5850
        %v5852 = vpop.f32.mrf.mxu0
        %v5853 = vpop.f32.mrf.mxu0
        %v5854 = vadd.f32 0.0, %v5853
        %v5855 = vpop.f32.mrf.mxu0
        %5856 = vmatprep.mubr.bf16.mxu0 0
        %5857 = vmatmul.mubr.bf16.gmra.mxu0 %v5699
        %v5858 = vpop.f32.mrf.mxu0
        %v5859 = vadd.f32 0.0, %v5858
        %v5860 = vpop.f32.mrf.mxu0
        %v5861 = vpop.f32.mrf.mxu0
        %v5862 = vadd.f32 0.0, %v5861
        %v5863 = vpop.f32.mrf.mxu0
        %5864 = vdwg.mxu0
        %v5865 = vadd.f32 %v5659, %v5739
        %v5866 = vadd.f32 %v5660, %v5742
        %v5867 = vadd.f32 %v5661, %v5747
        %v5868 = vadd.f32 %v5662, %v5750
        %v5869 = vadd.f32 %v5663, %v5755
        %v5870 = vadd.f32 %v5664, %v5758
        %v5871 = vadd.f32 %v5665, %v5763
        %v5872 = vadd.f32 %v5666, %v5766
        %v5873 = vadd.f32 %v5667, %v5771
        %v5874 = vadd.f32 %v5668, %v5774
        %v5875 = vadd.f32 %v5669, %v5779
        %v5876 = vadd.f32 %v5670, %v5782
        %v5877 = vadd.f32 %v5671, %v5787
        %v5878 = vadd.f32 %v5672, %v5790
        %v5879 = vadd.f32 %v5673, %v5795
        %v5880 = vadd.f32 %v5674, %v5798
        %v5881 = vadd.f32 %v5675, %v5803
        %v5882 = vadd.f32 %v5676, %v5806
        %v5883 = vadd.f32 %v5677, %v5811
        %v5884 = vadd.f32 %v5678, %v5814
        %v5885 = vadd.f32 %v5679, %v5819
        %v5886 = vadd.f32 %v5680, %v5822
        %v5887 = vadd.f32 %v5681, %v5827
        %v5888 = vadd.f32 %v5682, %v5830
        %v5889 = vadd.f32 %v5683, %v5835
        %v5890 = vadd.f32 %v5684, %v5838
        %v5891 = vadd.f32 %v5685, %v5843
        %v5892 = vadd.f32 %v5686, %v5846
        %v5893 = vadd.f32 %v5687, %v5851
        %v5894 = vadd.f32 %v5688, %v5854
        %v5895 = vadd.f32 %v5689, %v5859
        %v5896 = vadd.f32 %v5690, %v5862
        %v5897 = vrot.slane %v5480, 1
        %v5898 = vrot.slane %v5482, 2
        %v5899 = vor.u32 %v5897, %v5898
        %v5900 = vshrl.u32 %v3735, 16
        %v5902 = vrot.slane %v5900, 1
        %v5903 = vrot.slane %v5486, 2
        %v5904 = vor.u32 %v5902, %v5903
        %v5905 = vsel %vm4612, %v5899, %v5904
        %s5906 = scalar_lea.vmem %s9, 8
        %v5907 = vld [vmem:[%s5906] sm:$0x1]
        %v5909 = vsel %vm3890, %v5905, 0
        %v5912 = vsel %vm3685, %v5907, 0
        %5914 = vmatprep.subr.bf16.mxu0 0
        %5915 = vmatpush1.bf16.msra.mxu0 0
        %5916 = vmatprep.subr.bf16.mxu0 0
        %5917 = vmatpush1.bf16.msra.mxu0 0
        %5918 = vmatprep.subr.bf16.mxu0 0
        %5919 = vmatpush1.bf16.msra.mxu0 0
        %5920 = vmatprep.subr.bf16.mxu0 0
        %5921 = vmatpush1.bf16.msra.mxu0 0
        %5922 = vmatprep.subr.bf16.mxu0 0
        %5923 = vmatpush1.bf16.msra.mxu0 0
        %5924 = vmatprep.subr.bf16.mxu0 0
        %5925 = vmatpush1.bf16.msra.mxu0 0
        %5926 = vmatprep.subr.bf16.mxu0 0
        %5927 = vmatpush1.bf16.msra.mxu0 0
        %5928 = vmatprep.subr.bf16.mxu0 0
        %5929 = vmatpush1.bf16.msra.mxu0 %v5912
        %5930 = vmatprep.subr.bf16.mxu0 0
        %5931 = vmatpush2.bf16.msra.mxu0 0
        %5932 = vmatprep.subr.bf16.mxu0 0
        %5933 = vmatpush2.bf16.msra.mxu0 0
        %5934 = vmatprep.subr.bf16.mxu0 0
        %5935 = vmatpush2.bf16.msra.mxu0 0
        %5936 = vmatprep.subr.bf16.mxu0 0
        %5937 = vmatpush2.bf16.msra.mxu0 0
        %5938 = vmatprep.subr.bf16.mxu0 0
        %5939 = vmatpush2.bf16.msra.mxu0 0
        %5940 = vmatprep.subr.bf16.mxu0 0
        %5941 = vmatpush2.bf16.msra.mxu0 0
        %5942 = vmatprep.subr.bf16.mxu0 0
        %5943 = vmatpush2.bf16.msra.mxu0 0
        %5944 = vmatprep.subr.bf16.mxu0 0
        %5945 = vmatpush2.bf16.msra.mxu0 0
        %5946 = vmatprep.mubr.bf16.mxu0 0
        %5947 = vmatmul.mubr.bf16.gmra.mxu0 %v4751
        %v5948 = vpop.f32.mrf.mxu0
        %v5949 = vadd.f32 0.0, %v5948
        %v5950 = vpop.f32.mrf.mxu0
        %v5951 = vpop.f32.mrf.mxu0
        %v5952 = vadd.f32 0.0, %v5951
        %v5953 = vpop.f32.mrf.mxu0
        %5954 = vmatprep.mubr.bf16.mxu0 0
        %5955 = vmatmul.mubr.bf16.gmra.mxu0 %v4754
        %v5956 = vpop.f32.mrf.mxu0
        %v5957 = vadd.f32 0.0, %v5956
        %v5958 = vpop.f32.mrf.mxu0
        %v5959 = vpop.f32.mrf.mxu0
        %v5960 = vadd.f32 0.0, %v5959
        %v5961 = vpop.f32.mrf.mxu0
        %5962 = vmatprep.mubr.bf16.mxu0 0
        %5963 = vmatmul.mubr.bf16.gmra.mxu0 %v4757
        %v5964 = vpop.f32.mrf.mxu0
        %v5965 = vadd.f32 0.0, %v5964
        %v5966 = vpop.f32.mrf.mxu0
        %v5967 = vpop.f32.mrf.mxu0
        %v5968 = vadd.f32 0.0, %v5967
        %v5969 = vpop.f32.mrf.mxu0
        %5970 = vmatprep.mubr.bf16.mxu0 0
        %5971 = vmatmul.mubr.bf16.gmra.mxu0 %v4760
        %v5972 = vpop.f32.mrf.mxu0
        %v5973 = vadd.f32 0.0, %v5972
        %v5974 = vpop.f32.mrf.mxu0
        %v5975 = vpop.f32.mrf.mxu0
        %v5976 = vadd.f32 0.0, %v5975
        %v5977 = vpop.f32.mrf.mxu0
        %5978 = vmatprep.mubr.bf16.mxu0 0
        %5979 = vmatmul.mubr.bf16.gmra.mxu0 %v4763
        %v5980 = vpop.f32.mrf.mxu0
        %v5981 = vadd.f32 0.0, %v5980
        %v5982 = vpop.f32.mrf.mxu0
        %v5983 = vpop.f32.mrf.mxu0
        %v5984 = vadd.f32 0.0, %v5983
        %v5985 = vpop.f32.mrf.mxu0
        %5986 = vmatprep.mubr.bf16.mxu0 0
        %5987 = vmatmul.mubr.bf16.gmra.mxu0 %v4766
        %v5988 = vpop.f32.mrf.mxu0
        %v5989 = vadd.f32 0.0, %v5988
        %v5990 = vpop.f32.mrf.mxu0
        %v5991 = vpop.f32.mrf.mxu0
        %v5992 = vadd.f32 0.0, %v5991
        %v5993 = vpop.f32.mrf.mxu0
        %5994 = vmatprep.mubr.bf16.mxu0 0
        %5995 = vmatmul.mubr.bf16.gmra.mxu0 %v4769
        %v5996 = vpop.f32.mrf.mxu0
        %v5997 = vadd.f32 0.0, %v5996
        %v5998 = vpop.f32.mrf.mxu0
        %v5999 = vpop.f32.mrf.mxu0
        %v6000 = vadd.f32 0.0, %v5999
        %v6001 = vpop.f32.mrf.mxu0
        %6002 = vmatprep.mubr.bf16.mxu0 0
        %6003 = vmatmul.mubr.bf16.gmra.mxu0 %v4772
        %v6004 = vpop.f32.mrf.mxu0
        %v6005 = vadd.f32 0.0, %v6004
        %v6006 = vpop.f32.mrf.mxu0
        %v6007 = vpop.f32.mrf.mxu0
        %v6008 = vadd.f32 0.0, %v6007
        %v6009 = vpop.f32.mrf.mxu0
        %6010 = vmatprep.mubr.bf16.mxu0 0
        %6011 = vmatmul.mubr.bf16.gmra.mxu0 %v4775
        %v6012 = vpop.f32.mrf.mxu0
        %v6013 = vadd.f32 0.0, %v6012
        %v6014 = vpop.f32.mrf.mxu0
        %v6015 = vpop.f32.mrf.mxu0
        %v6016 = vadd.f32 0.0, %v6015
        %v6017 = vpop.f32.mrf.mxu0
        %6018 = vmatprep.mubr.bf16.mxu0 0
        %6019 = vmatmul.mubr.bf16.gmra.mxu0 %v4778
        %v6020 = vpop.f32.mrf.mxu0
        %v6021 = vadd.f32 0.0, %v6020
        %v6022 = vpop.f32.mrf.mxu0
        %v6023 = vpop.f32.mrf.mxu0
        %v6024 = vadd.f32 0.0, %v6023
        %v6025 = vpop.f32.mrf.mxu0
        %6026 = vmatprep.mubr.bf16.mxu0 0
        %6027 = vmatmul.mubr.bf16.gmra.mxu0 %v4781
        %v6028 = vpop.f32.mrf.mxu0
        %v6029 = vadd.f32 0.0, %v6028
        %v6030 = vpop.f32.mrf.mxu0
        %v6031 = vpop.f32.mrf.mxu0
        %v6032 = vadd.f32 0.0, %v6031
        %v6033 = vpop.f32.mrf.mxu0
        %6034 = vmatprep.mubr.bf16.mxu0 0
        %6035 = vmatmul.mubr.bf16.gmra.mxu0 %v4784
        %v6036 = vpop.f32.mrf.mxu0
        %v6037 = vadd.f32 0.0, %v6036
        %v6038 = vpop.f32.mrf.mxu0
        %v6039 = vpop.f32.mrf.mxu0
        %v6040 = vadd.f32 0.0, %v6039
        %v6041 = vpop.f32.mrf.mxu0
        %6042 = vmatprep.mubr.bf16.mxu0 0
        %6043 = vmatmul.mubr.bf16.gmra.mxu0 %v4787
        %v6044 = vpop.f32.mrf.mxu0
        %v6045 = vadd.f32 0.0, %v6044
        %v6046 = vpop.f32.mrf.mxu0
        %v6047 = vpop.f32.mrf.mxu0
        %v6048 = vadd.f32 0.0, %v6047
        %v6049 = vpop.f32.mrf.mxu0
        %6050 = vmatprep.mubr.bf16.mxu0 0
        %6051 = vmatmul.mubr.bf16.gmra.mxu0 %v4790
        %v6052 = vpop.f32.mrf.mxu0
        %v6053 = vadd.f32 0.0, %v6052
        %v6054 = vpop.f32.mrf.mxu0
        %v6055 = vpop.f32.mrf.mxu0
        %v6056 = vadd.f32 0.0, %v6055
        %v6057 = vpop.f32.mrf.mxu0
        %6058 = vmatprep.mubr.bf16.mxu0 0
        %6059 = vmatmul.mubr.bf16.gmra.mxu0 %v4793
        %v6060 = vpop.f32.mrf.mxu0
        %v6061 = vadd.f32 0.0, %v6060
        %v6062 = vpop.f32.mrf.mxu0
        %v6063 = vpop.f32.mrf.mxu0
        %v6064 = vadd.f32 0.0, %v6063
        %v6065 = vpop.f32.mrf.mxu0
        %6066 = vmatprep.mubr.bf16.mxu0 0
        %6067 = vmatmul.mubr.bf16.gmra.mxu0 %v5909
        %v6068 = vpop.f32.mrf.mxu0
        %v6069 = vadd.f32 0.0, %v6068
        %v6070 = vpop.f32.mrf.mxu0
        %v6071 = vpop.f32.mrf.mxu0
        %v6072 = vadd.f32 0.0, %v6071
        %v6073 = vpop.f32.mrf.mxu0
        %6074 = vdwg.mxu0
        %v6075 = vadd.f32 %v5865, %v5949
        %v6076 = vadd.f32 %v5866, %v5952
        %v6077 = vadd.f32 %v5867, %v5957
        %v6078 = vadd.f32 %v5868, %v5960
        %v6079 = vadd.f32 %v5869, %v5965
        %v6080 = vadd.f32 %v5870, %v5968
        %v6081 = vadd.f32 %v5871, %v5973
        %v6082 = vadd.f32 %v5872, %v5976
        %v6083 = vadd.f32 %v5873, %v5981
        %v6084 = vadd.f32 %v5874, %v5984
        %v6085 = vadd.f32 %v5875, %v5989
        %v6086 = vadd.f32 %v5876, %v5992
        %v6087 = vadd.f32 %v5877, %v5997
        %v6088 = vadd.f32 %v5878, %v6000
        %v6089 = vadd.f32 %v5879, %v6005
        %v6090 = vadd.f32 %v5880, %v6008
        %v6091 = vadd.f32 %v5881, %v6013
        %v6092 = vadd.f32 %v5882, %v6016
        %v6093 = vadd.f32 %v5883, %v6021
        %v6094 = vadd.f32 %v5884, %v6024
        %v6095 = vadd.f32 %v5885, %v6029
        %v6096 = vadd.f32 %v5886, %v6032
        %v6097 = vadd.f32 %v5887, %v6037
        %v6098 = vadd.f32 %v5888, %v6040
        %v6099 = vadd.f32 %v5889, %v6045
        %v6100 = vadd.f32 %v5890, %v6048
        %v6101 = vadd.f32 %v5891, %v6053
        %v6102 = vadd.f32 %v5892, %v6056
        %v6103 = vadd.f32 %v5893, %v6061
        %v6104 = vadd.f32 %v5894, %v6064
        %v6105 = vadd.f32 %v5895, %v6069
        %v6106 = vadd.f32 %v5896, %v6072
        %v6107 = vrot.slane %v3717, 2
        %v6108 = vrot.slane %v3735, 2
        %v6109 = vsel %vm4991, %v6107, %v6108
        %s6110 = scalar_lea.vmem %s9, 9
        %v6111 = vld [vmem:[%s6110] sm:$0x1]
        %v6113 = vsel %vm3890, %v6109, 0
        %v6116 = vsel %vm3685, %v6111, 0
        %6118 = vmatprep.subr.bf16.mxu0 0
        %6119 = vmatpush1.bf16.msra.mxu0 0
        %6120 = vmatprep.subr.bf16.mxu0 0
        %6121 = vmatpush1.bf16.msra.mxu0 0
        %6122 = vmatprep.subr.bf16.mxu0 0
        %6123 = vmatpush1.bf16.msra.mxu0 0
        %6124 = vmatprep.subr.bf16.mxu0 0
        %6125 = vmatpush1.bf16.msra.mxu0 0
        %6126 = vmatprep.subr.bf16.mxu0 0
        %6127 = vmatpush1.bf16.msra.mxu0 0
        %6128 = vmatprep.subr.bf16.mxu0 0
        %6129 = vmatpush1.bf16.msra.mxu0 0
        %6130 = vmatprep.subr.bf16.mxu0 0
        %6131 = vmatpush1.bf16.msra.mxu0 0
        %6132 = vmatprep.subr.bf16.mxu0 0
        %6133 = vmatpush1.bf16.msra.mxu0 %v6116
        %6134 = vmatprep.subr.bf16.mxu0 0
        %6135 = vmatpush2.bf16.msra.mxu0 0
        %6136 = vmatprep.subr.bf16.mxu0 0
        %6137 = vmatpush2.bf16.msra.mxu0 0
        %6138 = vmatprep.subr.bf16.mxu0 0
        %6139 = vmatpush2.bf16.msra.mxu0 0
        %6140 = vmatprep.subr.bf16.mxu0 0
        %6141 = vmatpush2.bf16.msra.mxu0 0
        %6142 = vmatprep.subr.bf16.mxu0 0
        %6143 = vmatpush2.bf16.msra.mxu0 0
        %6144 = vmatprep.subr.bf16.mxu0 0
        %6145 = vmatpush2.bf16.msra.mxu0 0
        %6146 = vmatprep.subr.bf16.mxu0 0
        %6147 = vmatpush2.bf16.msra.mxu0 0
        %6148 = vmatprep.subr.bf16.mxu0 0
        %6149 = vmatpush2.bf16.msra.mxu0 0
        %6150 = vmatprep.mubr.bf16.mxu0 0
        %6151 = vmatmul.mubr.bf16.gmra.mxu0 %v5040
        %v6152 = vpop.f32.mrf.mxu0
        %v6153 = vadd.f32 0.0, %v6152
        %v6154 = vpop.f32.mrf.mxu0
        %v6155 = vpop.f32.mrf.mxu0
        %v6156 = vadd.f32 0.0, %v6155
        %v6157 = vpop.f32.mrf.mxu0
        %6158 = vmatprep.mubr.bf16.mxu0 0
        %6159 = vmatmul.mubr.bf16.gmra.mxu0 %v5043
        %v6160 = vpop.f32.mrf.mxu0
        %v6161 = vadd.f32 0.0, %v6160
        %v6162 = vpop.f32.mrf.mxu0
        %v6163 = vpop.f32.mrf.mxu0
        %v6164 = vadd.f32 0.0, %v6163
        %v6165 = vpop.f32.mrf.mxu0
        %6166 = vmatprep.mubr.bf16.mxu0 0
        %6167 = vmatmul.mubr.bf16.gmra.mxu0 %v5046
        %v6168 = vpop.f32.mrf.mxu0
        %v6169 = vadd.f32 0.0, %v6168
        %v6170 = vpop.f32.mrf.mxu0
        %v6171 = vpop.f32.mrf.mxu0
        %v6172 = vadd.f32 0.0, %v6171
        %v6173 = vpop.f32.mrf.mxu0
        %6174 = vmatprep.mubr.bf16.mxu0 0
        %6175 = vmatmul.mubr.bf16.gmra.mxu0 %v5049
        %v6176 = vpop.f32.mrf.mxu0
        %v6177 = vadd.f32 0.0, %v6176
        %v6178 = vpop.f32.mrf.mxu0
        %v6179 = vpop.f32.mrf.mxu0
        %v6180 = vadd.f32 0.0, %v6179
        %v6181 = vpop.f32.mrf.mxu0
        %6182 = vmatprep.mubr.bf16.mxu0 0
        %6183 = vmatmul.mubr.bf16.gmra.mxu0 %v5052
        %v6184 = vpop.f32.mrf.mxu0
        %v6185 = vadd.f32 0.0, %v6184
        %v6186 = vpop.f32.mrf.mxu0
        %v6187 = vpop.f32.mrf.mxu0
        %v6188 = vadd.f32 0.0, %v6187
        %v6189 = vpop.f32.mrf.mxu0
        %6190 = vmatprep.mubr.bf16.mxu0 0
        %6191 = vmatmul.mubr.bf16.gmra.mxu0 %v5055
        %v6192 = vpop.f32.mrf.mxu0
        %v6193 = vadd.f32 0.0, %v6192
        %v6194 = vpop.f32.mrf.mxu0
        %v6195 = vpop.f32.mrf.mxu0
        %v6196 = vadd.f32 0.0, %v6195
        %v6197 = vpop.f32.mrf.mxu0
        %6198 = vmatprep.mubr.bf16.mxu0 0
        %6199 = vmatmul.mubr.bf16.gmra.mxu0 %v5058
        %v6200 = vpop.f32.mrf.mxu0
        %v6201 = vadd.f32 0.0, %v6200
        %v6202 = vpop.f32.mrf.mxu0
        %v6203 = vpop.f32.mrf.mxu0
        %v6204 = vadd.f32 0.0, %v6203
        %v6205 = vpop.f32.mrf.mxu0
        %6206 = vmatprep.mubr.bf16.mxu0 0
        %6207 = vmatmul.mubr.bf16.gmra.mxu0 %v5061
        %v6208 = vpop.f32.mrf.mxu0
        %v6209 = vadd.f32 0.0, %v6208
        %v6210 = vpop.f32.mrf.mxu0
        %v6211 = vpop.f32.mrf.mxu0
        %v6212 = vadd.f32 0.0, %v6211
        %v6213 = vpop.f32.mrf.mxu0
        %6214 = vmatprep.mubr.bf16.mxu0 0
        %6215 = vmatmul.mubr.bf16.gmra.mxu0 %v5064
        %v6216 = vpop.f32.mrf.mxu0
        %v6217 = vadd.f32 0.0, %v6216
        %v6218 = vpop.f32.mrf.mxu0
        %v6219 = vpop.f32.mrf.mxu0
        %v6220 = vadd.f32 0.0, %v6219
        %v6221 = vpop.f32.mrf.mxu0
        %6222 = vmatprep.mubr.bf16.mxu0 0
        %6223 = vmatmul.mubr.bf16.gmra.mxu0 %v5067
        %v6224 = vpop.f32.mrf.mxu0
        %v6225 = vadd.f32 0.0, %v6224
        %v6226 = vpop.f32.mrf.mxu0
        %v6227 = vpop.f32.mrf.mxu0
        %v6228 = vadd.f32 0.0, %v6227
        %v6229 = vpop.f32.mrf.mxu0
        %6230 = vmatprep.mubr.bf16.mxu0 0
        %6231 = vmatmul.mubr.bf16.gmra.mxu0 %v5070
        %v6232 = vpop.f32.mrf.mxu0
        %v6233 = vadd.f32 0.0, %v6232
        %v6234 = vpop.f32.mrf.mxu0
        %v6235 = vpop.f32.mrf.mxu0
        %v6236 = vadd.f32 0.0, %v6235
        %v6237 = vpop.f32.mrf.mxu0
        %6238 = vmatprep.mubr.bf16.mxu0 0
        %6239 = vmatmul.mubr.bf16.gmra.mxu0 %v5073
        %v6240 = vpop.f32.mrf.mxu0
        %v6241 = vadd.f32 0.0, %v6240
        %v6242 = vpop.f32.mrf.mxu0
        %v6243 = vpop.f32.mrf.mxu0
        %v6244 = vadd.f32 0.0, %v6243
        %v6245 = vpop.f32.mrf.mxu0
        %6246 = vmatprep.mubr.bf16.mxu0 0
        %6247 = vmatmul.mubr.bf16.gmra.mxu0 %v5076
        %v6248 = vpop.f32.mrf.mxu0
        %v6249 = vadd.f32 0.0, %v6248
        %v6250 = vpop.f32.mrf.mxu0
        %v6251 = vpop.f32.mrf.mxu0
        %v6252 = vadd.f32 0.0, %v6251
        %v6253 = vpop.f32.mrf.mxu0
        %6254 = vmatprep.mubr.bf16.mxu0 0
        %6255 = vmatmul.mubr.bf16.gmra.mxu0 %v5079
        %v6256 = vpop.f32.mrf.mxu0
        %v6257 = vadd.f32 0.0, %v6256
        %v6258 = vpop.f32.mrf.mxu0
        %v6259 = vpop.f32.mrf.mxu0
        %v6260 = vadd.f32 0.0, %v6259
        %v6261 = vpop.f32.mrf.mxu0
        %6262 = vmatprep.mubr.bf16.mxu0 0
        %6263 = vmatmul.mubr.bf16.gmra.mxu0 %v5082
        %v6264 = vpop.f32.mrf.mxu0
        %v6265 = vadd.f32 0.0, %v6264
        %v6266 = vpop.f32.mrf.mxu0
        %v6267 = vpop.f32.mrf.mxu0
        %v6268 = vadd.f32 0.0, %v6267
        %v6269 = vpop.f32.mrf.mxu0
        %6270 = vmatprep.mubr.bf16.mxu0 0
        %6271 = vmatmul.mubr.bf16.gmra.mxu0 %v6113
        %v6272 = vpop.f32.mrf.mxu0
        %v6273 = vadd.f32 0.0, %v6272
        %v6274 = vpop.f32.mrf.mxu0
        %v6275 = vpop.f32.mrf.mxu0
        %v6276 = vadd.f32 0.0, %v6275
        %v6277 = vpop.f32.mrf.mxu0
        %6278 = vdwg.mxu0
        %v6279 = vadd.f32 %v6075, %v6153
        %v6280 = vadd.f32 %v6076, %v6156
        %v6281 = vadd.f32 %v6077, %v6161
        %v6282 = vadd.f32 %v6078, %v6164
        %v6283 = vadd.f32 %v6079, %v6169
        %v6284 = vadd.f32 %v6080, %v6172
        %v6285 = vadd.f32 %v6081, %v6177
        %v6286 = vadd.f32 %v6082, %v6180
        %v6287 = vadd.f32 %v6083, %v6185
        %v6288 = vadd.f32 %v6084, %v6188
        %v6289 = vadd.f32 %v6085, %v6193
        %v6290 = vadd.f32 %v6086, %v6196
        %v6291 = vadd.f32 %v6087, %v6201
        %v6292 = vadd.f32 %v6088, %v6204
        %v6293 = vadd.f32 %v6089, %v6209
        %v6294 = vadd.f32 %v6090, %v6212
        %v6295 = vadd.f32 %v6091, %v6217
        %v6296 = vadd.f32 %v6092, %v6220
        %v6297 = vadd.f32 %v6093, %v6225
        %v6298 = vadd.f32 %v6094, %v6228
        %v6299 = vadd.f32 %v6095, %v6233
        %v6300 = vadd.f32 %v6096, %v6236
        %v6301 = vadd.f32 %v6097, %v6241
        %v6302 = vadd.f32 %v6098, %v6244
        %v6303 = vadd.f32 %v6099, %v6249
        %v6304 = vadd.f32 %v6100, %v6252
        %v6305 = vadd.f32 %v6101, %v6257
        %v6306 = vadd.f32 %v6102, %v6260
        %v6307 = vadd.f32 %v6103, %v6265
        %v6308 = vadd.f32 %v6104, %v6268
        %v6309 = vadd.f32 %v6105, %v6273
        %v6310 = vadd.f32 %v6106, %v6276
        %s6311 = scalar_lea.vmem %s9, 10
        %v6312 = vld [vmem:[%s6311] sm:$0x1]
        %v6313 = vsel %vm3890, %v3719, 0
        %v6316 = vsel %vm3685, %v6312, 0
        %6318 = vmatprep.subr.bf16.mxu0 0
        %6319 = vmatpush1.bf16.msra.mxu0 0
        %6320 = vmatprep.subr.bf16.mxu0 0
        %6321 = vmatpush1.bf16.msra.mxu0 0
        %6322 = vmatprep.subr.bf16.mxu0 0
        %6323 = vmatpush1.bf16.msra.mxu0 0
        %6324 = vmatprep.subr.bf16.mxu0 0
        %6325 = vmatpush1.bf16.msra.mxu0 0
        %6326 = vmatprep.subr.bf16.mxu0 0
        %6327 = vmatpush1.bf16.msra.mxu0 0
        %6328 = vmatprep.subr.bf16.mxu0 0
        %6329 = vmatpush1.bf16.msra.mxu0 0
        %6330 = vmatprep.subr.bf16.mxu0 0
        %6331 = vmatpush1.bf16.msra.mxu0 0
        %6332 = vmatprep.subr.bf16.mxu0 0
        %6333 = vmatpush1.bf16.msra.mxu0 %v6316
        %6334 = vmatprep.subr.bf16.mxu0 0
        %6335 = vmatpush2.bf16.msra.mxu0 0
        %6336 = vmatprep.subr.bf16.mxu0 0
        %6337 = vmatpush2.bf16.msra.mxu0 0
        %6338 = vmatprep.subr.bf16.mxu0 0
        %6339 = vmatpush2.bf16.msra.mxu0 0
        %6340 = vmatprep.subr.bf16.mxu0 0
        %6341 = vmatpush2.bf16.msra.mxu0 0
        %6342 = vmatprep.subr.bf16.mxu0 0
        %6343 = vmatpush2.bf16.msra.mxu0 0
        %6344 = vmatprep.subr.bf16.mxu0 0
        %6345 = vmatpush2.bf16.msra.mxu0 0
        %6346 = vmatprep.subr.bf16.mxu0 0
        %6347 = vmatpush2.bf16.msra.mxu0 0
        %6348 = vmatprep.subr.bf16.mxu0 0
        %6349 = vmatpush2.bf16.msra.mxu0 0
        %6350 = vmatprep.mubr.bf16.mxu0 0
        %6351 = vmatmul.mubr.bf16.gmra.mxu0 %v4102
        %v6352 = vpop.f32.mrf.mxu0
        %v6353 = vadd.f32 0.0, %v6352
        %v6354 = vpop.f32.mrf.mxu0
        %v6355 = vpop.f32.mrf.mxu0
        %v6356 = vadd.f32 0.0, %v6355
        %v6357 = vpop.f32.mrf.mxu0
        %6358 = vmatprep.mubr.bf16.mxu0 0
        %6359 = vmatmul.mubr.bf16.gmra.mxu0 %v4104
        %v6360 = vpop.f32.mrf.mxu0
        %v6361 = vadd.f32 0.0, %v6360
        %v6362 = vpop.f32.mrf.mxu0
        %v6363 = vpop.f32.mrf.mxu0
        %v6364 = vadd.f32 0.0, %v6363
        %v6365 = vpop.f32.mrf.mxu0
        %6366 = vmatprep.mubr.bf16.mxu0 0
        %6367 = vmatmul.mubr.bf16.gmra.mxu0 %v4106
        %v6368 = vpop.f32.mrf.mxu0
        %v6369 = vadd.f32 0.0, %v6368
        %v6370 = vpop.f32.mrf.mxu0
        %v6371 = vpop.f32.mrf.mxu0
        %v6372 = vadd.f32 0.0, %v6371
        %v6373 = vpop.f32.mrf.mxu0
        %6374 = vmatprep.mubr.bf16.mxu0 0
        %6375 = vmatmul.mubr.bf16.gmra.mxu0 %v4108
        %v6376 = vpop.f32.mrf.mxu0
        %v6377 = vadd.f32 0.0, %v6376
        %v6378 = vpop.f32.mrf.mxu0
        %v6379 = vpop.f32.mrf.mxu0
        %v6380 = vadd.f32 0.0, %v6379
        %v6381 = vpop.f32.mrf.mxu0
        %6382 = vmatprep.mubr.bf16.mxu0 0
        %6383 = vmatmul.mubr.bf16.gmra.mxu0 %v4110
        %v6384 = vpop.f32.mrf.mxu0
        %v6385 = vadd.f32 0.0, %v6384
        %v6386 = vpop.f32.mrf.mxu0
        %v6387 = vpop.f32.mrf.mxu0
        %v6388 = vadd.f32 0.0, %v6387
        %v6389 = vpop.f32.mrf.mxu0
        %6390 = vmatprep.mubr.bf16.mxu0 0
        %6391 = vmatmul.mubr.bf16.gmra.mxu0 %v4112
        %v6392 = vpop.f32.mrf.mxu0
        %v6393 = vadd.f32 0.0, %v6392
        %v6394 = vpop.f32.mrf.mxu0
        %v6395 = vpop.f32.mrf.mxu0
        %v6396 = vadd.f32 0.0, %v6395
        %v6397 = vpop.f32.mrf.mxu0
        %6398 = vmatprep.mubr.bf16.mxu0 0
        %6399 = vmatmul.mubr.bf16.gmra.mxu0 %v4114
        %v6400 = vpop.f32.mrf.mxu0
        %v6401 = vadd.f32 0.0, %v6400
        %v6402 = vpop.f32.mrf.mxu0
        %v6403 = vpop.f32.mrf.mxu0
        %v6404 = vadd.f32 0.0, %v6403
        %v6405 = vpop.f32.mrf.mxu0
        %6406 = vmatprep.mubr.bf16.mxu0 0
        %6407 = vmatmul.mubr.bf16.gmra.mxu0 %v4116
        %v6408 = vpop.f32.mrf.mxu0
        %v6409 = vadd.f32 0.0, %v6408
        %v6410 = vpop.f32.mrf.mxu0
        %v6411 = vpop.f32.mrf.mxu0
        %v6412 = vadd.f32 0.0, %v6411
        %v6413 = vpop.f32.mrf.mxu0
        %6414 = vmatprep.mubr.bf16.mxu0 0
        %6415 = vmatmul.mubr.bf16.gmra.mxu0 %v4118
        %v6416 = vpop.f32.mrf.mxu0
        %v6417 = vadd.f32 0.0, %v6416
        %v6418 = vpop.f32.mrf.mxu0
        %v6419 = vpop.f32.mrf.mxu0
        %v6420 = vadd.f32 0.0, %v6419
        %v6421 = vpop.f32.mrf.mxu0
        %6422 = vmatprep.mubr.bf16.mxu0 0
        %6423 = vmatmul.mubr.bf16.gmra.mxu0 %v4120
        %v6424 = vpop.f32.mrf.mxu0
        %v6425 = vadd.f32 0.0, %v6424
        %v6426 = vpop.f32.mrf.mxu0
        %v6427 = vpop.f32.mrf.mxu0
        %v6428 = vadd.f32 0.0, %v6427
        %v6429 = vpop.f32.mrf.mxu0
        %6430 = vmatprep.mubr.bf16.mxu0 0
        %6431 = vmatmul.mubr.bf16.gmra.mxu0 %v4122
        %v6432 = vpop.f32.mrf.mxu0
        %v6433 = vadd.f32 0.0, %v6432
        %v6434 = vpop.f32.mrf.mxu0
        %v6435 = vpop.f32.mrf.mxu0
        %v6436 = vadd.f32 0.0, %v6435
        %v6437 = vpop.f32.mrf.mxu0
        %6438 = vmatprep.mubr.bf16.mxu0 0
        %6439 = vmatmul.mubr.bf16.gmra.mxu0 %v4124
        %v6440 = vpop.f32.mrf.mxu0
        %v6441 = vadd.f32 0.0, %v6440
        %v6442 = vpop.f32.mrf.mxu0
        %v6443 = vpop.f32.mrf.mxu0
        %v6444 = vadd.f32 0.0, %v6443
        %v6445 = vpop.f32.mrf.mxu0
        %6446 = vmatprep.mubr.bf16.mxu0 0
        %6447 = vmatmul.mubr.bf16.gmra.mxu0 %v4126
        %v6448 = vpop.f32.mrf.mxu0
        %v6449 = vadd.f32 0.0, %v6448
        %v6450 = vpop.f32.mrf.mxu0
        %v6451 = vpop.f32.mrf.mxu0
        %v6452 = vadd.f32 0.0, %v6451
        %v6453 = vpop.f32.mrf.mxu0
        %6454 = vmatprep.mubr.bf16.mxu0 0
        %6455 = vmatmul.mubr.bf16.gmra.mxu0 %v4128
        %v6456 = vpop.f32.mrf.mxu0
        %v6457 = vadd.f32 0.0, %v6456
        %v6458 = vpop.f32.mrf.mxu0
        %v6459 = vpop.f32.mrf.mxu0
        %v6460 = vadd.f32 0.0, %v6459
        %v6461 = vpop.f32.mrf.mxu0
        %6462 = vmatprep.mubr.bf16.mxu0 0
        %6463 = vmatmul.mubr.bf16.gmra.mxu0 %v5282
        %v6464 = vpop.f32.mrf.mxu0
        %v6465 = vadd.f32 0.0, %v6464
        %v6466 = vpop.f32.mrf.mxu0
        %v6467 = vpop.f32.mrf.mxu0
        %v6468 = vadd.f32 0.0, %v6467
        %v6469 = vpop.f32.mrf.mxu0
        %6470 = vmatprep.mubr.bf16.mxu0 0
        %6471 = vmatmul.mubr.bf16.gmra.mxu0 %v6313
        %v6472 = vpop.f32.mrf.mxu0
        %v6473 = vadd.f32 0.0, %v6472
        %v6474 = vpop.f32.mrf.mxu0
        %v6475 = vpop.f32.mrf.mxu0
        %v6476 = vadd.f32 0.0, %v6475
        %v6477 = vpop.f32.mrf.mxu0
        %6478 = vdwg.mxu0
        %v6479 = vadd.f32 %v6279, %v6353
        %v6480 = vadd.f32 %v6280, %v6356
        %v6481 = vadd.f32 %v6281, %v6361
        %v6482 = vadd.f32 %v6282, %v6364
        %v6483 = vadd.f32 %v6283, %v6369
        %v6484 = vadd.f32 %v6284, %v6372
        %v6485 = vadd.f32 %v6285, %v6377
        %v6486 = vadd.f32 %v6286, %v6380
        %v6487 = vadd.f32 %v6287, %v6385
        %v6488 = vadd.f32 %v6288, %v6388
        %v6489 = vadd.f32 %v6289, %v6393
        %v6490 = vadd.f32 %v6290, %v6396
        %v6491 = vadd.f32 %v6291, %v6401
        %v6492 = vadd.f32 %v6292, %v6404
        %v6493 = vadd.f32 %v6293, %v6409
        %v6494 = vadd.f32 %v6294, %v6412
        %v6495 = vadd.f32 %v6295, %v6417
        %v6496 = vadd.f32 %v6296, %v6420
        %v6497 = vadd.f32 %v6297, %v6425
        %v6498 = vadd.f32 %v6298, %v6428
        %v6499 = vadd.f32 %v6299, %v6433
        %v6500 = vadd.f32 %v6300, %v6436
        %v6501 = vadd.f32 %v6301, %v6441
        %v6502 = vadd.f32 %v6302, %v6444
        %v6503 = vadd.f32 %v6303, %v6449
        %v6504 = vadd.f32 %v6304, %v6452
        %v6505 = vadd.f32 %v6305, %v6457
        %v6506 = vadd.f32 %v6306, %v6460
        %v6507 = vadd.f32 %v6307, %v6465
        %v6508 = vadd.f32 %v6308, %v6468
        %v6509 = vadd.f32 %v6309, %v6473
        %v6510 = vadd.f32 %v6310, %v6476
        %v6511 = vshrl.u32 %v3719, 16
        %v6513 = vshll.u32 %v3719, 16
        %v6515 = vrot.slane %v6513, 1
        %v6516 = vor.u32 %v6511, %v6515
        %v6517 = vshll.u32 %v3736, 16
        %v6519 = vrot.slane %v6517, 1
        %v6520 = vsel %vm1217, %v6516, %v6519
        %s6521 = scalar_lea.vmem %s9, 11
        %v6522 = vld [vmem:[%s6521] sm:$0x1]
        %v6524 = vsel %vm3890, %v6520, 0
        %v6527 = vsel %vm3685, %v6522, 0
        %6529 = vmatprep.subr.bf16.mxu0 0
        %6530 = vmatpush1.bf16.msra.mxu0 0
        %6531 = vmatprep.subr.bf16.mxu0 0
        %6532 = vmatpush1.bf16.msra.mxu0 0
        %6533 = vmatprep.subr.bf16.mxu0 0
        %6534 = vmatpush1.bf16.msra.mxu0 0
        %6535 = vmatprep.subr.bf16.mxu0 0
        %6536 = vmatpush1.bf16.msra.mxu0 0
        %6537 = vmatprep.subr.bf16.mxu0 0
        %6538 = vmatpush1.bf16.msra.mxu0 0
        %6539 = vmatprep.subr.bf16.mxu0 0
        %6540 = vmatpush1.bf16.msra.mxu0 0
        %6541 = vmatprep.subr.bf16.mxu0 0
        %6542 = vmatpush1.bf16.msra.mxu0 0
        %6543 = vmatprep.subr.bf16.mxu0 0
        %6544 = vmatpush1.bf16.msra.mxu0 %v6527
        %6545 = vmatprep.subr.bf16.mxu0 0
        %6546 = vmatpush2.bf16.msra.mxu0 0
        %6547 = vmatprep.subr.bf16.mxu0 0
        %6548 = vmatpush2.bf16.msra.mxu0 0
        %6549 = vmatprep.subr.bf16.mxu0 0
        %6550 = vmatpush2.bf16.msra.mxu0 0
        %6551 = vmatprep.subr.bf16.mxu0 0
        %6552 = vmatpush2.bf16.msra.mxu0 0
        %6553 = vmatprep.subr.bf16.mxu0 0
        %6554 = vmatpush2.bf16.msra.mxu0 0
        %6555 = vmatprep.subr.bf16.mxu0 0
        %6556 = vmatpush2.bf16.msra.mxu0 0
        %6557 = vmatprep.subr.bf16.mxu0 0
        %6558 = vmatpush2.bf16.msra.mxu0 0
        %6559 = vmatprep.subr.bf16.mxu0 0
        %6560 = vmatpush2.bf16.msra.mxu0 0
        %6561 = vmatprep.mubr.bf16.mxu0 0
        %6562 = vmatmul.mubr.bf16.gmra.mxu0 %v3895
        %v6563 = vpop.f32.mrf.mxu0
        %v6564 = vadd.f32 0.0, %v6563
        %v6565 = vpop.f32.mrf.mxu0
        %v6566 = vpop.f32.mrf.mxu0
        %v6567 = vadd.f32 0.0, %v6566
        %v6568 = vpop.f32.mrf.mxu0
        %6569 = vmatprep.mubr.bf16.mxu0 0
        %6570 = vmatmul.mubr.bf16.gmra.mxu0 %v3898
        %v6571 = vpop.f32.mrf.mxu0
        %v6572 = vadd.f32 0.0, %v6571
        %v6573 = vpop.f32.mrf.mxu0
        %v6574 = vpop.f32.mrf.mxu0
        %v6575 = vadd.f32 0.0, %v6574
        %v6576 = vpop.f32.mrf.mxu0
        %6577 = vmatprep.mubr.bf16.mxu0 0
        %6578 = vmatmul.mubr.bf16.gmra.mxu0 %v3901
        %v6579 = vpop.f32.mrf.mxu0
        %v6580 = vadd.f32 0.0, %v6579
        %v6581 = vpop.f32.mrf.mxu0
        %v6582 = vpop.f32.mrf.mxu0
        %v6583 = vadd.f32 0.0, %v6582
        %v6584 = vpop.f32.mrf.mxu0
        %6585 = vmatprep.mubr.bf16.mxu0 0
        %6586 = vmatmul.mubr.bf16.gmra.mxu0 %v3904
        %v6587 = vpop.f32.mrf.mxu0
        %v6588 = vadd.f32 0.0, %v6587
        %v6589 = vpop.f32.mrf.mxu0
        %v6590 = vpop.f32.mrf.mxu0
        %v6591 = vadd.f32 0.0, %v6590
        %v6592 = vpop.f32.mrf.mxu0
        %6593 = vmatprep.mubr.bf16.mxu0 0
        %6594 = vmatmul.mubr.bf16.gmra.mxu0 %v3907
        %v6595 = vpop.f32.mrf.mxu0
        %v6596 = vadd.f32 0.0, %v6595
        %v6597 = vpop.f32.mrf.mxu0
        %v6598 = vpop.f32.mrf.mxu0
        %v6599 = vadd.f32 0.0, %v6598
        %v6600 = vpop.f32.mrf.mxu0
        %6601 = vmatprep.mubr.bf16.mxu0 0
        %6602 = vmatmul.mubr.bf16.gmra.mxu0 %v3910
        %v6603 = vpop.f32.mrf.mxu0
        %v6604 = vadd.f32 0.0, %v6603
        %v6605 = vpop.f32.mrf.mxu0
        %v6606 = vpop.f32.mrf.mxu0
        %v6607 = vadd.f32 0.0, %v6606
        %v6608 = vpop.f32.mrf.mxu0
        %6609 = vmatprep.mubr.bf16.mxu0 0
        %6610 = vmatmul.mubr.bf16.gmra.mxu0 %v3913
        %v6611 = vpop.f32.mrf.mxu0
        %v6612 = vadd.f32 0.0, %v6611
        %v6613 = vpop.f32.mrf.mxu0
        %v6614 = vpop.f32.mrf.mxu0
        %v6615 = vadd.f32 0.0, %v6614
        %v6616 = vpop.f32.mrf.mxu0
        %6617 = vmatprep.mubr.bf16.mxu0 0
        %6618 = vmatmul.mubr.bf16.gmra.mxu0 %v3916
        %v6619 = vpop.f32.mrf.mxu0
        %v6620 = vadd.f32 0.0, %v6619
        %v6621 = vpop.f32.mrf.mxu0
        %v6622 = vpop.f32.mrf.mxu0
        %v6623 = vadd.f32 0.0, %v6622
        %v6624 = vpop.f32.mrf.mxu0
        %6625 = vmatprep.mubr.bf16.mxu0 0
        %6626 = vmatmul.mubr.bf16.gmra.mxu0 %v3919
        %v6627 = vpop.f32.mrf.mxu0
        %v6628 = vadd.f32 0.0, %v6627
        %v6629 = vpop.f32.mrf.mxu0
        %v6630 = vpop.f32.mrf.mxu0
        %v6631 = vadd.f32 0.0, %v6630
        %v6632 = vpop.f32.mrf.mxu0
        %6633 = vmatprep.mubr.bf16.mxu0 0
        %6634 = vmatmul.mubr.bf16.gmra.mxu0 %v3922
        %v6635 = vpop.f32.mrf.mxu0
        %v6636 = vadd.f32 0.0, %v6635
        %v6637 = vpop.f32.mrf.mxu0
        %v6638 = vpop.f32.mrf.mxu0
        %v6639 = vadd.f32 0.0, %v6638
        %v6640 = vpop.f32.mrf.mxu0
        %6641 = vmatprep.mubr.bf16.mxu0 0
        %6642 = vmatmul.mubr.bf16.gmra.mxu0 %v3925
        %v6643 = vpop.f32.mrf.mxu0
        %v6644 = vadd.f32 0.0, %v6643
        %v6645 = vpop.f32.mrf.mxu0
        %v6646 = vpop.f32.mrf.mxu0
        %v6647 = vadd.f32 0.0, %v6646
        %v6648 = vpop.f32.mrf.mxu0
        %6649 = vmatprep.mubr.bf16.mxu0 0
        %6650 = vmatmul.mubr.bf16.gmra.mxu0 %v3928
        %v6651 = vpop.f32.mrf.mxu0
        %v6652 = vadd.f32 0.0, %v6651
        %v6653 = vpop.f32.mrf.mxu0
        %v6654 = vpop.f32.mrf.mxu0
        %v6655 = vadd.f32 0.0, %v6654
        %v6656 = vpop.f32.mrf.mxu0
        %6657 = vmatprep.mubr.bf16.mxu0 0
        %6658 = vmatmul.mubr.bf16.gmra.mxu0 %v3931
        %v6659 = vpop.f32.mrf.mxu0
        %v6660 = vadd.f32 0.0, %v6659
        %v6661 = vpop.f32.mrf.mxu0
        %v6662 = vpop.f32.mrf.mxu0
        %v6663 = vadd.f32 0.0, %v6662
        %v6664 = vpop.f32.mrf.mxu0
        %6665 = vmatprep.mubr.bf16.mxu0 0
        %6666 = vmatmul.mubr.bf16.gmra.mxu0 %v3934
        %v6667 = vpop.f32.mrf.mxu0
        %v6668 = vadd.f32 0.0, %v6667
        %v6669 = vpop.f32.mrf.mxu0
        %v6670 = vpop.f32.mrf.mxu0
        %v6671 = vadd.f32 0.0, %v6670
        %v6672 = vpop.f32.mrf.mxu0
        %6673 = vmatprep.mubr.bf16.mxu0 0
        %6674 = vmatmul.mubr.bf16.gmra.mxu0 %v5493
        %v6675 = vpop.f32.mrf.mxu0
        %v6676 = vadd.f32 0.0, %v6675
        %v6677 = vpop.f32.mrf.mxu0
        %v6678 = vpop.f32.mrf.mxu0
        %v6679 = vadd.f32 0.0, %v6678
        %v6680 = vpop.f32.mrf.mxu0
        %6681 = vmatprep.mubr.bf16.mxu0 0
        %6682 = vmatmul.mubr.bf16.gmra.mxu0 %v6524
        %v6683 = vpop.f32.mrf.mxu0
        %v6684 = vadd.f32 0.0, %v6683
        %v6685 = vpop.f32.mrf.mxu0
        %v6686 = vpop.f32.mrf.mxu0
        %v6687 = vadd.f32 0.0, %v6686
        %v6688 = vpop.f32.mrf.mxu0
        %6689 = vdwg.mxu0
        %v6690 = vadd.f32 %v6479, %v6564
        %v6691 = vadd.f32 %v6480, %v6567
        %v6692 = vadd.f32 %v6481, %v6572
        %v6693 = vadd.f32 %v6482, %v6575
        %v6694 = vadd.f32 %v6483, %v6580
        %v6695 = vadd.f32 %v6484, %v6583
        %v6696 = vadd.f32 %v6485, %v6588
        %v6697 = vadd.f32 %v6486, %v6591
        %v6698 = vadd.f32 %v6487, %v6596
        %v6699 = vadd.f32 %v6488, %v6599
        %v6700 = vadd.f32 %v6489, %v6604
        %v6701 = vadd.f32 %v6490, %v6607
        %v6702 = vadd.f32 %v6491, %v6612
        %v6703 = vadd.f32 %v6492, %v6615
        %v6704 = vadd.f32 %v6493, %v6620
        %v6705 = vadd.f32 %v6494, %v6623
        %v6706 = vadd.f32 %v6495, %v6628
        %v6707 = vadd.f32 %v6496, %v6631
        %v6708 = vadd.f32 %v6497, %v6636
        %v6709 = vadd.f32 %v6498, %v6639
        %v6710 = vadd.f32 %v6499, %v6644
        %v6711 = vadd.f32 %v6500, %v6647
        %v6712 = vadd.f32 %v6501, %v6652
        %v6713 = vadd.f32 %v6502, %v6655
        %v6714 = vadd.f32 %v6503, %v6660
        %v6715 = vadd.f32 %v6504, %v6663
        %v6716 = vadd.f32 %v6505, %v6668
        %v6717 = vadd.f32 %v6506, %v6671
        %v6718 = vadd.f32 %v6507, %v6676
        %v6719 = vadd.f32 %v6508, %v6679
        %v6720 = vadd.f32 %v6509, %v6684
        %v6721 = vadd.f32 %v6510, %v6687
        %v6724 = vrot.slane %v3719, 1
        %v6725 = vrot.slane %v3736, 1
        %v6726 = vsel %vm1852, %v6724, %v6725
        %s6727 = scalar_lea.vmem %s9, 12
        %v6728 = vld [vmem:[%s6727] sm:$0x1]
        %v6730 = vsel %vm3890, %v6726, 0
        %v6733 = vsel %vm3685, %v6728, 0
        %6735 = vmatprep.subr.bf16.mxu0 0
        %6736 = vmatpush1.bf16.msra.mxu0 0
        %6737 = vmatprep.subr.bf16.mxu0 0
        %6738 = vmatpush1.bf16.msra.mxu0 0
        %6739 = vmatprep.subr.bf16.mxu0 0
        %6740 = vmatpush1.bf16.msra.mxu0 0
        %6741 = vmatprep.subr.bf16.mxu0 0
        %6742 = vmatpush1.bf16.msra.mxu0 0
        %6743 = vmatprep.subr.bf16.mxu0 0
        %6744 = vmatpush1.bf16.msra.mxu0 0
        %6745 = vmatprep.subr.bf16.mxu0 0
        %6746 = vmatpush1.bf16.msra.mxu0 0
        %6747 = vmatprep.subr.bf16.mxu0 0
        %6748 = vmatpush1.bf16.msra.mxu0 0
        %6749 = vmatprep.subr.bf16.mxu0 0
        %6750 = vmatpush1.bf16.msra.mxu0 %v6733
        %6751 = vmatprep.subr.bf16.mxu0 0
        %6752 = vmatpush2.bf16.msra.mxu0 0
        %6753 = vmatprep.subr.bf16.mxu0 0
        %6754 = vmatpush2.bf16.msra.mxu0 0
        %6755 = vmatprep.subr.bf16.mxu0 0
        %6756 = vmatpush2.bf16.msra.mxu0 0
        %6757 = vmatprep.subr.bf16.mxu0 0
        %6758 = vmatpush2.bf16.msra.mxu0 0
        %6759 = vmatprep.subr.bf16.mxu0 0
        %6760 = vmatpush2.bf16.msra.mxu0 0
        %6761 = vmatprep.subr.bf16.mxu0 0
        %6762 = vmatpush2.bf16.msra.mxu0 0
        %6763 = vmatprep.subr.bf16.mxu0 0
        %6764 = vmatpush2.bf16.msra.mxu0 0
        %6765 = vmatprep.subr.bf16.mxu0 0
        %6766 = vmatpush2.bf16.msra.mxu0 0
        %6767 = vmatprep.mubr.bf16.mxu0 0
        %6768 = vmatmul.mubr.bf16.gmra.mxu0 %v4375
        %v6769 = vpop.f32.mrf.mxu0
        %v6770 = vadd.f32 0.0, %v6769
        %v6771 = vpop.f32.mrf.mxu0
        %v6772 = vpop.f32.mrf.mxu0
        %v6773 = vadd.f32 0.0, %v6772
        %v6774 = vpop.f32.mrf.mxu0
        %6775 = vmatprep.mubr.bf16.mxu0 0
        %6776 = vmatmul.mubr.bf16.gmra.mxu0 %v4378
        %v6777 = vpop.f32.mrf.mxu0
        %v6778 = vadd.f32 0.0, %v6777
        %v6779 = vpop.f32.mrf.mxu0
        %v6780 = vpop.f32.mrf.mxu0
        %v6781 = vadd.f32 0.0, %v6780
        %v6782 = vpop.f32.mrf.mxu0
        %6783 = vmatprep.mubr.bf16.mxu0 0
        %6784 = vmatmul.mubr.bf16.gmra.mxu0 %v4381
        %v6785 = vpop.f32.mrf.mxu0
        %v6786 = vadd.f32 0.0, %v6785
        %v6787 = vpop.f32.mrf.mxu0
        %v6788 = vpop.f32.mrf.mxu0
        %v6789 = vadd.f32 0.0, %v6788
        %v6790 = vpop.f32.mrf.mxu0
        %6791 = vmatprep.mubr.bf16.mxu0 0
        %6792 = vmatmul.mubr.bf16.gmra.mxu0 %v4384
        %v6793 = vpop.f32.mrf.mxu0
        %v6794 = vadd.f32 0.0, %v6793
        %v6795 = vpop.f32.mrf.mxu0
        %v6796 = vpop.f32.mrf.mxu0
        %v6797 = vadd.f32 0.0, %v6796
        %v6798 = vpop.f32.mrf.mxu0
        %6799 = vmatprep.mubr.bf16.mxu0 0
        %6800 = vmatmul.mubr.bf16.gmra.mxu0 %v4387
        %v6801 = vpop.f32.mrf.mxu0
        %v6802 = vadd.f32 0.0, %v6801
        %v6803 = vpop.f32.mrf.mxu0
        %v6804 = vpop.f32.mrf.mxu0
        %v6805 = vadd.f32 0.0, %v6804
        %v6806 = vpop.f32.mrf.mxu0
        %6807 = vmatprep.mubr.bf16.mxu0 0
        %6808 = vmatmul.mubr.bf16.gmra.mxu0 %v4390
        %v6809 = vpop.f32.mrf.mxu0
        %v6810 = vadd.f32 0.0, %v6809
        %v6811 = vpop.f32.mrf.mxu0
        %v6812 = vpop.f32.mrf.mxu0
        %v6813 = vadd.f32 0.0, %v6812
        %v6814 = vpop.f32.mrf.mxu0
        %6815 = vmatprep.mubr.bf16.mxu0 0
        %6816 = vmatmul.mubr.bf16.gmra.mxu0 %v4393
        %v6817 = vpop.f32.mrf.mxu0
        %v6818 = vadd.f32 0.0, %v6817
        %v6819 = vpop.f32.mrf.mxu0
        %v6820 = vpop.f32.mrf.mxu0
        %v6821 = vadd.f32 0.0, %v6820
        %v6822 = vpop.f32.mrf.mxu0
        %6823 = vmatprep.mubr.bf16.mxu0 0
        %6824 = vmatmul.mubr.bf16.gmra.mxu0 %v4396
        %v6825 = vpop.f32.mrf.mxu0
        %v6826 = vadd.f32 0.0, %v6825
        %v6827 = vpop.f32.mrf.mxu0
        %v6828 = vpop.f32.mrf.mxu0
        %v6829 = vadd.f32 0.0, %v6828
        %v6830 = vpop.f32.mrf.mxu0
        %6831 = vmatprep.mubr.bf16.mxu0 0
        %6832 = vmatmul.mubr.bf16.gmra.mxu0 %v4399
        %v6833 = vpop.f32.mrf.mxu0
        %v6834 = vadd.f32 0.0, %v6833
        %v6835 = vpop.f32.mrf.mxu0
        %v6836 = vpop.f32.mrf.mxu0
        %v6837 = vadd.f32 0.0, %v6836
        %v6838 = vpop.f32.mrf.mxu0
        %6839 = vmatprep.mubr.bf16.mxu0 0
        %6840 = vmatmul.mubr.bf16.gmra.mxu0 %v4402
        %v6841 = vpop.f32.mrf.mxu0
        %v6842 = vadd.f32 0.0, %v6841
        %v6843 = vpop.f32.mrf.mxu0
        %v6844 = vpop.f32.mrf.mxu0
        %v6845 = vadd.f32 0.0, %v6844
        %v6846 = vpop.f32.mrf.mxu0
        %6847 = vmatprep.mubr.bf16.mxu0 0
        %6848 = vmatmul.mubr.bf16.gmra.mxu0 %v4405
        %v6849 = vpop.f32.mrf.mxu0
        %v6850 = vadd.f32 0.0, %v6849
        %v6851 = vpop.f32.mrf.mxu0
        %v6852 = vpop.f32.mrf.mxu0
        %v6853 = vadd.f32 0.0, %v6852
        %v6854 = vpop.f32.mrf.mxu0
        %6855 = vmatprep.mubr.bf16.mxu0 0
        %6856 = vmatmul.mubr.bf16.gmra.mxu0 %v4408
        %v6857 = vpop.f32.mrf.mxu0
        %v6858 = vadd.f32 0.0, %v6857
        %v6859 = vpop.f32.mrf.mxu0
        %v6860 = vpop.f32.mrf.mxu0
        %v6861 = vadd.f32 0.0, %v6860
        %v6862 = vpop.f32.mrf.mxu0
        %6863 = vmatprep.mubr.bf16.mxu0 0
        %6864 = vmatmul.mubr.bf16.gmra.mxu0 %v4411
        %v6865 = vpop.f32.mrf.mxu0
        %v6866 = vadd.f32 0.0, %v6865
        %v6867 = vpop.f32.mrf.mxu0
        %v6868 = vpop.f32.mrf.mxu0
        %v6869 = vadd.f32 0.0, %v6868
        %v6870 = vpop.f32.mrf.mxu0
        %6871 = vmatprep.mubr.bf16.mxu0 0
        %6872 = vmatmul.mubr.bf16.gmra.mxu0 %v4414
        %v6873 = vpop.f32.mrf.mxu0
        %v6874 = vadd.f32 0.0, %v6873
        %v6875 = vpop.f32.mrf.mxu0
        %v6876 = vpop.f32.mrf.mxu0
        %v6877 = vadd.f32 0.0, %v6876
        %v6878 = vpop.f32.mrf.mxu0
        %6879 = vmatprep.mubr.bf16.mxu0 0
        %6880 = vmatmul.mubr.bf16.gmra.mxu0 %v5699
        %v6881 = vpop.f32.mrf.mxu0
        %v6882 = vadd.f32 0.0, %v6881
        %v6883 = vpop.f32.mrf.mxu0
        %v6884 = vpop.f32.mrf.mxu0
        %v6885 = vadd.f32 0.0, %v6884
        %v6886 = vpop.f32.mrf.mxu0
        %6887 = vmatprep.mubr.bf16.mxu0 0
        %6888 = vmatmul.mubr.bf16.gmra.mxu0 %v6730
        %v6889 = vpop.f32.mrf.mxu0
        %v6890 = vadd.f32 0.0, %v6889
        %v6891 = vpop.f32.mrf.mxu0
        %v6892 = vpop.f32.mrf.mxu0
        %v6893 = vadd.f32 0.0, %v6892
        %v6894 = vpop.f32.mrf.mxu0
        %6895 = vdwg.mxu0
        %v6896 = vadd.f32 %v6690, %v6770
        %v6897 = vadd.f32 %v6691, %v6773
        %v6898 = vadd.f32 %v6692, %v6778
        %v6899 = vadd.f32 %v6693, %v6781
        %v6900 = vadd.f32 %v6694, %v6786
        %v6901 = vadd.f32 %v6695, %v6789
        %v6902 = vadd.f32 %v6696, %v6794
        %v6903 = vadd.f32 %v6697, %v6797
        %v6904 = vadd.f32 %v6698, %v6802
        %v6905 = vadd.f32 %v6699, %v6805
        %v6906 = vadd.f32 %v6700, %v6810
        %v6907 = vadd.f32 %v6701, %v6813
        %v6908 = vadd.f32 %v6702, %v6818
        %v6909 = vadd.f32 %v6703, %v6821
        %v6910 = vadd.f32 %v6704, %v6826
        %v6911 = vadd.f32 %v6705, %v6829
        %v6912 = vadd.f32 %v6706, %v6834
        %v6913 = vadd.f32 %v6707, %v6837
        %v6914 = vadd.f32 %v6708, %v6842
        %v6915 = vadd.f32 %v6709, %v6845
        %v6916 = vadd.f32 %v6710, %v6850
        %v6917 = vadd.f32 %v6711, %v6853
        %v6918 = vadd.f32 %v6712, %v6858
        %v6919 = vadd.f32 %v6713, %v6861
        %v6920 = vadd.f32 %v6714, %v6866
        %v6921 = vadd.f32 %v6715, %v6869
        %v6922 = vadd.f32 %v6716, %v6874
        %v6923 = vadd.f32 %v6717, %v6877
        %v6924 = vadd.f32 %v6718, %v6882
        %v6925 = vadd.f32 %v6719, %v6885
        %v6926 = vadd.f32 %v6720, %v6890
        %v6927 = vadd.f32 %v6721, %v6893
        %v6928 = vrot.slane %v6511, 1
        %v6929 = vrot.slane %v6513, 2
        %v6930 = vor.u32 %v6928, %v6929
        %v6931 = vshrl.u32 %v3736, 16
        %v6933 = vrot.slane %v6931, 1
        %v6934 = vrot.slane %v6517, 2
        %v6935 = vor.u32 %v6933, %v6934
        %v6936 = vsel %vm4612, %v6930, %v6935
        %s6937 = scalar_lea.vmem %s9, 13
        %v6938 = vld [vmem:[%s6937] sm:$0x1]
        %v6940 = vsel %vm3890, %v6936, 0
        %v6943 = vsel %vm3685, %v6938, 0
        %6945 = vmatprep.subr.bf16.mxu0 0
        %6946 = vmatpush1.bf16.msra.mxu0 0
        %6947 = vmatprep.subr.bf16.mxu0 0
        %6948 = vmatpush1.bf16.msra.mxu0 0
        %6949 = vmatprep.subr.bf16.mxu0 0
        %6950 = vmatpush1.bf16.msra.mxu0 0
        %6951 = vmatprep.subr.bf16.mxu0 0
        %6952 = vmatpush1.bf16.msra.mxu0 0
        %6953 = vmatprep.subr.bf16.mxu0 0
        %6954 = vmatpush1.bf16.msra.mxu0 0
        %6955 = vmatprep.subr.bf16.mxu0 0
        %6956 = vmatpush1.bf16.msra.mxu0 0
        %6957 = vmatprep.subr.bf16.mxu0 0
        %6958 = vmatpush1.bf16.msra.mxu0 0
        %6959 = vmatprep.subr.bf16.mxu0 0
        %6960 = vmatpush1.bf16.msra.mxu0 %v6943
        %6961 = vmatprep.subr.bf16.mxu0 0
        %6962 = vmatpush2.bf16.msra.mxu0 0
        %6963 = vmatprep.subr.bf16.mxu0 0
        %6964 = vmatpush2.bf16.msra.mxu0 0
        %6965 = vmatprep.subr.bf16.mxu0 0
        %6966 = vmatpush2.bf16.msra.mxu0 0
        %6967 = vmatprep.subr.bf16.mxu0 0
        %6968 = vmatpush2.bf16.msra.mxu0 0
        %6969 = vmatprep.subr.bf16.mxu0 0
        %6970 = vmatpush2.bf16.msra.mxu0 0
        %6971 = vmatprep.subr.bf16.mxu0 0
        %6972 = vmatpush2.bf16.msra.mxu0 0
        %6973 = vmatprep.subr.bf16.mxu0 0
        %6974 = vmatpush2.bf16.msra.mxu0 0
        %6975 = vmatprep.subr.bf16.mxu0 0
        %6976 = vmatpush2.bf16.msra.mxu0 0
        %6977 = vmatprep.mubr.bf16.mxu0 0
        %6978 = vmatmul.mubr.bf16.gmra.mxu0 %v4754
        %v6979 = vpop.f32.mrf.mxu0
        %v6980 = vadd.f32 0.0, %v6979
        %v6981 = vpop.f32.mrf.mxu0
        %v6982 = vpop.f32.mrf.mxu0
        %v6983 = vadd.f32 0.0, %v6982
        %v6984 = vpop.f32.mrf.mxu0
        %6985 = vmatprep.mubr.bf16.mxu0 0
        %6986 = vmatmul.mubr.bf16.gmra.mxu0 %v4757
        %v6987 = vpop.f32.mrf.mxu0
        %v6988 = vadd.f32 0.0, %v6987
        %v6989 = vpop.f32.mrf.mxu0
        %v6990 = vpop.f32.mrf.mxu0
        %v6991 = vadd.f32 0.0, %v6990
        %v6992 = vpop.f32.mrf.mxu0
        %6993 = vmatprep.mubr.bf16.mxu0 0
        %6994 = vmatmul.mubr.bf16.gmra.mxu0 %v4760
        %v6995 = vpop.f32.mrf.mxu0
        %v6996 = vadd.f32 0.0, %v6995
        %v6997 = vpop.f32.mrf.mxu0
        %v6998 = vpop.f32.mrf.mxu0
        %v6999 = vadd.f32 0.0, %v6998
        %v7000 = vpop.f32.mrf.mxu0
        %7001 = vmatprep.mubr.bf16.mxu0 0
        %7002 = vmatmul.mubr.bf16.gmra.mxu0 %v4763
        %v7003 = vpop.f32.mrf.mxu0
        %v7004 = vadd.f32 0.0, %v7003
        %v7005 = vpop.f32.mrf.mxu0
        %v7006 = vpop.f32.mrf.mxu0
        %v7007 = vadd.f32 0.0, %v7006
        %v7008 = vpop.f32.mrf.mxu0
        %7009 = vmatprep.mubr.bf16.mxu0 0
        %7010 = vmatmul.mubr.bf16.gmra.mxu0 %v4766
        %v7011 = vpop.f32.mrf.mxu0
        %v7012 = vadd.f32 0.0, %v7011
        %v7013 = vpop.f32.mrf.mxu0
        %v7014 = vpop.f32.mrf.mxu0
        %v7015 = vadd.f32 0.0, %v7014
        %v7016 = vpop.f32.mrf.mxu0
        %7017 = vmatprep.mubr.bf16.mxu0 0
        %7018 = vmatmul.mubr.bf16.gmra.mxu0 %v4769
        %v7019 = vpop.f32.mrf.mxu0
        %v7020 = vadd.f32 0.0, %v7019
        %v7021 = vpop.f32.mrf.mxu0
        %v7022 = vpop.f32.mrf.mxu0
        %v7023 = vadd.f32 0.0, %v7022
        %v7024 = vpop.f32.mrf.mxu0
        %7025 = vmatprep.mubr.bf16.mxu0 0
        %7026 = vmatmul.mubr.bf16.gmra.mxu0 %v4772
        %v7027 = vpop.f32.mrf.mxu0
        %v7028 = vadd.f32 0.0, %v7027
        %v7029 = vpop.f32.mrf.mxu0
        %v7030 = vpop.f32.mrf.mxu0
        %v7031 = vadd.f32 0.0, %v7030
        %v7032 = vpop.f32.mrf.mxu0
        %7033 = vmatprep.mubr.bf16.mxu0 0
        %7034 = vmatmul.mubr.bf16.gmra.mxu0 %v4775
        %v7035 = vpop.f32.mrf.mxu0
        %v7036 = vadd.f32 0.0, %v7035
        %v7037 = vpop.f32.mrf.mxu0
        %v7038 = vpop.f32.mrf.mxu0
        %v7039 = vadd.f32 0.0, %v7038
        %v7040 = vpop.f32.mrf.mxu0
        %7041 = vmatprep.mubr.bf16.mxu0 0
        %7042 = vmatmul.mubr.bf16.gmra.mxu0 %v4778
        %v7043 = vpop.f32.mrf.mxu0
        %v7044 = vadd.f32 0.0, %v7043
        %v7045 = vpop.f32.mrf.mxu0
        %v7046 = vpop.f32.mrf.mxu0
        %v7047 = vadd.f32 0.0, %v7046
        %v7048 = vpop.f32.mrf.mxu0
        %7049 = vmatprep.mubr.bf16.mxu0 0
        %7050 = vmatmul.mubr.bf16.gmra.mxu0 %v4781
        %v7051 = vpop.f32.mrf.mxu0
        %v7052 = vadd.f32 0.0, %v7051
        %v7053 = vpop.f32.mrf.mxu0
        %v7054 = vpop.f32.mrf.mxu0
        %v7055 = vadd.f32 0.0, %v7054
        %v7056 = vpop.f32.mrf.mxu0
        %7057 = vmatprep.mubr.bf16.mxu0 0
        %7058 = vmatmul.mubr.bf16.gmra.mxu0 %v4784
        %v7059 = vpop.f32.mrf.mxu0
        %v7060 = vadd.f32 0.0, %v7059
        %v7061 = vpop.f32.mrf.mxu0
        %v7062 = vpop.f32.mrf.mxu0
        %v7063 = vadd.f32 0.0, %v7062
        %v7064 = vpop.f32.mrf.mxu0
        %7065 = vmatprep.mubr.bf16.mxu0 0
        %7066 = vmatmul.mubr.bf16.gmra.mxu0 %v4787
        %v7067 = vpop.f32.mrf.mxu0
        %v7068 = vadd.f32 0.0, %v7067
        %v7069 = vpop.f32.mrf.mxu0
        %v7070 = vpop.f32.mrf.mxu0
        %v7071 = vadd.f32 0.0, %v7070
        %v7072 = vpop.f32.mrf.mxu0
        %7073 = vmatprep.mubr.bf16.mxu0 0
        %7074 = vmatmul.mubr.bf16.gmra.mxu0 %v4790
        %v7075 = vpop.f32.mrf.mxu0
        %v7076 = vadd.f32 0.0, %v7075
        %v7077 = vpop.f32.mrf.mxu0
        %v7078 = vpop.f32.mrf.mxu0
        %v7079 = vadd.f32 0.0, %v7078
        %v7080 = vpop.f32.mrf.mxu0
        %7081 = vmatprep.mubr.bf16.mxu0 0
        %7082 = vmatmul.mubr.bf16.gmra.mxu0 %v4793
        %v7083 = vpop.f32.mrf.mxu0
        %v7084 = vadd.f32 0.0, %v7083
        %v7085 = vpop.f32.mrf.mxu0
        %v7086 = vpop.f32.mrf.mxu0
        %v7087 = vadd.f32 0.0, %v7086
        %v7088 = vpop.f32.mrf.mxu0
        %7089 = vmatprep.mubr.bf16.mxu0 0
        %7090 = vmatmul.mubr.bf16.gmra.mxu0 %v5909
        %v7091 = vpop.f32.mrf.mxu0
        %v7092 = vadd.f32 0.0, %v7091
        %v7093 = vpop.f32.mrf.mxu0
        %v7094 = vpop.f32.mrf.mxu0
        %v7095 = vadd.f32 0.0, %v7094
        %v7096 = vpop.f32.mrf.mxu0
        %7097 = vmatprep.mubr.bf16.mxu0 0
        %7098 = vmatmul.mubr.bf16.gmra.mxu0 %v6940
        %v7099 = vpop.f32.mrf.mxu0
        %v7100 = vadd.f32 0.0, %v7099
        %v7101 = vpop.f32.mrf.mxu0
        %v7102 = vpop.f32.mrf.mxu0
        %v7103 = vadd.f32 0.0, %v7102
        %v7104 = vpop.f32.mrf.mxu0
        %7105 = vdwg.mxu0
        %v7106 = vadd.f32 %v6896, %v6980
        %v7107 = vadd.f32 %v6897, %v6983
        %v7108 = vadd.f32 %v6898, %v6988
        %v7109 = vadd.f32 %v6899, %v6991
        %v7110 = vadd.f32 %v6900, %v6996
        %v7111 = vadd.f32 %v6901, %v6999
        %v7112 = vadd.f32 %v6902, %v7004
        %v7113 = vadd.f32 %v6903, %v7007
        %v7114 = vadd.f32 %v6904, %v7012
        %v7115 = vadd.f32 %v6905, %v7015
        %v7116 = vadd.f32 %v6906, %v7020
        %v7117 = vadd.f32 %v6907, %v7023
        %v7118 = vadd.f32 %v6908, %v7028
        %v7119 = vadd.f32 %v6909, %v7031
        %v7120 = vadd.f32 %v6910, %v7036
        %v7121 = vadd.f32 %v6911, %v7039
        %v7122 = vadd.f32 %v6912, %v7044
        %v7123 = vadd.f32 %v6913, %v7047
        %v7124 = vadd.f32 %v6914, %v7052
        %v7125 = vadd.f32 %v6915, %v7055
        %v7126 = vadd.f32 %v6916, %v7060
        %v7127 = vadd.f32 %v6917, %v7063
        %v7128 = vadd.f32 %v6918, %v7068
        %v7129 = vadd.f32 %v6919, %v7071
        %v7130 = vadd.f32 %v6920, %v7076
        %v7131 = vadd.f32 %v6921, %v7079
        %v7132 = vadd.f32 %v6922, %v7084
        %v7133 = vadd.f32 %v6923, %v7087
        %v7134 = vadd.f32 %v6924, %v7092
        %v7135 = vadd.f32 %v6925, %v7095
        %v7136 = vadd.f32 %v6926, %v7100
        %v7137 = vadd.f32 %v6927, %v7103
        %v7138 = vrot.slane %v3719, 2
        %v7139 = vrot.slane %v3736, 2
        %v7140 = vsel %vm4991, %v7138, %v7139
        %s7141 = scalar_lea.vmem %s9, 14
        %v7142 = vld [vmem:[%s7141] sm:$0x1]
        %v7144 = vsel %vm3890, %v7140, 0
        %v7147 = vsel %vm3685, %v7142, 0
        %7149 = vmatprep.subr.bf16.mxu0 0
        %7150 = vmatpush1.bf16.msra.mxu0 0
        %7151 = vmatprep.subr.bf16.mxu0 0
        %7152 = vmatpush1.bf16.msra.mxu0 0
        %7153 = vmatprep.subr.bf16.mxu0 0
        %7154 = vmatpush1.bf16.msra.mxu0 0
        %7155 = vmatprep.subr.bf16.mxu0 0
        %7156 = vmatpush1.bf16.msra.mxu0 0
        %7157 = vmatprep.subr.bf16.mxu0 0
        %7158 = vmatpush1.bf16.msra.mxu0 0
        %7159 = vmatprep.subr.bf16.mxu0 0
        %7160 = vmatpush1.bf16.msra.mxu0 0
        %7161 = vmatprep.subr.bf16.mxu0 0
        %7162 = vmatpush1.bf16.msra.mxu0 0
        %7163 = vmatprep.subr.bf16.mxu0 0
        %7164 = vmatpush1.bf16.msra.mxu0 %v7147
        %7165 = vmatprep.subr.bf16.mxu0 0
        %7166 = vmatpush2.bf16.msra.mxu0 0
        %7167 = vmatprep.subr.bf16.mxu0 0
        %7168 = vmatpush2.bf16.msra.mxu0 0
        %7169 = vmatprep.subr.bf16.mxu0 0
        %7170 = vmatpush2.bf16.msra.mxu0 0
        %7171 = vmatprep.subr.bf16.mxu0 0
        %7172 = vmatpush2.bf16.msra.mxu0 0
        %7173 = vmatprep.subr.bf16.mxu0 0
        %7174 = vmatpush2.bf16.msra.mxu0 0
        %7175 = vmatprep.subr.bf16.mxu0 0
        %7176 = vmatpush2.bf16.msra.mxu0 0
        %7177 = vmatprep.subr.bf16.mxu0 0
        %7178 = vmatpush2.bf16.msra.mxu0 0
        %7179 = vmatprep.subr.bf16.mxu0 0
        %7180 = vmatpush2.bf16.msra.mxu0 0
        %7181 = vmatprep.mubr.bf16.mxu0 0
        %7182 = vmatmul.mubr.bf16.gmra.mxu0 %v5043
        %v7183 = vpop.f32.mrf.mxu0
        %v7184 = vadd.f32 0.0, %v7183
        %v7185 = vpop.f32.mrf.mxu0
        %v7186 = vpop.f32.mrf.mxu0
        %v7187 = vadd.f32 0.0, %v7186
        %v7188 = vpop.f32.mrf.mxu0
        %7189 = vmatprep.mubr.bf16.mxu0 0
        %7190 = vmatmul.mubr.bf16.gmra.mxu0 %v5046
        %v7191 = vpop.f32.mrf.mxu0
        %v7192 = vadd.f32 0.0, %v7191
        %v7193 = vpop.f32.mrf.mxu0
        %v7194 = vpop.f32.mrf.mxu0
        %v7195 = vadd.f32 0.0, %v7194
        %v7196 = vpop.f32.mrf.mxu0
        %7197 = vmatprep.mubr.bf16.mxu0 0
        %7198 = vmatmul.mubr.bf16.gmra.mxu0 %v5049
        %v7199 = vpop.f32.mrf.mxu0
        %v7200 = vadd.f32 0.0, %v7199
        %v7201 = vpop.f32.mrf.mxu0
        %v7202 = vpop.f32.mrf.mxu0
        %v7203 = vadd.f32 0.0, %v7202
        %v7204 = vpop.f32.mrf.mxu0
        %7205 = vmatprep.mubr.bf16.mxu0 0
        %7206 = vmatmul.mubr.bf16.gmra.mxu0 %v5052
        %v7207 = vpop.f32.mrf.mxu0
        %v7208 = vadd.f32 0.0, %v7207
        %v7209 = vpop.f32.mrf.mxu0
        %v7210 = vpop.f32.mrf.mxu0
        %v7211 = vadd.f32 0.0, %v7210
        %v7212 = vpop.f32.mrf.mxu0
        %7213 = vmatprep.mubr.bf16.mxu0 0
        %7214 = vmatmul.mubr.bf16.gmra.mxu0 %v5055
        %v7215 = vpop.f32.mrf.mxu0
        %v7216 = vadd.f32 0.0, %v7215
        %v7217 = vpop.f32.mrf.mxu0
        %v7218 = vpop.f32.mrf.mxu0
        %v7219 = vadd.f32 0.0, %v7218
        %v7220 = vpop.f32.mrf.mxu0
        %7221 = vmatprep.mubr.bf16.mxu0 0
        %7222 = vmatmul.mubr.bf16.gmra.mxu0 %v5058
        %v7223 = vpop.f32.mrf.mxu0
        %v7224 = vadd.f32 0.0, %v7223
        %v7225 = vpop.f32.mrf.mxu0
        %v7226 = vpop.f32.mrf.mxu0
        %v7227 = vadd.f32 0.0, %v7226
        %v7228 = vpop.f32.mrf.mxu0
        %7229 = vmatprep.mubr.bf16.mxu0 0
        %7230 = vmatmul.mubr.bf16.gmra.mxu0 %v5061
        %v7231 = vpop.f32.mrf.mxu0
        %v7232 = vadd.f32 0.0, %v7231
        %v7233 = vpop.f32.mrf.mxu0
        %v7234 = vpop.f32.mrf.mxu0
        %v7235 = vadd.f32 0.0, %v7234
        %v7236 = vpop.f32.mrf.mxu0
        %7237 = vmatprep.mubr.bf16.mxu0 0
        %7238 = vmatmul.mubr.bf16.gmra.mxu0 %v5064
        %v7239 = vpop.f32.mrf.mxu0
        %v7240 = vadd.f32 0.0, %v7239
        %v7241 = vpop.f32.mrf.mxu0
        %v7242 = vpop.f32.mrf.mxu0
        %v7243 = vadd.f32 0.0, %v7242
        %v7244 = vpop.f32.mrf.mxu0
        %7245 = vmatprep.mubr.bf16.mxu0 0
        %7246 = vmatmul.mubr.bf16.gmra.mxu0 %v5067
        %v7247 = vpop.f32.mrf.mxu0
        %v7248 = vadd.f32 0.0, %v7247
        %v7249 = vpop.f32.mrf.mxu0
        %v7250 = vpop.f32.mrf.mxu0
        %v7251 = vadd.f32 0.0, %v7250
        %v7252 = vpop.f32.mrf.mxu0
        %7253 = vmatprep.mubr.bf16.mxu0 0
        %7254 = vmatmul.mubr.bf16.gmra.mxu0 %v5070
        %v7255 = vpop.f32.mrf.mxu0
        %v7256 = vadd.f32 0.0, %v7255
        %v7257 = vpop.f32.mrf.mxu0
        %v7258 = vpop.f32.mrf.mxu0
        %v7259 = vadd.f32 0.0, %v7258
        %v7260 = vpop.f32.mrf.mxu0
        %7261 = vmatprep.mubr.bf16.mxu0 0
        %7262 = vmatmul.mubr.bf16.gmra.mxu0 %v5073
        %v7263 = vpop.f32.mrf.mxu0
        %v7264 = vadd.f32 0.0, %v7263
        %v7265 = vpop.f32.mrf.mxu0
        %v7266 = vpop.f32.mrf.mxu0
        %v7267 = vadd.f32 0.0, %v7266
        %v7268 = vpop.f32.mrf.mxu0
        %7269 = vmatprep.mubr.bf16.mxu0 0
        %7270 = vmatmul.mubr.bf16.gmra.mxu0 %v5076
        %v7271 = vpop.f32.mrf.mxu0
        %v7272 = vadd.f32 0.0, %v7271
        %v7273 = vpop.f32.mrf.mxu0
        %v7274 = vpop.f32.mrf.mxu0
        %v7275 = vadd.f32 0.0, %v7274
        %v7276 = vpop.f32.mrf.mxu0
        %7277 = vmatprep.mubr.bf16.mxu0 0
        %7278 = vmatmul.mubr.bf16.gmra.mxu0 %v5079
        %v7279 = vpop.f32.mrf.mxu0
        %v7280 = vadd.f32 0.0, %v7279
        %v7281 = vpop.f32.mrf.mxu0
        %v7282 = vpop.f32.mrf.mxu0
        %v7283 = vadd.f32 0.0, %v7282
        %v7284 = vpop.f32.mrf.mxu0
        %7285 = vmatprep.mubr.bf16.mxu0 0
        %7286 = vmatmul.mubr.bf16.gmra.mxu0 %v5082
        %v7287 = vpop.f32.mrf.mxu0
        %v7288 = vadd.f32 0.0, %v7287
        %v7289 = vpop.f32.mrf.mxu0
        %v7290 = vpop.f32.mrf.mxu0
        %v7291 = vadd.f32 0.0, %v7290
        %v7292 = vpop.f32.mrf.mxu0
        %7293 = vmatprep.mubr.bf16.mxu0 0
        %7294 = vmatmul.mubr.bf16.gmra.mxu0 %v6113
        %v7295 = vpop.f32.mrf.mxu0
        %v7296 = vadd.f32 0.0, %v7295
        %v7297 = vpop.f32.mrf.mxu0
        %v7298 = vpop.f32.mrf.mxu0
        %v7299 = vadd.f32 0.0, %v7298
        %v7300 = vpop.f32.mrf.mxu0
        %7301 = vmatprep.mubr.bf16.mxu0 0
        %7302 = vmatmul.mubr.bf16.gmra.mxu0 %v7144
        %v7303 = vpop.f32.mrf.mxu0
        %v7304 = vadd.f32 0.0, %v7303
        %v7305 = vpop.f32.mrf.mxu0
        %v7306 = vpop.f32.mrf.mxu0
        %v7307 = vadd.f32 0.0, %v7306
        %v7308 = vpop.f32.mrf.mxu0
        %7309 = vdwg.mxu0
        %v7310 = vadd.f32 %v7106, %v7184
        %v7311 = vadd.f32 %v7107, %v7187
        %v7312 = vadd.f32 %v7108, %v7192
        %v7313 = vadd.f32 %v7109, %v7195
        %v7314 = vadd.f32 %v7110, %v7200
        %v7315 = vadd.f32 %v7111, %v7203
        %v7316 = vadd.f32 %v7112, %v7208
        %v7317 = vadd.f32 %v7113, %v7211
        %v7318 = vadd.f32 %v7114, %v7216
        %v7319 = vadd.f32 %v7115, %v7219
        %v7320 = vadd.f32 %v7116, %v7224
        %v7321 = vadd.f32 %v7117, %v7227
        %v7322 = vadd.f32 %v7118, %v7232
        %v7323 = vadd.f32 %v7119, %v7235
        %v7324 = vadd.f32 %v7120, %v7240
        %v7325 = vadd.f32 %v7121, %v7243
        %v7326 = vadd.f32 %v7122, %v7248
        %v7327 = vadd.f32 %v7123, %v7251
        %v7328 = vadd.f32 %v7124, %v7256
        %v7329 = vadd.f32 %v7125, %v7259
        %v7330 = vadd.f32 %v7126, %v7264
        %v7331 = vadd.f32 %v7127, %v7267
        %v7332 = vadd.f32 %v7128, %v7272
        %v7333 = vadd.f32 %v7129, %v7275
        %v7334 = vadd.f32 %v7130, %v7280
        %v7335 = vadd.f32 %v7131, %v7283
        %v7336 = vadd.f32 %v7132, %v7288
        %v7337 = vadd.f32 %v7133, %v7291
        %v7338 = vadd.f32 %v7134, %v7296
        %v7339 = vadd.f32 %v7135, %v7299
        %v7340 = vadd.f32 %v7136, %v7304
        %v7341 = vadd.f32 %v7137, %v7307
        %s7342 = scalar_lea.vmem %s9, 15
        %v7343 = vld [vmem:[%s7342] sm:$0x1]
        %v7345 = vsel %vm3685, %v7343, 0
        %7347 = vmatprep.subr.bf16.mxu0 0
        %7348 = vmatpush1.bf16.msra.mxu0 0
        %7349 = vmatprep.subr.bf16.mxu0 0
        %7350 = vmatpush1.bf16.msra.mxu0 0
        %7351 = vmatprep.subr.bf16.mxu0 0
        %7352 = vmatpush1.bf16.msra.mxu0 0
        %7353 = vmatprep.subr.bf16.mxu0 0
        %7354 = vmatpush1.bf16.msra.mxu0 0
        %7355 = vmatprep.subr.bf16.mxu0 0
        %7356 = vmatpush1.bf16.msra.mxu0 0
        %7357 = vmatprep.subr.bf16.mxu0 0
        %7358 = vmatpush1.bf16.msra.mxu0 0
        %7359 = vmatprep.subr.bf16.mxu0 0
        %7360 = vmatpush1.bf16.msra.mxu0 0
        %7361 = vmatprep.subr.bf16.mxu0 0
        %7362 = vmatpush1.bf16.msra.mxu0 %v7345
        %7363 = vmatprep.subr.bf16.mxu0 0
        %7364 = vmatpush2.bf16.msra.mxu0 0
        %7365 = vmatprep.subr.bf16.mxu0 0
        %7366 = vmatpush2.bf16.msra.mxu0 0
        %7367 = vmatprep.subr.bf16.mxu0 0
        %7368 = vmatpush2.bf16.msra.mxu0 0
        %7369 = vmatprep.subr.bf16.mxu0 0
        %7370 = vmatpush2.bf16.msra.mxu0 0
        %7371 = vmatprep.subr.bf16.mxu0 0
        %7372 = vmatpush2.bf16.msra.mxu0 0
        %7373 = vmatprep.subr.bf16.mxu0 0
        %7374 = vmatpush2.bf16.msra.mxu0 0
        %7375 = vmatprep.subr.bf16.mxu0 0
        %7376 = vmatpush2.bf16.msra.mxu0 0
        %7377 = vmatprep.subr.bf16.mxu0 0
        %7378 = vmatpush2.bf16.msra.mxu0 0
        %7379 = vmatprep.mubr.bf16.mxu0 0
        %7380 = vmatmul.mubr.bf16.gmra.mxu0 %v4104
        %v7381 = vpop.f32.mrf.mxu0
        %v7382 = vadd.f32 0.0, %v7381
        %v7383 = vpop.f32.mrf.mxu0
        %v7384 = vpop.f32.mrf.mxu0
        %v7385 = vadd.f32 0.0, %v7384
        %v7386 = vpop.f32.mrf.mxu0
        %7387 = vmatprep.mubr.bf16.mxu0 0
        %7388 = vmatmul.mubr.bf16.gmra.mxu0 %v4106
        %v7389 = vpop.f32.mrf.mxu0
        %v7390 = vadd.f32 0.0, %v7389
        %v7391 = vpop.f32.mrf.mxu0
        %v7392 = vpop.f32.mrf.mxu0
        %v7393 = vadd.f32 0.0, %v7392
        %v7394 = vpop.f32.mrf.mxu0
        %7395 = vmatprep.mubr.bf16.mxu0 0
        %7396 = vmatmul.mubr.bf16.gmra.mxu0 %v4108
        %v7397 = vpop.f32.mrf.mxu0
        %v7398 = vadd.f32 0.0, %v7397
        %v7399 = vpop.f32.mrf.mxu0
        %v7400 = vpop.f32.mrf.mxu0
        %v7401 = vadd.f32 0.0, %v7400
        %v7402 = vpop.f32.mrf.mxu0
        %7403 = vmatprep.mubr.bf16.mxu0 0
        %7404 = vmatmul.mubr.bf16.gmra.mxu0 %v4110
        %v7405 = vpop.f32.mrf.mxu0
        %v7406 = vadd.f32 0.0, %v7405
        %v7407 = vpop.f32.mrf.mxu0
        %v7408 = vpop.f32.mrf.mxu0
        %v7409 = vadd.f32 0.0, %v7408
        %v7410 = vpop.f32.mrf.mxu0
        %7411 = vmatprep.mubr.bf16.mxu0 0
        %7412 = vmatmul.mubr.bf16.gmra.mxu0 %v4112
        %v7413 = vpop.f32.mrf.mxu0
        %v7414 = vadd.f32 0.0, %v7413
        %v7415 = vpop.f32.mrf.mxu0
        %v7416 = vpop.f32.mrf.mxu0
        %v7417 = vadd.f32 0.0, %v7416
        %v7418 = vpop.f32.mrf.mxu0
        %7419 = vmatprep.mubr.bf16.mxu0 0
        %7420 = vmatmul.mubr.bf16.gmra.mxu0 %v4114
        %v7421 = vpop.f32.mrf.mxu0
        %v7422 = vadd.f32 0.0, %v7421
        %v7423 = vpop.f32.mrf.mxu0
        %v7424 = vpop.f32.mrf.mxu0
        %v7425 = vadd.f32 0.0, %v7424
        %v7426 = vpop.f32.mrf.mxu0
        %7427 = vmatprep.mubr.bf16.mxu0 0
        %7428 = vmatmul.mubr.bf16.gmra.mxu0 %v4116
        %v7429 = vpop.f32.mrf.mxu0
        %v7430 = vadd.f32 0.0, %v7429
        %v7431 = vpop.f32.mrf.mxu0
        %v7432 = vpop.f32.mrf.mxu0
        %v7433 = vadd.f32 0.0, %v7432
        %v7434 = vpop.f32.mrf.mxu0
        %7435 = vmatprep.mubr.bf16.mxu0 0
        %7436 = vmatmul.mubr.bf16.gmra.mxu0 %v4118
        %v7437 = vpop.f32.mrf.mxu0
        %v7438 = vadd.f32 0.0, %v7437
        %v7439 = vpop.f32.mrf.mxu0
        %v7440 = vpop.f32.mrf.mxu0
        %v7441 = vadd.f32 0.0, %v7440
        %v7442 = vpop.f32.mrf.mxu0
        %7443 = vmatprep.mubr.bf16.mxu0 0
        %7444 = vmatmul.mubr.bf16.gmra.mxu0 %v4120
        %v7445 = vpop.f32.mrf.mxu0
        %v7446 = vadd.f32 0.0, %v7445
        %v7447 = vpop.f32.mrf.mxu0
        %v7448 = vpop.f32.mrf.mxu0
        %v7449 = vadd.f32 0.0, %v7448
        %v7450 = vpop.f32.mrf.mxu0
        %7451 = vmatprep.mubr.bf16.mxu0 0
        %7452 = vmatmul.mubr.bf16.gmra.mxu0 %v4122
        %v7453 = vpop.f32.mrf.mxu0
        %v7454 = vadd.f32 0.0, %v7453
        %v7455 = vpop.f32.mrf.mxu0
        %v7456 = vpop.f32.mrf.mxu0
        %v7457 = vadd.f32 0.0, %v7456
        %v7458 = vpop.f32.mrf.mxu0
        %7459 = vmatprep.mubr.bf16.mxu0 0
        %7460 = vmatmul.mubr.bf16.gmra.mxu0 %v4124
        %v7461 = vpop.f32.mrf.mxu0
        %v7462 = vadd.f32 0.0, %v7461
        %v7463 = vpop.f32.mrf.mxu0
        %v7464 = vpop.f32.mrf.mxu0
        %v7465 = vadd.f32 0.0, %v7464
        %v7466 = vpop.f32.mrf.mxu0
        %7467 = vmatprep.mubr.bf16.mxu0 0
        %7468 = vmatmul.mubr.bf16.gmra.mxu0 %v4126
        %v7469 = vpop.f32.mrf.mxu0
        %v7470 = vadd.f32 0.0, %v7469
        %v7471 = vpop.f32.mrf.mxu0
        %v7472 = vpop.f32.mrf.mxu0
        %v7473 = vadd.f32 0.0, %v7472
        %v7474 = vpop.f32.mrf.mxu0
        %7475 = vmatprep.mubr.bf16.mxu0 0
        %7476 = vmatmul.mubr.bf16.gmra.mxu0 %v4128
        %v7477 = vpop.f32.mrf.mxu0
        %v7478 = vadd.f32 0.0, %v7477
        %v7479 = vpop.f32.mrf.mxu0
        %v7480 = vpop.f32.mrf.mxu0
        %v7481 = vadd.f32 0.0, %v7480
        %v7482 = vpop.f32.mrf.mxu0
        %7483 = vmatprep.mubr.bf16.mxu0 0
        %7484 = vmatmul.mubr.bf16.gmra.mxu0 %v5282
        %v7485 = vpop.f32.mrf.mxu0
        %v7486 = vadd.f32 0.0, %v7485
        %v7487 = vpop.f32.mrf.mxu0
        %v7488 = vpop.f32.mrf.mxu0
        %v7489 = vadd.f32 0.0, %v7488
        %v7490 = vpop.f32.mrf.mxu0
        %7491 = vmatprep.mubr.bf16.mxu0 0
        %7492 = vmatmul.mubr.bf16.gmra.mxu0 %v6313
        %v7493 = vpop.f32.mrf.mxu0
        %v7494 = vadd.f32 0.0, %v7493
        %v7495 = vpop.f32.mrf.mxu0
        %v7496 = vpop.f32.mrf.mxu0
        %v7497 = vadd.f32 0.0, %v7496
        %v7498 = vpop.f32.mrf.mxu0
        %7499 = vmatprep.mubr.bf16.mxu0 0
        %7500 = vmatmul.mubr.bf16.gmra.mxu0 %v4100
        %v7501 = vpop.f32.mrf.mxu0
        %v7502 = vadd.f32 0.0, %v7501
        %v7503 = vpop.f32.mrf.mxu0
        %v7504 = vpop.f32.mrf.mxu0
        %v7505 = vadd.f32 0.0, %v7504
        %v7506 = vpop.f32.mrf.mxu0
        %7507 = vdwg.mxu0
        %v7508 = vadd.f32 %v7310, %v7382
        %v7509 = vadd.f32 %v7311, %v7385
        %v7510 = vadd.f32 %v7312, %v7390
        %v7511 = vadd.f32 %v7313, %v7393
        %v7512 = vadd.f32 %v7314, %v7398
        %v7513 = vadd.f32 %v7315, %v7401
        %v7514 = vadd.f32 %v7316, %v7406
        %v7515 = vadd.f32 %v7317, %v7409
        %v7516 = vadd.f32 %v7318, %v7414
        %v7517 = vadd.f32 %v7319, %v7417
        %v7518 = vadd.f32 %v7320, %v7422
        %v7519 = vadd.f32 %v7321, %v7425
        %v7520 = vadd.f32 %v7322, %v7430
        %v7521 = vadd.f32 %v7323, %v7433
        %v7522 = vadd.f32 %v7324, %v7438
        %v7523 = vadd.f32 %v7325, %v7441
        %v7524 = vadd.f32 %v7326, %v7446
        %v7525 = vadd.f32 %v7327, %v7449
        %v7526 = vadd.f32 %v7328, %v7454
        %v7527 = vadd.f32 %v7329, %v7457
        %v7528 = vadd.f32 %v7330, %v7462
        %v7529 = vadd.f32 %v7331, %v7465
        %v7530 = vadd.f32 %v7332, %v7470
        %v7531 = vadd.f32 %v7333, %v7473
        %v7532 = vadd.f32 %v7334, %v7478
        %v7533 = vadd.f32 %v7335, %v7481
        %v7534 = vadd.f32 %v7336, %v7486
        %v7535 = vadd.f32 %v7337, %v7489
        %v7536 = vadd.f32 %v7338, %v7494
        %v7537 = vadd.f32 %v7339, %v7497
        %v7538 = vadd.f32 %v7340, %v7502
        %v7539 = vadd.f32 %v7341, %v7505
        %s7540 = scalar_lea.vmem %s9, 16
        %v7541 = vld [vmem:[%s7540] sm:$0x1]
        %v7543 = vsel %vm3685, %v7541, 0
        %7545 = vmatprep.subr.bf16.mxu0 0
        %7546 = vmatpush1.bf16.msra.mxu0 0
        %7547 = vmatprep.subr.bf16.mxu0 0
        %7548 = vmatpush1.bf16.msra.mxu0 0
        %7549 = vmatprep.subr.bf16.mxu0 0
        %7550 = vmatpush1.bf16.msra.mxu0 0
        %7551 = vmatprep.subr.bf16.mxu0 0
        %7552 = vmatpush1.bf16.msra.mxu0 0
        %7553 = vmatprep.subr.bf16.mxu0 0
        %7554 = vmatpush1.bf16.msra.mxu0 0
        %7555 = vmatprep.subr.bf16.mxu0 0
        %7556 = vmatpush1.bf16.msra.mxu0 0
        %7557 = vmatprep.subr.bf16.mxu0 0
        %7558 = vmatpush1.bf16.msra.mxu0 0
        %7559 = vmatprep.subr.bf16.mxu0 0
        %7560 = vmatpush1.bf16.msra.mxu0 %v7543
        %7561 = vmatprep.subr.bf16.mxu0 0
        %7562 = vmatpush2.bf16.msra.mxu0 0
        %7563 = vmatprep.subr.bf16.mxu0 0
        %7564 = vmatpush2.bf16.msra.mxu0 0
        %7565 = vmatprep.subr.bf16.mxu0 0
        %7566 = vmatpush2.bf16.msra.mxu0 0
        %7567 = vmatprep.subr.bf16.mxu0 0
        %7568 = vmatpush2.bf16.msra.mxu0 0
        %7569 = vmatprep.subr.bf16.mxu0 0
        %7570 = vmatpush2.bf16.msra.mxu0 0
        %7571 = vmatprep.subr.bf16.mxu0 0
        %7572 = vmatpush2.bf16.msra.mxu0 0
        %7573 = vmatprep.subr.bf16.mxu0 0
        %7574 = vmatpush2.bf16.msra.mxu0 0
        %7575 = vmatprep.subr.bf16.mxu0 0
        %7576 = vmatpush2.bf16.msra.mxu0 0
        %7577 = vmatprep.mubr.bf16.mxu0 0
        %7578 = vmatmul.mubr.bf16.gmra.mxu0 %v3898
        %v7579 = vpop.f32.mrf.mxu0
        %v7580 = vadd.f32 0.0, %v7579
        %v7581 = vpop.f32.mrf.mxu0
        %v7582 = vpop.f32.mrf.mxu0
        %v7583 = vadd.f32 0.0, %v7582
        %v7584 = vpop.f32.mrf.mxu0
        %7585 = vmatprep.mubr.bf16.mxu0 0
        %7586 = vmatmul.mubr.bf16.gmra.mxu0 %v3901
        %v7587 = vpop.f32.mrf.mxu0
        %v7588 = vadd.f32 0.0, %v7587
        %v7589 = vpop.f32.mrf.mxu0
        %v7590 = vpop.f32.mrf.mxu0
        %v7591 = vadd.f32 0.0, %v7590
        %v7592 = vpop.f32.mrf.mxu0
        %7593 = vmatprep.mubr.bf16.mxu0 0
        %7594 = vmatmul.mubr.bf16.gmra.mxu0 %v3904
        %v7595 = vpop.f32.mrf.mxu0
        %v7596 = vadd.f32 0.0, %v7595
        %v7597 = vpop.f32.mrf.mxu0
        %v7598 = vpop.f32.mrf.mxu0
        %v7599 = vadd.f32 0.0, %v7598
        %v7600 = vpop.f32.mrf.mxu0
        %7601 = vmatprep.mubr.bf16.mxu0 0
        %7602 = vmatmul.mubr.bf16.gmra.mxu0 %v3907
        %v7603 = vpop.f32.mrf.mxu0
        %v7604 = vadd.f32 0.0, %v7603
        %v7605 = vpop.f32.mrf.mxu0
        %v7606 = vpop.f32.mrf.mxu0
        %v7607 = vadd.f32 0.0, %v7606
        %v7608 = vpop.f32.mrf.mxu0
        %7609 = vmatprep.mubr.bf16.mxu0 0
        %7610 = vmatmul.mubr.bf16.gmra.mxu0 %v3910
        %v7611 = vpop.f32.mrf.mxu0
        %v7612 = vadd.f32 0.0, %v7611
        %v7613 = vpop.f32.mrf.mxu0
        %v7614 = vpop.f32.mrf.mxu0
        %v7615 = vadd.f32 0.0, %v7614
        %v7616 = vpop.f32.mrf.mxu0
        %7617 = vmatprep.mubr.bf16.mxu0 0
        %7618 = vmatmul.mubr.bf16.gmra.mxu0 %v3913
        %v7619 = vpop.f32.mrf.mxu0
        %v7620 = vadd.f32 0.0, %v7619
        %v7621 = vpop.f32.mrf.mxu0
        %v7622 = vpop.f32.mrf.mxu0
        %v7623 = vadd.f32 0.0, %v7622
        %v7624 = vpop.f32.mrf.mxu0
        %7625 = vmatprep.mubr.bf16.mxu0 0
        %7626 = vmatmul.mubr.bf16.gmra.mxu0 %v3916
        %v7627 = vpop.f32.mrf.mxu0
        %v7628 = vadd.f32 0.0, %v7627
        %v7629 = vpop.f32.mrf.mxu0
        %v7630 = vpop.f32.mrf.mxu0
        %v7631 = vadd.f32 0.0, %v7630
        %v7632 = vpop.f32.mrf.mxu0
        %7633 = vmatprep.mubr.bf16.mxu0 0
        %7634 = vmatmul.mubr.bf16.gmra.mxu0 %v3919
        %v7635 = vpop.f32.mrf.mxu0
        %v7636 = vadd.f32 0.0, %v7635
        %v7637 = vpop.f32.mrf.mxu0
        %v7638 = vpop.f32.mrf.mxu0
        %v7639 = vadd.f32 0.0, %v7638
        %v7640 = vpop.f32.mrf.mxu0
        %7641 = vmatprep.mubr.bf16.mxu0 0
        %7642 = vmatmul.mubr.bf16.gmra.mxu0 %v3922
        %v7643 = vpop.f32.mrf.mxu0
        %v7644 = vadd.f32 0.0, %v7643
        %v7645 = vpop.f32.mrf.mxu0
        %v7646 = vpop.f32.mrf.mxu0
        %v7647 = vadd.f32 0.0, %v7646
        %v7648 = vpop.f32.mrf.mxu0
        %7649 = vmatprep.mubr.bf16.mxu0 0
        %7650 = vmatmul.mubr.bf16.gmra.mxu0 %v3925
        %v7651 = vpop.f32.mrf.mxu0
        %v7652 = vadd.f32 0.0, %v7651
        %v7653 = vpop.f32.mrf.mxu0
        %v7654 = vpop.f32.mrf.mxu0
        %v7655 = vadd.f32 0.0, %v7654
        %v7656 = vpop.f32.mrf.mxu0
        %7657 = vmatprep.mubr.bf16.mxu0 0
        %7658 = vmatmul.mubr.bf16.gmra.mxu0 %v3928
        %v7659 = vpop.f32.mrf.mxu0
        %v7660 = vadd.f32 0.0, %v7659
        %v7661 = vpop.f32.mrf.mxu0
        %v7662 = vpop.f32.mrf.mxu0
        %v7663 = vadd.f32 0.0, %v7662
        %v7664 = vpop.f32.mrf.mxu0
        %7665 = vmatprep.mubr.bf16.mxu0 0
        %7666 = vmatmul.mubr.bf16.gmra.mxu0 %v3931
        %v7667 = vpop.f32.mrf.mxu0
        %v7668 = vadd.f32 0.0, %v7667
        %v7669 = vpop.f32.mrf.mxu0
        %v7670 = vpop.f32.mrf.mxu0
        %v7671 = vadd.f32 0.0, %v7670
        %v7672 = vpop.f32.mrf.mxu0
        %7673 = vmatprep.mubr.bf16.mxu0 0
        %7674 = vmatmul.mubr.bf16.gmra.mxu0 %v3934
        %v7675 = vpop.f32.mrf.mxu0
        %v7676 = vadd.f32 0.0, %v7675
        %v7677 = vpop.f32.mrf.mxu0
        %v7678 = vpop.f32.mrf.mxu0
        %v7679 = vadd.f32 0.0, %v7678
        %v7680 = vpop.f32.mrf.mxu0
        %7681 = vmatprep.mubr.bf16.mxu0 0
        %7682 = vmatmul.mubr.bf16.gmra.mxu0 %v5493
        %v7683 = vpop.f32.mrf.mxu0
        %v7684 = vadd.f32 0.0, %v7683
        %v7685 = vpop.f32.mrf.mxu0
        %v7686 = vpop.f32.mrf.mxu0
        %v7687 = vadd.f32 0.0, %v7686
        %v7688 = vpop.f32.mrf.mxu0
        %7689 = vmatprep.mubr.bf16.mxu0 0
        %7690 = vmatmul.mubr.bf16.gmra.mxu0 %v6524
        %v7691 = vpop.f32.mrf.mxu0
        %v7692 = vadd.f32 0.0, %v7691
        %v7693 = vpop.f32.mrf.mxu0
        %v7694 = vpop.f32.mrf.mxu0
        %v7695 = vadd.f32 0.0, %v7694
        %v7696 = vpop.f32.mrf.mxu0
        %7697 = vmatprep.mubr.bf16.mxu0 0
        %7698 = vmatmul.mubr.bf16.gmra.mxu0 %v3892
        %v7699 = vpop.f32.mrf.mxu0
        %v7700 = vadd.f32 0.0, %v7699
        %v7701 = vpop.f32.mrf.mxu0
        %v7702 = vpop.f32.mrf.mxu0
        %v7703 = vadd.f32 0.0, %v7702
        %v7704 = vpop.f32.mrf.mxu0
        %7705 = vdwg.mxu0
        %v7706 = vadd.f32 %v7508, %v7580
        %v7707 = vadd.f32 %v7509, %v7583
        %v7708 = vadd.f32 %v7510, %v7588
        %v7709 = vadd.f32 %v7511, %v7591
        %v7710 = vadd.f32 %v7512, %v7596
        %v7711 = vadd.f32 %v7513, %v7599
        %v7712 = vadd.f32 %v7514, %v7604
        %v7713 = vadd.f32 %v7515, %v7607
        %v7714 = vadd.f32 %v7516, %v7612
        %v7715 = vadd.f32 %v7517, %v7615
        %v7716 = vadd.f32 %v7518, %v7620
        %v7717 = vadd.f32 %v7519, %v7623
        %v7718 = vadd.f32 %v7520, %v7628
        %v7719 = vadd.f32 %v7521, %v7631
        %v7720 = vadd.f32 %v7522, %v7636
        %v7721 = vadd.f32 %v7523, %v7639
        %v7722 = vadd.f32 %v7524, %v7644
        %v7723 = vadd.f32 %v7525, %v7647
        %v7724 = vadd.f32 %v7526, %v7652
        %v7725 = vadd.f32 %v7527, %v7655
        %v7726 = vadd.f32 %v7528, %v7660
        %v7727 = vadd.f32 %v7529, %v7663
        %v7728 = vadd.f32 %v7530, %v7668
        %v7729 = vadd.f32 %v7531, %v7671
        %v7730 = vadd.f32 %v7532, %v7676
        %v7731 = vadd.f32 %v7533, %v7679
        %v7732 = vadd.f32 %v7534, %v7684
        %v7733 = vadd.f32 %v7535, %v7687
        %v7734 = vadd.f32 %v7536, %v7692
        %v7735 = vadd.f32 %v7537, %v7695
        %v7736 = vadd.f32 %v7538, %v7700
        %v7737 = vadd.f32 %v7539, %v7703
        %s7738 = scalar_lea.vmem %s9, 17
        %v7739 = vld [vmem:[%s7738] sm:$0x1]
        %v7741 = vsel %vm3685, %v7739, 0
        %7743 = vmatprep.subr.bf16.mxu0 0
        %7744 = vmatpush1.bf16.msra.mxu0 0
        %7745 = vmatprep.subr.bf16.mxu0 0
        %7746 = vmatpush1.bf16.msra.mxu0 0
        %7747 = vmatprep.subr.bf16.mxu0 0
        %7748 = vmatpush1.bf16.msra.mxu0 0
        %7749 = vmatprep.subr.bf16.mxu0 0
        %7750 = vmatpush1.bf16.msra.mxu0 0
        %7751 = vmatprep.subr.bf16.mxu0 0
        %7752 = vmatpush1.bf16.msra.mxu0 0
        %7753 = vmatprep.subr.bf16.mxu0 0
        %7754 = vmatpush1.bf16.msra.mxu0 0
        %7755 = vmatprep.subr.bf16.mxu0 0
        %7756 = vmatpush1.bf16.msra.mxu0 0
        %7757 = vmatprep.subr.bf16.mxu0 0
        %7758 = vmatpush1.bf16.msra.mxu0 %v7741
        %7759 = vmatprep.subr.bf16.mxu0 0
        %7760 = vmatpush2.bf16.msra.mxu0 0
        %7761 = vmatprep.subr.bf16.mxu0 0
        %7762 = vmatpush2.bf16.msra.mxu0 0
        %7763 = vmatprep.subr.bf16.mxu0 0
        %7764 = vmatpush2.bf16.msra.mxu0 0
        %7765 = vmatprep.subr.bf16.mxu0 0
        %7766 = vmatpush2.bf16.msra.mxu0 0
        %7767 = vmatprep.subr.bf16.mxu0 0
        %7768 = vmatpush2.bf16.msra.mxu0 0
        %7769 = vmatprep.subr.bf16.mxu0 0
        %7770 = vmatpush2.bf16.msra.mxu0 0
        %7771 = vmatprep.subr.bf16.mxu0 0
        %7772 = vmatpush2.bf16.msra.mxu0 0
        %7773 = vmatprep.subr.bf16.mxu0 0
        %7774 = vmatpush2.bf16.msra.mxu0 0
        %7775 = vmatprep.mubr.bf16.mxu0 0
        %7776 = vmatmul.mubr.bf16.gmra.mxu0 %v4378
        %v7777 = vpop.f32.mrf.mxu0
        %v7778 = vadd.f32 0.0, %v7777
        %v7779 = vpop.f32.mrf.mxu0
        %v7780 = vpop.f32.mrf.mxu0
        %v7781 = vadd.f32 0.0, %v7780
        %v7782 = vpop.f32.mrf.mxu0
        %7783 = vmatprep.mubr.bf16.mxu0 0
        %7784 = vmatmul.mubr.bf16.gmra.mxu0 %v4381
        %v7785 = vpop.f32.mrf.mxu0
        %v7786 = vadd.f32 0.0, %v7785
        %v7787 = vpop.f32.mrf.mxu0
        %v7788 = vpop.f32.mrf.mxu0
        %v7789 = vadd.f32 0.0, %v7788
        %v7790 = vpop.f32.mrf.mxu0
        %7791 = vmatprep.mubr.bf16.mxu0 0
        %7792 = vmatmul.mubr.bf16.gmra.mxu0 %v4384
        %v7793 = vpop.f32.mrf.mxu0
        %v7794 = vadd.f32 0.0, %v7793
        %v7795 = vpop.f32.mrf.mxu0
        %v7796 = vpop.f32.mrf.mxu0
        %v7797 = vadd.f32 0.0, %v7796
        %v7798 = vpop.f32.mrf.mxu0
        %7799 = vmatprep.mubr.bf16.mxu0 0
        %7800 = vmatmul.mubr.bf16.gmra.mxu0 %v4387
        %v7801 = vpop.f32.mrf.mxu0
        %v7802 = vadd.f32 0.0, %v7801
        %v7803 = vpop.f32.mrf.mxu0
        %v7804 = vpop.f32.mrf.mxu0
        %v7805 = vadd.f32 0.0, %v7804
        %v7806 = vpop.f32.mrf.mxu0
        %7807 = vmatprep.mubr.bf16.mxu0 0
        %7808 = vmatmul.mubr.bf16.gmra.mxu0 %v4390
        %v7809 = vpop.f32.mrf.mxu0
        %v7810 = vadd.f32 0.0, %v7809
        %v7811 = vpop.f32.mrf.mxu0
        %v7812 = vpop.f32.mrf.mxu0
        %v7813 = vadd.f32 0.0, %v7812
        %v7814 = vpop.f32.mrf.mxu0
        %7815 = vmatprep.mubr.bf16.mxu0 0
        %7816 = vmatmul.mubr.bf16.gmra.mxu0 %v4393
        %v7817 = vpop.f32.mrf.mxu0
        %v7818 = vadd.f32 0.0, %v7817
        %v7819 = vpop.f32.mrf.mxu0
        %v7820 = vpop.f32.mrf.mxu0
        %v7821 = vadd.f32 0.0, %v7820
        %v7822 = vpop.f32.mrf.mxu0
        %7823 = vmatprep.mubr.bf16.mxu0 0
        %7824 = vmatmul.mubr.bf16.gmra.mxu0 %v4396
        %v7825 = vpop.f32.mrf.mxu0
        %v7826 = vadd.f32 0.0, %v7825
        %v7827 = vpop.f32.mrf.mxu0
        %v7828 = vpop.f32.mrf.mxu0
        %v7829 = vadd.f32 0.0, %v7828
        %v7830 = vpop.f32.mrf.mxu0
        %7831 = vmatprep.mubr.bf16.mxu0 0
        %7832 = vmatmul.mubr.bf16.gmra.mxu0 %v4399
        %v7833 = vpop.f32.mrf.mxu0
        %v7834 = vadd.f32 0.0, %v7833
        %v7835 = vpop.f32.mrf.mxu0
        %v7836 = vpop.f32.mrf.mxu0
        %v7837 = vadd.f32 0.0, %v7836
        %v7838 = vpop.f32.mrf.mxu0
        %7839 = vmatprep.mubr.bf16.mxu0 0
        %7840 = vmatmul.mubr.bf16.gmra.mxu0 %v4402
        %v7841 = vpop.f32.mrf.mxu0
        %v7842 = vadd.f32 0.0, %v7841
        %v7843 = vpop.f32.mrf.mxu0
        %v7844 = vpop.f32.mrf.mxu0
        %v7845 = vadd.f32 0.0, %v7844
        %v7846 = vpop.f32.mrf.mxu0
        %7847 = vmatprep.mubr.bf16.mxu0 0
        %7848 = vmatmul.mubr.bf16.gmra.mxu0 %v4405
        %v7849 = vpop.f32.mrf.mxu0
        %v7850 = vadd.f32 0.0, %v7849
        %v7851 = vpop.f32.mrf.mxu0
        %v7852 = vpop.f32.mrf.mxu0
        %v7853 = vadd.f32 0.0, %v7852
        %v7854 = vpop.f32.mrf.mxu0
        %7855 = vmatprep.mubr.bf16.mxu0 0
        %7856 = vmatmul.mubr.bf16.gmra.mxu0 %v4408
        %v7857 = vpop.f32.mrf.mxu0
        %v7858 = vadd.f32 0.0, %v7857
        %v7859 = vpop.f32.mrf.mxu0
        %v7860 = vpop.f32.mrf.mxu0
        %v7861 = vadd.f32 0.0, %v7860
        %v7862 = vpop.f32.mrf.mxu0
        %7863 = vmatprep.mubr.bf16.mxu0 0
        %7864 = vmatmul.mubr.bf16.gmra.mxu0 %v4411
        %v7865 = vpop.f32.mrf.mxu0
        %v7866 = vadd.f32 0.0, %v7865
        %v7867 = vpop.f32.mrf.mxu0
        %v7868 = vpop.f32.mrf.mxu0
        %v7869 = vadd.f32 0.0, %v7868
        %v7870 = vpop.f32.mrf.mxu0
        %7871 = vmatprep.mubr.bf16.mxu0 0
        %7872 = vmatmul.mubr.bf16.gmra.mxu0 %v4414
        %v7873 = vpop.f32.mrf.mxu0
        %v7874 = vadd.f32 0.0, %v7873
        %v7875 = vpop.f32.mrf.mxu0
        %v7876 = vpop.f32.mrf.mxu0
        %v7877 = vadd.f32 0.0, %v7876
        %v7878 = vpop.f32.mrf.mxu0
        %7879 = vmatprep.mubr.bf16.mxu0 0
        %7880 = vmatmul.mubr.bf16.gmra.mxu0 %v5699
        %v7881 = vpop.f32.mrf.mxu0
        %v7882 = vadd.f32 0.0, %v7881
        %v7883 = vpop.f32.mrf.mxu0
        %v7884 = vpop.f32.mrf.mxu0
        %v7885 = vadd.f32 0.0, %v7884
        %v7886 = vpop.f32.mrf.mxu0
        %7887 = vmatprep.mubr.bf16.mxu0 0
        %7888 = vmatmul.mubr.bf16.gmra.mxu0 %v6730
        %v7889 = vpop.f32.mrf.mxu0
        %v7890 = vadd.f32 0.0, %v7889
        %v7891 = vpop.f32.mrf.mxu0
        %v7892 = vpop.f32.mrf.mxu0
        %v7893 = vadd.f32 0.0, %v7892
        %v7894 = vpop.f32.mrf.mxu0
        %7895 = vmatprep.mubr.bf16.mxu0 0
        %7896 = vmatmul.mubr.bf16.gmra.mxu0 %v4372
        %v7897 = vpop.f32.mrf.mxu0
        %v7898 = vadd.f32 0.0, %v7897
        %v7899 = vpop.f32.mrf.mxu0
        %v7900 = vpop.f32.mrf.mxu0
        %v7901 = vadd.f32 0.0, %v7900
        %v7902 = vpop.f32.mrf.mxu0
        %7903 = vdwg.mxu0
        %v7904 = vadd.f32 %v7706, %v7778
        %v7905 = vadd.f32 %v7707, %v7781
        %v7906 = vadd.f32 %v7708, %v7786
        %v7907 = vadd.f32 %v7709, %v7789
        %v7908 = vadd.f32 %v7710, %v7794
        %v7909 = vadd.f32 %v7711, %v7797
        %v7910 = vadd.f32 %v7712, %v7802
        %v7911 = vadd.f32 %v7713, %v7805
        %v7912 = vadd.f32 %v7714, %v7810
        %v7913 = vadd.f32 %v7715, %v7813
        %v7914 = vadd.f32 %v7716, %v7818
        %v7915 = vadd.f32 %v7717, %v7821
        %v7916 = vadd.f32 %v7718, %v7826
        %v7917 = vadd.f32 %v7719, %v7829
        %v7918 = vadd.f32 %v7720, %v7834
        %v7919 = vadd.f32 %v7721, %v7837
        %v7920 = vadd.f32 %v7722, %v7842
        %v7921 = vadd.f32 %v7723, %v7845
        %v7922 = vadd.f32 %v7724, %v7850
        %v7923 = vadd.f32 %v7725, %v7853
        %v7924 = vadd.f32 %v7726, %v7858
        %v7925 = vadd.f32 %v7727, %v7861
        %v7926 = vadd.f32 %v7728, %v7866
        %v7927 = vadd.f32 %v7729, %v7869
        %v7928 = vadd.f32 %v7730, %v7874
        %v7929 = vadd.f32 %v7731, %v7877
        %v7930 = vadd.f32 %v7732, %v7882
        %v7931 = vadd.f32 %v7733, %v7885
        %v7932 = vadd.f32 %v7734, %v7890
        %v7933 = vadd.f32 %v7735, %v7893
        %v7934 = vadd.f32 %v7736, %v7898
        %v7935 = vadd.f32 %v7737, %v7901
        %s7936 = scalar_lea.vmem %s9, 18
        %v7937 = vld [vmem:[%s7936] sm:$0x1]
        %v7939 = vsel %vm3685, %v7937, 0
        %7941 = vmatprep.subr.bf16.mxu0 0
        %7942 = vmatpush1.bf16.msra.mxu0 0
        %7943 = vmatprep.subr.bf16.mxu0 0
        %7944 = vmatpush1.bf16.msra.mxu0 0
        %7945 = vmatprep.subr.bf16.mxu0 0
        %7946 = vmatpush1.bf16.msra.mxu0 0
        %7947 = vmatprep.subr.bf16.mxu0 0
        %7948 = vmatpush1.bf16.msra.mxu0 0
        %7949 = vmatprep.subr.bf16.mxu0 0
        %7950 = vmatpush1.bf16.msra.mxu0 0
        %7951 = vmatprep.subr.bf16.mxu0 0
        %7952 = vmatpush1.bf16.msra.mxu0 0
        %7953 = vmatprep.subr.bf16.mxu0 0
        %7954 = vmatpush1.bf16.msra.mxu0 0
        %7955 = vmatprep.subr.bf16.mxu0 0
        %7956 = vmatpush1.bf16.msra.mxu0 %v7939
        %7957 = vmatprep.subr.bf16.mxu0 0
        %7958 = vmatpush2.bf16.msra.mxu0 0
        %7959 = vmatprep.subr.bf16.mxu0 0
        %7960 = vmatpush2.bf16.msra.mxu0 0
        %7961 = vmatprep.subr.bf16.mxu0 0
        %7962 = vmatpush2.bf16.msra.mxu0 0
        %7963 = vmatprep.subr.bf16.mxu0 0
        %7964 = vmatpush2.bf16.msra.mxu0 0
        %7965 = vmatprep.subr.bf16.mxu0 0
        %7966 = vmatpush2.bf16.msra.mxu0 0
        %7967 = vmatprep.subr.bf16.mxu0 0
        %7968 = vmatpush2.bf16.msra.mxu0 0
        %7969 = vmatprep.subr.bf16.mxu0 0
        %7970 = vmatpush2.bf16.msra.mxu0 0
        %7971 = vmatprep.subr.bf16.mxu0 0
        %7972 = vmatpush2.bf16.msra.mxu0 0
        %7973 = vmatprep.mubr.bf16.mxu0 0
        %7974 = vmatmul.mubr.bf16.gmra.mxu0 %v4757
        %v7975 = vpop.f32.mrf.mxu0
        %v7976 = vadd.f32 0.0, %v7975
        %v7977 = vpop.f32.mrf.mxu0
        %v7978 = vpop.f32.mrf.mxu0
        %v7979 = vadd.f32 0.0, %v7978
        %v7980 = vpop.f32.mrf.mxu0
        %7981 = vmatprep.mubr.bf16.mxu0 0
        %7982 = vmatmul.mubr.bf16.gmra.mxu0 %v4760
        %v7983 = vpop.f32.mrf.mxu0
        %v7984 = vadd.f32 0.0, %v7983
        %v7985 = vpop.f32.mrf.mxu0
        %v7986 = vpop.f32.mrf.mxu0
        %v7987 = vadd.f32 0.0, %v7986
        %v7988 = vpop.f32.mrf.mxu0
        %7989 = vmatprep.mubr.bf16.mxu0 0
        %7990 = vmatmul.mubr.bf16.gmra.mxu0 %v4763
        %v7991 = vpop.f32.mrf.mxu0
        %v7992 = vadd.f32 0.0, %v7991
        %v7993 = vpop.f32.mrf.mxu0
        %v7994 = vpop.f32.mrf.mxu0
        %v7995 = vadd.f32 0.0, %v7994
        %v7996 = vpop.f32.mrf.mxu0
        %7997 = vmatprep.mubr.bf16.mxu0 0
        %7998 = vmatmul.mubr.bf16.gmra.mxu0 %v4766
        %v7999 = vpop.f32.mrf.mxu0
        %v8000 = vadd.f32 0.0, %v7999
        %v8001 = vpop.f32.mrf.mxu0
        %v8002 = vpop.f32.mrf.mxu0
        %v8003 = vadd.f32 0.0, %v8002
        %v8004 = vpop.f32.mrf.mxu0
        %8005 = vmatprep.mubr.bf16.mxu0 0
        %8006 = vmatmul.mubr.bf16.gmra.mxu0 %v4769
        %v8007 = vpop.f32.mrf.mxu0
        %v8008 = vadd.f32 0.0, %v8007
        %v8009 = vpop.f32.mrf.mxu0
        %v8010 = vpop.f32.mrf.mxu0
        %v8011 = vadd.f32 0.0, %v8010
        %v8012 = vpop.f32.mrf.mxu0
        %8013 = vmatprep.mubr.bf16.mxu0 0
        %8014 = vmatmul.mubr.bf16.gmra.mxu0 %v4772
        %v8015 = vpop.f32.mrf.mxu0
        %v8016 = vadd.f32 0.0, %v8015
        %v8017 = vpop.f32.mrf.mxu0
        %v8018 = vpop.f32.mrf.mxu0
        %v8019 = vadd.f32 0.0, %v8018
        %v8020 = vpop.f32.mrf.mxu0
        %8021 = vmatprep.mubr.bf16.mxu0 0
        %8022 = vmatmul.mubr.bf16.gmra.mxu0 %v4775
        %v8023 = vpop.f32.mrf.mxu0
        %v8024 = vadd.f32 0.0, %v8023
        %v8025 = vpop.f32.mrf.mxu0
        %v8026 = vpop.f32.mrf.mxu0
        %v8027 = vadd.f32 0.0, %v8026
        %v8028 = vpop.f32.mrf.mxu0
        %8029 = vmatprep.mubr.bf16.mxu0 0
        %8030 = vmatmul.mubr.bf16.gmra.mxu0 %v4778
        %v8031 = vpop.f32.mrf.mxu0
        %v8032 = vadd.f32 0.0, %v8031
        %v8033 = vpop.f32.mrf.mxu0
        %v8034 = vpop.f32.mrf.mxu0
        %v8035 = vadd.f32 0.0, %v8034
        %v8036 = vpop.f32.mrf.mxu0
        %8037 = vmatprep.mubr.bf16.mxu0 0
        %8038 = vmatmul.mubr.bf16.gmra.mxu0 %v4781
        %v8039 = vpop.f32.mrf.mxu0
        %v8040 = vadd.f32 0.0, %v8039
        %v8041 = vpop.f32.mrf.mxu0
        %v8042 = vpop.f32.mrf.mxu0
        %v8043 = vadd.f32 0.0, %v8042
        %v8044 = vpop.f32.mrf.mxu0
        %8045 = vmatprep.mubr.bf16.mxu0 0
        %8046 = vmatmul.mubr.bf16.gmra.mxu0 %v4784
        %v8047 = vpop.f32.mrf.mxu0
        %v8048 = vadd.f32 0.0, %v8047
        %v8049 = vpop.f32.mrf.mxu0
        %v8050 = vpop.f32.mrf.mxu0
        %v8051 = vadd.f32 0.0, %v8050
        %v8052 = vpop.f32.mrf.mxu0
        %8053 = vmatprep.mubr.bf16.mxu0 0
        %8054 = vmatmul.mubr.bf16.gmra.mxu0 %v4787
        %v8055 = vpop.f32.mrf.mxu0
        %v8056 = vadd.f32 0.0, %v8055
        %v8057 = vpop.f32.mrf.mxu0
        %v8058 = vpop.f32.mrf.mxu0
        %v8059 = vadd.f32 0.0, %v8058
        %v8060 = vpop.f32.mrf.mxu0
        %8061 = vmatprep.mubr.bf16.mxu0 0
        %8062 = vmatmul.mubr.bf16.gmra.mxu0 %v4790
        %v8063 = vpop.f32.mrf.mxu0
        %v8064 = vadd.f32 0.0, %v8063
        %v8065 = vpop.f32.mrf.mxu0
        %v8066 = vpop.f32.mrf.mxu0
        %v8067 = vadd.f32 0.0, %v8066
        %v8068 = vpop.f32.mrf.mxu0
        %8069 = vmatprep.mubr.bf16.mxu0 0
        %8070 = vmatmul.mubr.bf16.gmra.mxu0 %v4793
        %v8071 = vpop.f32.mrf.mxu0
        %v8072 = vadd.f32 0.0, %v8071
        %v8073 = vpop.f32.mrf.mxu0
        %v8074 = vpop.f32.mrf.mxu0
        %v8075 = vadd.f32 0.0, %v8074
        %v8076 = vpop.f32.mrf.mxu0
        %8077 = vmatprep.mubr.bf16.mxu0 0
        %8078 = vmatmul.mubr.bf16.gmra.mxu0 %v5909
        %v8079 = vpop.f32.mrf.mxu0
        %v8080 = vadd.f32 0.0, %v8079
        %v8081 = vpop.f32.mrf.mxu0
        %v8082 = vpop.f32.mrf.mxu0
        %v8083 = vadd.f32 0.0, %v8082
        %v8084 = vpop.f32.mrf.mxu0
        %8085 = vmatprep.mubr.bf16.mxu0 0
        %8086 = vmatmul.mubr.bf16.gmra.mxu0 %v6940
        %v8087 = vpop.f32.mrf.mxu0
        %v8088 = vadd.f32 0.0, %v8087
        %v8089 = vpop.f32.mrf.mxu0
        %v8090 = vpop.f32.mrf.mxu0
        %v8091 = vadd.f32 0.0, %v8090
        %v8092 = vpop.f32.mrf.mxu0
        %8093 = vmatprep.mubr.bf16.mxu0 0
        %8094 = vmatmul.mubr.bf16.gmra.mxu0 %v4751
        %v8095 = vpop.f32.mrf.mxu0
        %v8096 = vadd.f32 0.0, %v8095
        %v8097 = vpop.f32.mrf.mxu0
        %v8098 = vpop.f32.mrf.mxu0
        %v8099 = vadd.f32 0.0, %v8098
        %v8100 = vpop.f32.mrf.mxu0
        %8101 = vdwg.mxu0
        %v8102 = vadd.f32 %v7904, %v7976
        %v8103 = vadd.f32 %v7905, %v7979
        %v8104 = vadd.f32 %v7906, %v7984
        %v8105 = vadd.f32 %v7907, %v7987
        %v8106 = vadd.f32 %v7908, %v7992
        %v8107 = vadd.f32 %v7909, %v7995
        %v8108 = vadd.f32 %v7910, %v8000
        %v8109 = vadd.f32 %v7911, %v8003
        %v8110 = vadd.f32 %v7912, %v8008
        %v8111 = vadd.f32 %v7913, %v8011
        %v8112 = vadd.f32 %v7914, %v8016
        %v8113 = vadd.f32 %v7915, %v8019
        %v8114 = vadd.f32 %v7916, %v8024
        %v8115 = vadd.f32 %v7917, %v8027
        %v8116 = vadd.f32 %v7918, %v8032
        %v8117 = vadd.f32 %v7919, %v8035
        %v8118 = vadd.f32 %v7920, %v8040
        %v8119 = vadd.f32 %v7921, %v8043
        %v8120 = vadd.f32 %v7922, %v8048
        %v8121 = vadd.f32 %v7923, %v8051
        %v8122 = vadd.f32 %v7924, %v8056
        %v8123 = vadd.f32 %v7925, %v8059
        %v8124 = vadd.f32 %v7926, %v8064
        %v8125 = vadd.f32 %v7927, %v8067
        %v8126 = vadd.f32 %v7928, %v8072
        %v8127 = vadd.f32 %v7929, %v8075
        %v8128 = vadd.f32 %v7930, %v8080
        %v8129 = vadd.f32 %v7931, %v8083
        %v8130 = vadd.f32 %v7932, %v8088
        %v8131 = vadd.f32 %v7933, %v8091
        %v8132 = vadd.f32 %v7934, %v8096
        %v8133 = vadd.f32 %v7935, %v8099
        %s8134 = scalar_lea.vmem %s9, 19
        %v8135 = vld [vmem:[%s8134] sm:$0x1]
        %v8137 = vsel %vm3685, %v8135, 0
        %8139 = vmatprep.subr.bf16.mxu0 0
        %8140 = vmatpush1.bf16.msra.mxu0 0
        %8141 = vmatprep.subr.bf16.mxu0 0
        %8142 = vmatpush1.bf16.msra.mxu0 0
        %8143 = vmatprep.subr.bf16.mxu0 0
        %8144 = vmatpush1.bf16.msra.mxu0 0
        %8145 = vmatprep.subr.bf16.mxu0 0
        %8146 = vmatpush1.bf16.msra.mxu0 0
        %8147 = vmatprep.subr.bf16.mxu0 0
        %8148 = vmatpush1.bf16.msra.mxu0 0
        %8149 = vmatprep.subr.bf16.mxu0 0
        %8150 = vmatpush1.bf16.msra.mxu0 0
        %8151 = vmatprep.subr.bf16.mxu0 0
        %8152 = vmatpush1.bf16.msra.mxu0 0
        %8153 = vmatprep.subr.bf16.mxu0 0
        %8154 = vmatpush1.bf16.msra.mxu0 %v8137
        %8155 = vmatprep.subr.bf16.mxu0 0
        %8156 = vmatpush2.bf16.msra.mxu0 0
        %8157 = vmatprep.subr.bf16.mxu0 0
        %8158 = vmatpush2.bf16.msra.mxu0 0
        %8159 = vmatprep.subr.bf16.mxu0 0
        %8160 = vmatpush2.bf16.msra.mxu0 0
        %8161 = vmatprep.subr.bf16.mxu0 0
        %8162 = vmatpush2.bf16.msra.mxu0 0
        %8163 = vmatprep.subr.bf16.mxu0 0
        %8164 = vmatpush2.bf16.msra.mxu0 0
        %8165 = vmatprep.subr.bf16.mxu0 0
        %8166 = vmatpush2.bf16.msra.mxu0 0
        %8167 = vmatprep.subr.bf16.mxu0 0
        %8168 = vmatpush2.bf16.msra.mxu0 0
        %8169 = vmatprep.subr.bf16.mxu0 0
        %8170 = vmatpush2.bf16.msra.mxu0 0
        %8171 = vmatprep.mubr.bf16.mxu0 0
        %8172 = vmatmul.mubr.bf16.gmra.mxu0 %v5046
        %v8173 = vpop.f32.mrf.mxu0
        %v8174 = vadd.f32 0.0, %v8173
        %v8175 = vpop.f32.mrf.mxu0
        %v8176 = vpop.f32.mrf.mxu0
        %v8177 = vadd.f32 0.0, %v8176
        %v8178 = vpop.f32.mrf.mxu0
        %8179 = vmatprep.mubr.bf16.mxu0 0
        %8180 = vmatmul.mubr.bf16.gmra.mxu0 %v5049
        %v8181 = vpop.f32.mrf.mxu0
        %v8182 = vadd.f32 0.0, %v8181
        %v8183 = vpop.f32.mrf.mxu0
        %v8184 = vpop.f32.mrf.mxu0
        %v8185 = vadd.f32 0.0, %v8184
        %v8186 = vpop.f32.mrf.mxu0
        %8187 = vmatprep.mubr.bf16.mxu0 0
        %8188 = vmatmul.mubr.bf16.gmra.mxu0 %v5052
        %v8189 = vpop.f32.mrf.mxu0
        %v8190 = vadd.f32 0.0, %v8189
        %v8191 = vpop.f32.mrf.mxu0
        %v8192 = vpop.f32.mrf.mxu0
        %v8193 = vadd.f32 0.0, %v8192
        %v8194 = vpop.f32.mrf.mxu0
        %8195 = vmatprep.mubr.bf16.mxu0 0
        %8196 = vmatmul.mubr.bf16.gmra.mxu0 %v5055
        %v8197 = vpop.f32.mrf.mxu0
        %v8198 = vadd.f32 0.0, %v8197
        %v8199 = vpop.f32.mrf.mxu0
        %v8200 = vpop.f32.mrf.mxu0
        %v8201 = vadd.f32 0.0, %v8200
        %v8202 = vpop.f32.mrf.mxu0
        %8203 = vmatprep.mubr.bf16.mxu0 0
        %8204 = vmatmul.mubr.bf16.gmra.mxu0 %v5058
        %v8205 = vpop.f32.mrf.mxu0
        %v8206 = vadd.f32 0.0, %v8205
        %v8207 = vpop.f32.mrf.mxu0
        %v8208 = vpop.f32.mrf.mxu0
        %v8209 = vadd.f32 0.0, %v8208
        %v8210 = vpop.f32.mrf.mxu0
        %8211 = vmatprep.mubr.bf16.mxu0 0
        %8212 = vmatmul.mubr.bf16.gmra.mxu0 %v5061
        %v8213 = vpop.f32.mrf.mxu0
        %v8214 = vadd.f32 0.0, %v8213
        %v8215 = vpop.f32.mrf.mxu0
        %v8216 = vpop.f32.mrf.mxu0
        %v8217 = vadd.f32 0.0, %v8216
        %v8218 = vpop.f32.mrf.mxu0
        %8219 = vmatprep.mubr.bf16.mxu0 0
        %8220 = vmatmul.mubr.bf16.gmra.mxu0 %v5064
        %v8221 = vpop.f32.mrf.mxu0
        %v8222 = vadd.f32 0.0, %v8221
        %v8223 = vpop.f32.mrf.mxu0
        %v8224 = vpop.f32.mrf.mxu0
        %v8225 = vadd.f32 0.0, %v8224
        %v8226 = vpop.f32.mrf.mxu0
        %8227 = vmatprep.mubr.bf16.mxu0 0
        %8228 = vmatmul.mubr.bf16.gmra.mxu0 %v5067
        %v8229 = vpop.f32.mrf.mxu0
        %v8230 = vadd.f32 0.0, %v8229
        %v8231 = vpop.f32.mrf.mxu0
        %v8232 = vpop.f32.mrf.mxu0
        %v8233 = vadd.f32 0.0, %v8232
        %v8234 = vpop.f32.mrf.mxu0
        %8235 = vmatprep.mubr.bf16.mxu0 0
        %8236 = vmatmul.mubr.bf16.gmra.mxu0 %v5070
        %v8237 = vpop.f32.mrf.mxu0
        %v8238 = vadd.f32 0.0, %v8237
        %v8239 = vpop.f32.mrf.mxu0
        %v8240 = vpop.f32.mrf.mxu0
        %v8241 = vadd.f32 0.0, %v8240
        %v8242 = vpop.f32.mrf.mxu0
        %8243 = vmatprep.mubr.bf16.mxu0 0
        %8244 = vmatmul.mubr.bf16.gmra.mxu0 %v5073
        %v8245 = vpop.f32.mrf.mxu0
        %v8246 = vadd.f32 0.0, %v8245
        %v8247 = vpop.f32.mrf.mxu0
        %v8248 = vpop.f32.mrf.mxu0
        %v8249 = vadd.f32 0.0, %v8248
        %v8250 = vpop.f32.mrf.mxu0
        %8251 = vmatprep.mubr.bf16.mxu0 0
        %8252 = vmatmul.mubr.bf16.gmra.mxu0 %v5076
        %v8253 = vpop.f32.mrf.mxu0
        %v8254 = vadd.f32 0.0, %v8253
        %v8255 = vpop.f32.mrf.mxu0
        %v8256 = vpop.f32.mrf.mxu0
        %v8257 = vadd.f32 0.0, %v8256
        %v8258 = vpop.f32.mrf.mxu0
        %8259 = vmatprep.mubr.bf16.mxu0 0
        %8260 = vmatmul.mubr.bf16.gmra.mxu0 %v5079
        %v8261 = vpop.f32.mrf.mxu0
        %v8262 = vadd.f32 0.0, %v8261
        %v8263 = vpop.f32.mrf.mxu0
        %v8264 = vpop.f32.mrf.mxu0
        %v8265 = vadd.f32 0.0, %v8264
        %v8266 = vpop.f32.mrf.mxu0
        %8267 = vmatprep.mubr.bf16.mxu0 0
        %8268 = vmatmul.mubr.bf16.gmra.mxu0 %v5082
        %v8269 = vpop.f32.mrf.mxu0
        %v8270 = vadd.f32 0.0, %v8269
        %v8271 = vpop.f32.mrf.mxu0
        %v8272 = vpop.f32.mrf.mxu0
        %v8273 = vadd.f32 0.0, %v8272
        %v8274 = vpop.f32.mrf.mxu0
        %8275 = vmatprep.mubr.bf16.mxu0 0
        %8276 = vmatmul.mubr.bf16.gmra.mxu0 %v6113
        %v8277 = vpop.f32.mrf.mxu0
        %v8278 = vadd.f32 0.0, %v8277
        %v8279 = vpop.f32.mrf.mxu0
        %v8280 = vpop.f32.mrf.mxu0
        %v8281 = vadd.f32 0.0, %v8280
        %v8282 = vpop.f32.mrf.mxu0
        %8283 = vmatprep.mubr.bf16.mxu0 0
        %8284 = vmatmul.mubr.bf16.gmra.mxu0 %v7144
        %v8285 = vpop.f32.mrf.mxu0
        %v8286 = vadd.f32 0.0, %v8285
        %v8287 = vpop.f32.mrf.mxu0
        %v8288 = vpop.f32.mrf.mxu0
        %v8289 = vadd.f32 0.0, %v8288
        %v8290 = vpop.f32.mrf.mxu0
        %8291 = vmatprep.mubr.bf16.mxu0 0
        %8292 = vmatmul.mubr.bf16.gmra.mxu0 %v5040
        %v8293 = vpop.f32.mrf.mxu0
        %v8294 = vadd.f32 0.0, %v8293
        %v8295 = vpop.f32.mrf.mxu0
        %v8296 = vpop.f32.mrf.mxu0
        %v8297 = vadd.f32 0.0, %v8296
        %v8298 = vpop.f32.mrf.mxu0
        %8299 = vdwg.mxu0
        %v8300 = vadd.f32 %v8102, %v8174
        %v8301 = vadd.f32 %v8103, %v8177
        %v8302 = vadd.f32 %v8104, %v8182
        %v8303 = vadd.f32 %v8105, %v8185
        %v8304 = vadd.f32 %v8106, %v8190
        %v8305 = vadd.f32 %v8107, %v8193
        %v8306 = vadd.f32 %v8108, %v8198
        %v8307 = vadd.f32 %v8109, %v8201
        %v8308 = vadd.f32 %v8110, %v8206
        %v8309 = vadd.f32 %v8111, %v8209
        %v8310 = vadd.f32 %v8112, %v8214
        %v8311 = vadd.f32 %v8113, %v8217
        %v8312 = vadd.f32 %v8114, %v8222
        %v8313 = vadd.f32 %v8115, %v8225
        %v8314 = vadd.f32 %v8116, %v8230
        %v8315 = vadd.f32 %v8117, %v8233
        %v8316 = vadd.f32 %v8118, %v8238
        %v8317 = vadd.f32 %v8119, %v8241
        %v8318 = vadd.f32 %v8120, %v8246
        %v8319 = vadd.f32 %v8121, %v8249
        %v8320 = vadd.f32 %v8122, %v8254
        %v8321 = vadd.f32 %v8123, %v8257
        %v8322 = vadd.f32 %v8124, %v8262
        %v8323 = vadd.f32 %v8125, %v8265
        %v8324 = vadd.f32 %v8126, %v8270
        %v8325 = vadd.f32 %v8127, %v8273
        %v8326 = vadd.f32 %v8128, %v8278
        %v8327 = vadd.f32 %v8129, %v8281
        %v8328 = vadd.f32 %v8130, %v8286
        %v8329 = vadd.f32 %v8131, %v8289
        %v8330 = vadd.f32 %v8132, %v8294
        %v8331 = vadd.f32 %v8133, %v8297
        %s8332 = scalar_lea.vmem %s9, 20
        %v8333 = vld [vmem:[%s8332] sm:$0x1]
        %v8335 = vsel %vm3685, %v8333, 0
        %8337 = vmatprep.subr.bf16.mxu0 0
        %8338 = vmatpush1.bf16.msra.mxu0 0
        %8339 = vmatprep.subr.bf16.mxu0 0
        %8340 = vmatpush1.bf16.msra.mxu0 0
        %8341 = vmatprep.subr.bf16.mxu0 0
        %8342 = vmatpush1.bf16.msra.mxu0 0
        %8343 = vmatprep.subr.bf16.mxu0 0
        %8344 = vmatpush1.bf16.msra.mxu0 0
        %8345 = vmatprep.subr.bf16.mxu0 0
        %8346 = vmatpush1.bf16.msra.mxu0 0
        %8347 = vmatprep.subr.bf16.mxu0 0
        %8348 = vmatpush1.bf16.msra.mxu0 0
        %8349 = vmatprep.subr.bf16.mxu0 0
        %8350 = vmatpush1.bf16.msra.mxu0 0
        %8351 = vmatprep.subr.bf16.mxu0 0
        %8352 = vmatpush1.bf16.msra.mxu0 %v8335
        %8353 = vmatprep.subr.bf16.mxu0 0
        %8354 = vmatpush2.bf16.msra.mxu0 0
        %8355 = vmatprep.subr.bf16.mxu0 0
        %8356 = vmatpush2.bf16.msra.mxu0 0
        %8357 = vmatprep.subr.bf16.mxu0 0
        %8358 = vmatpush2.bf16.msra.mxu0 0
        %8359 = vmatprep.subr.bf16.mxu0 0
        %8360 = vmatpush2.bf16.msra.mxu0 0
        %8361 = vmatprep.subr.bf16.mxu0 0
        %8362 = vmatpush2.bf16.msra.mxu0 0
        %8363 = vmatprep.subr.bf16.mxu0 0
        %8364 = vmatpush2.bf16.msra.mxu0 0
        %8365 = vmatprep.subr.bf16.mxu0 0
        %8366 = vmatpush2.bf16.msra.mxu0 0
        %8367 = vmatprep.subr.bf16.mxu0 0
        %8368 = vmatpush2.bf16.msra.mxu0 0
        %8369 = vmatprep.mubr.bf16.mxu0 0
        %8370 = vmatmul.mubr.bf16.gmra.mxu0 %v4106
        %v8371 = vpop.f32.mrf.mxu0
        %v8372 = vadd.f32 0.0, %v8371
        %v8373 = vpop.f32.mrf.mxu0
        %v8374 = vpop.f32.mrf.mxu0
        %v8375 = vadd.f32 0.0, %v8374
        %v8376 = vpop.f32.mrf.mxu0
        %8377 = vmatprep.mubr.bf16.mxu0 0
        %8378 = vmatmul.mubr.bf16.gmra.mxu0 %v4108
        %v8379 = vpop.f32.mrf.mxu0
        %v8380 = vadd.f32 0.0, %v8379
        %v8381 = vpop.f32.mrf.mxu0
        %v8382 = vpop.f32.mrf.mxu0
        %v8383 = vadd.f32 0.0, %v8382
        %v8384 = vpop.f32.mrf.mxu0
        %8385 = vmatprep.mubr.bf16.mxu0 0
        %8386 = vmatmul.mubr.bf16.gmra.mxu0 %v4110
        %v8387 = vpop.f32.mrf.mxu0
        %v8388 = vadd.f32 0.0, %v8387
        %v8389 = vpop.f32.mrf.mxu0
        %v8390 = vpop.f32.mrf.mxu0
        %v8391 = vadd.f32 0.0, %v8390
        %v8392 = vpop.f32.mrf.mxu0
        %8393 = vmatprep.mubr.bf16.mxu0 0
        %8394 = vmatmul.mubr.bf16.gmra.mxu0 %v4112
        %v8395 = vpop.f32.mrf.mxu0
        %v8396 = vadd.f32 0.0, %v8395
        %v8397 = vpop.f32.mrf.mxu0
        %v8398 = vpop.f32.mrf.mxu0
        %v8399 = vadd.f32 0.0, %v8398
        %v8400 = vpop.f32.mrf.mxu0
        %8401 = vmatprep.mubr.bf16.mxu0 0
        %8402 = vmatmul.mubr.bf16.gmra.mxu0 %v4114
        %v8403 = vpop.f32.mrf.mxu0
        %v8404 = vadd.f32 0.0, %v8403
        %v8405 = vpop.f32.mrf.mxu0
        %v8406 = vpop.f32.mrf.mxu0
        %v8407 = vadd.f32 0.0, %v8406
        %v8408 = vpop.f32.mrf.mxu0
        %8409 = vmatprep.mubr.bf16.mxu0 0
        %8410 = vmatmul.mubr.bf16.gmra.mxu0 %v4116
        %v8411 = vpop.f32.mrf.mxu0
        %v8412 = vadd.f32 0.0, %v8411
        %v8413 = vpop.f32.mrf.mxu0
        %v8414 = vpop.f32.mrf.mxu0
        %v8415 = vadd.f32 0.0, %v8414
        %v8416 = vpop.f32.mrf.mxu0
        %8417 = vmatprep.mubr.bf16.mxu0 0
        %8418 = vmatmul.mubr.bf16.gmra.mxu0 %v4118
        %v8419 = vpop.f32.mrf.mxu0
        %v8420 = vadd.f32 0.0, %v8419
        %v8421 = vpop.f32.mrf.mxu0
        %v8422 = vpop.f32.mrf.mxu0
        %v8423 = vadd.f32 0.0, %v8422
        %v8424 = vpop.f32.mrf.mxu0
        %8425 = vmatprep.mubr.bf16.mxu0 0
        %8426 = vmatmul.mubr.bf16.gmra.mxu0 %v4120
        %v8427 = vpop.f32.mrf.mxu0
        %v8428 = vadd.f32 0.0, %v8427
        %v8429 = vpop.f32.mrf.mxu0
        %v8430 = vpop.f32.mrf.mxu0
        %v8431 = vadd.f32 0.0, %v8430
        %v8432 = vpop.f32.mrf.mxu0
        %8433 = vmatprep.mubr.bf16.mxu0 0
        %8434 = vmatmul.mubr.bf16.gmra.mxu0 %v4122
        %v8435 = vpop.f32.mrf.mxu0
        %v8436 = vadd.f32 0.0, %v8435
        %v8437 = vpop.f32.mrf.mxu0
        %v8438 = vpop.f32.mrf.mxu0
        %v8439 = vadd.f32 0.0, %v8438
        %v8440 = vpop.f32.mrf.mxu0
        %8441 = vmatprep.mubr.bf16.mxu0 0
        %8442 = vmatmul.mubr.bf16.gmra.mxu0 %v4124
        %v8443 = vpop.f32.mrf.mxu0
        %v8444 = vadd.f32 0.0, %v8443
        %v8445 = vpop.f32.mrf.mxu0
        %v8446 = vpop.f32.mrf.mxu0
        %v8447 = vadd.f32 0.0, %v8446
        %v8448 = vpop.f32.mrf.mxu0
        %8449 = vmatprep.mubr.bf16.mxu0 0
        %8450 = vmatmul.mubr.bf16.gmra.mxu0 %v4126
        %v8451 = vpop.f32.mrf.mxu0
        %v8452 = vadd.f32 0.0, %v8451
        %v8453 = vpop.f32.mrf.mxu0
        %v8454 = vpop.f32.mrf.mxu0
        %v8455 = vadd.f32 0.0, %v8454
        %v8456 = vpop.f32.mrf.mxu0
        %8457 = vmatprep.mubr.bf16.mxu0 0
        %8458 = vmatmul.mubr.bf16.gmra.mxu0 %v4128
        %v8459 = vpop.f32.mrf.mxu0
        %v8460 = vadd.f32 0.0, %v8459
        %v8461 = vpop.f32.mrf.mxu0
        %v8462 = vpop.f32.mrf.mxu0
        %v8463 = vadd.f32 0.0, %v8462
        %v8464 = vpop.f32.mrf.mxu0
        %8465 = vmatprep.mubr.bf16.mxu0 0
        %8466 = vmatmul.mubr.bf16.gmra.mxu0 %v5282
        %v8467 = vpop.f32.mrf.mxu0
        %v8468 = vadd.f32 0.0, %v8467
        %v8469 = vpop.f32.mrf.mxu0
        %v8470 = vpop.f32.mrf.mxu0
        %v8471 = vadd.f32 0.0, %v8470
        %v8472 = vpop.f32.mrf.mxu0
        %8473 = vmatprep.mubr.bf16.mxu0 0
        %8474 = vmatmul.mubr.bf16.gmra.mxu0 %v6313
        %v8475 = vpop.f32.mrf.mxu0
        %v8476 = vadd.f32 0.0, %v8475
        %v8477 = vpop.f32.mrf.mxu0
        %v8478 = vpop.f32.mrf.mxu0
        %v8479 = vadd.f32 0.0, %v8478
        %v8480 = vpop.f32.mrf.mxu0
        %8481 = vmatprep.mubr.bf16.mxu0 0
        %8482 = vmatmul.mubr.bf16.gmra.mxu0 %v4100
        %v8483 = vpop.f32.mrf.mxu0
        %v8484 = vadd.f32 0.0, %v8483
        %v8485 = vpop.f32.mrf.mxu0
        %v8486 = vpop.f32.mrf.mxu0
        %v8487 = vadd.f32 0.0, %v8486
        %v8488 = vpop.f32.mrf.mxu0
        %8489 = vmatprep.mubr.bf16.mxu0 0
        %8490 = vmatmul.mubr.bf16.gmra.mxu0 %v4100
        %v8491 = vpop.f32.mrf.mxu0
        %v8492 = vadd.f32 0.0, %v8491
        %v8493 = vpop.f32.mrf.mxu0
        %v8494 = vpop.f32.mrf.mxu0
        %v8495 = vadd.f32 0.0, %v8494
        %v8496 = vpop.f32.mrf.mxu0
        %8497 = vdwg.mxu0
        %v8498 = vadd.f32 %v8300, %v8372
        %v8499 = vadd.f32 %v8301, %v8375
        %v8500 = vadd.f32 %v8302, %v8380
        %v8501 = vadd.f32 %v8303, %v8383
        %v8502 = vadd.f32 %v8304, %v8388
        %v8503 = vadd.f32 %v8305, %v8391
        %v8504 = vadd.f32 %v8306, %v8396
        %v8505 = vadd.f32 %v8307, %v8399
        %v8506 = vadd.f32 %v8308, %v8404
        %v8507 = vadd.f32 %v8309, %v8407
        %v8508 = vadd.f32 %v8310, %v8412
        %v8509 = vadd.f32 %v8311, %v8415
        %v8510 = vadd.f32 %v8312, %v8420
        %v8511 = vadd.f32 %v8313, %v8423
        %v8512 = vadd.f32 %v8314, %v8428
        %v8513 = vadd.f32 %v8315, %v8431
        %v8514 = vadd.f32 %v8316, %v8436
        %v8515 = vadd.f32 %v8317, %v8439
        %v8516 = vadd.f32 %v8318, %v8444
        %v8517 = vadd.f32 %v8319, %v8447
        %v8518 = vadd.f32 %v8320, %v8452
        %v8519 = vadd.f32 %v8321, %v8455
        %v8520 = vadd.f32 %v8322, %v8460
        %v8521 = vadd.f32 %v8323, %v8463
        %v8522 = vadd.f32 %v8324, %v8468
        %v8523 = vadd.f32 %v8325, %v8471
        %v8524 = vadd.f32 %v8326, %v8476
        %v8525 = vadd.f32 %v8327, %v8479
        %v8526 = vadd.f32 %v8328, %v8484
        %v8527 = vadd.f32 %v8329, %v8487
        %v8528 = vadd.f32 %v8330, %v8492
        %v8529 = vadd.f32 %v8331, %v8495
        %s8530 = scalar_lea.vmem %s9, 21
        %v8531 = vld [vmem:[%s8530] sm:$0x1]
        %v8533 = vsel %vm3685, %v8531, 0
        %8535 = vmatprep.subr.bf16.mxu0 0
        %8536 = vmatpush1.bf16.msra.mxu0 0
        %8537 = vmatprep.subr.bf16.mxu0 0
        %8538 = vmatpush1.bf16.msra.mxu0 0
        %8539 = vmatprep.subr.bf16.mxu0 0
        %8540 = vmatpush1.bf16.msra.mxu0 0
        %8541 = vmatprep.subr.bf16.mxu0 0
        %8542 = vmatpush1.bf16.msra.mxu0 0
        %8543 = vmatprep.subr.bf16.mxu0 0
        %8544 = vmatpush1.bf16.msra.mxu0 0
        %8545 = vmatprep.subr.bf16.mxu0 0
        %8546 = vmatpush1.bf16.msra.mxu0 0
        %8547 = vmatprep.subr.bf16.mxu0 0
        %8548 = vmatpush1.bf16.msra.mxu0 0
        %8549 = vmatprep.subr.bf16.mxu0 0
        %8550 = vmatpush1.bf16.msra.mxu0 %v8533
        %8551 = vmatprep.subr.bf16.mxu0 0
        %8552 = vmatpush2.bf16.msra.mxu0 0
        %8553 = vmatprep.subr.bf16.mxu0 0
        %8554 = vmatpush2.bf16.msra.mxu0 0
        %8555 = vmatprep.subr.bf16.mxu0 0
        %8556 = vmatpush2.bf16.msra.mxu0 0
        %8557 = vmatprep.subr.bf16.mxu0 0
        %8558 = vmatpush2.bf16.msra.mxu0 0
        %8559 = vmatprep.subr.bf16.mxu0 0
        %8560 = vmatpush2.bf16.msra.mxu0 0
        %8561 = vmatprep.subr.bf16.mxu0 0
        %8562 = vmatpush2.bf16.msra.mxu0 0
        %8563 = vmatprep.subr.bf16.mxu0 0
        %8564 = vmatpush2.bf16.msra.mxu0 0
        %8565 = vmatprep.subr.bf16.mxu0 0
        %8566 = vmatpush2.bf16.msra.mxu0 0
        %8567 = vmatprep.mubr.bf16.mxu0 0
        %8568 = vmatmul.mubr.bf16.gmra.mxu0 %v3901
        %v8569 = vpop.f32.mrf.mxu0
        %v8570 = vadd.f32 0.0, %v8569
        %v8571 = vpop.f32.mrf.mxu0
        %v8572 = vpop.f32.mrf.mxu0
        %v8573 = vadd.f32 0.0, %v8572
        %v8574 = vpop.f32.mrf.mxu0
        %8575 = vmatprep.mubr.bf16.mxu0 0
        %8576 = vmatmul.mubr.bf16.gmra.mxu0 %v3904
        %v8577 = vpop.f32.mrf.mxu0
        %v8578 = vadd.f32 0.0, %v8577
        %v8579 = vpop.f32.mrf.mxu0
        %v8580 = vpop.f32.mrf.mxu0
        %v8581 = vadd.f32 0.0, %v8580
        %v8582 = vpop.f32.mrf.mxu0
        %8583 = vmatprep.mubr.bf16.mxu0 0
        %8584 = vmatmul.mubr.bf16.gmra.mxu0 %v3907
        %v8585 = vpop.f32.mrf.mxu0
        %v8586 = vadd.f32 0.0, %v8585
        %v8587 = vpop.f32.mrf.mxu0
        %v8588 = vpop.f32.mrf.mxu0
        %v8589 = vadd.f32 0.0, %v8588
        %v8590 = vpop.f32.mrf.mxu0
        %8591 = vmatprep.mubr.bf16.mxu0 0
        %8592 = vmatmul.mubr.bf16.gmra.mxu0 %v3910
        %v8593 = vpop.f32.mrf.mxu0
        %v8594 = vadd.f32 0.0, %v8593
        %v8595 = vpop.f32.mrf.mxu0
        %v8596 = vpop.f32.mrf.mxu0
        %v8597 = vadd.f32 0.0, %v8596
        %v8598 = vpop.f32.mrf.mxu0
        %8599 = vmatprep.mubr.bf16.mxu0 0
        %8600 = vmatmul.mubr.bf16.gmra.mxu0 %v3913
        %v8601 = vpop.f32.mrf.mxu0
        %v8602 = vadd.f32 0.0, %v8601
        %v8603 = vpop.f32.mrf.mxu0
        %v8604 = vpop.f32.mrf.mxu0
        %v8605 = vadd.f32 0.0, %v8604
        %v8606 = vpop.f32.mrf.mxu0
        %8607 = vmatprep.mubr.bf16.mxu0 0
        %8608 = vmatmul.mubr.bf16.gmra.mxu0 %v3916
        %v8609 = vpop.f32.mrf.mxu0
        %v8610 = vadd.f32 0.0, %v8609
        %v8611 = vpop.f32.mrf.mxu0
        %v8612 = vpop.f32.mrf.mxu0
        %v8613 = vadd.f32 0.0, %v8612
        %v8614 = vpop.f32.mrf.mxu0
        %8615 = vmatprep.mubr.bf16.mxu0 0
        %8616 = vmatmul.mubr.bf16.gmra.mxu0 %v3919
        %v8617 = vpop.f32.mrf.mxu0
        %v8618 = vadd.f32 0.0, %v8617
        %v8619 = vpop.f32.mrf.mxu0
        %v8620 = vpop.f32.mrf.mxu0
        %v8621 = vadd.f32 0.0, %v8620
        %v8622 = vpop.f32.mrf.mxu0
        %8623 = vmatprep.mubr.bf16.mxu0 0
        %8624 = vmatmul.mubr.bf16.gmra.mxu0 %v3922
        %v8625 = vpop.f32.mrf.mxu0
        %v8626 = vadd.f32 0.0, %v8625
        %v8627 = vpop.f32.mrf.mxu0
        %v8628 = vpop.f32.mrf.mxu0
        %v8629 = vadd.f32 0.0, %v8628
        %v8630 = vpop.f32.mrf.mxu0
        %8631 = vmatprep.mubr.bf16.mxu0 0
        %8632 = vmatmul.mubr.bf16.gmra.mxu0 %v3925
        %v8633 = vpop.f32.mrf.mxu0
        %v8634 = vadd.f32 0.0, %v8633
        %v8635 = vpop.f32.mrf.mxu0
        %v8636 = vpop.f32.mrf.mxu0
        %v8637 = vadd.f32 0.0, %v8636
        %v8638 = vpop.f32.mrf.mxu0
        %8639 = vmatprep.mubr.bf16.mxu0 0
        %8640 = vmatmul.mubr.bf16.gmra.mxu0 %v3928
        %v8641 = vpop.f32.mrf.mxu0
        %v8642 = vadd.f32 0.0, %v8641
        %v8643 = vpop.f32.mrf.mxu0
        %v8644 = vpop.f32.mrf.mxu0
        %v8645 = vadd.f32 0.0, %v8644
        %v8646 = vpop.f32.mrf.mxu0
        %8647 = vmatprep.mubr.bf16.mxu0 0
        %8648 = vmatmul.mubr.bf16.gmra.mxu0 %v3931
        %v8649 = vpop.f32.mrf.mxu0
        %v8650 = vadd.f32 0.0, %v8649
        %v8651 = vpop.f32.mrf.mxu0
        %v8652 = vpop.f32.mrf.mxu0
        %v8653 = vadd.f32 0.0, %v8652
        %v8654 = vpop.f32.mrf.mxu0
        %8655 = vmatprep.mubr.bf16.mxu0 0
        %8656 = vmatmul.mubr.bf16.gmra.mxu0 %v3934
        %v8657 = vpop.f32.mrf.mxu0
        %v8658 = vadd.f32 0.0, %v8657
        %v8659 = vpop.f32.mrf.mxu0
        %v8660 = vpop.f32.mrf.mxu0
        %v8661 = vadd.f32 0.0, %v8660
        %v8662 = vpop.f32.mrf.mxu0
        %8663 = vmatprep.mubr.bf16.mxu0 0
        %8664 = vmatmul.mubr.bf16.gmra.mxu0 %v5493
        %v8665 = vpop.f32.mrf.mxu0
        %v8666 = vadd.f32 0.0, %v8665
        %v8667 = vpop.f32.mrf.mxu0
        %v8668 = vpop.f32.mrf.mxu0
        %v8669 = vadd.f32 0.0, %v8668
        %v8670 = vpop.f32.mrf.mxu0
        %8671 = vmatprep.mubr.bf16.mxu0 0
        %8672 = vmatmul.mubr.bf16.gmra.mxu0 %v6524
        %v8673 = vpop.f32.mrf.mxu0
        %v8674 = vadd.f32 0.0, %v8673
        %v8675 = vpop.f32.mrf.mxu0
        %v8676 = vpop.f32.mrf.mxu0
        %v8677 = vadd.f32 0.0, %v8676
        %v8678 = vpop.f32.mrf.mxu0
        %8679 = vmatprep.mubr.bf16.mxu0 0
        %8680 = vmatmul.mubr.bf16.gmra.mxu0 %v3892
        %v8681 = vpop.f32.mrf.mxu0
        %v8682 = vadd.f32 0.0, %v8681
        %v8683 = vpop.f32.mrf.mxu0
        %v8684 = vpop.f32.mrf.mxu0
        %v8685 = vadd.f32 0.0, %v8684
        %v8686 = vpop.f32.mrf.mxu0
        %8687 = vmatprep.mubr.bf16.mxu0 0
        %8688 = vmatmul.mubr.bf16.gmra.mxu0 %v3892
        %v8689 = vpop.f32.mrf.mxu0
        %v8690 = vadd.f32 0.0, %v8689
        %v8691 = vpop.f32.mrf.mxu0
        %v8692 = vpop.f32.mrf.mxu0
        %v8693 = vadd.f32 0.0, %v8692
        %v8694 = vpop.f32.mrf.mxu0
        %8695 = vdwg.mxu0
        %v8696 = vadd.f32 %v8498, %v8570
        %v8697 = vadd.f32 %v8499, %v8573
        %v8698 = vadd.f32 %v8500, %v8578
        %v8699 = vadd.f32 %v8501, %v8581
        %v8700 = vadd.f32 %v8502, %v8586
        %v8701 = vadd.f32 %v8503, %v8589
        %v8702 = vadd.f32 %v8504, %v8594
        %v8703 = vadd.f32 %v8505, %v8597
        %v8704 = vadd.f32 %v8506, %v8602
        %v8705 = vadd.f32 %v8507, %v8605
        %v8706 = vadd.f32 %v8508, %v8610
        %v8707 = vadd.f32 %v8509, %v8613
        %v8708 = vadd.f32 %v8510, %v8618
        %v8709 = vadd.f32 %v8511, %v8621
        %v8710 = vadd.f32 %v8512, %v8626
        %v8711 = vadd.f32 %v8513, %v8629
        %v8712 = vadd.f32 %v8514, %v8634
        %v8713 = vadd.f32 %v8515, %v8637
        %v8714 = vadd.f32 %v8516, %v8642
        %v8715 = vadd.f32 %v8517, %v8645
        %v8716 = vadd.f32 %v8518, %v8650
        %v8717 = vadd.f32 %v8519, %v8653
        %v8718 = vadd.f32 %v8520, %v8658
        %v8719 = vadd.f32 %v8521, %v8661
        %v8720 = vadd.f32 %v8522, %v8666
        %v8721 = vadd.f32 %v8523, %v8669
        %v8722 = vadd.f32 %v8524, %v8674
        %v8723 = vadd.f32 %v8525, %v8677
        %v8724 = vadd.f32 %v8526, %v8682
        %v8725 = vadd.f32 %v8527, %v8685
        %v8726 = vadd.f32 %v8528, %v8690
        %v8727 = vadd.f32 %v8529, %v8693
        %s8728 = scalar_lea.vmem %s9, 22
        %v8729 = vld [vmem:[%s8728] sm:$0x1]
        %v8731 = vsel %vm3685, %v8729, 0
        %8733 = vmatprep.subr.bf16.mxu0 0
        %8734 = vmatpush1.bf16.msra.mxu0 0
        %8735 = vmatprep.subr.bf16.mxu0 0
        %8736 = vmatpush1.bf16.msra.mxu0 0
        %8737 = vmatprep.subr.bf16.mxu0 0
        %8738 = vmatpush1.bf16.msra.mxu0 0
        %8739 = vmatprep.subr.bf16.mxu0 0
        %8740 = vmatpush1.bf16.msra.mxu0 0
        %8741 = vmatprep.subr.bf16.mxu0 0
        %8742 = vmatpush1.bf16.msra.mxu0 0
        %8743 = vmatprep.subr.bf16.mxu0 0
        %8744 = vmatpush1.bf16.msra.mxu0 0
        %8745 = vmatprep.subr.bf16.mxu0 0
        %8746 = vmatpush1.bf16.msra.mxu0 0
        %8747 = vmatprep.subr.bf16.mxu0 0
        %8748 = vmatpush1.bf16.msra.mxu0 %v8731
        %8749 = vmatprep.subr.bf16.mxu0 0
        %8750 = vmatpush2.bf16.msra.mxu0 0
        %8751 = vmatprep.subr.bf16.mxu0 0
        %8752 = vmatpush2.bf16.msra.mxu0 0
        %8753 = vmatprep.subr.bf16.mxu0 0
        %8754 = vmatpush2.bf16.msra.mxu0 0
        %8755 = vmatprep.subr.bf16.mxu0 0
        %8756 = vmatpush2.bf16.msra.mxu0 0
        %8757 = vmatprep.subr.bf16.mxu0 0
        %8758 = vmatpush2.bf16.msra.mxu0 0
        %8759 = vmatprep.subr.bf16.mxu0 0
        %8760 = vmatpush2.bf16.msra.mxu0 0
        %8761 = vmatprep.subr.bf16.mxu0 0
        %8762 = vmatpush2.bf16.msra.mxu0 0
        %8763 = vmatprep.subr.bf16.mxu0 0
        %8764 = vmatpush2.bf16.msra.mxu0 0
        %8765 = vmatprep.mubr.bf16.mxu0 0
        %8766 = vmatmul.mubr.bf16.gmra.mxu0 %v4381
        %v8767 = vpop.f32.mrf.mxu0
        %v8768 = vadd.f32 0.0, %v8767
        %v8769 = vpop.f32.mrf.mxu0
        %v8770 = vpop.f32.mrf.mxu0
        %v8771 = vadd.f32 0.0, %v8770
        %v8772 = vpop.f32.mrf.mxu0
        %8773 = vmatprep.mubr.bf16.mxu0 0
        %8774 = vmatmul.mubr.bf16.gmra.mxu0 %v4384
        %v8775 = vpop.f32.mrf.mxu0
        %v8776 = vadd.f32 0.0, %v8775
        %v8777 = vpop.f32.mrf.mxu0
        %v8778 = vpop.f32.mrf.mxu0
        %v8779 = vadd.f32 0.0, %v8778
        %v8780 = vpop.f32.mrf.mxu0
        %8781 = vmatprep.mubr.bf16.mxu0 0
        %8782 = vmatmul.mubr.bf16.gmra.mxu0 %v4387
        %v8783 = vpop.f32.mrf.mxu0
        %v8784 = vadd.f32 0.0, %v8783
        %v8785 = vpop.f32.mrf.mxu0
        %v8786 = vpop.f32.mrf.mxu0
        %v8787 = vadd.f32 0.0, %v8786
        %v8788 = vpop.f32.mrf.mxu0
        %8789 = vmatprep.mubr.bf16.mxu0 0
        %8790 = vmatmul.mubr.bf16.gmra.mxu0 %v4390
        %v8791 = vpop.f32.mrf.mxu0
        %v8792 = vadd.f32 0.0, %v8791
        %v8793 = vpop.f32.mrf.mxu0
        %v8794 = vpop.f32.mrf.mxu0
        %v8795 = vadd.f32 0.0, %v8794
        %v8796 = vpop.f32.mrf.mxu0
        %8797 = vmatprep.mubr.bf16.mxu0 0
        %8798 = vmatmul.mubr.bf16.gmra.mxu0 %v4393
        %v8799 = vpop.f32.mrf.mxu0
        %v8800 = vadd.f32 0.0, %v8799
        %v8801 = vpop.f32.mrf.mxu0
        %v8802 = vpop.f32.mrf.mxu0
        %v8803 = vadd.f32 0.0, %v8802
        %v8804 = vpop.f32.mrf.mxu0
        %8805 = vmatprep.mubr.bf16.mxu0 0
        %8806 = vmatmul.mubr.bf16.gmra.mxu0 %v4396
        %v8807 = vpop.f32.mrf.mxu0
        %v8808 = vadd.f32 0.0, %v8807
        %v8809 = vpop.f32.mrf.mxu0
        %v8810 = vpop.f32.mrf.mxu0
        %v8811 = vadd.f32 0.0, %v8810
        %v8812 = vpop.f32.mrf.mxu0
        %8813 = vmatprep.mubr.bf16.mxu0 0
        %8814 = vmatmul.mubr.bf16.gmra.mxu0 %v4399
        %v8815 = vpop.f32.mrf.mxu0
        %v8816 = vadd.f32 0.0, %v8815
        %v8817 = vpop.f32.mrf.mxu0
        %v8818 = vpop.f32.mrf.mxu0
        %v8819 = vadd.f32 0.0, %v8818
        %v8820 = vpop.f32.mrf.mxu0
        %8821 = vmatprep.mubr.bf16.mxu0 0
        %8822 = vmatmul.mubr.bf16.gmra.mxu0 %v4402
        %v8823 = vpop.f32.mrf.mxu0
        %v8824 = vadd.f32 0.0, %v8823
        %v8825 = vpop.f32.mrf.mxu0
        %v8826 = vpop.f32.mrf.mxu0
        %v8827 = vadd.f32 0.0, %v8826
        %v8828 = vpop.f32.mrf.mxu0
        %8829 = vmatprep.mubr.bf16.mxu0 0
        %8830 = vmatmul.mubr.bf16.gmra.mxu0 %v4405
        %v8831 = vpop.f32.mrf.mxu0
        %v8832 = vadd.f32 0.0, %v8831
        %v8833 = vpop.f32.mrf.mxu0
        %v8834 = vpop.f32.mrf.mxu0
        %v8835 = vadd.f32 0.0, %v8834
        %v8836 = vpop.f32.mrf.mxu0
        %8837 = vmatprep.mubr.bf16.mxu0 0
        %8838 = vmatmul.mubr.bf16.gmra.mxu0 %v4408
        %v8839 = vpop.f32.mrf.mxu0
        %v8840 = vadd.f32 0.0, %v8839
        %v8841 = vpop.f32.mrf.mxu0
        %v8842 = vpop.f32.mrf.mxu0
        %v8843 = vadd.f32 0.0, %v8842
        %v8844 = vpop.f32.mrf.mxu0
        %8845 = vmatprep.mubr.bf16.mxu0 0
        %8846 = vmatmul.mubr.bf16.gmra.mxu0 %v4411
        %v8847 = vpop.f32.mrf.mxu0
        %v8848 = vadd.f32 0.0, %v8847
        %v8849 = vpop.f32.mrf.mxu0
        %v8850 = vpop.f32.mrf.mxu0
        %v8851 = vadd.f32 0.0, %v8850
        %v8852 = vpop.f32.mrf.mxu0
        %8853 = vmatprep.mubr.bf16.mxu0 0
        %8854 = vmatmul.mubr.bf16.gmra.mxu0 %v4414
        %v8855 = vpop.f32.mrf.mxu0
        %v8856 = vadd.f32 0.0, %v8855
        %v8857 = vpop.f32.mrf.mxu0
        %v8858 = vpop.f32.mrf.mxu0
        %v8859 = vadd.f32 0.0, %v8858
        %v8860 = vpop.f32.mrf.mxu0
        %8861 = vmatprep.mubr.bf16.mxu0 0
        %8862 = vmatmul.mubr.bf16.gmra.mxu0 %v5699
        %v8863 = vpop.f32.mrf.mxu0
        %v8864 = vadd.f32 0.0, %v8863
        %v8865 = vpop.f32.mrf.mxu0
        %v8866 = vpop.f32.mrf.mxu0
        %v8867 = vadd.f32 0.0, %v8866
        %v8868 = vpop.f32.mrf.mxu0
        %8869 = vmatprep.mubr.bf16.mxu0 0
        %8870 = vmatmul.mubr.bf16.gmra.mxu0 %v6730
        %v8871 = vpop.f32.mrf.mxu0
        %v8872 = vadd.f32 0.0, %v8871
        %v8873 = vpop.f32.mrf.mxu0
        %v8874 = vpop.f32.mrf.mxu0
        %v8875 = vadd.f32 0.0, %v8874
        %v8876 = vpop.f32.mrf.mxu0
        %8877 = vmatprep.mubr.bf16.mxu0 0
        %8878 = vmatmul.mubr.bf16.gmra.mxu0 %v4372
        %v8879 = vpop.f32.mrf.mxu0
        %v8880 = vadd.f32 0.0, %v8879
        %v8881 = vpop.f32.mrf.mxu0
        %v8882 = vpop.f32.mrf.mxu0
        %v8883 = vadd.f32 0.0, %v8882
        %v8884 = vpop.f32.mrf.mxu0
        %8885 = vmatprep.mubr.bf16.mxu0 0
        %8886 = vmatmul.mubr.bf16.gmra.mxu0 %v4372
        %v8887 = vpop.f32.mrf.mxu0
        %v8888 = vadd.f32 0.0, %v8887
        %v8889 = vpop.f32.mrf.mxu0
        %v8890 = vpop.f32.mrf.mxu0
        %v8891 = vadd.f32 0.0, %v8890
        %v8892 = vpop.f32.mrf.mxu0
        %8893 = vdwg.mxu0
        %v8894 = vadd.f32 %v8696, %v8768
        %v8895 = vadd.f32 %v8697, %v8771
        %v8896 = vadd.f32 %v8698, %v8776
        %v8897 = vadd.f32 %v8699, %v8779
        %v8898 = vadd.f32 %v8700, %v8784
        %v8899 = vadd.f32 %v8701, %v8787
        %v8900 = vadd.f32 %v8702, %v8792
        %v8901 = vadd.f32 %v8703, %v8795
        %v8902 = vadd.f32 %v8704, %v8800
        %v8903 = vadd.f32 %v8705, %v8803
        %v8904 = vadd.f32 %v8706, %v8808
        %v8905 = vadd.f32 %v8707, %v8811
        %v8906 = vadd.f32 %v8708, %v8816
        %v8907 = vadd.f32 %v8709, %v8819
        %v8908 = vadd.f32 %v8710, %v8824
        %v8909 = vadd.f32 %v8711, %v8827
        %v8910 = vadd.f32 %v8712, %v8832
        %v8911 = vadd.f32 %v8713, %v8835
        %v8912 = vadd.f32 %v8714, %v8840
        %v8913 = vadd.f32 %v8715, %v8843
        %v8914 = vadd.f32 %v8716, %v8848
        %v8915 = vadd.f32 %v8717, %v8851
        %v8916 = vadd.f32 %v8718, %v8856
        %v8917 = vadd.f32 %v8719, %v8859
        %v8918 = vadd.f32 %v8720, %v8864
        %v8919 = vadd.f32 %v8721, %v8867
        %v8920 = vadd.f32 %v8722, %v8872
        %v8921 = vadd.f32 %v8723, %v8875
        %v8922 = vadd.f32 %v8724, %v8880
        %v8923 = vadd.f32 %v8725, %v8883
        %v8924 = vadd.f32 %v8726, %v8888
        %v8925 = vadd.f32 %v8727, %v8891
        %s8926 = scalar_lea.vmem %s9, 23
        %v8927 = vld [vmem:[%s8926] sm:$0x1]
        %v8929 = vsel %vm3685, %v8927, 0
        %8931 = vmatprep.subr.bf16.mxu0 0
        %8932 = vmatpush1.bf16.msra.mxu0 0
        %8933 = vmatprep.subr.bf16.mxu0 0
        %8934 = vmatpush1.bf16.msra.mxu0 0
        %8935 = vmatprep.subr.bf16.mxu0 0
        %8936 = vmatpush1.bf16.msra.mxu0 0
        %8937 = vmatprep.subr.bf16.mxu0 0
        %8938 = vmatpush1.bf16.msra.mxu0 0
        %8939 = vmatprep.subr.bf16.mxu0 0
        %8940 = vmatpush1.bf16.msra.mxu0 0
        %8941 = vmatprep.subr.bf16.mxu0 0
        %8942 = vmatpush1.bf16.msra.mxu0 0
        %8943 = vmatprep.subr.bf16.mxu0 0
        %8944 = vmatpush1.bf16.msra.mxu0 0
        %8945 = vmatprep.subr.bf16.mxu0 0
        %8946 = vmatpush1.bf16.msra.mxu0 %v8929
        %8947 = vmatprep.subr.bf16.mxu0 0
        %8948 = vmatpush2.bf16.msra.mxu0 0
        %8949 = vmatprep.subr.bf16.mxu0 0
        %8950 = vmatpush2.bf16.msra.mxu0 0
        %8951 = vmatprep.subr.bf16.mxu0 0
        %8952 = vmatpush2.bf16.msra.mxu0 0
        %8953 = vmatprep.subr.bf16.mxu0 0
        %8954 = vmatpush2.bf16.msra.mxu0 0
        %8955 = vmatprep.subr.bf16.mxu0 0
        %8956 = vmatpush2.bf16.msra.mxu0 0
        %8957 = vmatprep.subr.bf16.mxu0 0
        %8958 = vmatpush2.bf16.msra.mxu0 0
        %8959 = vmatprep.subr.bf16.mxu0 0
        %8960 = vmatpush2.bf16.msra.mxu0 0
        %8961 = vmatprep.subr.bf16.mxu0 0
        %8962 = vmatpush2.bf16.msra.mxu0 0
        %8963 = vmatprep.mubr.bf16.mxu0 0
        %8964 = vmatmul.mubr.bf16.gmra.mxu0 %v4760
        %v8965 = vpop.f32.mrf.mxu0
        %v8966 = vadd.f32 0.0, %v8965
        %v8967 = vpop.f32.mrf.mxu0
        %v8968 = vpop.f32.mrf.mxu0
        %v8969 = vadd.f32 0.0, %v8968
        %v8970 = vpop.f32.mrf.mxu0
        %8971 = vmatprep.mubr.bf16.mxu0 0
        %8972 = vmatmul.mubr.bf16.gmra.mxu0 %v4763
        %v8973 = vpop.f32.mrf.mxu0
        %v8974 = vadd.f32 0.0, %v8973
        %v8975 = vpop.f32.mrf.mxu0
        %v8976 = vpop.f32.mrf.mxu0
        %v8977 = vadd.f32 0.0, %v8976
        %v8978 = vpop.f32.mrf.mxu0
        %8979 = vmatprep.mubr.bf16.mxu0 0
        %8980 = vmatmul.mubr.bf16.gmra.mxu0 %v4766
        %v8981 = vpop.f32.mrf.mxu0
        %v8982 = vadd.f32 0.0, %v8981
        %v8983 = vpop.f32.mrf.mxu0
        %v8984 = vpop.f32.mrf.mxu0
        %v8985 = vadd.f32 0.0, %v8984
        %v8986 = vpop.f32.mrf.mxu0
        %8987 = vmatprep.mubr.bf16.mxu0 0
        %8988 = vmatmul.mubr.bf16.gmra.mxu0 %v4769
        %v8989 = vpop.f32.mrf.mxu0
        %v8990 = vadd.f32 0.0, %v8989
        %v8991 = vpop.f32.mrf.mxu0
        %v8992 = vpop.f32.mrf.mxu0
        %v8993 = vadd.f32 0.0, %v8992
        %v8994 = vpop.f32.mrf.mxu0
        %8995 = vmatprep.mubr.bf16.mxu0 0
        %8996 = vmatmul.mubr.bf16.gmra.mxu0 %v4772
        %v8997 = vpop.f32.mrf.mxu0
        %v8998 = vadd.f32 0.0, %v8997
        %v8999 = vpop.f32.mrf.mxu0
        %v9000 = vpop.f32.mrf.mxu0
        %v9001 = vadd.f32 0.0, %v9000
        %v9002 = vpop.f32.mrf.mxu0
        %9003 = vmatprep.mubr.bf16.mxu0 0
        %9004 = vmatmul.mubr.bf16.gmra.mxu0 %v4775
        %v9005 = vpop.f32.mrf.mxu0
        %v9006 = vadd.f32 0.0, %v9005
        %v9007 = vpop.f32.mrf.mxu0
        %v9008 = vpop.f32.mrf.mxu0
        %v9009 = vadd.f32 0.0, %v9008
        %v9010 = vpop.f32.mrf.mxu0
        %9011 = vmatprep.mubr.bf16.mxu0 0
        %9012 = vmatmul.mubr.bf16.gmra.mxu0 %v4778
        %v9013 = vpop.f32.mrf.mxu0
        %v9014 = vadd.f32 0.0, %v9013
        %v9015 = vpop.f32.mrf.mxu0
        %v9016 = vpop.f32.mrf.mxu0
        %v9017 = vadd.f32 0.0, %v9016
        %v9018 = vpop.f32.mrf.mxu0
        %9019 = vmatprep.mubr.bf16.mxu0 0
        %9020 = vmatmul.mubr.bf16.gmra.mxu0 %v4781
        %v9021 = vpop.f32.mrf.mxu0
        %v9022 = vadd.f32 0.0, %v9021
        %v9023 = vpop.f32.mrf.mxu0
        %v9024 = vpop.f32.mrf.mxu0
        %v9025 = vadd.f32 0.0, %v9024
        %v9026 = vpop.f32.mrf.mxu0
        %9027 = vmatprep.mubr.bf16.mxu0 0
        %9028 = vmatmul.mubr.bf16.gmra.mxu0 %v4784
        %v9029 = vpop.f32.mrf.mxu0
        %v9030 = vadd.f32 0.0, %v9029
        %v9031 = vpop.f32.mrf.mxu0
        %v9032 = vpop.f32.mrf.mxu0
        %v9033 = vadd.f32 0.0, %v9032
        %v9034 = vpop.f32.mrf.mxu0
        %9035 = vmatprep.mubr.bf16.mxu0 0
        %9036 = vmatmul.mubr.bf16.gmra.mxu0 %v4787
        %v9037 = vpop.f32.mrf.mxu0
        %v9038 = vadd.f32 0.0, %v9037
        %v9039 = vpop.f32.mrf.mxu0
        %v9040 = vpop.f32.mrf.mxu0
        %v9041 = vadd.f32 0.0, %v9040
        %v9042 = vpop.f32.mrf.mxu0
        %9043 = vmatprep.mubr.bf16.mxu0 0
        %9044 = vmatmul.mubr.bf16.gmra.mxu0 %v4790
        %v9045 = vpop.f32.mrf.mxu0
        %v9046 = vadd.f32 0.0, %v9045
        %v9047 = vpop.f32.mrf.mxu0
        %v9048 = vpop.f32.mrf.mxu0
        %v9049 = vadd.f32 0.0, %v9048
        %v9050 = vpop.f32.mrf.mxu0
        %9051 = vmatprep.mubr.bf16.mxu0 0
        %9052 = vmatmul.mubr.bf16.gmra.mxu0 %v4793
        %v9053 = vpop.f32.mrf.mxu0
        %v9054 = vadd.f32 0.0, %v9053
        %v9055 = vpop.f32.mrf.mxu0
        %v9056 = vpop.f32.mrf.mxu0
        %v9057 = vadd.f32 0.0, %v9056
        %v9058 = vpop.f32.mrf.mxu0
        %9059 = vmatprep.mubr.bf16.mxu0 0
        %9060 = vmatmul.mubr.bf16.gmra.mxu0 %v5909
        %v9061 = vpop.f32.mrf.mxu0
        %v9062 = vadd.f32 0.0, %v9061
        %v9063 = vpop.f32.mrf.mxu0
        %v9064 = vpop.f32.mrf.mxu0
        %v9065 = vadd.f32 0.0, %v9064
        %v9066 = vpop.f32.mrf.mxu0
        %9067 = vmatprep.mubr.bf16.mxu0 0
        %9068 = vmatmul.mubr.bf16.gmra.mxu0 %v6940
        %v9069 = vpop.f32.mrf.mxu0
        %v9070 = vadd.f32 0.0, %v9069
        %v9071 = vpop.f32.mrf.mxu0
        %v9072 = vpop.f32.mrf.mxu0
        %v9073 = vadd.f32 0.0, %v9072
        %v9074 = vpop.f32.mrf.mxu0
        %9075 = vmatprep.mubr.bf16.mxu0 0
        %9076 = vmatmul.mubr.bf16.gmra.mxu0 %v4751
        %v9077 = vpop.f32.mrf.mxu0
        %v9078 = vadd.f32 0.0, %v9077
        %v9079 = vpop.f32.mrf.mxu0
        %v9080 = vpop.f32.mrf.mxu0
        %v9081 = vadd.f32 0.0, %v9080
        %v9082 = vpop.f32.mrf.mxu0
        %9083 = vmatprep.mubr.bf16.mxu0 0
        %9084 = vmatmul.mubr.bf16.gmra.mxu0 %v4751
        %v9085 = vpop.f32.mrf.mxu0
        %v9086 = vadd.f32 0.0, %v9085
        %v9087 = vpop.f32.mrf.mxu0
        %v9088 = vpop.f32.mrf.mxu0
        %v9089 = vadd.f32 0.0, %v9088
        %v9090 = vpop.f32.mrf.mxu0
        %9091 = vdwg.mxu0
        %v9092 = vadd.f32 %v8894, %v8966
        %v9093 = vadd.f32 %v8895, %v8969
        %v9094 = vadd.f32 %v8896, %v8974
        %v9095 = vadd.f32 %v8897, %v8977
        %v9096 = vadd.f32 %v8898, %v8982
        %v9097 = vadd.f32 %v8899, %v8985
        %v9098 = vadd.f32 %v8900, %v8990
        %v9099 = vadd.f32 %v8901, %v8993
        %v9100 = vadd.f32 %v8902, %v8998
        %v9101 = vadd.f32 %v8903, %v9001
        %v9102 = vadd.f32 %v8904, %v9006
        %v9103 = vadd.f32 %v8905, %v9009
        %v9104 = vadd.f32 %v8906, %v9014
        %v9105 = vadd.f32 %v8907, %v9017
        %v9106 = vadd.f32 %v8908, %v9022
        %v9107 = vadd.f32 %v8909, %v9025
        %v9108 = vadd.f32 %v8910, %v9030
        %v9109 = vadd.f32 %v8911, %v9033
        %v9110 = vadd.f32 %v8912, %v9038
        %v9111 = vadd.f32 %v8913, %v9041
        %v9112 = vadd.f32 %v8914, %v9046
        %v9113 = vadd.f32 %v8915, %v9049
        %v9114 = vadd.f32 %v8916, %v9054
        %v9115 = vadd.f32 %v8917, %v9057
        %v9116 = vadd.f32 %v8918, %v9062
        %v9117 = vadd.f32 %v8919, %v9065
        %v9118 = vadd.f32 %v8920, %v9070
        %v9119 = vadd.f32 %v8921, %v9073
        %v9120 = vadd.f32 %v8922, %v9078
        %v9121 = vadd.f32 %v8923, %v9081
        %v9122 = vadd.f32 %v8924, %v9086
        %v9123 = vadd.f32 %v8925, %v9089
        %s9124 = scalar_lea.vmem %s9, 24
        %v9125 = vld [vmem:[%s9124] sm:$0x1]
        %v9127 = vsel %vm3685, %v9125, 0
        %9129 = vmatprep.subr.bf16.mxu0 0
        %9130 = vmatpush1.bf16.msra.mxu0 0
        %9131 = vmatprep.subr.bf16.mxu0 0
        %9132 = vmatpush1.bf16.msra.mxu0 0
        %9133 = vmatprep.subr.bf16.mxu0 0
        %9134 = vmatpush1.bf16.msra.mxu0 0
        %9135 = vmatprep.subr.bf16.mxu0 0
        %9136 = vmatpush1.bf16.msra.mxu0 0
        %9137 = vmatprep.subr.bf16.mxu0 0
        %9138 = vmatpush1.bf16.msra.mxu0 0
        %9139 = vmatprep.subr.bf16.mxu0 0
        %9140 = vmatpush1.bf16.msra.mxu0 0
        %9141 = vmatprep.subr.bf16.mxu0 0
        %9142 = vmatpush1.bf16.msra.mxu0 0
        %9143 = vmatprep.subr.bf16.mxu0 0
        %9144 = vmatpush1.bf16.msra.mxu0 %v9127
        %9145 = vmatprep.subr.bf16.mxu0 0
        %9146 = vmatpush2.bf16.msra.mxu0 0
        %9147 = vmatprep.subr.bf16.mxu0 0
        %9148 = vmatpush2.bf16.msra.mxu0 0
        %9149 = vmatprep.subr.bf16.mxu0 0
        %9150 = vmatpush2.bf16.msra.mxu0 0
        %9151 = vmatprep.subr.bf16.mxu0 0
        %9152 = vmatpush2.bf16.msra.mxu0 0
        %9153 = vmatprep.subr.bf16.mxu0 0
        %9154 = vmatpush2.bf16.msra.mxu0 0
        %9155 = vmatprep.subr.bf16.mxu0 0
        %9156 = vmatpush2.bf16.msra.mxu0 0
        %9157 = vmatprep.subr.bf16.mxu0 0
        %9158 = vmatpush2.bf16.msra.mxu0 0
        %9159 = vmatprep.subr.bf16.mxu0 0
        %9160 = vmatpush2.bf16.msra.mxu0 0
        %9161 = vmatprep.mubr.bf16.mxu0 0
        %9162 = vmatmul.mubr.bf16.gmra.mxu0 %v5049
        %v9163 = vpop.f32.mrf.mxu0
        %v9164 = vadd.f32 0.0, %v9163
        %v9165 = vpop.f32.mrf.mxu0
        %v9166 = vpop.f32.mrf.mxu0
        %v9167 = vadd.f32 0.0, %v9166
        %v9168 = vpop.f32.mrf.mxu0
        %9169 = vmatprep.mubr.bf16.mxu0 0
        %9170 = vmatmul.mubr.bf16.gmra.mxu0 %v5052
        %v9171 = vpop.f32.mrf.mxu0
        %v9172 = vadd.f32 0.0, %v9171
        %v9173 = vpop.f32.mrf.mxu0
        %v9174 = vpop.f32.mrf.mxu0
        %v9175 = vadd.f32 0.0, %v9174
        %v9176 = vpop.f32.mrf.mxu0
        %9177 = vmatprep.mubr.bf16.mxu0 0
        %9178 = vmatmul.mubr.bf16.gmra.mxu0 %v5055
        %v9179 = vpop.f32.mrf.mxu0
        %v9180 = vadd.f32 0.0, %v9179
        %v9181 = vpop.f32.mrf.mxu0
        %v9182 = vpop.f32.mrf.mxu0
        %v9183 = vadd.f32 0.0, %v9182
        %v9184 = vpop.f32.mrf.mxu0
        %9185 = vmatprep.mubr.bf16.mxu0 0
        %9186 = vmatmul.mubr.bf16.gmra.mxu0 %v5058
        %v9187 = vpop.f32.mrf.mxu0
        %v9188 = vadd.f32 0.0, %v9187
        %v9189 = vpop.f32.mrf.mxu0
        %v9190 = vpop.f32.mrf.mxu0
        %v9191 = vadd.f32 0.0, %v9190
        %v9192 = vpop.f32.mrf.mxu0
        %9193 = vmatprep.mubr.bf16.mxu0 0
        %9194 = vmatmul.mubr.bf16.gmra.mxu0 %v5061
        %v9195 = vpop.f32.mrf.mxu0
        %v9196 = vadd.f32 0.0, %v9195
        %v9197 = vpop.f32.mrf.mxu0
        %v9198 = vpop.f32.mrf.mxu0
        %v9199 = vadd.f32 0.0, %v9198
        %v9200 = vpop.f32.mrf.mxu0
        %9201 = vmatprep.mubr.bf16.mxu0 0
        %9202 = vmatmul.mubr.bf16.gmra.mxu0 %v5064
        %v9203 = vpop.f32.mrf.mxu0
        %v9204 = vadd.f32 0.0, %v9203
        %v9205 = vpop.f32.mrf.mxu0
        %v9206 = vpop.f32.mrf.mxu0
        %v9207 = vadd.f32 0.0, %v9206
        %v9208 = vpop.f32.mrf.mxu0
        %9209 = vmatprep.mubr.bf16.mxu0 0
        %9210 = vmatmul.mubr.bf16.gmra.mxu0 %v5067
        %v9211 = vpop.f32.mrf.mxu0
        %v9212 = vadd.f32 0.0, %v9211
        %v9213 = vpop.f32.mrf.mxu0
        %v9214 = vpop.f32.mrf.mxu0
        %v9215 = vadd.f32 0.0, %v9214
        %v9216 = vpop.f32.mrf.mxu0
        %9217 = vmatprep.mubr.bf16.mxu0 0
        %9218 = vmatmul.mubr.bf16.gmra.mxu0 %v5070
        %v9219 = vpop.f32.mrf.mxu0
        %v9220 = vadd.f32 0.0, %v9219
        %v9221 = vpop.f32.mrf.mxu0
        %v9222 = vpop.f32.mrf.mxu0
        %v9223 = vadd.f32 0.0, %v9222
        %v9224 = vpop.f32.mrf.mxu0
        %9225 = vmatprep.mubr.bf16.mxu0 0
        %9226 = vmatmul.mubr.bf16.gmra.mxu0 %v5073
        %v9227 = vpop.f32.mrf.mxu0
        %v9228 = vadd.f32 0.0, %v9227
        %v9229 = vpop.f32.mrf.mxu0
        %v9230 = vpop.f32.mrf.mxu0
        %v9231 = vadd.f32 0.0, %v9230
        %v9232 = vpop.f32.mrf.mxu0
        %9233 = vmatprep.mubr.bf16.mxu0 0
        %9234 = vmatmul.mubr.bf16.gmra.mxu0 %v5076
        %v9235 = vpop.f32.mrf.mxu0
        %v9236 = vadd.f32 0.0, %v9235
        %v9237 = vpop.f32.mrf.mxu0
        %v9238 = vpop.f32.mrf.mxu0
        %v9239 = vadd.f32 0.0, %v9238
        %v9240 = vpop.f32.mrf.mxu0
        %9241 = vmatprep.mubr.bf16.mxu0 0
        %9242 = vmatmul.mubr.bf16.gmra.mxu0 %v5079
        %v9243 = vpop.f32.mrf.mxu0
        %v9244 = vadd.f32 0.0, %v9243
        %v9245 = vpop.f32.mrf.mxu0
        %v9246 = vpop.f32.mrf.mxu0
        %v9247 = vadd.f32 0.0, %v9246
        %v9248 = vpop.f32.mrf.mxu0
        %9249 = vmatprep.mubr.bf16.mxu0 0
        %9250 = vmatmul.mubr.bf16.gmra.mxu0 %v5082
        %v9251 = vpop.f32.mrf.mxu0
        %v9252 = vadd.f32 0.0, %v9251
        %v9253 = vpop.f32.mrf.mxu0
        %v9254 = vpop.f32.mrf.mxu0
        %v9255 = vadd.f32 0.0, %v9254
        %v9256 = vpop.f32.mrf.mxu0
        %9257 = vmatprep.mubr.bf16.mxu0 0
        %9258 = vmatmul.mubr.bf16.gmra.mxu0 %v6113
        %v9259 = vpop.f32.mrf.mxu0
        %v9260 = vadd.f32 0.0, %v9259
        %v9261 = vpop.f32.mrf.mxu0
        %v9262 = vpop.f32.mrf.mxu0
        %v9263 = vadd.f32 0.0, %v9262
        %v9264 = vpop.f32.mrf.mxu0
        %9265 = vmatprep.mubr.bf16.mxu0 0
        %9266 = vmatmul.mubr.bf16.gmra.mxu0 %v7144
        %v9267 = vpop.f32.mrf.mxu0
        %v9268 = vadd.f32 0.0, %v9267
        %v9269 = vpop.f32.mrf.mxu0
        %v9270 = vpop.f32.mrf.mxu0
        %v9271 = vadd.f32 0.0, %v9270
        %v9272 = vpop.f32.mrf.mxu0
        %9273 = vmatprep.mubr.bf16.mxu0 0
        %9274 = vmatmul.mubr.bf16.gmra.mxu0 %v5040
        %v9275 = vpop.f32.mrf.mxu0
        %v9276 = vadd.f32 0.0, %v9275
        %v9277 = vpop.f32.mrf.mxu0
        %v9278 = vpop.f32.mrf.mxu0
        %v9279 = vadd.f32 0.0, %v9278
        %v9280 = vpop.f32.mrf.mxu0
        %9281 = vmatprep.mubr.bf16.mxu0 0
        %9282 = vmatmul.mubr.bf16.gmra.mxu0 %v5040
        %v9283 = vpop.f32.mrf.mxu0
        %v9284 = vadd.f32 0.0, %v9283
        %v9285 = vpop.f32.mrf.mxu0
        %v9286 = vpop.f32.mrf.mxu0
        %v9287 = vadd.f32 0.0, %v9286
        %v9288 = vpop.f32.mrf.mxu0
        %9289 = vdwg.mxu0
        %v9290 = vadd.f32 %v9092, %v9164
        %v9291 = vadd.f32 %v9093, %v9167
        %v9292 = vadd.f32 %v9094, %v9172
        %v9293 = vadd.f32 %v9095, %v9175
        %v9294 = vadd.f32 %v9096, %v9180
        %v9295 = vadd.f32 %v9097, %v9183
        %v9296 = vadd.f32 %v9098, %v9188
        %v9297 = vadd.f32 %v9099, %v9191
        %v9298 = vadd.f32 %v9100, %v9196
        %v9299 = vadd.f32 %v9101, %v9199
        %v9300 = vadd.f32 %v9102, %v9204
        %v9301 = vadd.f32 %v9103, %v9207
        %v9302 = vadd.f32 %v9104, %v9212
        %v9303 = vadd.f32 %v9105, %v9215
        %v9304 = vadd.f32 %v9106, %v9220
        %v9305 = vadd.f32 %v9107, %v9223
        %v9306 = vadd.f32 %v9108, %v9228
        %v9307 = vadd.f32 %v9109, %v9231
        %v9308 = vadd.f32 %v9110, %v9236
        %v9309 = vadd.f32 %v9111, %v9239
        %v9310 = vadd.f32 %v9112, %v9244
        %v9311 = vadd.f32 %v9113, %v9247
        %v9312 = vadd.f32 %v9114, %v9252
        %v9313 = vadd.f32 %v9115, %v9255
        %v9314 = vadd.f32 %v9116, %v9260
        %v9315 = vadd.f32 %v9117, %v9263
        %v9316 = vadd.f32 %v9118, %v9268
        %v9317 = vadd.f32 %v9119, %v9271
        %v9318 = vadd.f32 %v9120, %v9276
        %v9319 = vadd.f32 %v9121, %v9279
        %v9320 = vadd.f32 %v9122, %v9284
        %v9321 = vadd.f32 %v9123, %v9287
        %v9322 = vld [vmem:[%s10] sm:$0x1]
        %v9324 = vlaneseq
        %v9325 = vshrl.u32 %v9324, 7
        %v9326 = vsub.s32 0, %v9325
        %v9327 = vrot.slane %v9322, %v9326
        %v9329 = vadd.f32 %v9290, %v9327
        %v9330 = vadd.f32 %v9291, %v9327
        %v9331 = vadd.f32 %v9292, %v9327
        %v9332 = vadd.f32 %v9293, %v9327
        %v9333 = vadd.f32 %v9294, %v9327
        %v9334 = vadd.f32 %v9295, %v9327
        %v9335 = vadd.f32 %v9296, %v9327
        %v9336 = vadd.f32 %v9297, %v9327
        %v9337 = vadd.f32 %v9298, %v9327
        %v9338 = vadd.f32 %v9299, %v9327
        %v9339 = vadd.f32 %v9300, %v9327
        %v9340 = vadd.f32 %v9301, %v9327
        %v9341 = vadd.f32 %v9302, %v9327
        %v9342 = vadd.f32 %v9303, %v9327
        %v9343 = vadd.f32 %v9304, %v9327
        %v9344 = vadd.f32 %v9305, %v9327
        %v9345 = vadd.f32 %v9306, %v9327
        %v9346 = vadd.f32 %v9307, %v9327
        %v9347 = vadd.f32 %v9308, %v9327
        %v9348 = vadd.f32 %v9309, %v9327
        %v9349 = vadd.f32 %v9310, %v9327
        %v9350 = vadd.f32 %v9311, %v9327
        %v9351 = vadd.f32 %v9312, %v9327
        %v9352 = vadd.f32 %v9313, %v9327
        %v9353 = vadd.f32 %v9314, %v9327
        %v9354 = vadd.f32 %v9315, %v9327
        %v9355 = vadd.f32 %v9316, %v9327
        %v9356 = vadd.f32 %v9317, %v9327
        %v9357 = vadd.f32 %v9318, %v9327
        %v9358 = vadd.f32 %v9319, %v9327
        %v9359 = vadd.f32 %v9320, %v9327
        %v9360 = vadd.f32 %v9321, %v9327
        %v9361 = vmax.f32 %v9329, 0.0
        %v9362 = vmax.f32 %v9330, 0.0
        %v9363 = vmax.f32 %v9331, 0.0
        %v9364 = vmax.f32 %v9332, 0.0
        %v9365 = vmax.f32 %v9333, 0.0
        %v9366 = vmax.f32 %v9334, 0.0
        %v9367 = vmax.f32 %v9335, 0.0
        %v9368 = vmax.f32 %v9336, 0.0
        %v9369 = vmax.f32 %v9337, 0.0
        %v9370 = vmax.f32 %v9338, 0.0
        %v9371 = vmax.f32 %v9339, 0.0
        %v9372 = vmax.f32 %v9340, 0.0
        %v9373 = vmax.f32 %v9341, 0.0
        %v9374 = vmax.f32 %v9342, 0.0
        %v9375 = vmax.f32 %v9343, 0.0
        %v9376 = vmax.f32 %v9344, 0.0
        %v9377 = vmax.f32 %v9345, 0.0
        %v9378 = vmax.f32 %v9346, 0.0
        %v9379 = vmax.f32 %v9347, 0.0
        %v9380 = vmax.f32 %v9348, 0.0
        %v9381 = vmax.f32 %v9349, 0.0
        %v9382 = vmax.f32 %v9350, 0.0
        %v9383 = vmax.f32 %v9351, 0.0
        %v9384 = vmax.f32 %v9352, 0.0
        %v9385 = vmax.f32 %v9353, 0.0
        %v9386 = vmax.f32 %v9354, 0.0
        %v9387 = vmax.f32 %v9355, 0.0
        %v9388 = vmax.f32 %v9356, 0.0
        %v9389 = vmax.f32 %v9357, 0.0
        %v9390 = vmax.f32 %v9358, 0.0
        %v9391 = vmax.f32 %v9359, 0.0
        %v9392 = vmax.f32 %v9360, 0.0
        %v9393 = vmax.bf16 %v440, %v442
        %v9394 = vmax.bf16 %v441, %v443
        %v9395 = vmax.bf16 %v442, %v444
        %v9396 = vmax.bf16 %v443, %v445
        %v9397 = vmax.bf16 %v444, %v446
        %v9398 = vmax.bf16 %v445, %v447
        %v9399 = vmax.bf16 %v446, %v448
        %v9400 = vmax.bf16 %v447, %v449
        %v9401 = vmax.bf16 %v448, %v450
        %v9402 = vmax.bf16 %v449, %v451
        %v9403 = vmax.bf16 %v450, %v452
        %v9404 = vmax.bf16 %v451, %v453
        %v9405 = vmax.bf16 %v452, %v454
        %v9406 = vmax.bf16 %v453, %v455
        %v9407 = vmax.bf16 %v454, %v456
        %v9408 = vmax.bf16 %v455, %v457
        %v9409 = vmax.bf16 %v456, %v458
        %v9410 = vmax.bf16 %v457, %v459
        %v9411 = vmax.bf16 %v458, %v460
        %v9412 = vmax.bf16 %v459, %v461
        %v9413 = vmax.bf16 %v460, %v462
        %v9414 = vmax.bf16 %v461, %v463
        %v9415 = vmax.bf16 %v462, %v464
        %v9416 = vmax.bf16 %v463, %v465
        %v9417 = vmax.bf16 %v464, %v466
        %v9418 = vmax.bf16 %v465, %v467
        %v9419 = vmax.bf16 %v466, %v468
        %v9420 = vmax.bf16 %v467, %v469
        %v9421 = vmax.bf16 %v468, %v470
        %v9422 = vmax.bf16 %v469, %v471
        %v9423 = vmax.bf16 %v9393, %v444
        %v9424 = vmax.bf16 %v9394, %v445
        %v9425 = vmax.bf16 %v9395, %v446
        %v9426 = vmax.bf16 %v9396, %v447
        %v9427 = vmax.bf16 %v9397, %v448
        %v9428 = vmax.bf16 %v9398, %v449
        %v9429 = vmax.bf16 %v9399, %v450
        %v9430 = vmax.bf16 %v9400, %v451
        %v9431 = vmax.bf16 %v9401, %v452
        %v9432 = vmax.bf16 %v9402, %v453
        %v9433 = vmax.bf16 %v9403, %v454
        %v9434 = vmax.bf16 %v9404, %v455
        %v9435 = vmax.bf16 %v9405, %v456
        %v9436 = vmax.bf16 %v9406, %v457
        %v9437 = vmax.bf16 %v9407, %v458
        %v9438 = vmax.bf16 %v9408, %v459
        %v9439 = vmax.bf16 %v9409, %v460
        %v9440 = vmax.bf16 %v9410, %v461
        %v9441 = vmax.bf16 %v9411, %v462
        %v9442 = vmax.bf16 %v9412, %v463
        %v9443 = vmax.bf16 %v9413, %v464
        %v9444 = vmax.bf16 %v9414, %v465
        %v9445 = vmax.bf16 %v9415, %v466
        %v9446 = vmax.bf16 %v9416, %v467
        %v9447 = vmax.bf16 %v9417, %v468
        %v9448 = vmax.bf16 %v9418, %v469
        %v9449 = vmax.bf16 %v9419, %v470
        %v9450 = vmax.bf16 %v9420, %v471
        %v9451 = vmax.bf16 %v9421, %v470
        %v9452 = vmax.bf16 %v9422, %v471
        %v9485 = vunpack.c.l.b16 %v9393
        %v9486 = vunpack.c.l.b16 %v9394
        %v9487 = vunpack.c.l.b16 %v9423
        %v9488 = vunpack.c.l.b16 %v9424
        %v9489 = vunpack.c.l.b16 %v9425
        %v9490 = vunpack.c.l.b16 %v9426
        %v9491 = vunpack.c.l.b16 %v9427
        %v9492 = vunpack.c.l.b16 %v9428
        %v9493 = vunpack.c.l.b16 %v9429
        %v9494 = vunpack.c.l.b16 %v9430
        %v9495 = vunpack.c.l.b16 %v9431
        %v9496 = vunpack.c.l.b16 %v9432
        %v9497 = vunpack.c.l.b16 %v9433
        %v9498 = vunpack.c.l.b16 %v9434
        %v9499 = vunpack.c.l.b16 %v9435
        %v9500 = vunpack.c.l.b16 %v9436
        %v9501 = vunpack.c.l.b16 %v9437
        %v9502 = vunpack.c.l.b16 %v9438
        %v9503 = vunpack.c.l.b16 %v9439
        %v9504 = vunpack.c.l.b16 %v9440
        %v9505 = vunpack.c.l.b16 %v9441
        %v9506 = vunpack.c.l.b16 %v9442
        %v9507 = vunpack.c.l.b16 %v9443
        %v9508 = vunpack.c.l.b16 %v9444
        %v9509 = vunpack.c.l.b16 %v9445
        %v9510 = vunpack.c.l.b16 %v9446
        %v9511 = vunpack.c.l.b16 %v9447
        %v9512 = vunpack.c.l.b16 %v9448
        %v9513 = vunpack.c.l.b16 %v9449
        %v9514 = vunpack.c.l.b16 %v9450
        %v9515 = vunpack.c.l.b16 %v9451
        %v9516 = vunpack.c.l.b16 %v9452
        %v9517 = vpack.c.b16 %v9486, %v9485
        %v9518 = vpack.c.b16 %v9488, %v9487
        %v9519 = vpack.c.b16 %v9490, %v9489
        %v9520 = vpack.c.b16 %v9492, %v9491
        %v9521 = vpack.c.b16 %v9494, %v9493
        %v9522 = vpack.c.b16 %v9496, %v9495
        %v9523 = vpack.c.b16 %v9498, %v9497
        %v9524 = vpack.c.b16 %v9500, %v9499
        %v9525 = vpack.c.b16 %v9502, %v9501
        %v9526 = vpack.c.b16 %v9504, %v9503
        %v9527 = vpack.c.b16 %v9506, %v9505
        %v9528 = vpack.c.b16 %v9508, %v9507
        %v9529 = vpack.c.b16 %v9510, %v9509
        %v9530 = vpack.c.b16 %v9512, %v9511
        %v9531 = vpack.c.b16 %v9514, %v9513
        %v9532 = vpack.c.b16 %v9516, %v9515
        %v9534 = vshrl.u32 %v9517, 16
        %v9536 = vrot.slane %v9534, 7
        %v9537 = vshll.u32 %v9517, 16
        %v9539 = vor.u32 %v9536, %v9537
        %v9541 = vshrl.u32 %v9518, 16
        %v9543 = vrot.slane %v9541, 7
        %v9544 = vshll.u32 %v9518, 16
        %v9546 = vor.u32 %v9543, %v9544
        %v9548 = vshrl.u32 %v9519, 16
        %v9550 = vrot.slane %v9548, 7
        %v9551 = vshll.u32 %v9519, 16
        %v9553 = vor.u32 %v9550, %v9551
        %v9555 = vshrl.u32 %v9520, 16
        %v9557 = vrot.slane %v9555, 7
        %v9558 = vshll.u32 %v9520, 16
        %v9560 = vor.u32 %v9557, %v9558
        %v9562 = vshrl.u32 %v9521, 16
        %v9564 = vrot.slane %v9562, 7
        %v9565 = vshll.u32 %v9521, 16
        %v9567 = vor.u32 %v9564, %v9565
        %v9569 = vshrl.u32 %v9522, 16
        %v9571 = vrot.slane %v9569, 7
        %v9572 = vshll.u32 %v9522, 16
        %v9574 = vor.u32 %v9571, %v9572
        %v9576 = vshrl.u32 %v9523, 16
        %v9578 = vrot.slane %v9576, 7
        %v9579 = vshll.u32 %v9523, 16
        %v9581 = vor.u32 %v9578, %v9579
        %v9583 = vshrl.u32 %v9524, 16
        %v9585 = vrot.slane %v9583, 7
        %v9586 = vshll.u32 %v9524, 16
        %v9588 = vor.u32 %v9585, %v9586
        %v9590 = vshrl.u32 %v9525, 16
        %v9592 = vrot.slane %v9590, 7
        %v9593 = vshll.u32 %v9525, 16
        %v9595 = vor.u32 %v9592, %v9593
        %v9597 = vshrl.u32 %v9526, 16
        %v9599 = vrot.slane %v9597, 7
        %v9600 = vshll.u32 %v9526, 16
        %v9602 = vor.u32 %v9599, %v9600
        %v9604 = vshrl.u32 %v9527, 16
        %v9606 = vrot.slane %v9604, 7
        %v9607 = vshll.u32 %v9527, 16
        %v9609 = vor.u32 %v9606, %v9607
        %v9611 = vshrl.u32 %v9528, 16
        %v9613 = vrot.slane %v9611, 7
        %v9614 = vshll.u32 %v9528, 16
        %v9616 = vor.u32 %v9613, %v9614
        %v9618 = vshrl.u32 %v9529, 16
        %v9620 = vrot.slane %v9618, 7
        %v9621 = vshll.u32 %v9529, 16
        %v9623 = vor.u32 %v9620, %v9621
        %v9625 = vshrl.u32 %v9530, 16
        %v9627 = vrot.slane %v9625, 7
        %v9628 = vshll.u32 %v9530, 16
        %v9630 = vor.u32 %v9627, %v9628
        %v9632 = vshrl.u32 %v9531, 16
        %v9634 = vrot.slane %v9632, 7
        %v9635 = vshll.u32 %v9531, 16
        %v9637 = vor.u32 %v9634, %v9635
        %v9639 = vshrl.u32 %v9532, 16
        %v9641 = vrot.slane %v9639, 7
        %v9642 = vshll.u32 %v9532, 16
        %v9644 = vor.u32 %v9641, %v9642
        %v9661 = vsel %vm1181, %v9393, %v9539
        %v9662 = vsel %vm1181, %v9423, %v9546
        %v9663 = vsel %vm1181, %v9425, %v9553
        %v9664 = vsel %vm1181, %v9427, %v9560
        %v9665 = vsel %vm1181, %v9429, %v9567
        %v9666 = vsel %vm1181, %v9431, %v9574
        %v9667 = vsel %vm1181, %v9433, %v9581
        %v9668 = vsel %vm1181, %v9435, %v9588
        %v9669 = vsel %vm1181, %v9437, %v9595
        %v9670 = vsel %vm1181, %v9439, %v9602
        %v9671 = vsel %vm1181, %v9441, %v9609
        %v9672 = vsel %vm1181, %v9443, %v9616
        %v9673 = vsel %vm1181, %v9445, %v9623
        %v9674 = vsel %vm1181, %v9447, %v9630
        %v9675 = vsel %vm1181, %v9449, %v9637
        %v9676 = vsel %vm1181, %v9451, %v9644
        %v9677 = vrot.slane %v9537, 1
        %v9678 = vor.u32 %v9534, %v9677
        %v9679 = vrot.slane %v9544, 1
        %v9680 = vor.u32 %v9541, %v9679
        %v9681 = vrot.slane %v9551, 1
        %v9682 = vor.u32 %v9548, %v9681
        %v9683 = vrot.slane %v9558, 1
        %v9684 = vor.u32 %v9555, %v9683
        %v9685 = vrot.slane %v9565, 1
        %v9686 = vor.u32 %v9562, %v9685
        %v9687 = vrot.slane %v9572, 1
        %v9688 = vor.u32 %v9569, %v9687
        %v9689 = vrot.slane %v9579, 1
        %v9690 = vor.u32 %v9576, %v9689
        %v9691 = vrot.slane %v9586, 1
        %v9692 = vor.u32 %v9583, %v9691
        %v9693 = vrot.slane %v9593, 1
        %v9694 = vor.u32 %v9590, %v9693
        %v9695 = vrot.slane %v9600, 1
        %v9696 = vor.u32 %v9597, %v9695
        %v9697 = vrot.slane %v9607, 1
        %v9698 = vor.u32 %v9604, %v9697
        %v9699 = vrot.slane %v9614, 1
        %v9700 = vor.u32 %v9611, %v9699
        %v9701 = vrot.slane %v9621, 1
        %v9702 = vor.u32 %v9618, %v9701
        %v9703 = vrot.slane %v9628, 1
        %v9704 = vor.u32 %v9625, %v9703
        %v9705 = vrot.slane %v9635, 1
        %v9706 = vor.u32 %v9632, %v9705
        %v9707 = vrot.slane %v9642, 1
        %v9708 = vor.u32 %v9639, %v9707
        %v9725 = vpack.c.b16 %v9486, %v9486
        %v9726 = vpack.c.b16 %v9488, %v9488
        %v9727 = vpack.c.b16 %v9490, %v9490
        %v9728 = vpack.c.b16 %v9492, %v9492
        %v9729 = vpack.c.b16 %v9494, %v9494
        %v9730 = vpack.c.b16 %v9496, %v9496
        %v9731 = vpack.c.b16 %v9498, %v9498
        %v9732 = vpack.c.b16 %v9500, %v9500
        %v9733 = vpack.c.b16 %v9502, %v9502
        %v9734 = vpack.c.b16 %v9504, %v9504
        %v9735 = vpack.c.b16 %v9506, %v9506
        %v9736 = vpack.c.b16 %v9508, %v9508
        %v9737 = vpack.c.b16 %v9510, %v9510
        %v9738 = vpack.c.b16 %v9512, %v9512
        %v9739 = vpack.c.b16 %v9514, %v9514
        %v9740 = vpack.c.b16 %v9516, %v9516
        %vm9757 = vcmask 1047552
        %vm9758 = vmand %vm9757, %vm1217
        %v9759 = vsel %vm9758, %v9678, %v9725
        %v9760 = vsel %vm9758, %v9680, %v9726
        %v9761 = vsel %vm9758, %v9682, %v9727
        %v9762 = vsel %vm9758, %v9684, %v9728
        %v9763 = vsel %vm9758, %v9686, %v9729
        %v9764 = vsel %vm9758, %v9688, %v9730
        %v9765 = vsel %vm9758, %v9690, %v9731
        %v9766 = vsel %vm9758, %v9692, %v9732
        %v9767 = vsel %vm9758, %v9694, %v9733
        %v9768 = vsel %vm9758, %v9696, %v9734
        %v9769 = vsel %vm9758, %v9698, %v9735
        %v9770 = vsel %vm9758, %v9700, %v9736
        %v9771 = vsel %vm9758, %v9702, %v9737
        %v9772 = vsel %vm9758, %v9704, %v9738
        %v9773 = vsel %vm9758, %v9706, %v9739
        %v9774 = vsel %vm9758, %v9708, %v9740
        %v9791 = vmax.bf16 %v9661, %v9517
        %v9792 = vmax.bf16 %v9662, %v9518
        %v9793 = vmax.bf16 %v9663, %v9519
        %v9794 = vmax.bf16 %v9664, %v9520
        %v9795 = vmax.bf16 %v9665, %v9521
        %v9796 = vmax.bf16 %v9666, %v9522
        %v9797 = vmax.bf16 %v9667, %v9523
        %v9798 = vmax.bf16 %v9668, %v9524
        %v9799 = vmax.bf16 %v9669, %v9525
        %v9800 = vmax.bf16 %v9670, %v9526
        %v9801 = vmax.bf16 %v9671, %v9527
        %v9802 = vmax.bf16 %v9672, %v9528
        %v9803 = vmax.bf16 %v9673, %v9529
        %v9804 = vmax.bf16 %v9674, %v9530
        %v9805 = vmax.bf16 %v9675, %v9531
        %v9806 = vmax.bf16 %v9676, %v9532
        %v9807 = vmax.bf16 %v9791, %v9759
        %v9808 = vmax.bf16 %v9792, %v9760
        %v9809 = vmax.bf16 %v9793, %v9761
        %v9810 = vmax.bf16 %v9794, %v9762
        %v9811 = vmax.bf16 %v9795, %v9763
        %v9812 = vmax.bf16 %v9796, %v9764
        %v9813 = vmax.bf16 %v9797, %v9765
        %v9814 = vmax.bf16 %v9798, %v9766
        %v9815 = vmax.bf16 %v9799, %v9767
        %v9816 = vmax.bf16 %v9800, %v9768
        %v9817 = vmax.bf16 %v9801, %v9769
        %v9818 = vmax.bf16 %v9802, %v9770
        %v9819 = vmax.bf16 %v9803, %v9771
        %v9820 = vmax.bf16 %v9804, %v9772
        %v9821 = vmax.bf16 %v9805, %v9773
        %v9822 = vmax.bf16 %v9806, %v9774
        %v9823 = vld [vmem:[%s11] sm:$0x3]
        %v9824 = vld [vmem:[%s12] sm:$0x1]
        %v9826 = vlaneseq
        %v9827 = vshrl.u32 %v9826, 7
        %v9828 = vsub.s32 0, %v9827
        %v9829 = vrot.slane %v9824, %v9828
        %v9832 = vsel %vm560, %v9807, 0
        %v9835 = vsel %vm560, %v9808, 0
        %v9838 = vsel %vm560, %v9809, 0
        %v9841 = vsel %vm560, %v9810, 0
        %v9844 = vsel %vm560, %v9811, 0
        %v9847 = vsel %vm560, %v9812, 0
        %v9850 = vsel %vm560, %v9813, 0
        %v9853 = vsel %vm560, %v9814, 0
        %v9856 = vsel %vm560, %v9815, 0
        %v9859 = vsel %vm560, %v9816, 0
        %v9862 = vsel %vm560, %v9817, 0
        %v9865 = vsel %vm560, %v9818, 0
        %v9868 = vsel %vm560, %v9819, 0
        %v9871 = vsel %vm560, %v9820, 0
        %v9874 = vsel %vm560, %v9821, 0
        %v9877 = vsel %vm560, %v9822, 0
        %v9880 = vsel %vm609, %v9823, 0
        %9882 = vmatprep.subr.bf16.mxu0 0
        %9883 = vmatpush1.bf16.msra.mxu0 0
        %9884 = vmatprep.subr.bf16.mxu0 0
        %9885 = vmatpush1.bf16.msra.mxu0 0
        %9886 = vmatprep.subr.bf16.mxu0 0
        %9887 = vmatpush1.bf16.msra.mxu0 0
        %9888 = vmatprep.subr.bf16.mxu0 0
        %9889 = vmatpush1.bf16.msra.mxu0 0
        %9890 = vmatprep.subr.bf16.mxu0 0
        %9891 = vmatpush1.bf16.msra.mxu0 0
        %9892 = vmatprep.subr.bf16.mxu0 0
        %9893 = vmatpush1.bf16.msra.mxu0 0
        %9894 = vmatprep.subr.bf16.mxu0 0
        %9895 = vmatpush1.bf16.msra.mxu0 0
        %9896 = vmatprep.subr.bf16.mxu0 0
        %9897 = vmatpush1.bf16.msra.mxu0 %v9880
        %9898 = vmatprep.subr.bf16.mxu0 0
        %9899 = vmatpush2.bf16.msra.mxu0 0
        %9900 = vmatprep.subr.bf16.mxu0 0
        %9901 = vmatpush2.bf16.msra.mxu0 0
        %9902 = vmatprep.subr.bf16.mxu0 0
        %9903 = vmatpush2.bf16.msra.mxu0 0
        %9904 = vmatprep.subr.bf16.mxu0 0
        %9905 = vmatpush2.bf16.msra.mxu0 0
        %9906 = vmatprep.subr.bf16.mxu0 0
        %9907 = vmatpush2.bf16.msra.mxu0 0
        %9908 = vmatprep.subr.bf16.mxu0 0
        %9909 = vmatpush2.bf16.msra.mxu0 0
        %9910 = vmatprep.subr.bf16.mxu0 0
        %9911 = vmatpush2.bf16.msra.mxu0 0
        %9912 = vmatprep.subr.bf16.mxu0 0
        %9913 = vmatpush2.bf16.msra.mxu0 0
        %9914 = vmatprep.mubr.bf16.mxu0 0
        %9915 = vmatmul.mubr.bf16.gmra.mxu0 %v9832
        %v9916 = vpop.f32.mrf.mxu0
        %v9917 = vadd.f32 %v9829, %v9916
        %v9918 = vpop.f32.mrf.mxu0
        %v9919 = vpop.f32.mrf.mxu0
        %v9920 = vadd.f32 %v9829, %v9919
        %v9921 = vpop.f32.mrf.mxu0
        %9922 = vmatprep.mubr.bf16.mxu0 0
        %9923 = vmatmul.mubr.bf16.gmra.mxu0 %v9835
        %v9924 = vpop.f32.mrf.mxu0
        %v9925 = vadd.f32 %v9829, %v9924
        %v9926 = vpop.f32.mrf.mxu0
        %v9927 = vpop.f32.mrf.mxu0
        %v9928 = vadd.f32 %v9829, %v9927
        %v9929 = vpop.f32.mrf.mxu0
        %9930 = vmatprep.mubr.bf16.mxu0 0
        %9931 = vmatmul.mubr.bf16.gmra.mxu0 %v9838
        %v9932 = vpop.f32.mrf.mxu0
        %v9933 = vadd.f32 %v9829, %v9932
        %v9934 = vpop.f32.mrf.mxu0
        %v9935 = vpop.f32.mrf.mxu0
        %v9936 = vadd.f32 %v9829, %v9935
        %v9937 = vpop.f32.mrf.mxu0
        %9938 = vmatprep.mubr.bf16.mxu0 0
        %9939 = vmatmul.mubr.bf16.gmra.mxu0 %v9841
        %v9940 = vpop.f32.mrf.mxu0
        %v9941 = vadd.f32 %v9829, %v9940
        %v9942 = vpop.f32.mrf.mxu0
        %v9943 = vpop.f32.mrf.mxu0
        %v9944 = vadd.f32 %v9829, %v9943
        %v9945 = vpop.f32.mrf.mxu0
        %9946 = vmatprep.mubr.bf16.mxu0 0
        %9947 = vmatmul.mubr.bf16.gmra.mxu0 %v9844
        %v9948 = vpop.f32.mrf.mxu0
        %v9949 = vadd.f32 %v9829, %v9948
        %v9950 = vpop.f32.mrf.mxu0
        %v9951 = vpop.f32.mrf.mxu0
        %v9952 = vadd.f32 %v9829, %v9951
        %v9953 = vpop.f32.mrf.mxu0
        %9954 = vmatprep.mubr.bf16.mxu0 0
        %9955 = vmatmul.mubr.bf16.gmra.mxu0 %v9847
        %v9956 = vpop.f32.mrf.mxu0
        %v9957 = vadd.f32 %v9829, %v9956
        %v9958 = vpop.f32.mrf.mxu0
        %v9959 = vpop.f32.mrf.mxu0
        %v9960 = vadd.f32 %v9829, %v9959
        %v9961 = vpop.f32.mrf.mxu0
        %9962 = vmatprep.mubr.bf16.mxu0 0
        %9963 = vmatmul.mubr.bf16.gmra.mxu0 %v9850
        %v9964 = vpop.f32.mrf.mxu0
        %v9965 = vadd.f32 %v9829, %v9964
        %v9966 = vpop.f32.mrf.mxu0
        %v9967 = vpop.f32.mrf.mxu0
        %v9968 = vadd.f32 %v9829, %v9967
        %v9969 = vpop.f32.mrf.mxu0
        %9970 = vmatprep.mubr.bf16.mxu0 0
        %9971 = vmatmul.mubr.bf16.gmra.mxu0 %v9853
        %v9972 = vpop.f32.mrf.mxu0
        %v9973 = vadd.f32 %v9829, %v9972
        %v9974 = vpop.f32.mrf.mxu0
        %v9975 = vpop.f32.mrf.mxu0
        %v9976 = vadd.f32 %v9829, %v9975
        %v9977 = vpop.f32.mrf.mxu0
        %9978 = vmatprep.mubr.bf16.mxu0 0
        %9979 = vmatmul.mubr.bf16.gmra.mxu0 %v9856
        %v9980 = vpop.f32.mrf.mxu0
        %v9981 = vadd.f32 %v9829, %v9980
        %v9982 = vpop.f32.mrf.mxu0
        %v9983 = vpop.f32.mrf.mxu0
        %v9984 = vadd.f32 %v9829, %v9983
        %v9985 = vpop.f32.mrf.mxu0
        %9986 = vmatprep.mubr.bf16.mxu0 0
        %9987 = vmatmul.mubr.bf16.gmra.mxu0 %v9859
        %v9988 = vpop.f32.mrf.mxu0
        %v9989 = vadd.f32 %v9829, %v9988
        %v9990 = vpop.f32.mrf.mxu0
        %v9991 = vpop.f32.mrf.mxu0
        %v9992 = vadd.f32 %v9829, %v9991
        %v9993 = vpop.f32.mrf.mxu0
        %9994 = vmatprep.mubr.bf16.mxu0 0
        %9995 = vmatmul.mubr.bf16.gmra.mxu0 %v9862
        %v9996 = vpop.f32.mrf.mxu0
        %v9997 = vadd.f32 %v9829, %v9996
        %v9998 = vpop.f32.mrf.mxu0
        %v9999 = vpop.f32.mrf.mxu0
        %v10000 = vadd.f32 %v9829, %v9999
        %v10001 = vpop.f32.mrf.mxu0
        %10002 = vmatprep.mubr.bf16.mxu0 0
        %10003 = vmatmul.mubr.bf16.gmra.mxu0 %v9865
        %v10004 = vpop.f32.mrf.mxu0
        %v10005 = vadd.f32 %v9829, %v10004
        %v10006 = vpop.f32.mrf.mxu0
        %v10007 = vpop.f32.mrf.mxu0
        %v10008 = vadd.f32 %v9829, %v10007
        %v10009 = vpop.f32.mrf.mxu0
        %10010 = vmatprep.mubr.bf16.mxu0 0
        %10011 = vmatmul.mubr.bf16.gmra.mxu0 %v9868
        %v10012 = vpop.f32.mrf.mxu0
        %v10013 = vadd.f32 %v9829, %v10012
        %v10014 = vpop.f32.mrf.mxu0
        %v10015 = vpop.f32.mrf.mxu0
        %v10016 = vadd.f32 %v9829, %v10015
        %v10017 = vpop.f32.mrf.mxu0
        %10018 = vmatprep.mubr.bf16.mxu0 0
        %10019 = vmatmul.mubr.bf16.gmra.mxu0 %v9871
        %v10020 = vpop.f32.mrf.mxu0
        %v10021 = vadd.f32 %v9829, %v10020
        %v10022 = vpop.f32.mrf.mxu0
        %v10023 = vpop.f32.mrf.mxu0
        %v10024 = vadd.f32 %v9829, %v10023
        %v10025 = vpop.f32.mrf.mxu0
        %10026 = vmatprep.mubr.bf16.mxu0 0
        %10027 = vmatmul.mubr.bf16.gmra.mxu0 %v9874
        %v10028 = vpop.f32.mrf.mxu0
        %v10029 = vadd.f32 %v9829, %v10028
        %v10030 = vpop.f32.mrf.mxu0
        %v10031 = vpop.f32.mrf.mxu0
        %v10032 = vadd.f32 %v9829, %v10031
        %v10033 = vpop.f32.mrf.mxu0
        %10034 = vmatprep.mubr.bf16.mxu0 0
        %10035 = vmatmul.mubr.bf16.gmra.mxu0 %v9877
        %v10036 = vpop.f32.mrf.mxu0
        %v10037 = vadd.f32 %v9829, %v10036
        %v10038 = vpop.f32.mrf.mxu0
        %v10039 = vpop.f32.mrf.mxu0
        %v10040 = vadd.f32 %v9829, %v10039
        %v10041 = vpop.f32.mrf.mxu0
        %10042 = vdwg.mxu0
        %v10043 = vmax.f32 %v9917, 0.0
        %v10044 = vmax.f32 %v9920, 0.0
        %v10045 = vmax.f32 %v9925, 0.0
        %v10046 = vmax.f32 %v9928, 0.0
        %v10047 = vmax.f32 %v9933, 0.0
        %v10048 = vmax.f32 %v9936, 0.0
        %v10049 = vmax.f32 %v9941, 0.0
        %v10050 = vmax.f32 %v9944, 0.0
        %v10051 = vmax.f32 %v9949, 0.0
        %v10052 = vmax.f32 %v9952, 0.0
        %v10053 = vmax.f32 %v9957, 0.0
        %v10054 = vmax.f32 %v9960, 0.0
        %v10055 = vmax.f32 %v9965, 0.0
        %v10056 = vmax.f32 %v9968, 0.0
        %v10057 = vmax.f32 %v9973, 0.0
        %v10058 = vmax.f32 %v9976, 0.0
        %v10059 = vmax.f32 %v9981, 0.0
        %v10060 = vmax.f32 %v9984, 0.0
        %v10061 = vmax.f32 %v9989, 0.0
        %v10062 = vmax.f32 %v9992, 0.0
        %v10063 = vmax.f32 %v9997, 0.0
        %v10064 = vmax.f32 %v10000, 0.0
        %v10065 = vmax.f32 %v10005, 0.0
        %v10066 = vmax.f32 %v10008, 0.0
        %v10067 = vmax.f32 %v10013, 0.0
        %v10068 = vmax.f32 %v10016, 0.0
        %v10069 = vmax.f32 %v10021, 0.0
        %v10070 = vmax.f32 %v10024, 0.0
        %v10071 = vmax.f32 %v10029, 0.0
        %v10072 = vmax.f32 %v10032, 0.0
        %v10073 = vmax.f32 %v10037, 0.0
        %v10074 = vmax.f32 %v10040, 0.0
        %10107 = vrot.lane.b32.xlu0 %v3399, 4
        %v10108 = vpop.permute.xlu0 %10107
        %10109 = vrot.lane.b32.xlu0 %v3400, 4
        %v10110 = vpop.permute.xlu0 %10109
        %10111 = vrot.lane.b32.xlu0 %v3401, 4
        %v10112 = vpop.permute.xlu0 %10111
        %10113 = vrot.lane.b32.xlu0 %v3402, 4
        %v10114 = vpop.permute.xlu0 %10113
        %10115 = vrot.lane.b32.xlu0 %v3403, 4
        %v10116 = vpop.permute.xlu0 %10115
        %10117 = vrot.lane.b32.xlu0 %v3404, 4
        %v10118 = vpop.permute.xlu0 %10117
        %10119 = vrot.lane.b32.xlu0 %v3405, 4
        %v10120 = vpop.permute.xlu0 %10119
        %10121 = vrot.lane.b32.xlu0 %v3406, 4
        %v10122 = vpop.permute.xlu0 %10121
        %10123 = vrot.lane.b32.xlu0 %v3407, 4
        %v10124 = vpop.permute.xlu0 %10123
        %10125 = vrot.lane.b32.xlu0 %v3408, 4
        %v10126 = vpop.permute.xlu0 %10125
        %10127 = vrot.lane.b32.xlu0 %v3409, 4
        %v10128 = vpop.permute.xlu0 %10127
        %10129 = vrot.lane.b32.xlu0 %v3410, 4
        %v10130 = vpop.permute.xlu0 %10129
        %10131 = vrot.lane.b32.xlu0 %v3411, 4
        %v10132 = vpop.permute.xlu0 %10131
        %10133 = vrot.lane.b32.xlu0 %v3412, 4
        %v10134 = vpop.permute.xlu0 %10133
        %10135 = vrot.lane.b32.xlu0 %v3413, 4
        %v10136 = vpop.permute.xlu0 %10135
        %10137 = vrot.lane.b32.xlu0 %v3414, 4
        %v10138 = vpop.permute.xlu0 %10137
        %10139 = vrot.lane.b32.xlu0 %v3415, 4
        %v10140 = vpop.permute.xlu0 %10139
        %10141 = vrot.lane.b32.xlu0 %v3416, 4
        %v10142 = vpop.permute.xlu0 %10141
        %10143 = vrot.lane.b32.xlu0 %v3417, 4
        %v10144 = vpop.permute.xlu0 %10143
        %10145 = vrot.lane.b32.xlu0 %v3418, 4
        %v10146 = vpop.permute.xlu0 %10145
        %10147 = vrot.lane.b32.xlu0 %v3419, 4
        %v10148 = vpop.permute.xlu0 %10147
        %10149 = vrot.lane.b32.xlu0 %v3420, 4
        %v10150 = vpop.permute.xlu0 %10149
        %10151 = vrot.lane.b32.xlu0 %v3421, 4
        %v10152 = vpop.permute.xlu0 %10151
        %10153 = vrot.lane.b32.xlu0 %v3422, 4
        %v10154 = vpop.permute.xlu0 %10153
        %10155 = vrot.lane.b32.xlu0 %v3423, 4
        %v10156 = vpop.permute.xlu0 %10155
        %10157 = vrot.lane.b32.xlu0 %v3424, 4
        %v10158 = vpop.permute.xlu0 %10157
        %10159 = vrot.lane.b32.xlu0 %v3425, 4
        %v10160 = vpop.permute.xlu0 %10159
        %10161 = vrot.lane.b32.xlu0 %v3426, 4
        %v10162 = vpop.permute.xlu0 %10161
        %10163 = vrot.lane.b32.xlu0 %v3427, 4
        %v10164 = vpop.permute.xlu0 %10163
        %10165 = vrot.lane.b32.xlu0 %v3428, 4
        %v10166 = vpop.permute.xlu0 %10165
        %10167 = vrot.lane.b32.xlu0 %v3429, 4
        %v10168 = vpop.permute.xlu0 %10167
        %10169 = vrot.lane.b32.xlu0 %v3430, 4
        %v10170 = vpop.permute.xlu0 %10169
        %10235 = vrot.lane.b32.xlu0 %v9361, 12
        %v10236 = vpop.permute.xlu0 %10235
        %10237 = vrot.lane.b32.xlu0 %v9362, 12
        %v10238 = vpop.permute.xlu0 %10237
        %10239 = vrot.lane.b32.xlu0 %v9363, 12
        %v10240 = vpop.permute.xlu0 %10239
        %10241 = vrot.lane.b32.xlu0 %v9364, 12
        %v10242 = vpop.permute.xlu0 %10241
        %10243 = vrot.lane.b32.xlu0 %v9365, 12
        %v10244 = vpop.permute.xlu0 %10243
        %10245 = vrot.lane.b32.xlu0 %v9366, 12
        %v10246 = vpop.permute.xlu0 %10245
        %10247 = vrot.lane.b32.xlu0 %v9367, 12
        %v10248 = vpop.permute.xlu0 %10247
        %10249 = vrot.lane.b32.xlu0 %v9368, 12
        %v10250 = vpop.permute.xlu0 %10249
        %10251 = vrot.lane.b32.xlu0 %v9369, 12
        %v10252 = vpop.permute.xlu0 %10251
        %10253 = vrot.lane.b32.xlu0 %v9370, 12
        %v10254 = vpop.permute.xlu0 %10253
        %10255 = vrot.lane.b32.xlu0 %v9371, 12
        %v10256 = vpop.permute.xlu0 %10255
        %10257 = vrot.lane.b32.xlu0 %v9372, 12
        %v10258 = vpop.permute.xlu0 %10257
        %10259 = vrot.lane.b32.xlu0 %v9373, 12
        %v10260 = vpop.permute.xlu0 %10259
        %10261 = vrot.lane.b32.xlu0 %v9374, 12
        %v10262 = vpop.permute.xlu0 %10261
        %10263 = vrot.lane.b32.xlu0 %v9375, 12
        %v10264 = vpop.permute.xlu0 %10263
        %10265 = vrot.lane.b32.xlu0 %v9376, 12
        %v10266 = vpop.permute.xlu0 %10265
        %10267 = vrot.lane.b32.xlu0 %v9377, 12
        %v10268 = vpop.permute.xlu0 %10267
        %10269 = vrot.lane.b32.xlu0 %v9378, 12
        %v10270 = vpop.permute.xlu0 %10269
        %10271 = vrot.lane.b32.xlu0 %v9379, 12
        %v10272 = vpop.permute.xlu0 %10271
        %10273 = vrot.lane.b32.xlu0 %v9380, 12
        %v10274 = vpop.permute.xlu0 %10273
        %10275 = vrot.lane.b32.xlu0 %v9381, 12
        %v10276 = vpop.permute.xlu0 %10275
        %10277 = vrot.lane.b32.xlu0 %v9382, 12
        %v10278 = vpop.permute.xlu0 %10277
        %10279 = vrot.lane.b32.xlu0 %v9383, 12
        %v10280 = vpop.permute.xlu0 %10279
        %10281 = vrot.lane.b32.xlu0 %v9384, 12
        %v10282 = vpop.permute.xlu0 %10281
        %10283 = vrot.lane.b32.xlu0 %v9385, 12
        %v10284 = vpop.permute.xlu0 %10283
        %10285 = vrot.lane.b32.xlu0 %v9386, 12
        %v10286 = vpop.permute.xlu0 %10285
        %10287 = vrot.lane.b32.xlu0 %v9387, 12
        %v10288 = vpop.permute.xlu0 %10287
        %10289 = vrot.lane.b32.xlu0 %v9388, 12
        %v10290 = vpop.permute.xlu0 %10289
        %10291 = vrot.lane.b32.xlu0 %v9389, 12
        %v10292 = vpop.permute.xlu0 %10291
        %10293 = vrot.lane.b32.xlu0 %v9390, 12
        %v10294 = vpop.permute.xlu0 %10293
        %10295 = vrot.lane.b32.xlu0 %v9391, 12
        %v10296 = vpop.permute.xlu0 %10295
        %10297 = vrot.lane.b32.xlu0 %v9392, 12
        %v10298 = vpop.permute.xlu0 %10297
        %10363 = vrot.lane.b32.xlu0 %v10043, 16
        %v10364 = vpop.permute.xlu0 %10363
        %10365 = vrot.lane.b32.xlu0 %v10044, 16
        %v10366 = vpop.permute.xlu0 %10365
        %10367 = vrot.lane.b32.xlu0 %v10045, 16
        %v10368 = vpop.permute.xlu0 %10367
        %10369 = vrot.lane.b32.xlu0 %v10046, 16
        %v10370 = vpop.permute.xlu0 %10369
        %10371 = vrot.lane.b32.xlu0 %v10047, 16
        %v10372 = vpop.permute.xlu0 %10371
        %10373 = vrot.lane.b32.xlu0 %v10048, 16
        %v10374 = vpop.permute.xlu0 %10373
        %10375 = vrot.lane.b32.xlu0 %v10049, 16
        %v10376 = vpop.permute.xlu0 %10375
        %10377 = vrot.lane.b32.xlu0 %v10050, 16
        %v10378 = vpop.permute.xlu0 %10377
        %10379 = vrot.lane.b32.xlu0 %v10051, 16
        %v10380 = vpop.permute.xlu0 %10379
        %10381 = vrot.lane.b32.xlu0 %v10052, 16
        %v10382 = vpop.permute.xlu0 %10381
        %10383 = vrot.lane.b32.xlu0 %v10053, 16
        %v10384 = vpop.permute.xlu0 %10383
        %10385 = vrot.lane.b32.xlu0 %v10054, 16
        %v10386 = vpop.permute.xlu0 %10385
        %10387 = vrot.lane.b32.xlu0 %v10055, 16
        %v10388 = vpop.permute.xlu0 %10387
        %10389 = vrot.lane.b32.xlu0 %v10056, 16
        %v10390 = vpop.permute.xlu0 %10389
        %10391 = vrot.lane.b32.xlu0 %v10057, 16
        %v10392 = vpop.permute.xlu0 %10391
        %10393 = vrot.lane.b32.xlu0 %v10058, 16
        %v10394 = vpop.permute.xlu0 %10393
        %10395 = vrot.lane.b32.xlu0 %v10059, 16
        %v10396 = vpop.permute.xlu0 %10395
        %10397 = vrot.lane.b32.xlu0 %v10060, 16
        %v10398 = vpop.permute.xlu0 %10397
        %10399 = vrot.lane.b32.xlu0 %v10061, 16
        %v10400 = vpop.permute.xlu0 %10399
        %10401 = vrot.lane.b32.xlu0 %v10062, 16
        %v10402 = vpop.permute.xlu0 %10401
        %10403 = vrot.lane.b32.xlu0 %v10063, 16
        %v10404 = vpop.permute.xlu0 %10403
        %10405 = vrot.lane.b32.xlu0 %v10064, 16
        %v10406 = vpop.permute.xlu0 %10405
        %10407 = vrot.lane.b32.xlu0 %v10065, 16
        %v10408 = vpop.permute.xlu0 %10407
        %10409 = vrot.lane.b32.xlu0 %v10066, 16
        %v10410 = vpop.permute.xlu0 %10409
        %10411 = vrot.lane.b32.xlu0 %v10067, 16
        %v10412 = vpop.permute.xlu0 %10411
        %10413 = vrot.lane.b32.xlu0 %v10068, 16
        %v10414 = vpop.permute.xlu0 %10413
        %10415 = vrot.lane.b32.xlu0 %v10069, 16
        %v10416 = vpop.permute.xlu0 %10415
        %10417 = vrot.lane.b32.xlu0 %v10070, 16
        %v10418 = vpop.permute.xlu0 %10417
        %10419 = vrot.lane.b32.xlu0 %v10071, 16
        %v10420 = vpop.permute.xlu0 %10419
        %10421 = vrot.lane.b32.xlu0 %v10072, 16
        %v10422 = vpop.permute.xlu0 %10421
        %10423 = vrot.lane.b32.xlu0 %v10073, 16
        %v10424 = vpop.permute.xlu0 %10423
        %10425 = vrot.lane.b32.xlu0 %v10074, 16
        %v10426 = vpop.permute.xlu0 %10425
        %v10459 = vsel %vm560, %v774, %v10108
        %v10460 = vsel %vm560, %v775, %v10110
        %v10461 = vsel %vm560, %v776, %v10112
        %v10462 = vsel %vm560, %v777, %v10114
        %v10463 = vsel %vm560, %v778, %v10116
        %v10464 = vsel %vm560, %v779, %v10118
        %v10465 = vsel %vm560, %v780, %v10120
        %v10466 = vsel %vm560, %v781, %v10122
        %v10467 = vsel %vm560, %v782, %v10124
        %v10468 = vsel %vm560, %v783, %v10126
        %v10469 = vsel %vm560, %v784, %v10128
        %v10470 = vsel %vm560, %v785, %v10130
        %v10471 = vsel %vm560, %v786, %v10132
        %v10472 = vsel %vm560, %v787, %v10134
        %v10473 = vsel %vm560, %v788, %v10136
        %v10474 = vsel %vm560, %v789, %v10138
        %v10475 = vsel %vm560, %v790, %v10140
        %v10476 = vsel %vm560, %v791, %v10142
        %v10477 = vsel %vm560, %v792, %v10144
        %v10478 = vsel %vm560, %v793, %v10146
        %v10479 = vsel %vm560, %v794, %v10148
        %v10480 = vsel %vm560, %v795, %v10150
        %v10481 = vsel %vm560, %v796, %v10152
        %v10482 = vsel %vm560, %v797, %v10154
        %v10483 = vsel %vm560, %v798, %v10156
        %v10484 = vsel %vm560, %v799, %v10158
        %v10485 = vsel %vm560, %v800, %v10160
        %v10486 = vsel %vm560, %v801, %v10162
        %v10487 = vsel %vm560, %v802, %v10164
        %v10488 = vsel %vm560, %v803, %v10166
        %v10489 = vsel %vm560, %v804, %v10168
        %v10490 = vsel %vm560, %v805, %v10170
        %vm10491 = vcmask 97280
        %v10492 = vsel %vm10491, %v10459, %v10236
        %v10493 = vsel %vm10491, %v10460, %v10238
        %v10494 = vsel %vm10491, %v10461, %v10240
        %v10495 = vsel %vm10491, %v10462, %v10242
        %v10496 = vsel %vm10491, %v10463, %v10244
        %v10497 = vsel %vm10491, %v10464, %v10246
        %v10498 = vsel %vm10491, %v10465, %v10248
        %v10499 = vsel %vm10491, %v10466, %v10250
        %v10500 = vsel %vm10491, %v10467, %v10252
        %v10501 = vsel %vm10491, %v10468, %v10254
        %v10502 = vsel %vm10491, %v10469, %v10256
        %v10503 = vsel %vm10491, %v10470, %v10258
        %v10504 = vsel %vm10491, %v10471, %v10260
        %v10505 = vsel %vm10491, %v10472, %v10262
        %v10506 = vsel %vm10491, %v10473, %v10264
        %v10507 = vsel %vm10491, %v10474, %v10266
        %v10508 = vsel %vm10491, %v10475, %v10268
        %v10509 = vsel %vm10491, %v10476, %v10270
        %v10510 = vsel %vm10491, %v10477, %v10272
        %v10511 = vsel %vm10491, %v10478, %v10274
        %v10512 = vsel %vm10491, %v10479, %v10276
        %v10513 = vsel %vm10491, %v10480, %v10278
        %v10514 = vsel %vm10491, %v10481, %v10280
        %v10515 = vsel %vm10491, %v10482, %v10282
        %v10516 = vsel %vm10491, %v10483, %v10284
        %v10517 = vsel %vm10491, %v10484, %v10286
        %v10518 = vsel %vm10491, %v10485, %v10288
        %v10519 = vsel %vm10491, %v10486, %v10290
        %v10520 = vsel %vm10491, %v10487, %v10292
        %v10521 = vsel %vm10491, %v10488, %v10294
        %v10522 = vsel %vm10491, %v10489, %v10296
        %v10523 = vsel %vm10491, %v10490, %v10298
        %vm10524 = vcmask 130048
        %v10525 = vsel %vm10524, %v10492, %v10364
        %v10526 = vsel %vm10524, %v10493, %v10366
        %v10527 = vsel %vm10524, %v10494, %v10368
        %v10528 = vsel %vm10524, %v10495, %v10370
        %v10529 = vsel %vm10524, %v10496, %v10372
        %v10530 = vsel %vm10524, %v10497, %v10374
        %v10531 = vsel %vm10524, %v10498, %v10376
        %v10532 = vsel %vm10524, %v10499, %v10378
        %v10533 = vsel %vm10524, %v10500, %v10380
        %v10534 = vsel %vm10524, %v10501, %v10382
        %v10535 = vsel %vm10524, %v10502, %v10384
        %v10536 = vsel %vm10524, %v10503, %v10386
        %v10537 = vsel %vm10524, %v10504, %v10388
        %v10538 = vsel %vm10524, %v10505, %v10390
        %v10539 = vsel %vm10524, %v10506, %v10392
        %v10540 = vsel %vm10524, %v10507, %v10394
        %v10541 = vsel %vm10524, %v10508, %v10396
        %v10542 = vsel %vm10524, %v10509, %v10398
        %v10543 = vsel %vm10524, %v10510, %v10400
        %v10544 = vsel %vm10524, %v10511, %v10402
        %v10545 = vsel %vm10524, %v10512, %v10404
        %v10546 = vsel %vm10524, %v10513, %v10406
        %v10547 = vsel %vm10524, %v10514, %v10408
        %v10548 = vsel %vm10524, %v10515, %v10410
        %v10549 = vsel %vm10524, %v10516, %v10412
        %v10550 = vsel %vm10524, %v10517, %v10414
        %v10551 = vsel %vm10524, %v10518, %v10416
        %v10552 = vsel %vm10524, %v10519, %v10418
        %v10553 = vsel %vm10524, %v10520, %v10420
        %v10554 = vsel %vm10524, %v10521, %v10422
        %v10555 = vsel %vm10524, %v10522, %v10424
        %v10556 = vsel %vm10524, %v10523, %v10426
        %vm10557 = vcmask 162816
        %10558 = vst.msk [vmem:[%s433] sm:$0xff] %vm10557, %v10525
        %10559 = vst.msk [vmem:[%s433 + $0x8] sm:$0xff] %vm10557, %v10526
        %10560 = vst.msk [vmem:[%s433 + $0x10] sm:$0xff] %vm10557, %v10527
        %10561 = vst.msk [vmem:[%s433 + $0x18] sm:$0xff] %vm10557, %v10528
        %10562 = vst.msk [vmem:[%s433 + $0x20] sm:$0xff] %vm10557, %v10529
        %10563 = vst.msk [vmem:[%s433 + $0x28] sm:$0xff] %vm10557, %v10530
        %10564 = vst.msk [vmem:[%s433 + $0x30] sm:$0xff] %vm10557, %v10531
        %10565 = vst.msk [vmem:[%s433 + $0x38] sm:$0xff] %vm10557, %v10532
        %10566 = vst.msk [vmem:[%s433 + $0x40] sm:$0xff] %vm10557, %v10533
        %10567 = vst.msk [vmem:[%s433 + $0x48] sm:$0xff] %vm10557, %v10534
        %10568 = vst.msk [vmem:[%s433 + $0x50] sm:$0xff] %vm10557, %v10535
        %10569 = vst.msk [vmem:[%s433 + $0x58] sm:$0xff] %vm10557, %v10536
        %10570 = vst.msk [vmem:[%s433 + $0x60] sm:$0xff] %vm10557, %v10537
        %10571 = vst.msk [vmem:[%s433 + $0x68] sm:$0xff] %vm10557, %v10538
        %10572 = vst.msk [vmem:[%s433 + $0x70] sm:$0xff] %vm10557, %v10539
        %10573 = vst.msk [vmem:[%s433 + $0x78] sm:$0xff] %vm10557, %v10540
        %10574 = vst.msk [vmem:[%s433 + $0x80] sm:$0xff] %vm10557, %v10541
        %10575 = vst.msk [vmem:[%s433 + $0x88] sm:$0xff] %vm10557, %v10542
        %10576 = vst.msk [vmem:[%s433 + $0x90] sm:$0xff] %vm10557, %v10543
        %10577 = vst.msk [vmem:[%s433 + $0x98] sm:$0xff] %vm10557, %v10544
        %10578 = vst.msk [vmem:[%s433 + $0xa0] sm:$0xff] %vm10557, %v10545
        %10579 = vst.msk [vmem:[%s433 + $0xa8] sm:$0xff] %vm10557, %v10546
        %10580 = vst.msk [vmem:[%s433 + $0xb0] sm:$0xff] %vm10557, %v10547
        %10581 = vst.msk [vmem:[%s433 + $0xb8] sm:$0xff] %vm10557, %v10548
        %10582 = vst.msk [vmem:[%s433 + $0xc0] sm:$0xff] %vm10557, %v10549
        %10583 = vst.msk [vmem:[%s433 + $0xc8] sm:$0xff] %vm10557, %v10550
        %10584 = vst.msk [vmem:[%s433 + $0xd0] sm:$0xff] %vm10557, %v10551
        %10585 = vst.msk [vmem:[%s433 + $0xd8] sm:$0xff] %vm10557, %v10552
        %10586 = vst.msk [vmem:[%s433 + $0xe0] sm:$0xff] %vm10557, %v10553
        %10587 = vst.msk [vmem:[%s433 + $0xe8] sm:$0xff] %vm10557, %v10554
        %10588 = vst.msk [vmem:[%s433 + $0xf0] sm:$0xff] %vm10557, %v10555
        %10589 = vst.msk [vmem:[%s433 + $0xf8] sm:$0xff] %vm10557, %v10556
        %s10590 = sand.u32 %s313, 1
        %s10591 = scalar_lea.sflag [#allocation3], %s10590
        %s10592 = sand.u32 %s313, 1
        %s10593 = smul.addr %s10592, 256
        %s10594 = scalar_lea.vmem [#allocation2], %s10593
        // Predicated region
        $region73: #{inception_forward.1} parent=71 // pred_check
          %p10595 = pneg %p323
        $region74: #{inception_forward.1} parent=71 // pred_check_branch
          %10597 = sbr.rel (%p10595) target = $region76
        $region75: #{inception_forward.1} parent=71 // pred_region
          %s10599 = ssub.s32 4096, 4096
          %10600 = vsyncadd %s10591, %s10599
          %s10601 = smul.addr %s27, 32
          %s10602 = smul.addr %s10601, 128
          %s10603 = scalar_lea.hbm %s13, %s10602
          %s10604 = sshll.u32 %s10594, 4
          %s10605 = int_to_ptr.vmem [resolvable:$true] %s10604
          %10610 = dma.vmem_to_hbm [thread:$0]  %s10605, 4096, %s10603, %s10591, 128, 128, 8
        $region76: #{inception_forward.1} parent=71 // pred_fallthru
          _
      $region72: #{inception_forward.1} parent=5 // pred_fallthru
        _
      %p10611 = scmp.le.s32.totalorder 2, %s22
      // Predicated region
      $region77: #{inception_forward.1} parent=5 // pred_check
        %p10612 = pneg %p10611
      $region78: #{inception_forward.1} parent=5 // pred_check_branch
        %10614 = sbr.rel (%p10612) target = $region80
      $region79: #{inception_forward.1} parent=5 // pred_region
        %s10615 = ssub.s32 %s22, 2
        // Predicated region
        $region81: #{inception_forward.1} parent=79 // pred_check
          %p10616 = pneg %p329
        $region82: #{inception_forward.1} parent=79 // pred_check_branch
          %10618 = sbr.rel (%p10616) target = $region84
        $region83: #{inception_forward.1} parent=79 // pred_region
          %s10619 = sand.u32 %s314, 1
          %s10620 = scalar_lea.sflag [#allocation3], %s10619
          %s10621 = sand.u32 %s314, 1
          %s10622 = smul.addr %s10621, 256
          %s10623 = scalar_lea.vmem [#allocation2], %s10622
          %10624 = dma.done %s10620, 4096
        $region84: #{inception_forward.1} parent=79 // pred_fallthru
          _
      $region80: #{inception_forward.1} parent=5 // pred_fallthru
        _
    $region6: #{inception_forward.1} parent=1 // loop_footer
      %s26 = sadd.s32 1, %s22
    $region7: #{inception_forward.1} parent=1 // loop_footer_branch
      %21 = sbr.rel target = $region3
    $region8: #{inception_forward.1} parent=1 // loop_exit
      _
    %10625 = vsyncpa [#allocation3], 1
    %s10626 = scalar_lea.sflag [#allocation3], 1
    %10627 = vsyncpa %s10626, 1

</llo_original>
